<compile_context>
chip_gen: v6e
topology: v6e:2x2x1
jax: 0.10.0
libtpu: 0.0.40
codegen_flags: <defaults>
</compile_context>

<pallas_src>
import math

import jax
import jax.numpy as jnp
from jax.experimental import pallas as pl
from jax.experimental.pallas import tpu as pltpu


_ROW_CHUNK = 8   # conv output rows per accumulator chunk (bounds live f32 vregs)


def _round_up(v, m):
    return (v + m - 1) // m * m


def residual_block_kernel(x_ref, w1_ref, w2_ref, wd_ref, b1_ref, bb_ref,
                          o_ref, h1_ref):
    """One (batch image n, row-tile t) grid step of the fused residual block.

    x_ref : (1, H+4, W+2, Cin_p)    spatially pre-padded NHWC image (resident
                                    across all row-tiles of this image)
    w1_ref: (3, 3*Cin_p, Cout_p)    conv1 weights, BN1 scale folded, dx merged
    w2_ref: (3, 3*Cout_p, Cout_p)   conv2 weights, BN2 scale folded, dx merged
    wd_ref: (Cin_p, Cout_p)         1x1 skip weights with BN_d scale folded
    b1_ref: (1, Cout_p)             BN1 bias (f32)
    bb_ref: (1, Cout_p)             BN2 bias + BN_d bias, combined (f32)
    o_ref : (1, TH, W, Cout_p)      output row-tile (lane-dense, Cout_p % 128 == 0)
    h1_ref: (TH+2, W+2, Cout_p)     scratch: conv1 activations + 1-px zero halo
    """
    _, _, Wp2, Cin_p = x_ref.shape
    Cout_p = o_ref.shape[-1]
    TH = o_ref.shape[1]
    W = Wp2 - 2
    RH = TH + 2                      # conv1 rows incl. one halo row each side

    t = pl.program_id(1)
    nt = pl.num_programs(1)
    row0 = pl.multiple_of(t * TH, TH)   # tile top, in padded-x row coordinates

    # Column halo of the conv1 activations (conv2's SAME zero padding).
    h1_ref[:, 0:1, :] = jnp.zeros((RH, 1, Cout_p), h1_ref.dtype)
    h1_ref[:, W + 1:W + 2, :] = jnp.zeros((RH, 1, Cout_p), h1_ref.dtype)

    # ---- conv1 (3x3, pad 1) + BN1 bias + ReLU over RH candidate rows ----
    # Row-chunked; per chunk 3 MXU dots with K = 3*Cin_p (dx taps merged).
    start = 0
    while start < RH:
        rc = min(_ROW_CHUNK, RH - start)
        acc = None
        for dy in range(3):
            parts = [x_ref[:, pl.ds(row0 + start + dy, rc), dx:dx + W, :]
                     for dx in range(3)]
            lhs = jnp.concatenate(parts, axis=-1).reshape(rc * W, 3 * Cin_p)
            d = jnp.dot(lhs, w1_ref[dy], preferred_element_type=jnp.float32)
            acc = d if acc is None else acc + d
        h1 = jnp.maximum(acc + b1_ref[...], 0.0)           # BN1 bias + ReLU
        h1_ref[start:start + rc, 1:W + 1, :] = (
            h1.reshape(rc, W, Cout_p).astype(h1_ref.dtype))
        start += rc

    @pl.when(t == 0)
    def _():                         # h1 row "-1" is conv2 zero padding
        h1_ref[0:1, :, :] = jnp.zeros((1, Wp2, Cout_p), h1_ref.dtype)

    @pl.when(t == nt - 1)
    def _():                         # h1 row "H" is conv2 zero padding
        h1_ref[RH - 1:RH, :, :] = jnp.zeros((1, Wp2, Cout_p), h1_ref.dtype)

    # ---- 1x1 skip (accumulated first) + conv2 (3x3) + biases + final ReLU ----
    start = 0
    while start < TH:
        oc = min(_ROW_CHUNK, TH - start)
        xc = x_ref[:, pl.ds(row0 + 2 + start, oc), 1:W + 1, :]
        acc = jnp.dot(xc.reshape(oc * W, Cin_p), wd_ref[...],
                      preferred_element_type=jnp.float32)
        for dy in range(3):
            parts = [h1_ref[start + dy:start + dy + oc, dx:dx + W, :]
                     for dx in range(3)]
            lhs = jnp.concatenate(parts, axis=-1).reshape(oc * W, 3 * Cout_p)
            acc = acc + jnp.dot(lhs, w2_ref[dy],
                                preferred_element_type=jnp.float32)
        out = jnp.maximum(acc + bb_ref[...], 0.0)          # biases + final ReLU
        o_ref[:, start:start + oc, :, :] = (
            out.reshape(1, oc, W, Cout_p).astype(o_ref.dtype))
        start += oc


def residual_block_nhwc(x, params, *, tile_h=16, compute_dtype=jnp.bfloat16,
                        vmem_limit_mb=64, slice_output=True):
    """Fused ResidualBlock forward, NHWC in / NHWC out (stride=1, Cin != Cout).

    compute_dtype feeds the MXU (accumulation is always f32); bf16 is the
    default.  slice_output=False returns the channel-padded (..., Cout_p)
    tensor so the next kernel in a padded-channel pipeline can consume it
    without an extra HBM slice pass.
    """
    N, H, W, Cin = x.shape
    Cout = params["w1"].shape[-1]
    TH = min(tile_h, H)
    assert H % TH == 0, "H must be divisible by the row-tile size"

    Cin_p = _round_up(Cin, 128)
    Cout_p = _round_up(Cout, 128)
    f32 = jnp.float32

    # Fold BN scales into conv weights; combine the two output-side biases.
    w1f = params["w1"].astype(f32) * params["s1"].reshape(1, 1, 1, Cout)
    w2f = params["w2"].astype(f32) * params["s2"].reshape(1, 1, 1, Cout)
    wdf = params["wd"].astype(f32) * params["sd"].reshape(1, Cout)
    b1 = params["b1"].reshape(1, Cout).astype(f32)
    bb = (params["b2"] + params["bd"]).reshape(1, Cout).astype(f32)

    # Channel-pad to the 128-lane width, cast to compute dtype, and merge the
    # 3 dx taps into the contraction dim (K = 3*C fills the wide MXU).
    w1p = jnp.zeros((3, 3, Cin_p, Cout_p), compute_dtype
                    ).at[:, :, :Cin, :Cout].set(w1f.astype(compute_dtype))
    w2p = jnp.zeros((3, 3, Cout_p, Cout_p), compute_dtype
                    ).at[:, :, :Cout, :Cout].set(w2f.astype(compute_dtype))
    w1m = w1p.reshape(3, 3 * Cin_p, Cout_p)
    w2m = w2p.reshape(3, 3 * Cout_p, Cout_p)
    wdp = jnp.zeros((Cin_p, Cout_p), compute_dtype
                    ).at[:Cin, :Cout].set(wdf.astype(compute_dtype))
    b1p = jnp.zeros((1, Cout_p), f32).at[:, :Cout].set(b1)
    bbp = jnp.zeros((1, Cout_p), f32).at[:, :Cout].set(bb)

    # Spatial halo: 2 rows top/bottom (fused 3x3->3x3 chain), 1 column l/r.
    xp = jnp.pad(x.astype(compute_dtype),
                 ((0, 0), (2, 2), (1, 1), (0, Cin_p - Cin)))

    grid = (N, H // TH)
    itemsize = jnp.dtype(compute_dtype).itemsize
    cost = pl.CostEstimate(
        flops=2 * N * H * W * (9 * Cin_p * Cout_p + 9 * Cout_p * Cout_p
                               + Cin_p * Cout_p),
        transcendentals=0,
        bytes_accessed=(xp.size + w1m.size + w2m.size + wdp.size) * itemsize
                       + N * H * W * Cout_p * itemsize)

    out = pl.pallas_call(
        residual_block_kernel,
        out_shape=jax.ShapeDtypeStruct((N, H, W, Cout_p), compute_dtype),
        grid_spec=pltpu.PrefetchScalarGridSpec(
            num_scalar_prefetch=0,
            grid=grid,
            in_specs=[
                pl.BlockSpec((1, H + 4, W + 2, Cin_p), lambda n, t: (n, 0, 0, 0)),
                pl.BlockSpec((3, 3 * Cin_p, Cout_p), lambda n, t: (0, 0, 0)),
                pl.BlockSpec((3, 3 * Cout_p, Cout_p), lambda n, t: (0, 0, 0)),
                pl.BlockSpec((Cin_p, Cout_p), lambda n, t: (0, 0)),
                pl.BlockSpec((1, Cout_p), lambda n, t: (0, 0)),
                pl.BlockSpec((1, Cout_p), lambda n, t: (0, 0)),
            ],
            out_specs=pl.BlockSpec((1, TH, W, Cout_p), lambda n, t: (n, t, 0, 0)),
            scratch_shapes=[pltpu.VMEM((TH + 2, W + 2, Cout_p), compute_dtype)],
        ),
        compiler_params=pltpu.CompilerParams(
            # n stays "parallel" (v7x megacore splits on images); t is a plain
            # sequential loop on single-TensorCore chips.
            dimension_semantics=("parallel", "arbitrary"),
            vmem_limit_bytes=vmem_limit_mb * 1024 * 1024),
        cost_estimate=cost,
    )(xp, w1m, w2m, wdp, b1p, bbp)

    if slice_output:
        # TODO(synk): in a padded-channel NHWC pipeline, fuse this slice into
        #             the consumer instead (slice_output=False).
        return out[..., :Cout]
    return out


def residual_block_nchw(x_nchw, params, *, tile_h=16,
                        compute_dtype=jnp.bfloat16, vmem_limit_mb=64):
    """Parity shim for the PyTorch NCHW interface.  In an NHWC end-to-end model
    these boundary transposes disappear; avoid this path in a hot loop."""
    x = jnp.transpose(x_nchw, (0, 2, 3, 1))
    y = residual_block_nhwc(x, params, tile_h=tile_h,
                            compute_dtype=compute_dtype,
                            vmem_limit_mb=vmem_limit_mb)
    return jnp.transpose(y, (0, 3, 1, 2))


def _fold_bn(gamma, beta, mean, var, eps=1e-5):
    scale = gamma / jnp.sqrt(var + eps)
    bias = beta - mean * scale
    return scale.astype(jnp.float32), bias.astype(jnp.float32)


def make_params(key, cin, cout, k=3):
    ks = jax.random.split(key, 15)

    def bn(k0, k1, k2, k3, c):
        gamma = jax.random.uniform(k0, (c,), jnp.float32, 0.5, 1.5)
        beta = 0.1 * jax.random.normal(k1, (c,), jnp.float32)
        mean = 0.1 * jax.random.normal(k2, (c,), jnp.float32)
        var = jax.random.uniform(k3, (c,), jnp.float32, 0.5, 1.5)
        return _fold_bn(gamma, beta, mean, var)

    w1 = jax.random.normal(ks[0], (k, k, cin, cout), jnp.float32) * math.sqrt(2.0 / (k * k * cin))
    w2 = jax.random.normal(ks[1], (k, k, cout, cout), jnp.float32) * math.sqrt(2.0 / (k * k * cout))
    wd = jax.random.normal(ks[2], (cin, cout), jnp.float32) * math.sqrt(2.0 / cin)
    s1, b1 = bn(ks[3], ks[4], ks[5], ks[6], cout)
    s2, b2 = bn(ks[7], ks[8], ks[9], ks[10], cout)
    sd, bd = bn(ks[11], ks[12], ks[13], ks[14], cout)
    return dict(w1=w1, s1=s1, b1=b1, w2=w2, s2=s2, b2=b2, wd=wd, sd=sd, bd=bd)


def reference_nhwc(x, params):
    """Pure-JAX reference (lax.conv, highest precision) for correctness check."""
    def conv(v, w):
        return jax.lax.conv_general_dilated(
            v, w, window_strides=(1, 1), padding="SAME",
            dimension_numbers=("NHWC", "HWIO", "NHWC"),
            precision=jax.lax.Precision.HIGHEST)

    h = conv(x, params["w1"]) * params["s1"] + params["b1"]
    h = jnp.maximum(h, 0.0)
    h = conv(h, params["w2"]) * params["s2"] + params["b2"]
    cin, cout = params["wd"].shape
    skip = conv(x, params["wd"].reshape(1, 1, cin, cout)) * params["sd"] + params["bd"]
    return jnp.maximum(h + skip, 0.0)


if __name__ == "__main__":
    N, H, W, Cin, Cout = 2, 16, 16, 4, 8   # Cin != Cout -> downsample branch on

    key = jax.random.PRNGKey(0)
    kx, kp = jax.random.split(key)
    x = jax.random.normal(kx, (N, H, W, Cin), jnp.float32)   # NHWC end-to-end
    params = make_params(kp, Cin, Cout)
    ref = reference_nhwc(x, params)

    # f32 compute path: tight correctness check of the fused math.
    out_f32 = jax.block_until_ready(
        residual_block_nhwc(x, params, compute_dtype=jnp.float32))
    assert out_f32.shape == (N, H, W, Cout)
    err_f32 = jnp.max(jnp.abs(out_f32 - ref))
    assert jnp.allclose(out_f32, ref, atol=1e-4, rtol=1e-4), f"f32 max err {err_f32}"

    # bf16 default path (f32 accumulation): loose tolerance for bf16 rounding.
    out_bf16 = jax.block_until_ready(residual_block_nhwc(x, params))
    assert out_bf16.shape == (N, H, W, Cout)
    assert out_bf16.dtype == jnp.bfloat16
    err_bf16 = jnp.max(jnp.abs(out_bf16.astype(jnp.float32) - ref))
    assert jnp.allclose(out_bf16.astype(jnp.float32), ref,
                        atol=2e-1, rtol=5e-2), f"bf16 max err {err_bf16}"

    # PyTorch NCHW-layout parity (same kernel, boundary transposes only).
    x_nchw = jnp.transpose(x, (0, 3, 1, 2))
    out_nchw = jax.block_until_ready(
        residual_block_nchw(x_nchw, params, compute_dtype=jnp.float32))
    assert jnp.allclose(out_nchw, jnp.transpose(ref, (0, 3, 1, 2)),
                        atol=1e-4, rtol=1e-4)

    print("KERNEL_OK")
</pallas_src>

<mosaic_0001>
module attributes {stable_mosaic.version = 11 : i64} {
  func.func @residual_block_kernel(%arg0: i32, %arg1: i32, %arg2: memref<1x20x18x128xf32, #tpu.memory_space<vmem>>, %arg3: memref<3x384x128xf32, #tpu.memory_space<vmem>>, %arg4: memref<3x384x128xf32, #tpu.memory_space<vmem>>, %arg5: memref<128x128xf32, #tpu.memory_space<vmem>>, %arg6: memref<1x128xf32, #tpu.memory_space<vmem>>, %arg7: memref<1x128xf32, #tpu.memory_space<vmem>>, %arg8: memref<1x16x16x128xf32, #tpu.memory_space<vmem>>, %arg9: memref<18x18x128xf32, #tpu.memory_space<vmem>>) attributes {dimension_semantics = [#tpu.dimension_semantics<parallel>, #tpu.dimension_semantics<arbitrary>], iteration_bounds = array<i64: 2, 1>, scalar_prefetch = 0 : i64, scratch_operands = 1 : i64, tpu.core_type = #tpu.core_type<tc>, window_params = [{transform_indices = @transform_0, window_bounds = array<i64: 1, 20, 18, 128>}, {pipeline_mode = #tpu.pipeline_mode<synchronous>, transform_indices = @transform_1, window_bounds = array<i64: 3, 384, 128>}, {pipeline_mode = #tpu.pipeline_mode<synchronous>, transform_indices = @transform_2, window_bounds = array<i64: 3, 384, 128>}, {pipeline_mode = #tpu.pipeline_mode<synchronous>, transform_indices = @transform_3, window_bounds = array<i64: 128, 128>}, {pipeline_mode = #tpu.pipeline_mode<synchronous>, transform_indices = @transform_4, window_bounds = array<i64: 1, 128>}, {pipeline_mode = #tpu.pipeline_mode<synchronous>, transform_indices = @transform_5, window_bounds = array<i64: 1, 128>}, {transform_indices = @transform_6, window_bounds = array<i64: 1, 16, 16, 128>}]} {
    %c16_i32 = arith.constant 16 : i32
    %0 = arith.muli %arg1, %c16_i32 : i32
    %1 = tpu.assume_multiple %0, 16 : i32
    %cst = arith.constant 0.000000e+00 : f32
    %2 = vector.broadcast %cst : f32 to vector<18x1x128xf32>
    %c0 = arith.constant 0 : index
    %c0_0 = arith.constant 0 : index
    %c0_1 = arith.constant 0 : index
    %3 = vector.load %arg9[%c0, %c0_0, %c0_1] : memref<18x18x128xf32, #tpu.memory_space<vmem>>, vector<18x1x128xf32>
    tpu.vector_store %arg9[%c0, %c0_0, %c0_1], %2 {strides = array<i32>} : memref<18x18x128xf32, #tpu.memory_space<vmem>>, vector<18x1x128xf32>,
    %cst_2 = arith.constant 0.000000e+00 : f32
    %4 = vector.broadcast %cst_2 : f32 to vector<18x1x128xf32>
    %c0_3 = arith.constant 0 : index
    %c17 = arith.constant 17 : index
    %c0_4 = arith.constant 0 : index
    %5 = vector.load %arg9[%c0_3, %c17, %c0_4] : memref<18x18x128xf32, #tpu.memory_space<vmem>>, vector<18x1x128xf32>
    tpu.vector_store %arg9[%c0_3, %c17, %c0_4], %4 {strides = array<i32>} : memref<18x18x128xf32, #tpu.memory_space<vmem>>, vector<18x1x128xf32>,
    %c0_i32 = arith.constant 0 : i32
    %6 = arith.addi %1, %c0_i32 : i32
    %c0_i32_5 = arith.constant 0 : i32
    %7 = arith.addi %6, %c0_i32_5 : i32
    %c0_6 = arith.constant 0 : index
    %8 = arith.index_cast %7 : i32 to index
    %c0_7 = arith.constant 0 : index
    %c0_8 = arith.constant 0 : index
    %9 = vector.load %arg2[%c0_6, %8, %c0_7, %c0_8] : memref<1x20x18x128xf32, #tpu.memory_space<vmem>>, vector<1x8x16x128xf32>
    %c0_i32_9 = arith.constant 0 : i32
    %10 = arith.addi %1, %c0_i32_9 : i32
    %c0_i32_10 = arith.constant 0 : i32
    %11 = arith.addi %10, %c0_i32_10 : i32
    %c0_11 = arith.constant 0 : index
    %12 = arith.index_cast %11 : i32 to index
    %c1 = arith.constant 1 : index
    %c0_12 = arith.constant 0 : index
    %13 = vector.load %arg2[%c0_11, %12, %c1, %c0_12] : memref<1x20x18x128xf32, #tpu.memory_space<vmem>>, vector<1x8x16x128xf32>
    %c0_i32_13 = arith.constant 0 : i32
    %14 = arith.addi %1, %c0_i32_13 : i32
    %c0_i32_14 = arith.constant 0 : i32
    %15 = arith.addi %14, %c0_i32_14 : i32
    %c0_15 = arith.constant 0 : index
    %16 = arith.index_cast %15 : i32 to index
    %c2 = arith.constant 2 : index
    %c0_16 = arith.constant 0 : index
    %17 = vector.load %arg2[%c0_15, %16, %c2, %c0_16] : memref<1x20x18x128xf32, #tpu.memory_space<vmem>>, vector<1x8x16x128xf32>
    %18 = tpu.concatenate %9, %13, %17 in 3 : vector<1x8x16x128xf32>, vector<1x8x16x128xf32>, vector<1x8x16x128xf32> -> vector<1x8x16x384xf32>
    %19 = vector.shape_cast %18 : vector<1x8x16x384xf32> to vector<128x384xf32>
    %c0_17 = arith.constant 0 : index
    %c0_18 = arith.constant 0 : index
    %c0_19 = arith.constant 0 : index
    %20 = vector.load %arg3[%c0_17, %c0_18, %c0_19] : memref<3x384x128xf32, #tpu.memory_space<vmem>>, vector<1x384x128xf32>
    %21 = vector.shape_cast %20 : vector<1x384x128xf32> to vector<384x128xf32>
    %cst_20 = arith.constant dense<0.000000e+00> : vector<128x128xf32>
    %22 = tpu.matmul %19, %21, %cst_20 {dimension_numbers = #tpu.dot_dimension_numbers<[1], [0], [0], [1], [0, 0, 1, 1], [], []>} : vector<128x384xf32>, vector<384x128xf32>, vector<128x128xf32> -> vector<128x128xf32>
    %c0_i32_21 = arith.constant 0 : i32
    %23 = arith.addi %1, %c0_i32_21 : i32
    %c1_i32 = arith.constant 1 : i32
    %24 = arith.addi %23, %c1_i32 : i32
    %c0_22 = arith.constant 0 : index
    %25 = arith.index_cast %24 : i32 to index
    %c0_23 = arith.constant 0 : index
    %c0_24 = arith.constant 0 : index
    %26 = vector.load %arg2[%c0_22, %25, %c0_23, %c0_24] : memref<1x20x18x128xf32, #tpu.memory_space<vmem>>, vector<1x8x16x128xf32>
    %c0_i32_25 = arith.constant 0 : i32
    %27 = arith.addi %1, %c0_i32_25 : i32
    %c1_i32_26 = arith.constant 1 : i32
    %28 = arith.addi %27, %c1_i32_26 : i32
    %c0_27 = arith.constant 0 : index
    %29 = arith.index_cast %28 : i32 to index
    %c1_28 = arith.constant 1 : index
    %c0_29 = arith.constant 0 : index
    %30 = vector.load %arg2[%c0_27, %29, %c1_28, %c0_29] : memref<1x20x18x128xf32, #tpu.memory_space<vmem>>, vector<1x8x16x128xf32>
    %c0_i32_30 = arith.constant 0 : i32
    %31 = arith.addi %1, %c0_i32_30 : i32
    %c1_i32_31 = arith.constant 1 : i32
    %32 = arith.addi %31, %c1_i32_31 : i32
    %c0_32 = arith.constant 0 : index
    %33 = arith.index_cast %32 : i32 to index
    %c2_33 = arith.constant 2 : index
    %c0_34 = arith.constant 0 : index
    %34 = vector.load %arg2[%c0_32, %33, %c2_33, %c0_34] : memref<1x20x18x128xf32, #tpu.memory_space<vmem>>, vector<1x8x16x128xf32>
    %35 = tpu.concatenate %26, %30, %34 in 3 : vector<1x8x16x128xf32>, vector<1x8x16x128xf32>, vector<1x8x16x128xf32> -> vector<1x8x16x384xf32>
    %36 = vector.shape_cast %35 : vector<1x8x16x384xf32> to vector<128x384xf32>
    %c1_35 = arith.constant 1 : index
    %c0_36 = arith.constant 0 : index
    %c0_37 = arith.constant 0 : index
    %37 = vector.load %arg3[%c1_35, %c0_36, %c0_37] : memref<3x384x128xf32, #tpu.memory_space<vmem>>, vector<1x384x128xf32>
    %38 = vector.shape_cast %37 : vector<1x384x128xf32> to vector<384x128xf32>
    %cst_38 = arith.constant dense<0.000000e+00> : vector<128x128xf32>
    %39 = tpu.matmul %36, %38, %cst_38 {dimension_numbers = #tpu.dot_dimension_numbers<[1], [0], [0], [1], [0, 0, 1, 1], [], []>} : vector<128x384xf32>, vector<384x128xf32>, vector<128x128xf32> -> vector<128x128xf32>
    %40 = arith.addf %22, %39 : vector<128x128xf32>
    %c0_i32_39 = arith.constant 0 : i32
    %41 = arith.addi %1, %c0_i32_39 : i32
    %c2_i32 = arith.constant 2 : i32
    %42 = arith.addi %41, %c2_i32 : i32
    %c0_40 = arith.constant 0 : index
    %43 = arith.index_cast %42 : i32 to index
    %c0_41 = arith.constant 0 : index
    %c0_42 = arith.constant 0 : index
    %44 = vector.load %arg2[%c0_40, %43, %c0_41, %c0_42] : memref<1x20x18x128xf32, #tpu.memory_space<vmem>>, vector<1x8x16x128xf32>
    %c0_i32_43 = arith.constant 0 : i32
    %45 = arith.addi %1, %c0_i32_43 : i32
    %c2_i32_44 = arith.constant 2 : i32
    %46 = arith.addi %45, %c2_i32_44 : i32
    %c0_45 = arith.constant 0 : index
    %47 = arith.index_cast %46 : i32 to index
    %c1_46 = arith.constant 1 : index
    %c0_47 = arith.constant 0 : index
    %48 = vector.load %arg2[%c0_45, %47, %c1_46, %c0_47] : memref<1x20x18x128xf32, #tpu.memory_space<vmem>>, vector<1x8x16x128xf32>
    %c0_i32_48 = arith.constant 0 : i32
    %49 = arith.addi %1, %c0_i32_48 : i32
    %c2_i32_49 = arith.constant 2 : i32
    %50 = arith.addi %49, %c2_i32_49 : i32
    %c0_50 = arith.constant 0 : index
    %51 = arith.index_cast %50 : i32 to index
    %c2_51 = arith.constant 2 : index
    %c0_52 = arith.constant 0 : index
    %52 = vector.load %arg2[%c0_50, %51, %c2_51, %c0_52] : memref<1x20x18x128xf32, #tpu.memory_space<vmem>>, vector<1x8x16x128xf32>
    %53 = tpu.concatenate %44, %48, %52 in 3 : vector<1x8x16x128xf32>, vector<1x8x16x128xf32>, vector<1x8x16x128xf32> -> vector<1x8x16x384xf32>
    %54 = vector.shape_cast %53 : vector<1x8x16x384xf32> to vector<128x384xf32>
    %c2_53 = arith.constant 2 : index
    %c0_54 = arith.constant 0 : index
    %c0_55 = arith.constant 0 : index
    %55 = vector.load %arg3[%c2_53, %c0_54, %c0_55] : memref<3x384x128xf32, #tpu.memory_space<vmem>>, vector<1x384x128xf32>
    %56 = vector.shape_cast %55 : vector<1x384x128xf32> to vector<384x128xf32>
    %cst_56 = arith.constant dense<0.000000e+00> : vector<128x128xf32>
    %57 = tpu.matmul %54, %56, %cst_56 {dimension_numbers = #tpu.dot_dimension_numbers<[1], [0], [0], [1], [0, 0, 1, 1], [], []>} : vector<128x384xf32>, vector<384x128xf32>, vector<128x128xf32> -> vector<128x128xf32>
    %58 = arith.addf %40, %57 : vector<128x128xf32>
    %c0_57 = arith.constant 0 : index
    %c0_58 = arith.constant 0 : index
    %59 = vector.load %arg6[%c0_57, %c0_58] : memref<1x128xf32, #tpu.memory_space<vmem>>, vector<1x128xf32>
    %60 = vector.broadcast %59 : vector<1x128xf32> to vector<128x128xf32>
    %61 = arith.addf %58, %60 : vector<128x128xf32>
    %cst_59 = arith.constant 0.000000e+00 : f32
    %62 = vector.broadcast %cst_59 : f32 to vector<128x128xf32>
    %63 = arith.maximumf %61, %62 : vector<128x128xf32>
    %64 = vector.shape_cast %63 : vector<128x128xf32> to vector<8x16x128xf32>
    %c0_60 = arith.constant 0 : index
    %c1_61 = arith.constant 1 : index
    %c0_62 = arith.constant 0 : index
    %65 = vector.load %arg9[%c0_60, %c1_61, %c0_62] : memref<18x18x128xf32, #tpu.memory_space<vmem>>, vector<8x16x128xf32>
    tpu.vector_store %arg9[%c0_60, %c1_61, %c0_62], %64 {strides = array<i32>} : memref<18x18x128xf32, #tpu.memory_space<vmem>>, vector<8x16x128xf32>,
    %c8_i32 = arith.constant 8 : i32
    %66 = arith.addi %1, %c8_i32 : i32
    %c0_i32_63 = arith.constant 0 : i32
    %67 = arith.addi %66, %c0_i32_63 : i32
    %c0_64 = arith.constant 0 : index
    %68 = arith.index_cast %67 : i32 to index
    %c0_65 = arith.constant 0 : index
    %c0_66 = arith.constant 0 : index
    %69 = vector.load %arg2[%c0_64, %68, %c0_65, %c0_66] : memref<1x20x18x128xf32, #tpu.memory_space<vmem>>, vector<1x8x16x128xf32>
    %c8_i32_67 = arith.constant 8 : i32
    %70 = arith.addi %1, %c8_i32_67 : i32
    %c0_i32_68 = arith.constant 0 : i32
    %71 = arith.addi %70, %c0_i32_68 : i32
    %c0_69 = arith.constant 0 : index
    %72 = arith.index_cast %71 : i32 to index
    %c1_70 = arith.constant 1 : index
    %c0_71 = arith.constant 0 : index
    %73 = vector.load %arg2[%c0_69, %72, %c1_70, %c0_71] : memref<1x20x18x128xf32, #tpu.memory_space<vmem>>, vector<1x8x16x128xf32>
    %c8_i32_72 = arith.constant 8 : i32
    %74 = arith.addi %1, %c8_i32_72 : i32
    %c0_i32_73 = arith.constant 0 : i32
    %75 = arith.addi %74, %c0_i32_73 : i32
    %c0_74 = arith.constant 0 : index
    %76 = arith.index_cast %75 : i32 to index
    %c2_75 = arith.constant 2 : index
    %c0_76 = arith.constant 0 : index
    %77 = vector.load %arg2[%c0_74, %76, %c2_75, %c0_76] : memref<1x20x18x128xf32, #tpu.memory_space<vmem>>, vector<1x8x16x128xf32>
    %78 = tpu.concatenate %69, %73, %77 in 3 : vector<1x8x16x128xf32>, vector<1x8x16x128xf32>, vector<1x8x16x128xf32> -> vector<1x8x16x384xf32>
    %79 = vector.shape_cast %78 : vector<1x8x16x384xf32> to vector<128x384xf32>
    %c0_77 = arith.constant 0 : index
    %c0_78 = arith.constant 0 : index
    %c0_79 = arith.constant 0 : index
    %80 = vector.load %arg3[%c0_77, %c0_78, %c0_79] : memref<3x384x128xf32, #tpu.memory_space<vmem>>, vector<1x384x128xf32>
    %81 = vector.shape_cast %80 : vector<1x384x128xf32> to vector<384x128xf32>
    %cst_80 = arith.constant dense<0.000000e+00> : vector<128x128xf32>
    %82 = tpu.matmul %79, %81, %cst_80 {dimension_numbers = #tpu.dot_dimension_numbers<[1], [0], [0], [1], [0, 0, 1, 1], [], []>} : vector<128x384xf32>, vector<384x128xf32>, vector<128x128xf32> -> vector<128x128xf32>
    %c8_i32_81 = arith.constant 8 : i32
    %83 = arith.addi %1, %c8_i32_81 : i32
    %c1_i32_82 = arith.constant 1 : i32
    %84 = arith.addi %83, %c1_i32_82 : i32
    %c0_83 = arith.constant 0 : index
    %85 = arith.index_cast %84 : i32 to index
    %c0_84 = arith.constant 0 : index
    %c0_85 = arith.constant 0 : index
    %86 = vector.load %arg2[%c0_83, %85, %c0_84, %c0_85] : memref<1x20x18x128xf32, #tpu.memory_space<vmem>>, vector<1x8x16x128xf32>
    %c8_i32_86 = arith.constant 8 : i32
    %87 = arith.addi %1, %c8_i32_86 : i32
    %c1_i32_87 = arith.constant 1 : i32
    %88 = arith.addi %87, %c1_i32_87 : i32
    %c0_88 = arith.constant 0 : index
    %89 = arith.index_cast %88 : i32 to index
    %c1_89 = arith.constant 1 : index
    %c0_90 = arith.constant 0 : index
    %90 = vector.load %arg2[%c0_88, %89, %c1_89, %c0_90] : memref<1x20x18x128xf32, #tpu.memory_space<vmem>>, vector<1x8x16x128xf32>
    %c8_i32_91 = arith.constant 8 : i32
    %91 = arith.addi %1, %c8_i32_91 : i32
    %c1_i32_92 = arith.constant 1 : i32
    %92 = arith.addi %91, %c1_i32_92 : i32
    %c0_93 = arith.constant 0 : index
    %93 = arith.index_cast %92 : i32 to index
    %c2_94 = arith.constant 2 : index
    %c0_95 = arith.constant 0 : index
    %94 = vector.load %arg2[%c0_93, %93, %c2_94, %c0_95] : memref<1x20x18x128xf32, #tpu.memory_space<vmem>>, vector<1x8x16x128xf32>
    %95 = tpu.concatenate %86, %90, %94 in 3 : vector<1x8x16x128xf32>, vector<1x8x16x128xf32>, vector<1x8x16x128xf32> -> vector<1x8x16x384xf32>
    %96 = vector.shape_cast %95 : vector<1x8x16x384xf32> to vector<128x384xf32>
    %c1_96 = arith.constant 1 : index
    %c0_97 = arith.constant 0 : index
    %c0_98 = arith.constant 0 : index
    %97 = vector.load %arg3[%c1_96, %c0_97, %c0_98] : memref<3x384x128xf32, #tpu.memory_space<vmem>>, vector<1x384x128xf32>
    %98 = vector.shape_cast %97 : vector<1x384x128xf32> to vector<384x128xf32>
    %cst_99 = arith.constant dense<0.000000e+00> : vector<128x128xf32>
    %99 = tpu.matmul %96, %98, %cst_99 {dimension_numbers = #tpu.dot_dimension_numbers<[1], [0], [0], [1], [0, 0, 1, 1], [], []>} : vector<128x384xf32>, vector<384x128xf32>, vector<128x128xf32> -> vector<128x128xf32>
    %100 = arith.addf %82, %99 : vector<128x128xf32>
    %c8_i32_100 = arith.constant 8 : i32
    %101 = arith.addi %1, %c8_i32_100 : i32
    %c2_i32_101 = arith.constant 2 : i32
    %102 = arith.addi %101, %c2_i32_101 : i32
    %c0_102 = arith.constant 0 : index
    %103 = arith.index_cast %102 : i32 to index
    %c0_103 = arith.constant 0 : index
    %c0_104 = arith.constant 0 : index
    %104 = vector.load %arg2[%c0_102, %103, %c0_103, %c0_104] : memref<1x20x18x128xf32, #tpu.memory_space<vmem>>, vector<1x8x16x128xf32>
    %c8_i32_105 = arith.constant 8 : i32
    %105 = arith.addi %1, %c8_i32_105 : i32
    %c2_i32_106 = arith.constant 2 : i32
    %106 = arith.addi %105, %c2_i32_106 : i32
    %c0_107 = arith.constant 0 : index
    %107 = arith.index_cast %106 : i32 to index
    %c1_108 = arith.constant 1 : index
    %c0_109 = arith.constant 0 : index
    %108 = vector.load %arg2[%c0_107, %107, %c1_108, %c0_109] : memref<1x20x18x128xf32, #tpu.memory_space<vmem>>, vector<1x8x16x128xf32>
    %c8_i32_110 = arith.constant 8 : i32
    %109 = arith.addi %1, %c8_i32_110 : i32
    %c2_i32_111 = arith.constant 2 : i32
    %110 = arith.addi %109, %c2_i32_111 : i32
    %c0_112 = arith.constant 0 : index
    %111 = arith.index_cast %110 : i32 to index
    %c2_113 = arith.constant 2 : index
    %c0_114 = arith.constant 0 : index
    %112 = vector.load %arg2[%c0_112, %111, %c2_113, %c0_114] : memref<1x20x18x128xf32, #tpu.memory_space<vmem>>, vector<1x8x16x128xf32>
    %113 = tpu.concatenate %104, %108, %112 in 3 : vector<1x8x16x128xf32>, vector<1x8x16x128xf32>, vector<1x8x16x128xf32> -> vector<1x8x16x384xf32>
    %114 = vector.shape_cast %113 : vector<1x8x16x384xf32> to vector<128x384xf32>
    %c2_115 = arith.constant 2 : index
    %c0_116 = arith.constant 0 : index
    %c0_117 = arith.constant 0 : index
    %115 = vector.load %arg3[%c2_115, %c0_116, %c0_117] : memref<3x384x128xf32, #tpu.memory_space<vmem>>, vector<1x384x128xf32>
    %116 = vector.shape_cast %115 : vector<1x384x128xf32> to vector<384x128xf32>
    %cst_118 = arith.constant dense<0.000000e+00> : vector<128x128xf32>
    %117 = tpu.matmul %114, %116, %cst_118 {dimension_numbers = #tpu.dot_dimension_numbers<[1], [0], [0], [1], [0, 0, 1, 1], [], []>} : vector<128x384xf32>, vector<384x128xf32>, vector<128x128xf32> -> vector<128x128xf32>
    %118 = arith.addf %100, %117 : vector<128x128xf32>
    %c0_119 = arith.constant 0 : index
    %c0_120 = arith.constant 0 : index
    %119 = vector.load %arg6[%c0_119, %c0_120] : memref<1x128xf32, #tpu.memory_space<vmem>>, vector<1x128xf32>
    %120 = vector.broadcast %119 : vector<1x128xf32> to vector<128x128xf32>
    %121 = arith.addf %118, %120 : vector<128x128xf32>
    %cst_121 = arith.constant 0.000000e+00 : f32
    %122 = vector.broadcast %cst_121 : f32 to vector<128x128xf32>
    %123 = arith.maximumf %121, %122 : vector<128x128xf32>
    %124 = vector.shape_cast %123 : vector<128x128xf32> to vector<8x16x128xf32>
    %c8 = arith.constant 8 : index
    %c1_122 = arith.constant 1 : index
    %c0_123 = arith.constant 0 : index
    %125 = vector.load %arg9[%c8, %c1_122, %c0_123] : memref<18x18x128xf32, #tpu.memory_space<vmem>>, vector<8x16x128xf32>
    tpu.vector_store %arg9[%c8, %c1_122, %c0_123], %124 {strides = array<i32>} : memref<18x18x128xf32, #tpu.memory_space<vmem>>, vector<8x16x128xf32>,
    %c16_i32_124 = arith.constant 16 : i32
    %126 = arith.addi %1, %c16_i32_124 : i32
    %c0_i32_125 = arith.constant 0 : i32
    %127 = arith.addi %126, %c0_i32_125 : i32
    %c0_126 = arith.constant 0 : index
    %128 = arith.index_cast %127 : i32 to index
    %c0_127 = arith.constant 0 : index
    %c0_128 = arith.constant 0 : index
    %129 = vector.load %arg2[%c0_126, %128, %c0_127, %c0_128] : memref<1x20x18x128xf32, #tpu.memory_space<vmem>>, vector<1x2x16x128xf32>
    %c16_i32_129 = arith.constant 16 : i32
    %130 = arith.addi %1, %c16_i32_129 : i32
    %c0_i32_130 = arith.constant 0 : i32
    %131 = arith.addi %130, %c0_i32_130 : i32
    %c0_131 = arith.constant 0 : index
    %132 = arith.index_cast %131 : i32 to index
    %c1_132 = arith.constant 1 : index
    %c0_133 = arith.constant 0 : index
    %133 = vector.load %arg2[%c0_131, %132, %c1_132, %c0_133] : memref<1x20x18x128xf32, #tpu.memory_space<vmem>>, vector<1x2x16x128xf32>
    %c16_i32_134 = arith.constant 16 : i32
    %134 = arith.addi %1, %c16_i32_134 : i32
    %c0_i32_135 = arith.constant 0 : i32
    %135 = arith.addi %134, %c0_i32_135 : i32
    %c0_136 = arith.constant 0 : index
    %136 = arith.index_cast %135 : i32 to index
    %c2_137 = arith.constant 2 : index
    %c0_138 = arith.constant 0 : index
    %137 = vector.load %arg2[%c0_136, %136, %c2_137, %c0_138] : memref<1x20x18x128xf32, #tpu.memory_space<vmem>>, vector<1x2x16x128xf32>
    %138 = tpu.concatenate %129, %133, %137 in 3 : vector<1x2x16x128xf32>, vector<1x2x16x128xf32>, vector<1x2x16x128xf32> -> vector<1x2x16x384xf32>
    %139 = vector.shape_cast %138 : vector<1x2x16x384xf32> to vector<32x384xf32>
    %c0_139 = arith.constant 0 : index
    %c0_140 = arith.constant 0 : index
    %c0_141 = arith.constant 0 : index
    %140 = vector.load %arg3[%c0_139, %c0_140, %c0_141] : memref<3x384x128xf32, #tpu.memory_space<vmem>>, vector<1x384x128xf32>
    %141 = vector.shape_cast %140 : vector<1x384x128xf32> to vector<384x128xf32>
    %cst_142 = arith.constant dense<0.000000e+00> : vector<32x128xf32>
    %142 = tpu.matmul %139, %141, %cst_142 {dimension_numbers = #tpu.dot_dimension_numbers<[1], [0], [0], [1], [0, 0, 1, 1], [], []>} : vector<32x384xf32>, vector<384x128xf32>, vector<32x128xf32> -> vector<32x128xf32>
    %c16_i32_143 = arith.constant 16 : i32
    %143 = arith.addi %1, %c16_i32_143 : i32
    %c1_i32_144 = arith.constant 1 : i32
    %144 = arith.addi %143, %c1_i32_144 : i32
    %c0_145 = arith.constant 0 : index
    %145 = arith.index_cast %144 : i32 to index
    %c0_146 = arith.constant 0 : index
    %c0_147 = arith.constant 0 : index
    %146 = vector.load %arg2[%c0_145, %145, %c0_146, %c0_147] : memref<1x20x18x128xf32, #tpu.memory_space<vmem>>, vector<1x2x16x128xf32>
    %c16_i32_148 = arith.constant 16 : i32
    %147 = arith.addi %1, %c16_i32_148 : i32
    %c1_i32_149 = arith.constant 1 : i32
    %148 = arith.addi %147, %c1_i32_149 : i32
    %c0_150 = arith.constant 0 : index
    %149 = arith.index_cast %148 : i32 to index
    %c1_151 = arith.constant 1 : index
    %c0_152 = arith.constant 0 : index
    %150 = vector.load %arg2[%c0_150, %149, %c1_151, %c0_152] : memref<1x20x18x128xf32, #tpu.memory_space<vmem>>, vector<1x2x16x128xf32>
    %c16_i32_153 = arith.constant 16 : i32
    %151 = arith.addi %1, %c16_i32_153 : i32
    %c1_i32_154 = arith.constant 1 : i32
    %152 = arith.addi %151, %c1_i32_154 : i32
    %c0_155 = arith.constant 0 : index
    %153 = arith.index_cast %152 : i32 to index
    %c2_156 = arith.constant 2 : index
    %c0_157 = arith.constant 0 : index
    %154 = vector.load %arg2[%c0_155, %153, %c2_156, %c0_157] : memref<1x20x18x128xf32, #tpu.memory_space<vmem>>, vector<1x2x16x128xf32>
    %155 = tpu.concatenate %146, %150, %154 in 3 : vector<1x2x16x128xf32>, vector<1x2x16x128xf32>, vector<1x2x16x128xf32> -> vector<1x2x16x384xf32>
    %156 = vector.shape_cast %155 : vector<1x2x16x384xf32> to vector<32x384xf32>
    %c1_158 = arith.constant 1 : index
    %c0_159 = arith.constant 0 : index
    %c0_160 = arith.constant 0 : index
    %157 = vector.load %arg3[%c1_158, %c0_159, %c0_160] : memref<3x384x128xf32, #tpu.memory_space<vmem>>, vector<1x384x128xf32>
    %158 = vector.shape_cast %157 : vector<1x384x128xf32> to vector<384x128xf32>
    %cst_161 = arith.constant dense<0.000000e+00> : vector<32x128xf32>
    %159 = tpu.matmul %156, %158, %cst_161 {dimension_numbers = #tpu.dot_dimension_numbers<[1], [0], [0], [1], [0, 0, 1, 1], [], []>} : vector<32x384xf32>, vector<384x128xf32>, vector<32x128xf32> -> vector<32x128xf32>
    %160 = arith.addf %142, %159 : vector<32x128xf32>
    %c16_i32_162 = arith.constant 16 : i32
    %161 = arith.addi %1, %c16_i32_162 : i32
    %c2_i32_163 = arith.constant 2 : i32
    %162 = arith.addi %161, %c2_i32_163 : i32
    %c0_164 = arith.constant 0 : index
    %163 = arith.index_cast %162 : i32 to index
    %c0_165 = arith.constant 0 : index
    %c0_166 = arith.constant 0 : index
    %164 = vector.load %arg2[%c0_164, %163, %c0_165, %c0_166] : memref<1x20x18x128xf32, #tpu.memory_space<vmem>>, vector<1x2x16x128xf32>
    %c16_i32_167 = arith.constant 16 : i32
    %165 = arith.addi %1, %c16_i32_167 : i32
    %c2_i32_168 = arith.constant 2 : i32
    %166 = arith.addi %165, %c2_i32_168 : i32
    %c0_169 = arith.constant 0 : index
    %167 = arith.index_cast %166 : i32 to index
    %c1_170 = arith.constant 1 : index
    %c0_171 = arith.constant 0 : index
    %168 = vector.load %arg2[%c0_169, %167, %c1_170, %c0_171] : memref<1x20x18x128xf32, #tpu.memory_space<vmem>>, vector<1x2x16x128xf32>
    %c16_i32_172 = arith.constant 16 : i32
    %169 = arith.addi %1, %c16_i32_172 : i32
    %c2_i32_173 = arith.constant 2 : i32
    %170 = arith.addi %169, %c2_i32_173 : i32
    %c0_174 = arith.constant 0 : index
    %171 = arith.index_cast %170 : i32 to index
    %c2_175 = arith.constant 2 : index
    %c0_176 = arith.constant 0 : index
    %172 = vector.load %arg2[%c0_174, %171, %c2_175, %c0_176] : memref<1x20x18x128xf32, #tpu.memory_space<vmem>>, vector<1x2x16x128xf32>
    %173 = tpu.concatenate %164, %168, %172 in 3 : vector<1x2x16x128xf32>, vector<1x2x16x128xf32>, vector<1x2x16x128xf32> -> vector<1x2x16x384xf32>
    %174 = vector.shape_cast %173 : vector<1x2x16x384xf32> to vector<32x384xf32>
    %c2_177 = arith.constant 2 : index
    %c0_178 = arith.constant 0 : index
    %c0_179 = arith.constant 0 : index
    %175 = vector.load %arg3[%c2_177, %c0_178, %c0_179] : memref<3x384x128xf32, #tpu.memory_space<vmem>>, vector<1x384x128xf32>
    %176 = vector.shape_cast %175 : vector<1x384x128xf32> to vector<384x128xf32>
    %cst_180 = arith.constant dense<0.000000e+00> : vector<32x128xf32>
    %177 = tpu.matmul %174, %176, %cst_180 {dimension_numbers = #tpu.dot_dimension_numbers<[1], [0], [0], [1], [0, 0, 1, 1], [], []>} : vector<32x384xf32>, vector<384x128xf32>, vector<32x128xf32> -> vector<32x128xf32>
    %178 = arith.addf %160, %177 : vector<32x128xf32>
    %c0_181 = arith.constant 0 : index
    %c0_182 = arith.constant 0 : index
    %179 = vector.load %arg6[%c0_181, %c0_182] : memref<1x128xf32, #tpu.memory_space<vmem>>, vector<1x128xf32>
    %180 = vector.broadcast %179 : vector<1x128xf32> to vector<32x128xf32>
    %181 = arith.addf %178, %180 : vector<32x128xf32>
    %cst_183 = arith.constant 0.000000e+00 : f32
    %182 = vector.broadcast %cst_183 : f32 to vector<32x128xf32>
    %183 = arith.maximumf %181, %182 : vector<32x128xf32>
    %184 = vector.shape_cast %183 : vector<32x128xf32> to vector<2x16x128xf32>
    %c16 = arith.constant 16 : index
    %c1_184 = arith.constant 1 : index
    %c0_185 = arith.constant 0 : index
    %185 = vector.load %arg9[%c16, %c1_184, %c0_185] : memref<18x18x128xf32, #tpu.memory_space<vmem>>, vector<2x16x128xf32>
    tpu.vector_store %arg9[%c16, %c1_184, %c0_185], %184 {strides = array<i32>} : memref<18x18x128xf32, #tpu.memory_space<vmem>>, vector<2x16x128xf32>,
    %c0_i32_186 = arith.constant 0 : i32
    %186 = arith.cmpi eq, %arg1, %c0_i32_186 : i32
    %187 = arith.extui %186 : i1 to i32
    %c0_i32_187 = arith.constant 0 : i32
    %188 = arith.cmpi ne, %187, %c0_i32_187 : i32
    scf.if %188 {
      %cst_296 = arith.constant 0.000000e+00 : f32
      %274 = vector.broadcast %cst_296 : f32 to vector<1x18x128xf32>
      %c0_297 = arith.constant 0 : index
      %c0_298 = arith.constant 0 : index
      %c0_299 = arith.constant 0 : index
      %275 = vector.load %arg9[%c0_297, %c0_298, %c0_299] : memref<18x18x128xf32, #tpu.memory_space<vmem>>, vector<1x18x128xf32>
      tpu.vector_store %arg9[%c0_297, %c0_298, %c0_299], %274 {strides = array<i32>} : memref<18x18x128xf32, #tpu.memory_space<vmem>>, vector<1x18x128xf32>,
    } else {
    }
    %c0_i32_188 = arith.constant 0 : i32
    %189 = arith.cmpi eq, %arg1, %c0_i32_188 : i32
    %190 = arith.extui %189 : i1 to i32
    %c0_i32_189 = arith.constant 0 : i32
    %191 = arith.cmpi ne, %190, %c0_i32_189 : i32
    scf.if %191 {
      %cst_296 = arith.constant 0.000000e+00 : f32
      %274 = vector.broadcast %cst_296 : f32 to vector<1x18x128xf32>
      %c17_297 = arith.constant 17 : index
      %c0_298 = arith.constant 0 : index
      %c0_299 = arith.constant 0 : index
      %275 = vector.load %arg9[%c17_297, %c0_298, %c0_299] : memref<18x18x128xf32, #tpu.memory_space<vmem>>, vector<1x18x128xf32>
      tpu.vector_store %arg9[%c17_297, %c0_298, %c0_299], %274 {strides = array<i32>} : memref<18x18x128xf32, #tpu.memory_space<vmem>>, vector<1x18x128xf32>,
    } else {
    }
    %c2_i32_190 = arith.constant 2 : i32
    %192 = arith.addi %1, %c2_i32_190 : i32
    %c0_i32_191 = arith.constant 0 : i32
    %193 = arith.addi %192, %c0_i32_191 : i32
    %c0_192 = arith.constant 0 : index
    %194 = arith.index_cast %193 : i32 to index
    %c1_193 = arith.constant 1 : index
    %c0_194 = arith.constant 0 : index
    %195 = vector.load %arg2[%c0_192, %194, %c1_193, %c0_194] : memref<1x20x18x128xf32, #tpu.memory_space<vmem>>, vector<1x8x16x128xf32>
    %196 = vector.shape_cast %195 : vector<1x8x16x128xf32> to vector<128x128xf32>
    %c0_195 = arith.constant 0 : index
    %c0_196 = arith.constant 0 : index
    %197 = vector.load %arg5[%c0_195, %c0_196] : memref<128x128xf32, #tpu.memory_space<vmem>>, vector<128x128xf32>
    %cst_197 = arith.constant dense<0.000000e+00> : vector<128x128xf32>
    %198 = tpu.matmul %196, %197, %cst_197 {dimension_numbers = #tpu.dot_dimension_numbers<[1], [0], [0], [1], [0, 0, 1, 1], [], []>} : vector<128x128xf32>, vector<128x128xf32>, vector<128x128xf32> -> vector<128x128xf32>
    %c0_198 = arith.constant 0 : index
    %c0_199 = arith.constant 0 : index
    %c0_200 = arith.constant 0 : index
    %199 = vector.load %arg9[%c0_198, %c0_199, %c0_200] : memref<18x18x128xf32, #tpu.memory_space<vmem>>, vector<8x16x128xf32>
    %c0_201 = arith.constant 0 : index
    %c1_202 = arith.constant 1 : index
    %c0_203 = arith.constant 0 : index
    %200 = vector.load %arg9[%c0_201, %c1_202, %c0_203] : memref<18x18x128xf32, #tpu.memory_space<vmem>>, vector<8x16x128xf32>
    %c0_204 = arith.constant 0 : index
    %c2_205 = arith.constant 2 : index
    %c0_206 = arith.constant 0 : index
    %201 = vector.load %arg9[%c0_204, %c2_205, %c0_206] : memref<18x18x128xf32, #tpu.memory_space<vmem>>, vector<8x16x128xf32>
    %202 = tpu.concatenate %199, %200, %201 in 2 : vector<8x16x128xf32>, vector<8x16x128xf32>, vector<8x16x128xf32> -> vector<8x16x384xf32>
    %203 = vector.shape_cast %202 : vector<8x16x384xf32> to vector<128x384xf32>
    %c0_207 = arith.constant 0 : index
    %c0_208 = arith.constant 0 : index
    %c0_209 = arith.constant 0 : index
    %204 = vector.load %arg4[%c0_207, %c0_208, %c0_209] : memref<3x384x128xf32, #tpu.memory_space<vmem>>, vector<1x384x128xf32>
    %205 = vector.shape_cast %204 : vector<1x384x128xf32> to vector<384x128xf32>
    %cst_210 = arith.constant dense<0.000000e+00> : vector<128x128xf32>
    %206 = tpu.matmul %203, %205, %cst_210 {dimension_numbers = #tpu.dot_dimension_numbers<[1], [0], [0], [1], [0, 0, 1, 1], [], []>} : vector<128x384xf32>, vector<384x128xf32>, vector<128x128xf32> -> vector<128x128xf32>
    %207 = arith.addf %198, %206 : vector<128x128xf32>
    %c1_211 = arith.constant 1 : index
    %c0_212 = arith.constant 0 : index
    %c0_213 = arith.constant 0 : index
    %208 = vector.load %arg9[%c1_211, %c0_212, %c0_213] : memref<18x18x128xf32, #tpu.memory_space<vmem>>, vector<8x16x128xf32>
    %c1_214 = arith.constant 1 : index
    %c1_215 = arith.constant 1 : index
    %c0_216 = arith.constant 0 : index
    %209 = vector.load %arg9[%c1_214, %c1_215, %c0_216] : memref<18x18x128xf32, #tpu.memory_space<vmem>>, vector<8x16x128xf32>
    %c1_217 = arith.constant 1 : index
    %c2_218 = arith.constant 2 : index
    %c0_219 = arith.constant 0 : index
    %210 = vector.load %arg9[%c1_217, %c2_218, %c0_219] : memref<18x18x128xf32, #tpu.memory_space<vmem>>, vector<8x16x128xf32>
    %211 = tpu.concatenate %208, %209, %210 in 2 : vector<8x16x128xf32>, vector<8x16x128xf32>, vector<8x16x128xf32> -> vector<8x16x384xf32>
    %212 = vector.shape_cast %211 : vector<8x16x384xf32> to vector<128x384xf32>
    %c1_220 = arith.constant 1 : index
    %c0_221 = arith.constant 0 : index
    %c0_222 = arith.constant 0 : index
    %213 = vector.load %arg4[%c1_220, %c0_221, %c0_222] : memref<3x384x128xf32, #tpu.memory_space<vmem>>, vector<1x384x128xf32>
    %214 = vector.shape_cast %213 : vector<1x384x128xf32> to vector<384x128xf32>
    %cst_223 = arith.constant dense<0.000000e+00> : vector<128x128xf32>
    %215 = tpu.matmul %212, %214, %cst_223 {dimension_numbers = #tpu.dot_dimension_numbers<[1], [0], [0], [1], [0, 0, 1, 1], [], []>} : vector<128x384xf32>, vector<384x128xf32>, vector<128x128xf32> -> vector<128x128xf32>
    %216 = arith.addf %207, %215 : vector<128x128xf32>
    %c2_224 = arith.constant 2 : index
    %c0_225 = arith.constant 0 : index
    %c0_226 = arith.constant 0 : index
    %217 = vector.load %arg9[%c2_224, %c0_225, %c0_226] : memref<18x18x128xf32, #tpu.memory_space<vmem>>, vector<8x16x128xf32>
    %c2_227 = arith.constant 2 : index
    %c1_228 = arith.constant 1 : index
    %c0_229 = arith.constant 0 : index
    %218 = vector.load %arg9[%c2_227, %c1_228, %c0_229] : memref<18x18x128xf32, #tpu.memory_space<vmem>>, vector<8x16x128xf32>
    %c2_230 = arith.constant 2 : index
    %c2_231 = arith.constant 2 : index
    %c0_232 = arith.constant 0 : index
    %219 = vector.load %arg9[%c2_230, %c2_231, %c0_232] : memref<18x18x128xf32, #tpu.memory_space<vmem>>, vector<8x16x128xf32>
    %220 = tpu.concatenate %217, %218, %219 in 2 : vector<8x16x128xf32>, vector<8x16x128xf32>, vector<8x16x128xf32> -> vector<8x16x384xf32>
    %221 = vector.shape_cast %220 : vector<8x16x384xf32> to vector<128x384xf32>
    %c2_233 = arith.constant 2 : index
    %c0_234 = arith.constant 0 : index
    %c0_235 = arith.constant 0 : index
    %222 = vector.load %arg4[%c2_233, %c0_234, %c0_235] : memref<3x384x128xf32, #tpu.memory_space<vmem>>, vector<1x384x128xf32>
    %223 = vector.shape_cast %222 : vector<1x384x128xf32> to vector<384x128xf32>
    %cst_236 = arith.constant dense<0.000000e+00> : vector<128x128xf32>
    %224 = tpu.matmul %221, %223, %cst_236 {dimension_numbers = #tpu.dot_dimension_numbers<[1], [0], [0], [1], [0, 0, 1, 1], [], []>} : vector<128x384xf32>, vector<384x128xf32>, vector<128x128xf32> -> vector<128x128xf32>
    %225 = arith.addf %216, %224 : vector<128x128xf32>
    %c0_237 = arith.constant 0 : index
    %c0_238 = arith.constant 0 : index
    %226 = vector.load %arg7[%c0_237, %c0_238] : memref<1x128xf32, #tpu.memory_space<vmem>>, vector<1x128xf32>
    %227 = vector.broadcast %226 : vector<1x128xf32> to vector<128x128xf32>
    %228 = arith.addf %225, %227 : vector<128x128xf32>
    %cst_239 = arith.constant 0.000000e+00 : f32
    %229 = vector.broadcast %cst_239 : f32 to vector<128x128xf32>
    %230 = arith.maximumf %228, %229 : vector<128x128xf32>
    %231 = vector.shape_cast %230 : vector<128x128xf32> to vector<1x8x16x128xf32>
    %c0_240 = arith.constant 0 : index
    %c0_241 = arith.constant 0 : index
    %c0_242 = arith.constant 0 : index
    %c0_243 = arith.constant 0 : index
    %232 = vector.load %arg8[%c0_240, %c0_241, %c0_242, %c0_243] : memref<1x16x16x128xf32, #tpu.memory_space<vmem>>, vector<1x8x16x128xf32>
    tpu.vector_store %arg8[%c0_240, %c0_241, %c0_242, %c0_243], %231 {strides = array<i32>} : memref<1x16x16x128xf32, #tpu.memory_space<vmem>>, vector<1x8x16x128xf32>,
    %c2_i32_244 = arith.constant 2 : i32
    %233 = arith.addi %1, %c2_i32_244 : i32
    %c8_i32_245 = arith.constant 8 : i32
    %234 = arith.addi %233, %c8_i32_245 : i32
    %c0_246 = arith.constant 0 : index
    %235 = arith.index_cast %234 : i32 to index
    %c1_247 = arith.constant 1 : index
    %c0_248 = arith.constant 0 : index
    %236 = vector.load %arg2[%c0_246, %235, %c1_247, %c0_248] : memref<1x20x18x128xf32, #tpu.memory_space<vmem>>, vector<1x8x16x128xf32>
    %237 = vector.shape_cast %236 : vector<1x8x16x128xf32> to vector<128x128xf32>
    %c0_249 = arith.constant 0 : index
    %c0_250 = arith.constant 0 : index
    %238 = vector.load %arg5[%c0_249, %c0_250] : memref<128x128xf32, #tpu.memory_space<vmem>>, vector<128x128xf32>
    %cst_251 = arith.constant dense<0.000000e+00> : vector<128x128xf32>
    %239 = tpu.matmul %237, %238, %cst_251 {dimension_numbers = #tpu.dot_dimension_numbers<[1], [0], [0], [1], [0, 0, 1, 1], [], []>} : vector<128x128xf32>, vector<128x128xf32>, vector<128x128xf32> -> vector<128x128xf32>
    %c8_252 = arith.constant 8 : index
    %c0_253 = arith.constant 0 : index
    %c0_254 = arith.constant 0 : index
    %240 = vector.load %arg9[%c8_252, %c0_253, %c0_254] : memref<18x18x128xf32, #tpu.memory_space<vmem>>, vector<8x16x128xf32>
    %c8_255 = arith.constant 8 : index
    %c1_256 = arith.constant 1 : index
    %c0_257 = arith.constant 0 : index
    %241 = vector.load %arg9[%c8_255, %c1_256, %c0_257] : memref<18x18x128xf32, #tpu.memory_space<vmem>>, vector<8x16x128xf32>
    %c8_258 = arith.constant 8 : index
    %c2_259 = arith.constant 2 : index
    %c0_260 = arith.constant 0 : index
    %242 = vector.load %arg9[%c8_258, %c2_259, %c0_260] : memref<18x18x128xf32, #tpu.memory_space<vmem>>, vector<8x16x128xf32>
    %243 = tpu.concatenate %240, %241, %242 in 2 : vector<8x16x128xf32>, vector<8x16x128xf32>, vector<8x16x128xf32> -> vector<8x16x384xf32>
    %244 = vector.shape_cast %243 : vector<8x16x384xf32> to vector<128x384xf32>
    %c0_261 = arith.constant 0 : index
    %c0_262 = arith.constant 0 : index
    %c0_263 = arith.constant 0 : index
    %245 = vector.load %arg4[%c0_261, %c0_262, %c0_263] : memref<3x384x128xf32, #tpu.memory_space<vmem>>, vector<1x384x128xf32>
    %246 = vector.shape_cast %245 : vector<1x384x128xf32> to vector<384x128xf32>
    %cst_264 = arith.constant dense<0.000000e+00> : vector<128x128xf32>
    %247 = tpu.matmul %244, %246, %cst_264 {dimension_numbers = #tpu.dot_dimension_numbers<[1], [0], [0], [1], [0, 0, 1, 1], [], []>} : vector<128x384xf32>, vector<384x128xf32>, vector<128x128xf32> -> vector<128x128xf32>
    %248 = arith.addf %239, %247 : vector<128x128xf32>
    %c9 = arith.constant 9 : index
    %c0_265 = arith.constant 0 : index
    %c0_266 = arith.constant 0 : index
    %249 = vector.load %arg9[%c9, %c0_265, %c0_266] : memref<18x18x128xf32, #tpu.memory_space<vmem>>, vector<8x16x128xf32>
    %c9_267 = arith.constant 9 : index
    %c1_268 = arith.constant 1 : index
    %c0_269 = arith.constant 0 : index
    %250 = vector.load %arg9[%c9_267, %c1_268, %c0_269] : memref<18x18x128xf32, #tpu.memory_space<vmem>>, vector<8x16x128xf32>
    %c9_270 = arith.constant 9 : index
    %c2_271 = arith.constant 2 : index
    %c0_272 = arith.constant 0 : index
    %251 = vector.load %arg9[%c9_270, %c2_271, %c0_272] : memref<18x18x128xf32, #tpu.memory_space<vmem>>, vector<8x16x128xf32>
    %252 = tpu.concatenate %249, %250, %251 in 2 : vector<8x16x128xf32>, vector<8x16x128xf32>, vector<8x16x128xf32> -> vector<8x16x384xf32>
    %253 = vector.shape_cast %252 : vector<8x16x384xf32> to vector<128x384xf32>
    %c1_273 = arith.constant 1 : index
    %c0_274 = arith.constant 0 : index
    %c0_275 = arith.constant 0 : index
    %254 = vector.load %arg4[%c1_273, %c0_274, %c0_275] : memref<3x384x128xf32, #tpu.memory_space<vmem>>, vector<1x384x128xf32>
    %255 = vector.shape_cast %254 : vector<1x384x128xf32> to vector<384x128xf32>
    %cst_276 = arith.constant dense<0.000000e+00> : vector<128x128xf32>
    %256 = tpu.matmul %253, %255, %cst_276 {dimension_numbers = #tpu.dot_dimension_numbers<[1], [0], [0], [1], [0, 0, 1, 1], [], []>} : vector<128x384xf32>, vector<384x128xf32>, vector<128x128xf32> -> vector<128x128xf32>
    %257 = arith.addf %248, %256 : vector<128x128xf32>
    %c10 = arith.constant 10 : index
    %c0_277 = arith.constant 0 : index
    %c0_278 = arith.constant 0 : index
    %258 = vector.load %arg9[%c10, %c0_277, %c0_278] : memref<18x18x128xf32, #tpu.memory_space<vmem>>, vector<8x16x128xf32>
    %c10_279 = arith.constant 10 : index
    %c1_280 = arith.constant 1 : index
    %c0_281 = arith.constant 0 : index
    %259 = vector.load %arg9[%c10_279, %c1_280, %c0_281] : memref<18x18x128xf32, #tpu.memory_space<vmem>>, vector<8x16x128xf32>
    %c10_282 = arith.constant 10 : index
    %c2_283 = arith.constant 2 : index
    %c0_284 = arith.constant 0 : index
    %260 = vector.load %arg9[%c10_282, %c2_283, %c0_284] : memref<18x18x128xf32, #tpu.memory_space<vmem>>, vector<8x16x128xf32>
    %261 = tpu.concatenate %258, %259, %260 in 2 : vector<8x16x128xf32>, vector<8x16x128xf32>, vector<8x16x128xf32> -> vector<8x16x384xf32>
    %262 = vector.shape_cast %261 : vector<8x16x384xf32> to vector<128x384xf32>
    %c2_285 = arith.constant 2 : index
    %c0_286 = arith.constant 0 : index
    %c0_287 = arith.constant 0 : index
    %263 = vector.load %arg4[%c2_285, %c0_286, %c0_287] : memref<3x384x128xf32, #tpu.memory_space<vmem>>, vector<1x384x128xf32>
    %264 = vector.shape_cast %263 : vector<1x384x128xf32> to vector<384x128xf32>
    %cst_288 = arith.constant dense<0.000000e+00> : vector<128x128xf32>
    %265 = tpu.matmul %262, %264, %cst_288 {dimension_numbers = #tpu.dot_dimension_numbers<[1], [0], [0], [1], [0, 0, 1, 1], [], []>} : vector<128x384xf32>, vector<384x128xf32>, vector<128x128xf32> -> vector<128x128xf32>
    %266 = arith.addf %257, %265 : vector<128x128xf32>
    %c0_289 = arith.constant 0 : index
    %c0_290 = arith.constant 0 : index
    %267 = vector.load %arg7[%c0_289, %c0_290] : memref<1x128xf32, #tpu.memory_space<vmem>>, vector<1x128xf32>
    %268 = vector.broadcast %267 : vector<1x128xf32> to vector<128x128xf32>
    %269 = arith.addf %266, %268 : vector<128x128xf32>
    %cst_291 = arith.constant 0.000000e+00 : f32
    %270 = vector.broadcast %cst_291 : f32 to vector<128x128xf32>
    %271 = arith.maximumf %269, %270 : vector<128x128xf32>
    %272 = vector.shape_cast %271 : vector<128x128xf32> to vector<1x8x16x128xf32>
    %c0_292 = arith.constant 0 : index
    %c8_293 = arith.constant 8 : index
    %c0_294 = arith.constant 0 : index
    %c0_295 = arith.constant 0 : index
    %273 = vector.load %arg8[%c0_292, %c8_293, %c0_294, %c0_295] : memref<1x16x16x128xf32, #tpu.memory_space<vmem>>, vector<1x8x16x128xf32>
    tpu.vector_store %arg8[%c0_292, %c8_293, %c0_294, %c0_295], %272 {strides = array<i32>} : memref<1x16x16x128xf32, #tpu.memory_space<vmem>>, vector<1x8x16x128xf32>,
    return
  }
  func.func @transform_0(%arg0: i32, %arg1: i32) -> (i32, i32, i32, i32) {
    %c0_i32 = arith.constant 0 : i32
    %c0_i32_0 = arith.constant 0 : i32
    %c0_i32_1 = arith.constant 0 : i32
    %c0_i32_2 = arith.constant 0 : i32
    return %arg0, %c0_i32, %c0_i32_0, %c0_i32_1 : i32, i32, i32, i32
  }
  func.func @transform_1(%arg0: i32, %arg1: i32) -> (i32, i32, i32) {
    %c0_i32 = arith.constant 0 : i32
    %c0_i32_0 = arith.constant 0 : i32
    %c0_i32_1 = arith.constant 0 : i32
    %c0_i32_2 = arith.constant 0 : i32
    return %c0_i32, %c0_i32_0, %c0_i32_1 : i32, i32, i32
  }
  func.func @transform_2(%arg0: i32, %arg1: i32) -> (i32, i32, i32) {
    %c0_i32 = arith.constant 0 : i32
    %c0_i32_0 = arith.constant 0 : i32
    %c0_i32_1 = arith.constant 0 : i32
    %c0_i32_2 = arith.constant 0 : i32
    return %c0_i32, %c0_i32_0, %c0_i32_1 : i32, i32, i32
  }
  func.func @transform_3(%arg0: i32, %arg1: i32) -> (i32, i32) {
    %c0_i32 = arith.constant 0 : i32
    %c0_i32_0 = arith.constant 0 : i32
    %c0_i32_1 = arith.constant 0 : i32
    return %c0_i32, %c0_i32_0 : i32, i32
  }
  func.func @transform_4(%arg0: i32, %arg1: i32) -> (i32, i32) {
    %c0_i32 = arith.constant 0 : i32
    %c0_i32_0 = arith.constant 0 : i32
    %c0_i32_1 = arith.constant 0 : i32
    return %c0_i32, %c0_i32_0 : i32, i32
  }
  func.func @transform_5(%arg0: i32, %arg1: i32) -> (i32, i32) {
    %c0_i32 = arith.constant 0 : i32
    %c0_i32_0 = arith.constant 0 : i32
    %c0_i32_1 = arith.constant 0 : i32
    return %c0_i32, %c0_i32_0 : i32, i32
  }
  func.func @transform_6(%arg0: i32, %arg1: i32) -> (i32, i32, i32, i32) {
    %c0_i32 = arith.constant 0 : i32
    %c0_i32_0 = arith.constant 0 : i32
    %c0_i32_1 = arith.constant 0 : i32
    return %arg0, %arg1, %c0_i32, %c0_i32_0 : i32, i32, i32, i32
  }
}

</mosaic_0001>

<llo_original>
// kernel: tpu_custom_call.1
$region0: #{tpu_custom_call.1}
  #allocation0 [shape = 'u32[]', space=smem, size = 0x4, offset = 0x4, fixed_abs, tag = 'smem constant byte address 0x4 - core index']
  #allocation1 [shape = 'u32[144,128]{1,0:T(1,128)}', space=vmem, size = 0x12000, scoped, tag = 'internal scratch']
  #allocation2 [shape = 'f32[18,18,128]{2,1,0:T(8,128)}', space=vmem, size = 0x36000, scoped, tag = 'scratch operand']
  %s0 = inlined_call_operand.vmem [shape: f32[2,20,18,128], index: 0, kind: input, shape index: {}]
  %s1 = inlined_call_operand.vmem [shape: f32[3,384,128], index: 1, kind: input, shape index: {}]
  %s2 = inlined_call_operand.hbm [shape: f32[3,384,128], index: 2, kind: input, shape index: {}]
  %s3 = inlined_call_operand.vmem [shape: f32[128,128], index: 3, kind: input, shape index: {}]
  %s4 = inlined_call_operand.vmem [shape: f32[1,128], index: 4, kind: input, shape index: {}]
  %s5 = inlined_call_operand.vmem [shape: f32[1,128], index: 5, kind: input, shape index: {}]
  %s6 = inlined_call_operand.hbm [shape: f32[2,16,16,128], index: 6, kind: output, shape index: {}]
  %s7 = sld [smem:[#allocation0]]
  $region65: #{tpu_custom_call.1} parent=0
    _
  %s9 = ssub.s32 1, %s7
  %s10 = scalar_select 0, %s9, %s7
  $region1: #{tpu_custom_call.1} parent=0
    #allocation3 [shape = 'u8[589824]{0}', space=vmem, size = 0x90000, scoped, tag = 'input window, operand 2, single buffered']
    #allocation4 [shape = 's32[2]{0}', space=sflag, size = 0x8, scoped, tag = 'scoped memory for tpu_custom_call.1']
    #allocation5 [shape = 's32[2]{0}', space=sflag, size = 0x8, scoped, tag = 'scoped memory for tpu_custom_call.1']
    #allocation6 [shape = 'u8[262144]{0}', space=vmem, size = 0x40000, scoped, tag = 'output window, operand 0']
    %11 = vsyncpa [#allocation4], 0
    %12 = vsyncpa [#allocation5], 0
    %s13 = scalar_lea.sflag [#allocation5], 1
    %14 = vsyncpa %s13, 0
    loop: start=0, step=1, limit=4
    $region2: #{tpu_custom_call.1} parent=1 // loop_pre_header
      _
    $region3: #{tpu_custom_call.1} parent=1 // loop_header
      %s16 = sphi 0, %s20
      %p17 = scmp.ge.s32.totalorder %s16, 4
      %s23 = sphi 0, %s35
      %s24 = sphi 0, %s31
      %s25 = sphi 0, %s23
      %s26 = sphi 0, %s24
      %s27 = sphi 0, %s25
      %s28 = sphi 0, %s26
      %s38 = sphi 0, %s40
      %s41 = sphi 0, %s38
      %s42 = sphi 0, %s41
      %s58 = sphi 0, %s42
      %s62 = sphi 0, %s62
      %s64 = sphi 0, %s62
      %s65 = sphi 0, %s64
      %s79 = sphi 0, %s65
      %s83 = sphi 0, %s83
      %s85 = sphi 0, %s83
      %s86 = sphi 0, %s85
      %s100 = sphi 0, %s86
      %s104 = sphi 0, %s104
      %s106 = sphi 0, %s104
      %s107 = sphi 0, %s106
      %s121 = sphi 0, %s107
      %s125 = sphi 0, %s125
      %s127 = sphi 0, %s125
      %s128 = sphi 0, %s127
      %s142 = sphi 0, %s128
      %s146 = sphi 0, %s146
      %s148 = sphi 0, %s146
      %s149 = sphi 0, %s148
      %s163 = sphi 0, %s149
      %s171 = sphi 0, %s173
      %s174 = sphi 0, %s171
      %s175 = sphi 0, %s174
      %s191 = sphi 0, %s175
    $region4: #{tpu_custom_call.1} parent=1 // loop_header_branch
      %19 = sbr.rel (%p17) target = $region8
    $region5: #{tpu_custom_call.1} parent=1 // loop_body
      %s21 = ssub.s32 %s16, 1
      %s22 = ssub.s32 %s16, 2
      %s29 = sadd.s32 1, %s24
      %p30 = scmp.ge.s32.totalorder %s29, 1
      %s31 = scalar_select %p30, 0, %s29
      %s32 = sadd.s32 1, %s23
      %s33 = scalar_select %p30, %s32, %s23
      %p34 = scmp.ge.s32.totalorder %s33, 2
      %s35 = scalar_select %p34, 0, %s33
      %s36 = ssub.s32 %s23, %s35
      %p37 = scmp.eq.s32.totalorder %s36, 0
      %s39 = sadd.s32 %s38, 1
      %s40 = scalar_select %p37, %s38, %s39
      %p43 = pneg %p37
      %p44 = scmp.eq.s32.totalorder %s16, 1
      %p45 = por %p43, %p44
      %p46 = scmp.ne.s32.totalorder %s38, %s41
      %p47 = scmp.eq.s32.totalorder %s16, 0
      %p48 = por %p46, %p47
      %p49 = scmp.ne.s32.totalorder %s38, %s41
      %p50 = scmp.eq.s32.totalorder %s21, 1
      %p51 = por %p49, %p50
      %p52 = scmp.ne.s32.totalorder %s41, %s42
      %p53 = scmp.eq.s32.totalorder %s21, 0
      %p54 = por %p52, %p53
      %p55 = scmp.ne.s32.totalorder %s41, %s42
      %p56 = scmp.eq.s32.totalorder %s22, 1
      %p57 = por %p55, %p56
      %p59 = scmp.ne.s32.totalorder %s42, %s58
      %p60 = scmp.eq.s32.totalorder %s22, 0
      %p61 = por %p59, %p60
      %s63 = sadd.s32 %s62, 1
      %p66 = scmp.eq.s32.totalorder %s16, 1
      %p67 = scmp.ne.s32.totalorder %s62, %s64
      %p68 = scmp.eq.s32.totalorder %s16, 0
      %p69 = por %p67, %p68
      %p70 = scmp.ne.s32.totalorder %s62, %s64
      %p71 = scmp.eq.s32.totalorder %s21, 1
      %p72 = por %p70, %p71
      %p73 = scmp.ne.s32.totalorder %s64, %s65
      %p74 = scmp.eq.s32.totalorder %s21, 0
      %p75 = por %p73, %p74
      %p76 = scmp.ne.s32.totalorder %s64, %s65
      %p77 = scmp.eq.s32.totalorder %s22, 1
      %p78 = por %p76, %p77
      %p80 = scmp.ne.s32.totalorder %s65, %s79
      %p81 = scmp.eq.s32.totalorder %s22, 0
      %p82 = por %p80, %p81
      %s84 = sadd.s32 %s83, 1
      %p87 = scmp.eq.s32.totalorder %s16, 1
      %p88 = scmp.ne.s32.totalorder %s83, %s85
      %p89 = scmp.eq.s32.totalorder %s16, 0
      %p90 = por %p88, %p89
      %p91 = scmp.ne.s32.totalorder %s83, %s85
      %p92 = scmp.eq.s32.totalorder %s21, 1
      %p93 = por %p91, %p92
      %p94 = scmp.ne.s32.totalorder %s85, %s86
      %p95 = scmp.eq.s32.totalorder %s21, 0
      %p96 = por %p94, %p95
      %p97 = scmp.ne.s32.totalorder %s85, %s86
      %p98 = scmp.eq.s32.totalorder %s22, 1
      %p99 = por %p97, %p98
      %p101 = scmp.ne.s32.totalorder %s86, %s100
      %p102 = scmp.eq.s32.totalorder %s22, 0
      %p103 = por %p101, %p102
      %s105 = sadd.s32 %s104, 1
      %p108 = scmp.eq.s32.totalorder %s16, 1
      %p109 = scmp.ne.s32.totalorder %s104, %s106
      %p110 = scmp.eq.s32.totalorder %s16, 0
      %p111 = por %p109, %p110
      %p112 = scmp.ne.s32.totalorder %s104, %s106
      %p113 = scmp.eq.s32.totalorder %s21, 1
      %p114 = por %p112, %p113
      %p115 = scmp.ne.s32.totalorder %s106, %s107
      %p116 = scmp.eq.s32.totalorder %s21, 0
      %p117 = por %p115, %p116
      %p118 = scmp.ne.s32.totalorder %s106, %s107
      %p119 = scmp.eq.s32.totalorder %s22, 1
      %p120 = por %p118, %p119
      %p122 = scmp.ne.s32.totalorder %s107, %s121
      %p123 = scmp.eq.s32.totalorder %s22, 0
      %p124 = por %p122, %p123
      %s126 = sadd.s32 %s125, 1
      %p129 = scmp.eq.s32.totalorder %s16, 1
      %p130 = scmp.ne.s32.totalorder %s125, %s127
      %p131 = scmp.eq.s32.totalorder %s16, 0
      %p132 = por %p130, %p131
      %p133 = scmp.ne.s32.totalorder %s125, %s127
      %p134 = scmp.eq.s32.totalorder %s21, 1
      %p135 = por %p133, %p134
      %p136 = scmp.ne.s32.totalorder %s127, %s128
      %p137 = scmp.eq.s32.totalorder %s21, 0
      %p138 = por %p136, %p137
      %p139 = scmp.ne.s32.totalorder %s127, %s128
      %p140 = scmp.eq.s32.totalorder %s22, 1
      %p141 = por %p139, %p140
      %p143 = scmp.ne.s32.totalorder %s128, %s142
      %p144 = scmp.eq.s32.totalorder %s22, 0
      %p145 = por %p143, %p144
      %s147 = sadd.s32 %s146, 1
      %p150 = scmp.eq.s32.totalorder %s16, 1
      %p151 = scmp.ne.s32.totalorder %s146, %s148
      %p152 = scmp.eq.s32.totalorder %s16, 0
      %p153 = por %p151, %p152
      %p154 = scmp.ne.s32.totalorder %s146, %s148
      %p155 = scmp.eq.s32.totalorder %s21, 1
      %p156 = por %p154, %p155
      %p157 = scmp.ne.s32.totalorder %s148, %s149
      %p158 = scmp.eq.s32.totalorder %s21, 0
      %p159 = por %p157, %p158
      %p160 = scmp.ne.s32.totalorder %s148, %s149
      %p161 = scmp.eq.s32.totalorder %s22, 1
      %p162 = por %p160, %p161
      %p164 = scmp.ne.s32.totalorder %s149, %s163
      %p165 = scmp.eq.s32.totalorder %s22, 0
      %p166 = por %p164, %p165
      %s167 = ssub.s32 %s23, %s35
      %s168 = ssub.s32 %s24, %s31
      %s169 = sor.u32 %s167, %s168
      %p170 = scmp.eq.s32.totalorder %s169, 0
      %s172 = sadd.s32 %s171, 1
      %s173 = scalar_select %p170, %s171, %s172
      %p176 = pneg %p170
      %p177 = scmp.eq.s32.totalorder %s16, 1
      %p178 = por %p176, %p177
      %p179 = scmp.ne.s32.totalorder %s171, %s174
      %p180 = scmp.eq.s32.totalorder %s16, 0
      %p181 = por %p179, %p180
      %p182 = scmp.ne.s32.totalorder %s171, %s174
      %p183 = scmp.eq.s32.totalorder %s21, 1
      %p184 = por %p182, %p183
      %p185 = scmp.ne.s32.totalorder %s174, %s175
      %p186 = scmp.eq.s32.totalorder %s21, 0
      %p187 = por %p185, %p186
      %p188 = scmp.ne.s32.totalorder %s174, %s175
      %p189 = scmp.eq.s32.totalorder %s22, 1
      %p190 = por %p188, %p189
      %p192 = scmp.ne.s32.totalorder %s175, %s191
      %p193 = scmp.eq.s32.totalorder %s22, 0
      %p194 = por %p192, %p193
      %p195 = scmp.le.s32.totalorder 1, %s16
      %p196 = scmp.lt.s32.totalorder %s16, 3
      %p197 = pnand %p195, %p196
      %p198 = pneg %p197
      // Predicated region
      $region9: #{tpu_custom_call.1} parent=5 // pred_check
        _
      $region10: #{tpu_custom_call.1} parent=5 // pred_check_branch
        %200 = sbr.rel (%p197) target = $region12
      $region11: #{tpu_custom_call.1} parent=5 // pred_region
        %s201 = ssub.s32 %s16, 1
        // Predicated region
        $region13: #{tpu_custom_call.1} parent=11 // pred_check
          %p202 = pneg %p75
        $region14: #{tpu_custom_call.1} parent=11 // pred_check_branch
          %204 = sbr.rel (%p202) target = $region16
        $region15: #{tpu_custom_call.1} parent=11 // pred_region
          _
        $region16: #{tpu_custom_call.1} parent=11 // pred_fallthru
          _
        // Predicated region
        $region17: #{tpu_custom_call.1} parent=11 // pred_check
          %p205 = pneg %p96
        $region18: #{tpu_custom_call.1} parent=11 // pred_check_branch
          %207 = sbr.rel (%p205) target = $region20
        $region19: #{tpu_custom_call.1} parent=11 // pred_region
          %s209 = ssub.s32 18432, 18432
          %210 = vsyncadd [#allocation4], %s209
          %s211 = sshll.u32 [#allocation3], 4
          %s212 = int_to_ptr.vmem [resolvable:$true] %s211
          %217 = dma.hbm_to_vmem [thread:$0]  %s2, 18432, %s212, [#allocation4], 128, 128, 8
        $region20: #{tpu_custom_call.1} parent=11 // pred_fallthru
          _
        // Predicated region
        $region21: #{tpu_custom_call.1} parent=11 // pred_check
          %p218 = pneg %p117
        $region22: #{tpu_custom_call.1} parent=11 // pred_check_branch
          %220 = sbr.rel (%p218) target = $region24
        $region23: #{tpu_custom_call.1} parent=11 // pred_region
          _
        $region24: #{tpu_custom_call.1} parent=11 // pred_fallthru
          _
        // Predicated region
        $region25: #{tpu_custom_call.1} parent=11 // pred_check
          %p221 = pneg %p138
        $region26: #{tpu_custom_call.1} parent=11 // pred_check_branch
          %223 = sbr.rel (%p221) target = $region28
        $region27: #{tpu_custom_call.1} parent=11 // pred_region
          _
        $region28: #{tpu_custom_call.1} parent=11 // pred_fallthru
          _
        // Predicated region
        $region29: #{tpu_custom_call.1} parent=11 // pred_check
          %p224 = pneg %p159
        $region30: #{tpu_custom_call.1} parent=11 // pred_check_branch
          %226 = sbr.rel (%p224) target = $region32
        $region31: #{tpu_custom_call.1} parent=11 // pred_region
          _
        $region32: #{tpu_custom_call.1} parent=11 // pred_fallthru
          _
      $region12: #{tpu_custom_call.1} parent=5 // pred_fallthru
        _
      %p227 = scmp.lt.s32.totalorder %s16, 2
      // Predicated region
      $region33: #{tpu_custom_call.1} parent=5 // pred_check
        %p228 = pneg %p227
      $region34: #{tpu_custom_call.1} parent=5 // pred_check_branch
        %230 = sbr.rel (%p228) target = $region36
      $region35: #{tpu_custom_call.1} parent=5 // pred_region
        // Predicated region
        $region37: #{tpu_custom_call.1} parent=35 // pred_check
          %p231 = pneg %p48
        $region38: #{tpu_custom_call.1} parent=35 // pred_check_branch
          %233 = sbr.rel (%p231) target = $region40
        $region39: #{tpu_custom_call.1} parent=35 // pred_region
          %p234 = scmp.lt.s32.totalorder %s23, 1
          %s235 = scalar_select %p234, %s23, 1
          %s236 = smul.addr %s235, 60
          %s237 = smul.addr %s236, 8
          %s238 = scalar_lea.vmem %s0, %s237
        $region40: #{tpu_custom_call.1} parent=35 // pred_fallthru
          _
      $region36: #{tpu_custom_call.1} parent=5 // pred_fallthru
        _
      %p239 = scmp.le.s32.totalorder 1, %s16
      %p240 = scmp.lt.s32.totalorder %s16, 3
      %p241 = pnand %p239, %p240
      %p242 = pneg %p241
      // Predicated region
      $region41: #{tpu_custom_call.1} parent=5 // pred_check
        _
      $region42: #{tpu_custom_call.1} parent=5 // pred_check_branch
        %244 = sbr.rel (%p241) target = $region44
      $region43: #{tpu_custom_call.1} parent=5 // pred_region
        %s245 = ssub.s32 %s16, 1
        // Predicated region
        $region45: #{tpu_custom_call.1} parent=43 // pred_check
          %p246 = pneg %p96
        $region46: #{tpu_custom_call.1} parent=43 // pred_check_branch
          %248 = sbr.rel (%p246) target = $region48
        $region47: #{tpu_custom_call.1} parent=43 // pred_region
          %249 = dma.done [#allocation4], 18432
        $region48: #{tpu_custom_call.1} parent=43 // pred_fallthru
          _
        %p250 = scmp.lt.s32.totalorder %s25, 1
        %s251 = scalar_select %p250, %s25, 1
        %s252 = smul.addr %s251, 60
        %s253 = smul.addr %s252, 8
        %s254 = scalar_lea.vmem %s0, %s253
        %p255 = pneg %p54
        %p256 = pneg %p51
        %p257 = pneg %p75
        %p258 = pneg %p72
        %p259 = pneg %p96
        %p260 = pneg %p93
        %p261 = pneg %p117
        %p262 = pneg %p114
        %p263 = pneg %p138
        %p264 = pneg %p135
        %p265 = pneg %p159
        %p266 = pneg %p156
        %p267 = pneg %p187
        %p268 = pneg %p184
        %s269 = sand.u32 %s174, 1
        %s270 = scalar_lea.sflag [#allocation5], %s269
        %s271 = sand.u32 %s174, 1
        %s272 = smul.addr %s271, 256
        %s273 = scalar_lea.vmem [#allocation6], %s272
        %p274 = scmp.lt.s32.totalorder %s25, 1
        %s275 = scalar_select %p274, %s25, 1
        %s276 = smul.addr %s275, 60
        %s277 = smul.addr %s276, 8
        %s278 = scalar_lea.vmem %s0, %s277
        %s279 = smul.u32 16, %s26
        %s280 = smul.u32 %s26, 16
        %281 = vst [vmem:[#allocation2] sm:$0x1] 0.0
        %282 = vst [vmem:[#allocation2 + $0x18] sm:$0x1] 0.0
        %283 = vst [vmem:[#allocation2 + $0x30] sm:$0x1] 0.0
        %284 = vst [vmem:[#allocation2 + $0x48] sm:$0x1] 0.0
        %285 = vst [vmem:[#allocation2 + $0x60] sm:$0x1] 0.0
        %286 = vst [vmem:[#allocation2 + $0x78] sm:$0x1] 0.0
        %287 = vst [vmem:[#allocation2 + $0x90] sm:$0x1] 0.0
        %288 = vst [vmem:[#allocation2 + $0xa8] sm:$0x1] 0.0
        %289 = vst [vmem:[#allocation2 + $0xc0] sm:$0x1] 0.0
        %290 = vst [vmem:[#allocation2 + $0xd8] sm:$0x1] 0.0
        %291 = vst [vmem:[#allocation2 + $0xf0] sm:$0x1] 0.0
        %292 = vst [vmem:[#allocation2 + $0x108] sm:$0x1] 0.0
        %293 = vst [vmem:[#allocation2 + $0x120] sm:$0x1] 0.0
        %294 = vst [vmem:[#allocation2 + $0x138] sm:$0x1] 0.0
        %295 = vst [vmem:[#allocation2 + $0x150] sm:$0x1] 0.0
        %296 = vst [vmem:[#allocation2 + $0x168] sm:$0x1] 0.0
        %297 = vst [vmem:[#allocation2 + $0x180] sm:$0x1] 0.0
        %298 = vst [vmem:[#allocation2 + $0x198] sm:$0x1] 0.0
        %299 = vst [vmem:[#allocation2 + $0x11] sm:$0x1] 0.0
        %300 = vst [vmem:[#allocation2 + $0x29] sm:$0x1] 0.0
        %301 = vst [vmem:[#allocation2 + $0x41] sm:$0x1] 0.0
        %302 = vst [vmem:[#allocation2 + $0x59] sm:$0x1] 0.0
        %303 = vst [vmem:[#allocation2 + $0x71] sm:$0x1] 0.0
        %304 = vst [vmem:[#allocation2 + $0x89] sm:$0x1] 0.0
        %305 = vst [vmem:[#allocation2 + $0xa1] sm:$0x1] 0.0
        %306 = vst [vmem:[#allocation2 + $0xb9] sm:$0x1] 0.0
        %307 = vst [vmem:[#allocation2 + $0xd1] sm:$0x1] 0.0
        %308 = vst [vmem:[#allocation2 + $0xe9] sm:$0x1] 0.0
        %309 = vst [vmem:[#allocation2 + $0x101] sm:$0x1] 0.0
        %310 = vst [vmem:[#allocation2 + $0x119] sm:$0x1] 0.0
        %311 = vst [vmem:[#allocation2 + $0x131] sm:$0x1] 0.0
        %312 = vst [vmem:[#allocation2 + $0x149] sm:$0x1] 0.0
        %313 = vst [vmem:[#allocation2 + $0x161] sm:$0x1] 0.0
        %314 = vst [vmem:[#allocation2 + $0x179] sm:$0x1] 0.0
        %315 = vst [vmem:[#allocation2 + $0x191] sm:$0x1] 0.0
        %316 = vst [vmem:[#allocation2 + $0x1a9] sm:$0x1] 0.0
        %s317 = smul.u32 %s280, 24
        %s318 = scalar_lea.vmem %s278, %s317
        %v319 = vld [vmem:[%s318] sm:$0xff]
        %v320 = vld [vmem:[%s318 + $0x8] sm:$0xff]
        %v321 = vld [vmem:[%s318 + $0x18] sm:$0xff]
        %v322 = vld [vmem:[%s318 + $0x20] sm:$0xff]
        %v323 = vld [vmem:[%s318 + $0x30] sm:$0xff]
        %v324 = vld [vmem:[%s318 + $0x38] sm:$0xff]
        %v325 = vld [vmem:[%s318 + $0x48] sm:$0xff]
        %v326 = vld [vmem:[%s318 + $0x50] sm:$0xff]
        %v327 = vld [vmem:[%s318 + $0x60] sm:$0xff]
        %v328 = vld [vmem:[%s318 + $0x68] sm:$0xff]
        %v329 = vld [vmem:[%s318 + $0x78] sm:$0xff]
        %v330 = vld [vmem:[%s318 + $0x80] sm:$0xff]
        %v331 = vld [vmem:[%s318 + $0x90] sm:$0xff]
        %v332 = vld [vmem:[%s318 + $0x98] sm:$0xff]
        %v333 = vld [vmem:[%s318 + $0xa8] sm:$0xff]
        %v334 = vld [vmem:[%s318 + $0xb0] sm:$0xff]
        %v335 = vld [vmem:[%s318 + $0x1] sm:$0xff]
        %v336 = vld [vmem:[%s318 + $0x9] sm:$0xff]
        %v337 = vld [vmem:[%s318 + $0x19] sm:$0xff]
        %v338 = vld [vmem:[%s318 + $0x21] sm:$0xff]
        %v339 = vld [vmem:[%s318 + $0x31] sm:$0xff]
        %v340 = vld [vmem:[%s318 + $0x39] sm:$0xff]
        %v341 = vld [vmem:[%s318 + $0x49] sm:$0xff]
        %v342 = vld [vmem:[%s318 + $0x51] sm:$0xff]
        %v343 = vld [vmem:[%s318 + $0x61] sm:$0xff]
        %v344 = vld [vmem:[%s318 + $0x69] sm:$0xff]
        %v345 = vld [vmem:[%s318 + $0x79] sm:$0xff]
        %v346 = vld [vmem:[%s318 + $0x81] sm:$0xff]
        %v347 = vld [vmem:[%s318 + $0x91] sm:$0xff]
        %v348 = vld [vmem:[%s318 + $0x99] sm:$0xff]
        %v349 = vld [vmem:[%s318 + $0xa9] sm:$0xff]
        %v350 = vld [vmem:[%s318 + $0xb1] sm:$0xff]
        %v351 = vld [vmem:[%s318 + $0x2] sm:$0xff]
        %v352 = vld [vmem:[%s318 + $0xa] sm:$0xff]
        %v353 = vld [vmem:[%s318 + $0x1a] sm:$0xff]
        %v354 = vld [vmem:[%s318 + $0x22] sm:$0xff]
        %v355 = vld [vmem:[%s318 + $0x32] sm:$0xff]
        %v356 = vld [vmem:[%s318 + $0x3a] sm:$0xff]
        %v357 = vld [vmem:[%s318 + $0x4a] sm:$0xff]
        %v358 = vld [vmem:[%s318 + $0x52] sm:$0xff]
        %v359 = vld [vmem:[%s318 + $0x62] sm:$0xff]
        %v360 = vld [vmem:[%s318 + $0x6a] sm:$0xff]
        %v361 = vld [vmem:[%s318 + $0x7a] sm:$0xff]
        %v362 = vld [vmem:[%s318 + $0x82] sm:$0xff]
        %v363 = vld [vmem:[%s318 + $0x92] sm:$0xff]
        %v364 = vld [vmem:[%s318 + $0x9a] sm:$0xff]
        %v365 = vld [vmem:[%s318 + $0xaa] sm:$0xff]
        %v366 = vld [vmem:[%s318 + $0xb2] sm:$0xff]
        %v367 = vld [vmem:[%s1] sm:$0xff]
        %v368 = vld [vmem:[%s1 + $0x8] sm:$0xff]
        %v369 = vld [vmem:[%s1 + $0x10] sm:$0xff]
        %v370 = vld [vmem:[%s1 + $0x18] sm:$0xff]
        %v371 = vld [vmem:[%s1 + $0x20] sm:$0xff]
        %v372 = vld [vmem:[%s1 + $0x28] sm:$0xff]
        %v373 = vld [vmem:[%s1 + $0x30] sm:$0xff]
        %v374 = vld [vmem:[%s1 + $0x38] sm:$0xff]
        %v375 = vld [vmem:[%s1 + $0x40] sm:$0xff]
        %v376 = vld [vmem:[%s1 + $0x48] sm:$0xff]
        %v377 = vld [vmem:[%s1 + $0x50] sm:$0xff]
        %v378 = vld [vmem:[%s1 + $0x58] sm:$0xff]
        %v379 = vld [vmem:[%s1 + $0x60] sm:$0xff]
        %v380 = vld [vmem:[%s1 + $0x68] sm:$0xff]
        %v381 = vld [vmem:[%s1 + $0x70] sm:$0xff]
        %v382 = vld [vmem:[%s1 + $0x78] sm:$0xff]
        %v383 = vld [vmem:[%s1 + $0x80] sm:$0xff]
        %v384 = vld [vmem:[%s1 + $0x88] sm:$0xff]
        %v385 = vld [vmem:[%s1 + $0x90] sm:$0xff]
        %v386 = vld [vmem:[%s1 + $0x98] sm:$0xff]
        %v387 = vld [vmem:[%s1 + $0xa0] sm:$0xff]
        %v388 = vld [vmem:[%s1 + $0xa8] sm:$0xff]
        %v389 = vld [vmem:[%s1 + $0xb0] sm:$0xff]
        %v390 = vld [vmem:[%s1 + $0xb8] sm:$0xff]
        %v391 = vld [vmem:[%s1 + $0xc0] sm:$0xff]
        %v392 = vld [vmem:[%s1 + $0xc8] sm:$0xff]
        %v393 = vld [vmem:[%s1 + $0xd0] sm:$0xff]
        %v394 = vld [vmem:[%s1 + $0xd8] sm:$0xff]
        %v395 = vld [vmem:[%s1 + $0xe0] sm:$0xff]
        %v396 = vld [vmem:[%s1 + $0xe8] sm:$0xff]
        %v397 = vld [vmem:[%s1 + $0xf0] sm:$0xff]
        %v398 = vld [vmem:[%s1 + $0xf8] sm:$0xff]
        %v399 = vld [vmem:[%s1 + $0x100] sm:$0xff]
        %v400 = vld [vmem:[%s1 + $0x108] sm:$0xff]
        %v401 = vld [vmem:[%s1 + $0x110] sm:$0xff]
        %v402 = vld [vmem:[%s1 + $0x118] sm:$0xff]
        %v403 = vld [vmem:[%s1 + $0x120] sm:$0xff]
        %v404 = vld [vmem:[%s1 + $0x128] sm:$0xff]
        %v405 = vld [vmem:[%s1 + $0x130] sm:$0xff]
        %v406 = vld [vmem:[%s1 + $0x138] sm:$0xff]
        %v407 = vld [vmem:[%s1 + $0x140] sm:$0xff]
        %v408 = vld [vmem:[%s1 + $0x148] sm:$0xff]
        %v409 = vld [vmem:[%s1 + $0x150] sm:$0xff]
        %v410 = vld [vmem:[%s1 + $0x158] sm:$0xff]
        %v411 = vld [vmem:[%s1 + $0x160] sm:$0xff]
        %v412 = vld [vmem:[%s1 + $0x168] sm:$0xff]
        %v413 = vld [vmem:[%s1 + $0x170] sm:$0xff]
        %v414 = vld [vmem:[%s1 + $0x178] sm:$0xff]
        %s415 = sadd.s32 %s280, 1
        %s416 = smul.u32 %s415, 24
        %s417 = scalar_lea.vmem %s278, %s416
        %v418 = vld [vmem:[%s417] sm:$0xff]
        %v419 = vld [vmem:[%s417 + $0x8] sm:$0xff]
        %v420 = vld [vmem:[%s417 + $0x18] sm:$0xff]
        %v421 = vld [vmem:[%s417 + $0x20] sm:$0xff]
        %v422 = vld [vmem:[%s417 + $0x30] sm:$0xff]
        %v423 = vld [vmem:[%s417 + $0x38] sm:$0xff]
        %v424 = vld [vmem:[%s417 + $0x48] sm:$0xff]
        %v425 = vld [vmem:[%s417 + $0x50] sm:$0xff]
        %v426 = vld [vmem:[%s417 + $0x60] sm:$0xff]
        %v427 = vld [vmem:[%s417 + $0x68] sm:$0xff]
        %v428 = vld [vmem:[%s417 + $0x78] sm:$0xff]
        %v429 = vld [vmem:[%s417 + $0x80] sm:$0xff]
        %v430 = vld [vmem:[%s417 + $0x90] sm:$0xff]
        %v431 = vld [vmem:[%s417 + $0x98] sm:$0xff]
        %v432 = vld [vmem:[%s417 + $0xa8] sm:$0xff]
        %v433 = vld [vmem:[%s417 + $0xb0] sm:$0xff]
        %v434 = vld [vmem:[%s417 + $0x1] sm:$0xff]
        %v435 = vld [vmem:[%s417 + $0x9] sm:$0xff]
        %v436 = vld [vmem:[%s417 + $0x19] sm:$0xff]
        %v437 = vld [vmem:[%s417 + $0x21] sm:$0xff]
        %v438 = vld [vmem:[%s417 + $0x31] sm:$0xff]
        %v439 = vld [vmem:[%s417 + $0x39] sm:$0xff]
        %v440 = vld [vmem:[%s417 + $0x49] sm:$0xff]
        %v441 = vld [vmem:[%s417 + $0x51] sm:$0xff]
        %v442 = vld [vmem:[%s417 + $0x61] sm:$0xff]
        %v443 = vld [vmem:[%s417 + $0x69] sm:$0xff]
        %v444 = vld [vmem:[%s417 + $0x79] sm:$0xff]
        %v445 = vld [vmem:[%s417 + $0x81] sm:$0xff]
        %v446 = vld [vmem:[%s417 + $0x91] sm:$0xff]
        %v447 = vld [vmem:[%s417 + $0x99] sm:$0xff]
        %v448 = vld [vmem:[%s417 + $0xa9] sm:$0xff]
        %v449 = vld [vmem:[%s417 + $0xb1] sm:$0xff]
        %v450 = vld [vmem:[%s417 + $0x2] sm:$0xff]
        %v451 = vld [vmem:[%s417 + $0xa] sm:$0xff]
        %v452 = vld [vmem:[%s417 + $0x1a] sm:$0xff]
        %v453 = vld [vmem:[%s417 + $0x22] sm:$0xff]
        %v454 = vld [vmem:[%s417 + $0x32] sm:$0xff]
        %v455 = vld [vmem:[%s417 + $0x3a] sm:$0xff]
        %v456 = vld [vmem:[%s417 + $0x4a] sm:$0xff]
        %v457 = vld [vmem:[%s417 + $0x52] sm:$0xff]
        %v458 = vld [vmem:[%s417 + $0x62] sm:$0xff]
        %v459 = vld [vmem:[%s417 + $0x6a] sm:$0xff]
        %v460 = vld [vmem:[%s417 + $0x7a] sm:$0xff]
        %v461 = vld [vmem:[%s417 + $0x82] sm:$0xff]
        %v462 = vld [vmem:[%s417 + $0x92] sm:$0xff]
        %v463 = vld [vmem:[%s417 + $0x9a] sm:$0xff]
        %v464 = vld [vmem:[%s417 + $0xaa] sm:$0xff]
        %v465 = vld [vmem:[%s417 + $0xb2] sm:$0xff]
        %s466 = scalar_lea.vmem %s1, 384
        %v467 = vld [vmem:[%s466] sm:$0xff]
        %v468 = vld [vmem:[%s466 + $0x8] sm:$0xff]
        %v469 = vld [vmem:[%s466 + $0x10] sm:$0xff]
        %v470 = vld [vmem:[%s466 + $0x18] sm:$0xff]
        %v471 = vld [vmem:[%s466 + $0x20] sm:$0xff]
        %v472 = vld [vmem:[%s466 + $0x28] sm:$0xff]
        %v473 = vld [vmem:[%s466 + $0x30] sm:$0xff]
        %v474 = vld [vmem:[%s466 + $0x38] sm:$0xff]
        %v475 = vld [vmem:[%s466 + $0x40] sm:$0xff]
        %v476 = vld [vmem:[%s466 + $0x48] sm:$0xff]
        %v477 = vld [vmem:[%s466 + $0x50] sm:$0xff]
        %v478 = vld [vmem:[%s466 + $0x58] sm:$0xff]
        %v479 = vld [vmem:[%s466 + $0x60] sm:$0xff]
        %v480 = vld [vmem:[%s466 + $0x68] sm:$0xff]
        %v481 = vld [vmem:[%s466 + $0x70] sm:$0xff]
        %v482 = vld [vmem:[%s466 + $0x78] sm:$0xff]
        %v483 = vld [vmem:[%s466 + $0x80] sm:$0xff]
        %v484 = vld [vmem:[%s466 + $0x88] sm:$0xff]
        %v485 = vld [vmem:[%s466 + $0x90] sm:$0xff]
        %v486 = vld [vmem:[%s466 + $0x98] sm:$0xff]
        %v487 = vld [vmem:[%s466 + $0xa0] sm:$0xff]
        %v488 = vld [vmem:[%s466 + $0xa8] sm:$0xff]
        %v489 = vld [vmem:[%s466 + $0xb0] sm:$0xff]
        %v490 = vld [vmem:[%s466 + $0xb8] sm:$0xff]
        %v491 = vld [vmem:[%s466 + $0xc0] sm:$0xff]
        %v492 = vld [vmem:[%s466 + $0xc8] sm:$0xff]
        %v493 = vld [vmem:[%s466 + $0xd0] sm:$0xff]
        %v494 = vld [vmem:[%s466 + $0xd8] sm:$0xff]
        %v495 = vld [vmem:[%s466 + $0xe0] sm:$0xff]
        %v496 = vld [vmem:[%s466 + $0xe8] sm:$0xff]
        %v497 = vld [vmem:[%s466 + $0xf0] sm:$0xff]
        %v498 = vld [vmem:[%s466 + $0xf8] sm:$0xff]
        %v499 = vld [vmem:[%s466 + $0x100] sm:$0xff]
        %v500 = vld [vmem:[%s466 + $0x108] sm:$0xff]
        %v501 = vld [vmem:[%s466 + $0x110] sm:$0xff]
        %v502 = vld [vmem:[%s466 + $0x118] sm:$0xff]
        %v503 = vld [vmem:[%s466 + $0x120] sm:$0xff]
        %v504 = vld [vmem:[%s466 + $0x128] sm:$0xff]
        %v505 = vld [vmem:[%s466 + $0x130] sm:$0xff]
        %v506 = vld [vmem:[%s466 + $0x138] sm:$0xff]
        %v507 = vld [vmem:[%s466 + $0x140] sm:$0xff]
        %v508 = vld [vmem:[%s466 + $0x148] sm:$0xff]
        %v509 = vld [vmem:[%s466 + $0x150] sm:$0xff]
        %v510 = vld [vmem:[%s466 + $0x158] sm:$0xff]
        %v511 = vld [vmem:[%s466 + $0x160] sm:$0xff]
        %v512 = vld [vmem:[%s466 + $0x168] sm:$0xff]
        %v513 = vld [vmem:[%s466 + $0x170] sm:$0xff]
        %v514 = vld [vmem:[%s466 + $0x178] sm:$0xff]
        %515 = vmatprep.subr.mxu0 0.0
        %516 = vmatpush1.msra.mxu0 %v482
        %517 = vmatprep.subr.mxu0 0.0
        %518 = vmatpush1.msra.mxu0 %v481
        %519 = vmatprep.subr.mxu0 0.0
        %520 = vmatpush1.msra.mxu0 %v480
        %521 = vmatprep.subr.mxu0 0.0
        %522 = vmatpush1.msra.mxu0 %v479
        %523 = vmatprep.subr.mxu0 0.0
        %524 = vmatpush1.msra.mxu0 %v478
        %525 = vmatprep.subr.mxu0 0.0
        %526 = vmatpush1.msra.mxu0 %v477
        %527 = vmatprep.subr.mxu0 0.0
        %528 = vmatpush1.msra.mxu0 %v476
        %529 = vmatprep.subr.mxu0 0.0
        %530 = vmatpush1.msra.mxu0 %v475
        %531 = vmatprep.subr.mxu0 0.0
        %532 = vmatpush1.msra.mxu0 %v474
        %533 = vmatprep.subr.mxu0 0.0
        %534 = vmatpush1.msra.mxu0 %v473
        %535 = vmatprep.subr.mxu0 0.0
        %536 = vmatpush1.msra.mxu0 %v472
        %537 = vmatprep.subr.mxu0 0.0
        %538 = vmatpush1.msra.mxu0 %v471
        %539 = vmatprep.subr.mxu0 0.0
        %540 = vmatpush1.msra.mxu0 %v470
        %541 = vmatprep.subr.mxu0 0.0
        %542 = vmatpush1.msra.mxu0 %v469
        %543 = vmatprep.subr.mxu0 0.0
        %544 = vmatpush1.msra.mxu0 %v468
        %545 = vmatprep.subr.mxu0 0.0
        %546 = vmatpush1.msra.mxu0 %v467
        %547 = vmatprep.subr.mxu0 0.0
        %548 = vmatpush2.msra.mxu0 %v498
        %549 = vmatprep.subr.mxu0 0.0
        %550 = vmatpush2.msra.mxu0 %v497
        %551 = vmatprep.subr.mxu0 0.0
        %552 = vmatpush2.msra.mxu0 %v496
        %553 = vmatprep.subr.mxu0 0.0
        %554 = vmatpush2.msra.mxu0 %v495
        %555 = vmatprep.subr.mxu0 0.0
        %556 = vmatpush2.msra.mxu0 %v494
        %557 = vmatprep.subr.mxu0 0.0
        %558 = vmatpush2.msra.mxu0 %v493
        %559 = vmatprep.subr.mxu0 0.0
        %560 = vmatpush2.msra.mxu0 %v492
        %561 = vmatprep.subr.mxu0 0.0
        %562 = vmatpush2.msra.mxu0 %v491
        %563 = vmatprep.subr.mxu0 0.0
        %564 = vmatpush2.msra.mxu0 %v490
        %565 = vmatprep.subr.mxu0 0.0
        %566 = vmatpush2.msra.mxu0 %v489
        %567 = vmatprep.subr.mxu0 0.0
        %568 = vmatpush2.msra.mxu0 %v488
        %569 = vmatprep.subr.mxu0 0.0
        %570 = vmatpush2.msra.mxu0 %v487
        %571 = vmatprep.subr.mxu0 0.0
        %572 = vmatpush2.msra.mxu0 %v486
        %573 = vmatprep.subr.mxu0 0.0
        %574 = vmatpush2.msra.mxu0 %v485
        %575 = vmatprep.subr.mxu0 0.0
        %576 = vmatpush2.msra.mxu0 %v484
        %577 = vmatprep.subr.mxu0 0.0
        %578 = vmatpush2.msra.mxu0 %v483
        %579 = vmatprep.mubr.f32.mxu0 %v434
        %580 = vmatmul.mubr.f32.gmra.mxu0 %v418
        %v581 = vpop.f32.mrf.mxu0
        %v582 = vadd.f32 0.0, %v581
        %v583 = vpop.f32.mrf.mxu0
        %584 = vmatprep.mubr.f32.mxu0 %v435
        %585 = vmatmul.mubr.f32.gmra.mxu0 %v419
        %v586 = vpop.f32.mrf.mxu0
        %v587 = vadd.f32 0.0, %v586
        %v588 = vpop.f32.mrf.mxu0
        %589 = vmatprep.mubr.f32.mxu0 %v436
        %590 = vmatmul.mubr.f32.gmra.mxu0 %v420
        %v591 = vpop.f32.mrf.mxu0
        %v592 = vadd.f32 0.0, %v591
        %v593 = vpop.f32.mrf.mxu0
        %594 = vmatprep.mubr.f32.mxu0 %v437
        %595 = vmatmul.mubr.f32.gmra.mxu0 %v421
        %v596 = vpop.f32.mrf.mxu0
        %v597 = vadd.f32 0.0, %v596
        %v598 = vpop.f32.mrf.mxu0
        %599 = vmatprep.mubr.f32.mxu0 %v438
        %600 = vmatmul.mubr.f32.gmra.mxu0 %v422
        %v601 = vpop.f32.mrf.mxu0
        %v602 = vadd.f32 0.0, %v601
        %v603 = vpop.f32.mrf.mxu0
        %604 = vmatprep.mubr.f32.mxu0 %v439
        %605 = vmatmul.mubr.f32.gmra.mxu0 %v423
        %v606 = vpop.f32.mrf.mxu0
        %v607 = vadd.f32 0.0, %v606
        %v608 = vpop.f32.mrf.mxu0
        %609 = vmatprep.mubr.f32.mxu0 %v440
        %610 = vmatmul.mubr.f32.gmra.mxu0 %v424
        %v611 = vpop.f32.mrf.mxu0
        %v612 = vadd.f32 0.0, %v611
        %v613 = vpop.f32.mrf.mxu0
        %614 = vmatprep.mubr.f32.mxu0 %v441
        %615 = vmatmul.mubr.f32.gmra.mxu0 %v425
        %v616 = vpop.f32.mrf.mxu0
        %v617 = vadd.f32 0.0, %v616
        %v618 = vpop.f32.mrf.mxu0
        %619 = vmatprep.mubr.f32.mxu0 %v442
        %620 = vmatmul.mubr.f32.gmra.mxu0 %v426
        %v621 = vpop.f32.mrf.mxu0
        %v622 = vadd.f32 0.0, %v621
        %v623 = vpop.f32.mrf.mxu0
        %624 = vmatprep.mubr.f32.mxu0 %v443
        %625 = vmatmul.mubr.f32.gmra.mxu0 %v427
        %v626 = vpop.f32.mrf.mxu0
        %v627 = vadd.f32 0.0, %v626
        %v628 = vpop.f32.mrf.mxu0
        %629 = vmatprep.mubr.f32.mxu0 %v444
        %630 = vmatmul.mubr.f32.gmra.mxu0 %v428
        %v631 = vpop.f32.mrf.mxu0
        %v632 = vadd.f32 0.0, %v631
        %v633 = vpop.f32.mrf.mxu0
        %634 = vmatprep.mubr.f32.mxu0 %v445
        %635 = vmatmul.mubr.f32.gmra.mxu0 %v429
        %v636 = vpop.f32.mrf.mxu0
        %v637 = vadd.f32 0.0, %v636
        %v638 = vpop.f32.mrf.mxu0
        %639 = vmatprep.mubr.f32.mxu0 %v446
        %640 = vmatmul.mubr.f32.gmra.mxu0 %v430
        %v641 = vpop.f32.mrf.mxu0
        %v642 = vadd.f32 0.0, %v641
        %v643 = vpop.f32.mrf.mxu0
        %644 = vmatprep.mubr.f32.mxu0 %v447
        %645 = vmatmul.mubr.f32.gmra.mxu0 %v431
        %v646 = vpop.f32.mrf.mxu0
        %v647 = vadd.f32 0.0, %v646
        %v648 = vpop.f32.mrf.mxu0
        %649 = vmatprep.mubr.f32.mxu0 %v448
        %650 = vmatmul.mubr.f32.gmra.mxu0 %v432
        %v651 = vpop.f32.mrf.mxu0
        %v652 = vadd.f32 0.0, %v651
        %v653 = vpop.f32.mrf.mxu0
        %654 = vmatprep.mubr.f32.mxu0 %v449
        %655 = vmatmul.mubr.f32.gmra.mxu0 %v433
        %v656 = vpop.f32.mrf.mxu0
        %v657 = vadd.f32 0.0, %v656
        %v658 = vpop.f32.mrf.mxu0
        %659 = vdwg.mxu0
        %660 = vmatprep.subr.mxu0 0.0
        %661 = vmatpush1.msra.mxu0 %v514
        %662 = vmatprep.subr.mxu0 0.0
        %663 = vmatpush1.msra.mxu0 %v513
        %664 = vmatprep.subr.mxu0 0.0
        %665 = vmatpush1.msra.mxu0 %v512
        %666 = vmatprep.subr.mxu0 0.0
        %667 = vmatpush1.msra.mxu0 %v511
        %668 = vmatprep.subr.mxu0 0.0
        %669 = vmatpush1.msra.mxu0 %v510
        %670 = vmatprep.subr.mxu0 0.0
        %671 = vmatpush1.msra.mxu0 %v509
        %672 = vmatprep.subr.mxu0 0.0
        %673 = vmatpush1.msra.mxu0 %v508
        %674 = vmatprep.subr.mxu0 0.0
        %675 = vmatpush1.msra.mxu0 %v507
        %676 = vmatprep.subr.mxu0 0.0
        %677 = vmatpush1.msra.mxu0 %v506
        %678 = vmatprep.subr.mxu0 0.0
        %679 = vmatpush1.msra.mxu0 %v505
        %680 = vmatprep.subr.mxu0 0.0
        %681 = vmatpush1.msra.mxu0 %v504
        %682 = vmatprep.subr.mxu0 0.0
        %683 = vmatpush1.msra.mxu0 %v503
        %684 = vmatprep.subr.mxu0 0.0
        %685 = vmatpush1.msra.mxu0 %v502
        %686 = vmatprep.subr.mxu0 0.0
        %687 = vmatpush1.msra.mxu0 %v501
        %688 = vmatprep.subr.mxu0 0.0
        %689 = vmatpush1.msra.mxu0 %v500
        %690 = vmatprep.subr.mxu0 0.0
        %691 = vmatpush1.msra.mxu0 %v499
        %692 = vmatprep.subr.mxu0 0.0
        %693 = vmatpush2.msra.mxu0 0.0
        %694 = vmatprep.subr.mxu0 0.0
        %695 = vmatpush2.msra.mxu0 0.0
        %696 = vmatprep.subr.mxu0 0.0
        %697 = vmatpush2.msra.mxu0 0.0
        %698 = vmatprep.subr.mxu0 0.0
        %699 = vmatpush2.msra.mxu0 0.0
        %700 = vmatprep.subr.mxu0 0.0
        %701 = vmatpush2.msra.mxu0 0.0
        %702 = vmatprep.subr.mxu0 0.0
        %703 = vmatpush2.msra.mxu0 0.0
        %704 = vmatprep.subr.mxu0 0.0
        %705 = vmatpush2.msra.mxu0 0.0
        %706 = vmatprep.subr.mxu0 0.0
        %707 = vmatpush2.msra.mxu0 0.0
        %708 = vmatprep.subr.mxu0 0.0
        %709 = vmatpush2.msra.mxu0 0.0
        %710 = vmatprep.subr.mxu0 0.0
        %711 = vmatpush2.msra.mxu0 0.0
        %712 = vmatprep.subr.mxu0 0.0
        %713 = vmatpush2.msra.mxu0 0.0
        %714 = vmatprep.subr.mxu0 0.0
        %715 = vmatpush2.msra.mxu0 0.0
        %716 = vmatprep.subr.mxu0 0.0
        %717 = vmatpush2.msra.mxu0 0.0
        %718 = vmatprep.subr.mxu0 0.0
        %719 = vmatpush2.msra.mxu0 0.0
        %720 = vmatprep.subr.mxu0 0.0
        %721 = vmatpush2.msra.mxu0 0.0
        %722 = vmatprep.subr.mxu0 0.0
        %723 = vmatpush2.msra.mxu0 0.0
        %724 = vmatprep.mubr.f32.mxu0 0.0
        %725 = vmatmul.mubr.f32.gmra.mxu0 %v450
        %v726 = vpop.f32.mrf.mxu0
        %v727 = vadd.f32 %v582, %v726
        %v728 = vpop.f32.mrf.mxu0
        %729 = vmatprep.mubr.f32.mxu0 0.0
        %730 = vmatmul.mubr.f32.gmra.mxu0 %v451
        %v731 = vpop.f32.mrf.mxu0
        %v732 = vadd.f32 %v587, %v731
        %v733 = vpop.f32.mrf.mxu0
        %734 = vmatprep.mubr.f32.mxu0 0.0
        %735 = vmatmul.mubr.f32.gmra.mxu0 %v452
        %v736 = vpop.f32.mrf.mxu0
        %v737 = vadd.f32 %v592, %v736
        %v738 = vpop.f32.mrf.mxu0
        %739 = vmatprep.mubr.f32.mxu0 0.0
        %740 = vmatmul.mubr.f32.gmra.mxu0 %v453
        %v741 = vpop.f32.mrf.mxu0
        %v742 = vadd.f32 %v597, %v741
        %v743 = vpop.f32.mrf.mxu0
        %744 = vmatprep.mubr.f32.mxu0 0.0
        %745 = vmatmul.mubr.f32.gmra.mxu0 %v454
        %v746 = vpop.f32.mrf.mxu0
        %v747 = vadd.f32 %v602, %v746
        %v748 = vpop.f32.mrf.mxu0
        %749 = vmatprep.mubr.f32.mxu0 0.0
        %750 = vmatmul.mubr.f32.gmra.mxu0 %v455
        %v751 = vpop.f32.mrf.mxu0
        %v752 = vadd.f32 %v607, %v751
        %v753 = vpop.f32.mrf.mxu0
        %754 = vmatprep.mubr.f32.mxu0 0.0
        %755 = vmatmul.mubr.f32.gmra.mxu0 %v456
        %v756 = vpop.f32.mrf.mxu0
        %v757 = vadd.f32 %v612, %v756
        %v758 = vpop.f32.mrf.mxu0
        %759 = vmatprep.mubr.f32.mxu0 0.0
        %760 = vmatmul.mubr.f32.gmra.mxu0 %v457
        %v761 = vpop.f32.mrf.mxu0
        %v762 = vadd.f32 %v617, %v761
        %v763 = vpop.f32.mrf.mxu0
        %764 = vmatprep.mubr.f32.mxu0 0.0
        %765 = vmatmul.mubr.f32.gmra.mxu0 %v458
        %v766 = vpop.f32.mrf.mxu0
        %v767 = vadd.f32 %v622, %v766
        %v768 = vpop.f32.mrf.mxu0
        %769 = vmatprep.mubr.f32.mxu0 0.0
        %770 = vmatmul.mubr.f32.gmra.mxu0 %v459
        %v771 = vpop.f32.mrf.mxu0
        %v772 = vadd.f32 %v627, %v771
        %v773 = vpop.f32.mrf.mxu0
        %774 = vmatprep.mubr.f32.mxu0 0.0
        %775 = vmatmul.mubr.f32.gmra.mxu0 %v460
        %v776 = vpop.f32.mrf.mxu0
        %v777 = vadd.f32 %v632, %v776
        %v778 = vpop.f32.mrf.mxu0
        %779 = vmatprep.mubr.f32.mxu0 0.0
        %780 = vmatmul.mubr.f32.gmra.mxu0 %v461
        %v781 = vpop.f32.mrf.mxu0
        %v782 = vadd.f32 %v637, %v781
        %v783 = vpop.f32.mrf.mxu0
        %784 = vmatprep.mubr.f32.mxu0 0.0
        %785 = vmatmul.mubr.f32.gmra.mxu0 %v462
        %v786 = vpop.f32.mrf.mxu0
        %v787 = vadd.f32 %v642, %v786
        %v788 = vpop.f32.mrf.mxu0
        %789 = vmatprep.mubr.f32.mxu0 0.0
        %790 = vmatmul.mubr.f32.gmra.mxu0 %v463
        %v791 = vpop.f32.mrf.mxu0
        %v792 = vadd.f32 %v647, %v791
        %v793 = vpop.f32.mrf.mxu0
        %794 = vmatprep.mubr.f32.mxu0 0.0
        %795 = vmatmul.mubr.f32.gmra.mxu0 %v464
        %v796 = vpop.f32.mrf.mxu0
        %v797 = vadd.f32 %v652, %v796
        %v798 = vpop.f32.mrf.mxu0
        %799 = vmatprep.mubr.f32.mxu0 0.0
        %800 = vmatmul.mubr.f32.gmra.mxu0 %v465
        %v801 = vpop.f32.mrf.mxu0
        %v802 = vadd.f32 %v657, %v801
        %v803 = vpop.f32.mrf.mxu0
        %804 = vdwg.mxu0
        %805 = vmatprep.subr.mxu0 0.0
        %806 = vmatpush1.msra.mxu0 %v382
        %807 = vmatprep.subr.mxu0 0.0
        %808 = vmatpush1.msra.mxu0 %v381
        %809 = vmatprep.subr.mxu0 0.0
        %810 = vmatpush1.msra.mxu0 %v380
        %811 = vmatprep.subr.mxu0 0.0
        %812 = vmatpush1.msra.mxu0 %v379
        %813 = vmatprep.subr.mxu0 0.0
        %814 = vmatpush1.msra.mxu0 %v378
        %815 = vmatprep.subr.mxu0 0.0
        %816 = vmatpush1.msra.mxu0 %v377
        %817 = vmatprep.subr.mxu0 0.0
        %818 = vmatpush1.msra.mxu0 %v376
        %819 = vmatprep.subr.mxu0 0.0
        %820 = vmatpush1.msra.mxu0 %v375
        %821 = vmatprep.subr.mxu0 0.0
        %822 = vmatpush1.msra.mxu0 %v374
        %823 = vmatprep.subr.mxu0 0.0
        %824 = vmatpush1.msra.mxu0 %v373
        %825 = vmatprep.subr.mxu0 0.0
        %826 = vmatpush1.msra.mxu0 %v372
        %827 = vmatprep.subr.mxu0 0.0
        %828 = vmatpush1.msra.mxu0 %v371
        %829 = vmatprep.subr.mxu0 0.0
        %830 = vmatpush1.msra.mxu0 %v370
        %831 = vmatprep.subr.mxu0 0.0
        %832 = vmatpush1.msra.mxu0 %v369
        %833 = vmatprep.subr.mxu0 0.0
        %834 = vmatpush1.msra.mxu0 %v368
        %835 = vmatprep.subr.mxu0 0.0
        %836 = vmatpush1.msra.mxu0 %v367
        %837 = vmatprep.subr.mxu0 0.0
        %838 = vmatpush2.msra.mxu0 %v398
        %839 = vmatprep.subr.mxu0 0.0
        %840 = vmatpush2.msra.mxu0 %v397
        %841 = vmatprep.subr.mxu0 0.0
        %842 = vmatpush2.msra.mxu0 %v396
        %843 = vmatprep.subr.mxu0 0.0
        %844 = vmatpush2.msra.mxu0 %v395
        %845 = vmatprep.subr.mxu0 0.0
        %846 = vmatpush2.msra.mxu0 %v394
        %847 = vmatprep.subr.mxu0 0.0
        %848 = vmatpush2.msra.mxu0 %v393
        %849 = vmatprep.subr.mxu0 0.0
        %850 = vmatpush2.msra.mxu0 %v392
        %851 = vmatprep.subr.mxu0 0.0
        %852 = vmatpush2.msra.mxu0 %v391
        %853 = vmatprep.subr.mxu0 0.0
        %854 = vmatpush2.msra.mxu0 %v390
        %855 = vmatprep.subr.mxu0 0.0
        %856 = vmatpush2.msra.mxu0 %v389
        %857 = vmatprep.subr.mxu0 0.0
        %858 = vmatpush2.msra.mxu0 %v388
        %859 = vmatprep.subr.mxu0 0.0
        %860 = vmatpush2.msra.mxu0 %v387
        %861 = vmatprep.subr.mxu0 0.0
        %862 = vmatpush2.msra.mxu0 %v386
        %863 = vmatprep.subr.mxu0 0.0
        %864 = vmatpush2.msra.mxu0 %v385
        %865 = vmatprep.subr.mxu0 0.0
        %866 = vmatpush2.msra.mxu0 %v384
        %867 = vmatprep.subr.mxu0 0.0
        %868 = vmatpush2.msra.mxu0 %v383
        %869 = vmatprep.mubr.f32.mxu0 %v335
        %870 = vmatmul.mubr.f32.gmra.mxu0 %v319
        %v871 = vpop.f32.mrf.mxu0
        %v872 = vadd.f32 %v727, %v871
        %v873 = vpop.f32.mrf.mxu0
        %874 = vmatprep.mubr.f32.mxu0 %v336
        %875 = vmatmul.mubr.f32.gmra.mxu0 %v320
        %v876 = vpop.f32.mrf.mxu0
        %v877 = vadd.f32 %v732, %v876
        %v878 = vpop.f32.mrf.mxu0
        %879 = vmatprep.mubr.f32.mxu0 %v337
        %880 = vmatmul.mubr.f32.gmra.mxu0 %v321
        %v881 = vpop.f32.mrf.mxu0
        %v882 = vadd.f32 %v737, %v881
        %v883 = vpop.f32.mrf.mxu0
        %884 = vmatprep.mubr.f32.mxu0 %v338
        %885 = vmatmul.mubr.f32.gmra.mxu0 %v322
        %v886 = vpop.f32.mrf.mxu0
        %v887 = vadd.f32 %v742, %v886
        %v888 = vpop.f32.mrf.mxu0
        %889 = vmatprep.mubr.f32.mxu0 %v339
        %890 = vmatmul.mubr.f32.gmra.mxu0 %v323
        %v891 = vpop.f32.mrf.mxu0
        %v892 = vadd.f32 %v747, %v891
        %v893 = vpop.f32.mrf.mxu0
        %894 = vmatprep.mubr.f32.mxu0 %v340
        %895 = vmatmul.mubr.f32.gmra.mxu0 %v324
        %v896 = vpop.f32.mrf.mxu0
        %v897 = vadd.f32 %v752, %v896
        %v898 = vpop.f32.mrf.mxu0
        %899 = vmatprep.mubr.f32.mxu0 %v341
        %900 = vmatmul.mubr.f32.gmra.mxu0 %v325
        %v901 = vpop.f32.mrf.mxu0
        %v902 = vadd.f32 %v757, %v901
        %v903 = vpop.f32.mrf.mxu0
        %904 = vmatprep.mubr.f32.mxu0 %v342
        %905 = vmatmul.mubr.f32.gmra.mxu0 %v326
        %v906 = vpop.f32.mrf.mxu0
        %v907 = vadd.f32 %v762, %v906
        %v908 = vpop.f32.mrf.mxu0
        %909 = vmatprep.mubr.f32.mxu0 %v343
        %910 = vmatmul.mubr.f32.gmra.mxu0 %v327
        %v911 = vpop.f32.mrf.mxu0
        %v912 = vadd.f32 %v767, %v911
        %v913 = vpop.f32.mrf.mxu0
        %914 = vmatprep.mubr.f32.mxu0 %v344
        %915 = vmatmul.mubr.f32.gmra.mxu0 %v328
        %v916 = vpop.f32.mrf.mxu0
        %v917 = vadd.f32 %v772, %v916
        %v918 = vpop.f32.mrf.mxu0
        %919 = vmatprep.mubr.f32.mxu0 %v345
        %920 = vmatmul.mubr.f32.gmra.mxu0 %v329
        %v921 = vpop.f32.mrf.mxu0
        %v922 = vadd.f32 %v777, %v921
        %v923 = vpop.f32.mrf.mxu0
        %924 = vmatprep.mubr.f32.mxu0 %v346
        %925 = vmatmul.mubr.f32.gmra.mxu0 %v330
        %v926 = vpop.f32.mrf.mxu0
        %v927 = vadd.f32 %v782, %v926
        %v928 = vpop.f32.mrf.mxu0
        %929 = vmatprep.mubr.f32.mxu0 %v347
        %930 = vmatmul.mubr.f32.gmra.mxu0 %v331
        %v931 = vpop.f32.mrf.mxu0
        %v932 = vadd.f32 %v787, %v931
        %v933 = vpop.f32.mrf.mxu0
        %934 = vmatprep.mubr.f32.mxu0 %v348
        %935 = vmatmul.mubr.f32.gmra.mxu0 %v332
        %v936 = vpop.f32.mrf.mxu0
        %v937 = vadd.f32 %v792, %v936
        %v938 = vpop.f32.mrf.mxu0
        %939 = vmatprep.mubr.f32.mxu0 %v349
        %940 = vmatmul.mubr.f32.gmra.mxu0 %v333
        %v941 = vpop.f32.mrf.mxu0
        %v942 = vadd.f32 %v797, %v941
        %v943 = vpop.f32.mrf.mxu0
        %944 = vmatprep.mubr.f32.mxu0 %v350
        %945 = vmatmul.mubr.f32.gmra.mxu0 %v334
        %v946 = vpop.f32.mrf.mxu0
        %v947 = vadd.f32 %v802, %v946
        %v948 = vpop.f32.mrf.mxu0
        %949 = vdwg.mxu0
        %950 = vmatprep.subr.mxu0 0.0
        %951 = vmatpush1.msra.mxu0 %v414
        %952 = vmatprep.subr.mxu0 0.0
        %953 = vmatpush1.msra.mxu0 %v413
        %954 = vmatprep.subr.mxu0 0.0
        %955 = vmatpush1.msra.mxu0 %v412
        %956 = vmatprep.subr.mxu0 0.0
        %957 = vmatpush1.msra.mxu0 %v411
        %958 = vmatprep.subr.mxu0 0.0
        %959 = vmatpush1.msra.mxu0 %v410
        %960 = vmatprep.subr.mxu0 0.0
        %961 = vmatpush1.msra.mxu0 %v409
        %962 = vmatprep.subr.mxu0 0.0
        %963 = vmatpush1.msra.mxu0 %v408
        %964 = vmatprep.subr.mxu0 0.0
        %965 = vmatpush1.msra.mxu0 %v407
        %966 = vmatprep.subr.mxu0 0.0
        %967 = vmatpush1.msra.mxu0 %v406
        %968 = vmatprep.subr.mxu0 0.0
        %969 = vmatpush1.msra.mxu0 %v405
        %970 = vmatprep.subr.mxu0 0.0
        %971 = vmatpush1.msra.mxu0 %v404
        %972 = vmatprep.subr.mxu0 0.0
        %973 = vmatpush1.msra.mxu0 %v403
        %974 = vmatprep.subr.mxu0 0.0
        %975 = vmatpush1.msra.mxu0 %v402
        %976 = vmatprep.subr.mxu0 0.0
        %977 = vmatpush1.msra.mxu0 %v401
        %978 = vmatprep.subr.mxu0 0.0
        %979 = vmatpush1.msra.mxu0 %v400
        %980 = vmatprep.subr.mxu0 0.0
        %981 = vmatpush1.msra.mxu0 %v399
        %982 = vmatprep.subr.mxu0 0.0
        %983 = vmatpush2.msra.mxu0 0.0
        %984 = vmatprep.subr.mxu0 0.0
        %985 = vmatpush2.msra.mxu0 0.0
        %986 = vmatprep.subr.mxu0 0.0
        %987 = vmatpush2.msra.mxu0 0.0
        %988 = vmatprep.subr.mxu0 0.0
        %989 = vmatpush2.msra.mxu0 0.0
        %990 = vmatprep.subr.mxu0 0.0
        %991 = vmatpush2.msra.mxu0 0.0
        %992 = vmatprep.subr.mxu0 0.0
        %993 = vmatpush2.msra.mxu0 0.0
        %994 = vmatprep.subr.mxu0 0.0
        %995 = vmatpush2.msra.mxu0 0.0
        %996 = vmatprep.subr.mxu0 0.0
        %997 = vmatpush2.msra.mxu0 0.0
        %998 = vmatprep.subr.mxu0 0.0
        %999 = vmatpush2.msra.mxu0 0.0
        %1000 = vmatprep.subr.mxu0 0.0
        %1001 = vmatpush2.msra.mxu0 0.0
        %1002 = vmatprep.subr.mxu0 0.0
        %1003 = vmatpush2.msra.mxu0 0.0
        %1004 = vmatprep.subr.mxu0 0.0
        %1005 = vmatpush2.msra.mxu0 0.0
        %1006 = vmatprep.subr.mxu0 0.0
        %1007 = vmatpush2.msra.mxu0 0.0
        %1008 = vmatprep.subr.mxu0 0.0
        %1009 = vmatpush2.msra.mxu0 0.0
        %1010 = vmatprep.subr.mxu0 0.0
        %1011 = vmatpush2.msra.mxu0 0.0
        %1012 = vmatprep.subr.mxu0 0.0
        %1013 = vmatpush2.msra.mxu0 0.0
        %1014 = vmatprep.mubr.f32.mxu0 0.0
        %1015 = vmatmul.mubr.f32.gmra.mxu0 %v351
        %v1016 = vpop.f32.mrf.mxu0
        %v1017 = vadd.f32 %v872, %v1016
        %v1018 = vpop.f32.mrf.mxu0
        %1019 = vmatprep.mubr.f32.mxu0 0.0
        %1020 = vmatmul.mubr.f32.gmra.mxu0 %v352
        %v1021 = vpop.f32.mrf.mxu0
        %v1022 = vadd.f32 %v877, %v1021
        %v1023 = vpop.f32.mrf.mxu0
        %1024 = vmatprep.mubr.f32.mxu0 0.0
        %1025 = vmatmul.mubr.f32.gmra.mxu0 %v353
        %v1026 = vpop.f32.mrf.mxu0
        %v1027 = vadd.f32 %v882, %v1026
        %v1028 = vpop.f32.mrf.mxu0
        %1029 = vmatprep.mubr.f32.mxu0 0.0
        %1030 = vmatmul.mubr.f32.gmra.mxu0 %v354
        %v1031 = vpop.f32.mrf.mxu0
        %v1032 = vadd.f32 %v887, %v1031
        %v1033 = vpop.f32.mrf.mxu0
        %1034 = vmatprep.mubr.f32.mxu0 0.0
        %1035 = vmatmul.mubr.f32.gmra.mxu0 %v355
        %v1036 = vpop.f32.mrf.mxu0
        %v1037 = vadd.f32 %v892, %v1036
        %v1038 = vpop.f32.mrf.mxu0
        %1039 = vmatprep.mubr.f32.mxu0 0.0
        %1040 = vmatmul.mubr.f32.gmra.mxu0 %v356
        %v1041 = vpop.f32.mrf.mxu0
        %v1042 = vadd.f32 %v897, %v1041
        %v1043 = vpop.f32.mrf.mxu0
        %1044 = vmatprep.mubr.f32.mxu0 0.0
        %1045 = vmatmul.mubr.f32.gmra.mxu0 %v357
        %v1046 = vpop.f32.mrf.mxu0
        %v1047 = vadd.f32 %v902, %v1046
        %v1048 = vpop.f32.mrf.mxu0
        %1049 = vmatprep.mubr.f32.mxu0 0.0
        %1050 = vmatmul.mubr.f32.gmra.mxu0 %v358
        %v1051 = vpop.f32.mrf.mxu0
        %v1052 = vadd.f32 %v907, %v1051
        %v1053 = vpop.f32.mrf.mxu0
        %1054 = vmatprep.mubr.f32.mxu0 0.0
        %1055 = vmatmul.mubr.f32.gmra.mxu0 %v359
        %v1056 = vpop.f32.mrf.mxu0
        %v1057 = vadd.f32 %v912, %v1056
        %v1058 = vpop.f32.mrf.mxu0
        %1059 = vmatprep.mubr.f32.mxu0 0.0
        %1060 = vmatmul.mubr.f32.gmra.mxu0 %v360
        %v1061 = vpop.f32.mrf.mxu0
        %v1062 = vadd.f32 %v917, %v1061
        %v1063 = vpop.f32.mrf.mxu0
        %1064 = vmatprep.mubr.f32.mxu0 0.0
        %1065 = vmatmul.mubr.f32.gmra.mxu0 %v361
        %v1066 = vpop.f32.mrf.mxu0
        %v1067 = vadd.f32 %v922, %v1066
        %v1068 = vpop.f32.mrf.mxu0
        %1069 = vmatprep.mubr.f32.mxu0 0.0
        %1070 = vmatmul.mubr.f32.gmra.mxu0 %v362
        %v1071 = vpop.f32.mrf.mxu0
        %v1072 = vadd.f32 %v927, %v1071
        %v1073 = vpop.f32.mrf.mxu0
        %1074 = vmatprep.mubr.f32.mxu0 0.0
        %1075 = vmatmul.mubr.f32.gmra.mxu0 %v363
        %v1076 = vpop.f32.mrf.mxu0
        %v1077 = vadd.f32 %v932, %v1076
        %v1078 = vpop.f32.mrf.mxu0
        %1079 = vmatprep.mubr.f32.mxu0 0.0
        %1080 = vmatmul.mubr.f32.gmra.mxu0 %v364
        %v1081 = vpop.f32.mrf.mxu0
        %v1082 = vadd.f32 %v937, %v1081
        %v1083 = vpop.f32.mrf.mxu0
        %1084 = vmatprep.mubr.f32.mxu0 0.0
        %1085 = vmatmul.mubr.f32.gmra.mxu0 %v365
        %v1086 = vpop.f32.mrf.mxu0
        %v1087 = vadd.f32 %v942, %v1086
        %v1088 = vpop.f32.mrf.mxu0
        %1089 = vmatprep.mubr.f32.mxu0 0.0
        %1090 = vmatmul.mubr.f32.gmra.mxu0 %v366
        %v1091 = vpop.f32.mrf.mxu0
        %v1092 = vadd.f32 %v947, %v1091
        %v1093 = vpop.f32.mrf.mxu0
        %1094 = vdwg.mxu0
        %s1095 = sadd.s32 %s280, 2
        %s1096 = smul.u32 %s1095, 24
        %s1097 = scalar_lea.vmem %s278, %s1096
        %v1098 = vld [vmem:[%s1097] sm:$0xff]
        %v1099 = vld [vmem:[%s1097 + $0x8] sm:$0xff]
        %v1100 = vld [vmem:[%s1097 + $0x18] sm:$0xff]
        %v1101 = vld [vmem:[%s1097 + $0x20] sm:$0xff]
        %v1102 = vld [vmem:[%s1097 + $0x30] sm:$0xff]
        %v1103 = vld [vmem:[%s1097 + $0x38] sm:$0xff]
        %v1104 = vld [vmem:[%s1097 + $0x48] sm:$0xff]
        %v1105 = vld [vmem:[%s1097 + $0x50] sm:$0xff]
        %v1106 = vld [vmem:[%s1097 + $0x60] sm:$0xff]
        %v1107 = vld [vmem:[%s1097 + $0x68] sm:$0xff]
        %v1108 = vld [vmem:[%s1097 + $0x78] sm:$0xff]
        %v1109 = vld [vmem:[%s1097 + $0x80] sm:$0xff]
        %v1110 = vld [vmem:[%s1097 + $0x90] sm:$0xff]
        %v1111 = vld [vmem:[%s1097 + $0x98] sm:$0xff]
        %v1112 = vld [vmem:[%s1097 + $0xa8] sm:$0xff]
        %v1113 = vld [vmem:[%s1097 + $0xb0] sm:$0xff]
        %v1114 = vld [vmem:[%s1097 + $0x1] sm:$0xff]
        %v1115 = vld [vmem:[%s1097 + $0x9] sm:$0xff]
        %v1116 = vld [vmem:[%s1097 + $0x19] sm:$0xff]
        %v1117 = vld [vmem:[%s1097 + $0x21] sm:$0xff]
        %v1118 = vld [vmem:[%s1097 + $0x31] sm:$0xff]
        %v1119 = vld [vmem:[%s1097 + $0x39] sm:$0xff]
        %v1120 = vld [vmem:[%s1097 + $0x49] sm:$0xff]
        %v1121 = vld [vmem:[%s1097 + $0x51] sm:$0xff]
        %v1122 = vld [vmem:[%s1097 + $0x61] sm:$0xff]
        %v1123 = vld [vmem:[%s1097 + $0x69] sm:$0xff]
        %v1124 = vld [vmem:[%s1097 + $0x79] sm:$0xff]
        %v1125 = vld [vmem:[%s1097 + $0x81] sm:$0xff]
        %v1126 = vld [vmem:[%s1097 + $0x91] sm:$0xff]
        %v1127 = vld [vmem:[%s1097 + $0x99] sm:$0xff]
        %v1128 = vld [vmem:[%s1097 + $0xa9] sm:$0xff]
        %v1129 = vld [vmem:[%s1097 + $0xb1] sm:$0xff]
        %v1130 = vld [vmem:[%s1097 + $0x2] sm:$0xff]
        %v1131 = vld [vmem:[%s1097 + $0xa] sm:$0xff]
        %v1132 = vld [vmem:[%s1097 + $0x1a] sm:$0xff]
        %v1133 = vld [vmem:[%s1097 + $0x22] sm:$0xff]
        %v1134 = vld [vmem:[%s1097 + $0x32] sm:$0xff]
        %v1135 = vld [vmem:[%s1097 + $0x3a] sm:$0xff]
        %v1136 = vld [vmem:[%s1097 + $0x4a] sm:$0xff]
        %v1137 = vld [vmem:[%s1097 + $0x52] sm:$0xff]
        %v1138 = vld [vmem:[%s1097 + $0x62] sm:$0xff]
        %v1139 = vld [vmem:[%s1097 + $0x6a] sm:$0xff]
        %v1140 = vld [vmem:[%s1097 + $0x7a] sm:$0xff]
        %v1141 = vld [vmem:[%s1097 + $0x82] sm:$0xff]
        %v1142 = vld [vmem:[%s1097 + $0x92] sm:$0xff]
        %v1143 = vld [vmem:[%s1097 + $0x9a] sm:$0xff]
        %v1144 = vld [vmem:[%s1097 + $0xaa] sm:$0xff]
        %v1145 = vld [vmem:[%s1097 + $0xb2] sm:$0xff]
        %s1146 = scalar_lea.vmem %s1, 768
        %v1147 = vld [vmem:[%s1146] sm:$0xff]
        %v1148 = vld [vmem:[%s1146 + $0x8] sm:$0xff]
        %v1149 = vld [vmem:[%s1146 + $0x10] sm:$0xff]
        %v1150 = vld [vmem:[%s1146 + $0x18] sm:$0xff]
        %v1151 = vld [vmem:[%s1146 + $0x20] sm:$0xff]
        %v1152 = vld [vmem:[%s1146 + $0x28] sm:$0xff]
        %v1153 = vld [vmem:[%s1146 + $0x30] sm:$0xff]
        %v1154 = vld [vmem:[%s1146 + $0x38] sm:$0xff]
        %v1155 = vld [vmem:[%s1146 + $0x40] sm:$0xff]
        %v1156 = vld [vmem:[%s1146 + $0x48] sm:$0xff]
        %v1157 = vld [vmem:[%s1146 + $0x50] sm:$0xff]
        %v1158 = vld [vmem:[%s1146 + $0x58] sm:$0xff]
        %v1159 = vld [vmem:[%s1146 + $0x60] sm:$0xff]
        %v1160 = vld [vmem:[%s1146 + $0x68] sm:$0xff]
        %v1161 = vld [vmem:[%s1146 + $0x70] sm:$0xff]
        %v1162 = vld [vmem:[%s1146 + $0x78] sm:$0xff]
        %v1163 = vld [vmem:[%s1146 + $0x80] sm:$0xff]
        %v1164 = vld [vmem:[%s1146 + $0x88] sm:$0xff]
        %v1165 = vld [vmem:[%s1146 + $0x90] sm:$0xff]
        %v1166 = vld [vmem:[%s1146 + $0x98] sm:$0xff]
        %v1167 = vld [vmem:[%s1146 + $0xa0] sm:$0xff]
        %v1168 = vld [vmem:[%s1146 + $0xa8] sm:$0xff]
        %v1169 = vld [vmem:[%s1146 + $0xb0] sm:$0xff]
        %v1170 = vld [vmem:[%s1146 + $0xb8] sm:$0xff]
        %v1171 = vld [vmem:[%s1146 + $0xc0] sm:$0xff]
        %v1172 = vld [vmem:[%s1146 + $0xc8] sm:$0xff]
        %v1173 = vld [vmem:[%s1146 + $0xd0] sm:$0xff]
        %v1174 = vld [vmem:[%s1146 + $0xd8] sm:$0xff]
        %v1175 = vld [vmem:[%s1146 + $0xe0] sm:$0xff]
        %v1176 = vld [vmem:[%s1146 + $0xe8] sm:$0xff]
        %v1177 = vld [vmem:[%s1146 + $0xf0] sm:$0xff]
        %v1178 = vld [vmem:[%s1146 + $0xf8] sm:$0xff]
        %v1179 = vld [vmem:[%s1146 + $0x100] sm:$0xff]
        %v1180 = vld [vmem:[%s1146 + $0x108] sm:$0xff]
        %v1181 = vld [vmem:[%s1146 + $0x110] sm:$0xff]
        %v1182 = vld [vmem:[%s1146 + $0x118] sm:$0xff]
        %v1183 = vld [vmem:[%s1146 + $0x120] sm:$0xff]
        %v1184 = vld [vmem:[%s1146 + $0x128] sm:$0xff]
        %v1185 = vld [vmem:[%s1146 + $0x130] sm:$0xff]
        %v1186 = vld [vmem:[%s1146 + $0x138] sm:$0xff]
        %v1187 = vld [vmem:[%s1146 + $0x140] sm:$0xff]
        %v1188 = vld [vmem:[%s1146 + $0x148] sm:$0xff]
        %v1189 = vld [vmem:[%s1146 + $0x150] sm:$0xff]
        %v1190 = vld [vmem:[%s1146 + $0x158] sm:$0xff]
        %v1191 = vld [vmem:[%s1146 + $0x160] sm:$0xff]
        %v1192 = vld [vmem:[%s1146 + $0x168] sm:$0xff]
        %v1193 = vld [vmem:[%s1146 + $0x170] sm:$0xff]
        %v1194 = vld [vmem:[%s1146 + $0x178] sm:$0xff]
        %1195 = vmatprep.subr.mxu0 0.0
        %1196 = vmatpush1.msra.mxu0 %v1162
        %1197 = vmatprep.subr.mxu0 0.0
        %1198 = vmatpush1.msra.mxu0 %v1161
        %1199 = vmatprep.subr.mxu0 0.0
        %1200 = vmatpush1.msra.mxu0 %v1160
        %1201 = vmatprep.subr.mxu0 0.0
        %1202 = vmatpush1.msra.mxu0 %v1159
        %1203 = vmatprep.subr.mxu0 0.0
        %1204 = vmatpush1.msra.mxu0 %v1158
        %1205 = vmatprep.subr.mxu0 0.0
        %1206 = vmatpush1.msra.mxu0 %v1157
        %1207 = vmatprep.subr.mxu0 0.0
        %1208 = vmatpush1.msra.mxu0 %v1156
        %1209 = vmatprep.subr.mxu0 0.0
        %1210 = vmatpush1.msra.mxu0 %v1155
        %1211 = vmatprep.subr.mxu0 0.0
        %1212 = vmatpush1.msra.mxu0 %v1154
        %1213 = vmatprep.subr.mxu0 0.0
        %1214 = vmatpush1.msra.mxu0 %v1153
        %1215 = vmatprep.subr.mxu0 0.0
        %1216 = vmatpush1.msra.mxu0 %v1152
        %1217 = vmatprep.subr.mxu0 0.0
        %1218 = vmatpush1.msra.mxu0 %v1151
        %1219 = vmatprep.subr.mxu0 0.0
        %1220 = vmatpush1.msra.mxu0 %v1150
        %1221 = vmatprep.subr.mxu0 0.0
        %1222 = vmatpush1.msra.mxu0 %v1149
        %1223 = vmatprep.subr.mxu0 0.0
        %1224 = vmatpush1.msra.mxu0 %v1148
        %1225 = vmatprep.subr.mxu0 0.0
        %1226 = vmatpush1.msra.mxu0 %v1147
        %1227 = vmatprep.subr.mxu0 0.0
        %1228 = vmatpush2.msra.mxu0 %v1178
        %1229 = vmatprep.subr.mxu0 0.0
        %1230 = vmatpush2.msra.mxu0 %v1177
        %1231 = vmatprep.subr.mxu0 0.0
        %1232 = vmatpush2.msra.mxu0 %v1176
        %1233 = vmatprep.subr.mxu0 0.0
        %1234 = vmatpush2.msra.mxu0 %v1175
        %1235 = vmatprep.subr.mxu0 0.0
        %1236 = vmatpush2.msra.mxu0 %v1174
        %1237 = vmatprep.subr.mxu0 0.0
        %1238 = vmatpush2.msra.mxu0 %v1173
        %1239 = vmatprep.subr.mxu0 0.0
        %1240 = vmatpush2.msra.mxu0 %v1172
        %1241 = vmatprep.subr.mxu0 0.0
        %1242 = vmatpush2.msra.mxu0 %v1171
        %1243 = vmatprep.subr.mxu0 0.0
        %1244 = vmatpush2.msra.mxu0 %v1170
        %1245 = vmatprep.subr.mxu0 0.0
        %1246 = vmatpush2.msra.mxu0 %v1169
        %1247 = vmatprep.subr.mxu0 0.0
        %1248 = vmatpush2.msra.mxu0 %v1168
        %1249 = vmatprep.subr.mxu0 0.0
        %1250 = vmatpush2.msra.mxu0 %v1167
        %1251 = vmatprep.subr.mxu0 0.0
        %1252 = vmatpush2.msra.mxu0 %v1166
        %1253 = vmatprep.subr.mxu0 0.0
        %1254 = vmatpush2.msra.mxu0 %v1165
        %1255 = vmatprep.subr.mxu0 0.0
        %1256 = vmatpush2.msra.mxu0 %v1164
        %1257 = vmatprep.subr.mxu0 0.0
        %1258 = vmatpush2.msra.mxu0 %v1163
        %1259 = vmatprep.mubr.f32.mxu0 %v1114
        %1260 = vmatmul.mubr.f32.gmra.mxu0 %v1098
        %v1261 = vpop.f32.mrf.mxu0
        %v1262 = vadd.f32 0.0, %v1261
        %v1263 = vpop.f32.mrf.mxu0
        %1264 = vmatprep.mubr.f32.mxu0 %v1115
        %1265 = vmatmul.mubr.f32.gmra.mxu0 %v1099
        %v1266 = vpop.f32.mrf.mxu0
        %v1267 = vadd.f32 0.0, %v1266
        %v1268 = vpop.f32.mrf.mxu0
        %1269 = vmatprep.mubr.f32.mxu0 %v1116
        %1270 = vmatmul.mubr.f32.gmra.mxu0 %v1100
        %v1271 = vpop.f32.mrf.mxu0
        %v1272 = vadd.f32 0.0, %v1271
        %v1273 = vpop.f32.mrf.mxu0
        %1274 = vmatprep.mubr.f32.mxu0 %v1117
        %1275 = vmatmul.mubr.f32.gmra.mxu0 %v1101
        %v1276 = vpop.f32.mrf.mxu0
        %v1277 = vadd.f32 0.0, %v1276
        %v1278 = vpop.f32.mrf.mxu0
        %1279 = vmatprep.mubr.f32.mxu0 %v1118
        %1280 = vmatmul.mubr.f32.gmra.mxu0 %v1102
        %v1281 = vpop.f32.mrf.mxu0
        %v1282 = vadd.f32 0.0, %v1281
        %v1283 = vpop.f32.mrf.mxu0
        %1284 = vmatprep.mubr.f32.mxu0 %v1119
        %1285 = vmatmul.mubr.f32.gmra.mxu0 %v1103
        %v1286 = vpop.f32.mrf.mxu0
        %v1287 = vadd.f32 0.0, %v1286
        %v1288 = vpop.f32.mrf.mxu0
        %1289 = vmatprep.mubr.f32.mxu0 %v1120
        %1290 = vmatmul.mubr.f32.gmra.mxu0 %v1104
        %v1291 = vpop.f32.mrf.mxu0
        %v1292 = vadd.f32 0.0, %v1291
        %v1293 = vpop.f32.mrf.mxu0
        %1294 = vmatprep.mubr.f32.mxu0 %v1121
        %1295 = vmatmul.mubr.f32.gmra.mxu0 %v1105
        %v1296 = vpop.f32.mrf.mxu0
        %v1297 = vadd.f32 0.0, %v1296
        %v1298 = vpop.f32.mrf.mxu0
        %1299 = vmatprep.mubr.f32.mxu0 %v1122
        %1300 = vmatmul.mubr.f32.gmra.mxu0 %v1106
        %v1301 = vpop.f32.mrf.mxu0
        %v1302 = vadd.f32 0.0, %v1301
        %v1303 = vpop.f32.mrf.mxu0
        %1304 = vmatprep.mubr.f32.mxu0 %v1123
        %1305 = vmatmul.mubr.f32.gmra.mxu0 %v1107
        %v1306 = vpop.f32.mrf.mxu0
        %v1307 = vadd.f32 0.0, %v1306
        %v1308 = vpop.f32.mrf.mxu0
        %1309 = vmatprep.mubr.f32.mxu0 %v1124
        %1310 = vmatmul.mubr.f32.gmra.mxu0 %v1108
        %v1311 = vpop.f32.mrf.mxu0
        %v1312 = vadd.f32 0.0, %v1311
        %v1313 = vpop.f32.mrf.mxu0
        %1314 = vmatprep.mubr.f32.mxu0 %v1125
        %1315 = vmatmul.mubr.f32.gmra.mxu0 %v1109
        %v1316 = vpop.f32.mrf.mxu0
        %v1317 = vadd.f32 0.0, %v1316
        %v1318 = vpop.f32.mrf.mxu0
        %1319 = vmatprep.mubr.f32.mxu0 %v1126
        %1320 = vmatmul.mubr.f32.gmra.mxu0 %v1110
        %v1321 = vpop.f32.mrf.mxu0
        %v1322 = vadd.f32 0.0, %v1321
        %v1323 = vpop.f32.mrf.mxu0
        %1324 = vmatprep.mubr.f32.mxu0 %v1127
        %1325 = vmatmul.mubr.f32.gmra.mxu0 %v1111
        %v1326 = vpop.f32.mrf.mxu0
        %v1327 = vadd.f32 0.0, %v1326
        %v1328 = vpop.f32.mrf.mxu0
        %1329 = vmatprep.mubr.f32.mxu0 %v1128
        %1330 = vmatmul.mubr.f32.gmra.mxu0 %v1112
        %v1331 = vpop.f32.mrf.mxu0
        %v1332 = vadd.f32 0.0, %v1331
        %v1333 = vpop.f32.mrf.mxu0
        %1334 = vmatprep.mubr.f32.mxu0 %v1129
        %1335 = vmatmul.mubr.f32.gmra.mxu0 %v1113
        %v1336 = vpop.f32.mrf.mxu0
        %v1337 = vadd.f32 0.0, %v1336
        %v1338 = vpop.f32.mrf.mxu0
        %1339 = vdwg.mxu0
        %1340 = vmatprep.subr.mxu0 0.0
        %1341 = vmatpush1.msra.mxu0 %v1194
        %1342 = vmatprep.subr.mxu0 0.0
        %1343 = vmatpush1.msra.mxu0 %v1193
        %1344 = vmatprep.subr.mxu0 0.0
        %1345 = vmatpush1.msra.mxu0 %v1192
        %1346 = vmatprep.subr.mxu0 0.0
        %1347 = vmatpush1.msra.mxu0 %v1191
        %1348 = vmatprep.subr.mxu0 0.0
        %1349 = vmatpush1.msra.mxu0 %v1190
        %1350 = vmatprep.subr.mxu0 0.0
        %1351 = vmatpush1.msra.mxu0 %v1189
        %1352 = vmatprep.subr.mxu0 0.0
        %1353 = vmatpush1.msra.mxu0 %v1188
        %1354 = vmatprep.subr.mxu0 0.0
        %1355 = vmatpush1.msra.mxu0 %v1187
        %1356 = vmatprep.subr.mxu0 0.0
        %1357 = vmatpush1.msra.mxu0 %v1186
        %1358 = vmatprep.subr.mxu0 0.0
        %1359 = vmatpush1.msra.mxu0 %v1185
        %1360 = vmatprep.subr.mxu0 0.0
        %1361 = vmatpush1.msra.mxu0 %v1184
        %1362 = vmatprep.subr.mxu0 0.0
        %1363 = vmatpush1.msra.mxu0 %v1183
        %1364 = vmatprep.subr.mxu0 0.0
        %1365 = vmatpush1.msra.mxu0 %v1182
        %1366 = vmatprep.subr.mxu0 0.0
        %1367 = vmatpush1.msra.mxu0 %v1181
        %1368 = vmatprep.subr.mxu0 0.0
        %1369 = vmatpush1.msra.mxu0 %v1180
        %1370 = vmatprep.subr.mxu0 0.0
        %1371 = vmatpush1.msra.mxu0 %v1179
        %1372 = vmatprep.subr.mxu0 0.0
        %1373 = vmatpush2.msra.mxu0 0.0
        %1374 = vmatprep.subr.mxu0 0.0
        %1375 = vmatpush2.msra.mxu0 0.0
        %1376 = vmatprep.subr.mxu0 0.0
        %1377 = vmatpush2.msra.mxu0 0.0
        %1378 = vmatprep.subr.mxu0 0.0
        %1379 = vmatpush2.msra.mxu0 0.0
        %1380 = vmatprep.subr.mxu0 0.0
        %1381 = vmatpush2.msra.mxu0 0.0
        %1382 = vmatprep.subr.mxu0 0.0
        %1383 = vmatpush2.msra.mxu0 0.0
        %1384 = vmatprep.subr.mxu0 0.0
        %1385 = vmatpush2.msra.mxu0 0.0
        %1386 = vmatprep.subr.mxu0 0.0
        %1387 = vmatpush2.msra.mxu0 0.0
        %1388 = vmatprep.subr.mxu0 0.0
        %1389 = vmatpush2.msra.mxu0 0.0
        %1390 = vmatprep.subr.mxu0 0.0
        %1391 = vmatpush2.msra.mxu0 0.0
        %1392 = vmatprep.subr.mxu0 0.0
        %1393 = vmatpush2.msra.mxu0 0.0
        %1394 = vmatprep.subr.mxu0 0.0
        %1395 = vmatpush2.msra.mxu0 0.0
        %1396 = vmatprep.subr.mxu0 0.0
        %1397 = vmatpush2.msra.mxu0 0.0
        %1398 = vmatprep.subr.mxu0 0.0
        %1399 = vmatpush2.msra.mxu0 0.0
        %1400 = vmatprep.subr.mxu0 0.0
        %1401 = vmatpush2.msra.mxu0 0.0
        %1402 = vmatprep.subr.mxu0 0.0
        %1403 = vmatpush2.msra.mxu0 0.0
        %1404 = vmatprep.mubr.f32.mxu0 0.0
        %1405 = vmatmul.mubr.f32.gmra.mxu0 %v1130
        %v1406 = vpop.f32.mrf.mxu0
        %v1407 = vadd.f32 %v1262, %v1406
        %v1408 = vpop.f32.mrf.mxu0
        %1409 = vmatprep.mubr.f32.mxu0 0.0
        %1410 = vmatmul.mubr.f32.gmra.mxu0 %v1131
        %v1411 = vpop.f32.mrf.mxu0
        %v1412 = vadd.f32 %v1267, %v1411
        %v1413 = vpop.f32.mrf.mxu0
        %1414 = vmatprep.mubr.f32.mxu0 0.0
        %1415 = vmatmul.mubr.f32.gmra.mxu0 %v1132
        %v1416 = vpop.f32.mrf.mxu0
        %v1417 = vadd.f32 %v1272, %v1416
        %v1418 = vpop.f32.mrf.mxu0
        %1419 = vmatprep.mubr.f32.mxu0 0.0
        %1420 = vmatmul.mubr.f32.gmra.mxu0 %v1133
        %v1421 = vpop.f32.mrf.mxu0
        %v1422 = vadd.f32 %v1277, %v1421
        %v1423 = vpop.f32.mrf.mxu0
        %1424 = vmatprep.mubr.f32.mxu0 0.0
        %1425 = vmatmul.mubr.f32.gmra.mxu0 %v1134
        %v1426 = vpop.f32.mrf.mxu0
        %v1427 = vadd.f32 %v1282, %v1426
        %v1428 = vpop.f32.mrf.mxu0
        %1429 = vmatprep.mubr.f32.mxu0 0.0
        %1430 = vmatmul.mubr.f32.gmra.mxu0 %v1135
        %v1431 = vpop.f32.mrf.mxu0
        %v1432 = vadd.f32 %v1287, %v1431
        %v1433 = vpop.f32.mrf.mxu0
        %1434 = vmatprep.mubr.f32.mxu0 0.0
        %1435 = vmatmul.mubr.f32.gmra.mxu0 %v1136
        %v1436 = vpop.f32.mrf.mxu0
        %v1437 = vadd.f32 %v1292, %v1436
        %v1438 = vpop.f32.mrf.mxu0
        %1439 = vmatprep.mubr.f32.mxu0 0.0
        %1440 = vmatmul.mubr.f32.gmra.mxu0 %v1137
        %v1441 = vpop.f32.mrf.mxu0
        %v1442 = vadd.f32 %v1297, %v1441
        %v1443 = vpop.f32.mrf.mxu0
        %1444 = vmatprep.mubr.f32.mxu0 0.0
        %1445 = vmatmul.mubr.f32.gmra.mxu0 %v1138
        %v1446 = vpop.f32.mrf.mxu0
        %v1447 = vadd.f32 %v1302, %v1446
        %v1448 = vpop.f32.mrf.mxu0
        %1449 = vmatprep.mubr.f32.mxu0 0.0
        %1450 = vmatmul.mubr.f32.gmra.mxu0 %v1139
        %v1451 = vpop.f32.mrf.mxu0
        %v1452 = vadd.f32 %v1307, %v1451
        %v1453 = vpop.f32.mrf.mxu0
        %1454 = vmatprep.mubr.f32.mxu0 0.0
        %1455 = vmatmul.mubr.f32.gmra.mxu0 %v1140
        %v1456 = vpop.f32.mrf.mxu0
        %v1457 = vadd.f32 %v1312, %v1456
        %v1458 = vpop.f32.mrf.mxu0
        %1459 = vmatprep.mubr.f32.mxu0 0.0
        %1460 = vmatmul.mubr.f32.gmra.mxu0 %v1141
        %v1461 = vpop.f32.mrf.mxu0
        %v1462 = vadd.f32 %v1317, %v1461
        %v1463 = vpop.f32.mrf.mxu0
        %1464 = vmatprep.mubr.f32.mxu0 0.0
        %1465 = vmatmul.mubr.f32.gmra.mxu0 %v1142
        %v1466 = vpop.f32.mrf.mxu0
        %v1467 = vadd.f32 %v1322, %v1466
        %v1468 = vpop.f32.mrf.mxu0
        %1469 = vmatprep.mubr.f32.mxu0 0.0
        %1470 = vmatmul.mubr.f32.gmra.mxu0 %v1143
        %v1471 = vpop.f32.mrf.mxu0
        %v1472 = vadd.f32 %v1327, %v1471
        %v1473 = vpop.f32.mrf.mxu0
        %1474 = vmatprep.mubr.f32.mxu0 0.0
        %1475 = vmatmul.mubr.f32.gmra.mxu0 %v1144
        %v1476 = vpop.f32.mrf.mxu0
        %v1477 = vadd.f32 %v1332, %v1476
        %v1478 = vpop.f32.mrf.mxu0
        %1479 = vmatprep.mubr.f32.mxu0 0.0
        %1480 = vmatmul.mubr.f32.gmra.mxu0 %v1145
        %v1481 = vpop.f32.mrf.mxu0
        %v1482 = vadd.f32 %v1337, %v1481
        %v1483 = vpop.f32.mrf.mxu0
        %1484 = vdwg.mxu0
        %v1485 = vadd.f32 %v1017, %v1407
        %v1486 = vadd.f32 %v1022, %v1412
        %v1487 = vadd.f32 %v1027, %v1417
        %v1488 = vadd.f32 %v1032, %v1422
        %v1489 = vadd.f32 %v1037, %v1427
        %v1490 = vadd.f32 %v1042, %v1432
        %v1491 = vadd.f32 %v1047, %v1437
        %v1492 = vadd.f32 %v1052, %v1442
        %v1493 = vadd.f32 %v1057, %v1447
        %v1494 = vadd.f32 %v1062, %v1452
        %v1495 = vadd.f32 %v1067, %v1457
        %v1496 = vadd.f32 %v1072, %v1462
        %v1497 = vadd.f32 %v1077, %v1467
        %v1498 = vadd.f32 %v1082, %v1472
        %v1499 = vadd.f32 %v1087, %v1477
        %v1500 = vadd.f32 %v1092, %v1482
        %v1501 = vld [vmem:[%s4] sm:$0x1]
        %v1503 = vlaneseq
        %v1504 = vshrl.u32 %v1503, 7
        %v1505 = vsub.s32 0, %v1504
        %v1506 = vrot.slane %v1501, %v1505
        %v1508 = vadd.f32 %v1485, %v1506
        %v1509 = vadd.f32 %v1486, %v1506
        %v1510 = vadd.f32 %v1487, %v1506
        %v1511 = vadd.f32 %v1488, %v1506
        %v1512 = vadd.f32 %v1489, %v1506
        %v1513 = vadd.f32 %v1490, %v1506
        %v1514 = vadd.f32 %v1491, %v1506
        %v1515 = vadd.f32 %v1492, %v1506
        %v1516 = vadd.f32 %v1493, %v1506
        %v1517 = vadd.f32 %v1494, %v1506
        %v1518 = vadd.f32 %v1495, %v1506
        %v1519 = vadd.f32 %v1496, %v1506
        %v1520 = vadd.f32 %v1497, %v1506
        %v1521 = vadd.f32 %v1498, %v1506
        %v1522 = vadd.f32 %v1499, %v1506
        %v1523 = vadd.f32 %v1500, %v1506
        %v1524 = vmax.f32 %v1508, 0.0
        %v1525 = vmax.f32 %v1509, 0.0
        %v1526 = vmax.f32 %v1510, 0.0
        %v1527 = vmax.f32 %v1511, 0.0
        %v1528 = vmax.f32 %v1512, 0.0
        %v1529 = vmax.f32 %v1513, 0.0
        %v1530 = vmax.f32 %v1514, 0.0
        %v1531 = vmax.f32 %v1515, 0.0
        %v1532 = vmax.f32 %v1516, 0.0
        %v1533 = vmax.f32 %v1517, 0.0
        %v1534 = vmax.f32 %v1518, 0.0
        %v1535 = vmax.f32 %v1519, 0.0
        %v1536 = vmax.f32 %v1520, 0.0
        %v1537 = vmax.f32 %v1521, 0.0
        %v1538 = vmax.f32 %v1522, 0.0
        %v1539 = vmax.f32 %v1523, 0.0
        %1540 = vst [vmem:[#allocation2 + $0x1] sm:$0xff] %v1524
        %1541 = vst [vmem:[#allocation2 + $0x9] sm:$0xff] %v1525
        %1542 = vst [vmem:[#allocation2 + $0x19] sm:$0xff] %v1526
        %1543 = vst [vmem:[#allocation2 + $0x21] sm:$0xff] %v1527
        %1544 = vst [vmem:[#allocation2 + $0x31] sm:$0xff] %v1528
        %1545 = vst [vmem:[#allocation2 + $0x39] sm:$0xff] %v1529
        %1546 = vst [vmem:[#allocation2 + $0x49] sm:$0xff] %v1530
        %1547 = vst [vmem:[#allocation2 + $0x51] sm:$0xff] %v1531
        %1548 = vst [vmem:[#allocation2 + $0x61] sm:$0xff] %v1532
        %1549 = vst [vmem:[#allocation2 + $0x69] sm:$0xff] %v1533
        %1550 = vst [vmem:[#allocation2 + $0x79] sm:$0xff] %v1534
        %1551 = vst [vmem:[#allocation2 + $0x81] sm:$0xff] %v1535
        %1552 = vst [vmem:[#allocation2 + $0x91] sm:$0xff] %v1536
        %1553 = vst [vmem:[#allocation2 + $0x99] sm:$0xff] %v1537
        %1554 = vst [vmem:[#allocation2 + $0xa9] sm:$0xff] %v1538
        %1555 = vst [vmem:[#allocation2 + $0xb1] sm:$0xff] %v1539
        %s1556 = sadd.s32 %s280, 8
        %s1557 = smul.u32 %s1556, 24
        %s1558 = scalar_lea.vmem %s278, %s1557
        %v1559 = vld [vmem:[%s1558] sm:$0xff]
        %v1560 = vld [vmem:[%s1558 + $0x8] sm:$0xff]
        %v1561 = vld [vmem:[%s1558 + $0x18] sm:$0xff]
        %v1562 = vld [vmem:[%s1558 + $0x20] sm:$0xff]
        %v1563 = vld [vmem:[%s1558 + $0x30] sm:$0xff]
        %v1564 = vld [vmem:[%s1558 + $0x38] sm:$0xff]
        %v1565 = vld [vmem:[%s1558 + $0x48] sm:$0xff]
        %v1566 = vld [vmem:[%s1558 + $0x50] sm:$0xff]
        %v1567 = vld [vmem:[%s1558 + $0x60] sm:$0xff]
        %v1568 = vld [vmem:[%s1558 + $0x68] sm:$0xff]
        %v1569 = vld [vmem:[%s1558 + $0x78] sm:$0xff]
        %v1570 = vld [vmem:[%s1558 + $0x80] sm:$0xff]
        %v1571 = vld [vmem:[%s1558 + $0x90] sm:$0xff]
        %v1572 = vld [vmem:[%s1558 + $0x98] sm:$0xff]
        %v1573 = vld [vmem:[%s1558 + $0xa8] sm:$0xff]
        %v1574 = vld [vmem:[%s1558 + $0xb0] sm:$0xff]
        %v1575 = vld [vmem:[%s1558 + $0x1] sm:$0xff]
        %v1576 = vld [vmem:[%s1558 + $0x9] sm:$0xff]
        %v1577 = vld [vmem:[%s1558 + $0x19] sm:$0xff]
        %v1578 = vld [vmem:[%s1558 + $0x21] sm:$0xff]
        %v1579 = vld [vmem:[%s1558 + $0x31] sm:$0xff]
        %v1580 = vld [vmem:[%s1558 + $0x39] sm:$0xff]
        %v1581 = vld [vmem:[%s1558 + $0x49] sm:$0xff]
        %v1582 = vld [vmem:[%s1558 + $0x51] sm:$0xff]
        %v1583 = vld [vmem:[%s1558 + $0x61] sm:$0xff]
        %v1584 = vld [vmem:[%s1558 + $0x69] sm:$0xff]
        %v1585 = vld [vmem:[%s1558 + $0x79] sm:$0xff]
        %v1586 = vld [vmem:[%s1558 + $0x81] sm:$0xff]
        %v1587 = vld [vmem:[%s1558 + $0x91] sm:$0xff]
        %v1588 = vld [vmem:[%s1558 + $0x99] sm:$0xff]
        %v1589 = vld [vmem:[%s1558 + $0xa9] sm:$0xff]
        %v1590 = vld [vmem:[%s1558 + $0xb1] sm:$0xff]
        %v1591 = vld [vmem:[%s1558 + $0x2] sm:$0xff]
        %v1592 = vld [vmem:[%s1558 + $0xa] sm:$0xff]
        %v1593 = vld [vmem:[%s1558 + $0x1a] sm:$0xff]
        %v1594 = vld [vmem:[%s1558 + $0x22] sm:$0xff]
        %v1595 = vld [vmem:[%s1558 + $0x32] sm:$0xff]
        %v1596 = vld [vmem:[%s1558 + $0x3a] sm:$0xff]
        %v1597 = vld [vmem:[%s1558 + $0x4a] sm:$0xff]
        %v1598 = vld [vmem:[%s1558 + $0x52] sm:$0xff]
        %v1599 = vld [vmem:[%s1558 + $0x62] sm:$0xff]
        %v1600 = vld [vmem:[%s1558 + $0x6a] sm:$0xff]
        %v1601 = vld [vmem:[%s1558 + $0x7a] sm:$0xff]
        %v1602 = vld [vmem:[%s1558 + $0x82] sm:$0xff]
        %v1603 = vld [vmem:[%s1558 + $0x92] sm:$0xff]
        %v1604 = vld [vmem:[%s1558 + $0x9a] sm:$0xff]
        %v1605 = vld [vmem:[%s1558 + $0xaa] sm:$0xff]
        %v1606 = vld [vmem:[%s1558 + $0xb2] sm:$0xff]
        %v1607 = vld [vmem:[%s1] sm:$0xff]
        %v1608 = vld [vmem:[%s1 + $0x8] sm:$0xff]
        %v1609 = vld [vmem:[%s1 + $0x10] sm:$0xff]
        %v1610 = vld [vmem:[%s1 + $0x18] sm:$0xff]
        %v1611 = vld [vmem:[%s1 + $0x20] sm:$0xff]
        %v1612 = vld [vmem:[%s1 + $0x28] sm:$0xff]
        %v1613 = vld [vmem:[%s1 + $0x30] sm:$0xff]
        %v1614 = vld [vmem:[%s1 + $0x38] sm:$0xff]
        %v1615 = vld [vmem:[%s1 + $0x40] sm:$0xff]
        %v1616 = vld [vmem:[%s1 + $0x48] sm:$0xff]
        %v1617 = vld [vmem:[%s1 + $0x50] sm:$0xff]
        %v1618 = vld [vmem:[%s1 + $0x58] sm:$0xff]
        %v1619 = vld [vmem:[%s1 + $0x60] sm:$0xff]
        %v1620 = vld [vmem:[%s1 + $0x68] sm:$0xff]
        %v1621 = vld [vmem:[%s1 + $0x70] sm:$0xff]
        %v1622 = vld [vmem:[%s1 + $0x78] sm:$0xff]
        %v1623 = vld [vmem:[%s1 + $0x80] sm:$0xff]
        %v1624 = vld [vmem:[%s1 + $0x88] sm:$0xff]
        %v1625 = vld [vmem:[%s1 + $0x90] sm:$0xff]
        %v1626 = vld [vmem:[%s1 + $0x98] sm:$0xff]
        %v1627 = vld [vmem:[%s1 + $0xa0] sm:$0xff]
        %v1628 = vld [vmem:[%s1 + $0xa8] sm:$0xff]
        %v1629 = vld [vmem:[%s1 + $0xb0] sm:$0xff]
        %v1630 = vld [vmem:[%s1 + $0xb8] sm:$0xff]
        %v1631 = vld [vmem:[%s1 + $0xc0] sm:$0xff]
        %v1632 = vld [vmem:[%s1 + $0xc8] sm:$0xff]
        %v1633 = vld [vmem:[%s1 + $0xd0] sm:$0xff]
        %v1634 = vld [vmem:[%s1 + $0xd8] sm:$0xff]
        %v1635 = vld [vmem:[%s1 + $0xe0] sm:$0xff]
        %v1636 = vld [vmem:[%s1 + $0xe8] sm:$0xff]
        %v1637 = vld [vmem:[%s1 + $0xf0] sm:$0xff]
        %v1638 = vld [vmem:[%s1 + $0xf8] sm:$0xff]
        %v1639 = vld [vmem:[%s1 + $0x100] sm:$0xff]
        %v1640 = vld [vmem:[%s1 + $0x108] sm:$0xff]
        %v1641 = vld [vmem:[%s1 + $0x110] sm:$0xff]
        %v1642 = vld [vmem:[%s1 + $0x118] sm:$0xff]
        %v1643 = vld [vmem:[%s1 + $0x120] sm:$0xff]
        %v1644 = vld [vmem:[%s1 + $0x128] sm:$0xff]
        %v1645 = vld [vmem:[%s1 + $0x130] sm:$0xff]
        %v1646 = vld [vmem:[%s1 + $0x138] sm:$0xff]
        %v1647 = vld [vmem:[%s1 + $0x140] sm:$0xff]
        %v1648 = vld [vmem:[%s1 + $0x148] sm:$0xff]
        %v1649 = vld [vmem:[%s1 + $0x150] sm:$0xff]
        %v1650 = vld [vmem:[%s1 + $0x158] sm:$0xff]
        %v1651 = vld [vmem:[%s1 + $0x160] sm:$0xff]
        %v1652 = vld [vmem:[%s1 + $0x168] sm:$0xff]
        %v1653 = vld [vmem:[%s1 + $0x170] sm:$0xff]
        %v1654 = vld [vmem:[%s1 + $0x178] sm:$0xff]
        %s1655 = sadd.s32 %s280, 9
        %s1656 = smul.u32 %s1655, 24
        %s1657 = scalar_lea.vmem %s278, %s1656
        %v1658 = vld [vmem:[%s1657] sm:$0xff]
        %v1659 = vld [vmem:[%s1657 + $0x8] sm:$0xff]
        %v1660 = vld [vmem:[%s1657 + $0x18] sm:$0xff]
        %v1661 = vld [vmem:[%s1657 + $0x20] sm:$0xff]
        %v1662 = vld [vmem:[%s1657 + $0x30] sm:$0xff]
        %v1663 = vld [vmem:[%s1657 + $0x38] sm:$0xff]
        %v1664 = vld [vmem:[%s1657 + $0x48] sm:$0xff]
        %v1665 = vld [vmem:[%s1657 + $0x50] sm:$0xff]
        %v1666 = vld [vmem:[%s1657 + $0x60] sm:$0xff]
        %v1667 = vld [vmem:[%s1657 + $0x68] sm:$0xff]
        %v1668 = vld [vmem:[%s1657 + $0x78] sm:$0xff]
        %v1669 = vld [vmem:[%s1657 + $0x80] sm:$0xff]
        %v1670 = vld [vmem:[%s1657 + $0x90] sm:$0xff]
        %v1671 = vld [vmem:[%s1657 + $0x98] sm:$0xff]
        %v1672 = vld [vmem:[%s1657 + $0xa8] sm:$0xff]
        %v1673 = vld [vmem:[%s1657 + $0xb0] sm:$0xff]
        %v1674 = vld [vmem:[%s1657 + $0x1] sm:$0xff]
        %v1675 = vld [vmem:[%s1657 + $0x9] sm:$0xff]
        %v1676 = vld [vmem:[%s1657 + $0x19] sm:$0xff]
        %v1677 = vld [vmem:[%s1657 + $0x21] sm:$0xff]
        %v1678 = vld [vmem:[%s1657 + $0x31] sm:$0xff]
        %v1679 = vld [vmem:[%s1657 + $0x39] sm:$0xff]
        %v1680 = vld [vmem:[%s1657 + $0x49] sm:$0xff]
        %v1681 = vld [vmem:[%s1657 + $0x51] sm:$0xff]
        %v1682 = vld [vmem:[%s1657 + $0x61] sm:$0xff]
        %v1683 = vld [vmem:[%s1657 + $0x69] sm:$0xff]
        %v1684 = vld [vmem:[%s1657 + $0x79] sm:$0xff]
        %v1685 = vld [vmem:[%s1657 + $0x81] sm:$0xff]
        %v1686 = vld [vmem:[%s1657 + $0x91] sm:$0xff]
        %v1687 = vld [vmem:[%s1657 + $0x99] sm:$0xff]
        %v1688 = vld [vmem:[%s1657 + $0xa9] sm:$0xff]
        %v1689 = vld [vmem:[%s1657 + $0xb1] sm:$0xff]
        %v1690 = vld [vmem:[%s1657 + $0x2] sm:$0xff]
        %v1691 = vld [vmem:[%s1657 + $0xa] sm:$0xff]
        %v1692 = vld [vmem:[%s1657 + $0x1a] sm:$0xff]
        %v1693 = vld [vmem:[%s1657 + $0x22] sm:$0xff]
        %v1694 = vld [vmem:[%s1657 + $0x32] sm:$0xff]
        %v1695 = vld [vmem:[%s1657 + $0x3a] sm:$0xff]
        %v1696 = vld [vmem:[%s1657 + $0x4a] sm:$0xff]
        %v1697 = vld [vmem:[%s1657 + $0x52] sm:$0xff]
        %v1698 = vld [vmem:[%s1657 + $0x62] sm:$0xff]
        %v1699 = vld [vmem:[%s1657 + $0x6a] sm:$0xff]
        %v1700 = vld [vmem:[%s1657 + $0x7a] sm:$0xff]
        %v1701 = vld [vmem:[%s1657 + $0x82] sm:$0xff]
        %v1702 = vld [vmem:[%s1657 + $0x92] sm:$0xff]
        %v1703 = vld [vmem:[%s1657 + $0x9a] sm:$0xff]
        %v1704 = vld [vmem:[%s1657 + $0xaa] sm:$0xff]
        %v1705 = vld [vmem:[%s1657 + $0xb2] sm:$0xff]
        %v1706 = vld [vmem:[%s466] sm:$0xff]
        %v1707 = vld [vmem:[%s466 + $0x8] sm:$0xff]
        %v1708 = vld [vmem:[%s466 + $0x10] sm:$0xff]
        %v1709 = vld [vmem:[%s466 + $0x18] sm:$0xff]
        %v1710 = vld [vmem:[%s466 + $0x20] sm:$0xff]
        %v1711 = vld [vmem:[%s466 + $0x28] sm:$0xff]
        %v1712 = vld [vmem:[%s466 + $0x30] sm:$0xff]
        %v1713 = vld [vmem:[%s466 + $0x38] sm:$0xff]
        %v1714 = vld [vmem:[%s466 + $0x40] sm:$0xff]
        %v1715 = vld [vmem:[%s466 + $0x48] sm:$0xff]
        %v1716 = vld [vmem:[%s466 + $0x50] sm:$0xff]
        %v1717 = vld [vmem:[%s466 + $0x58] sm:$0xff]
        %v1718 = vld [vmem:[%s466 + $0x60] sm:$0xff]
        %v1719 = vld [vmem:[%s466 + $0x68] sm:$0xff]
        %v1720 = vld [vmem:[%s466 + $0x70] sm:$0xff]
        %v1721 = vld [vmem:[%s466 + $0x78] sm:$0xff]
        %v1722 = vld [vmem:[%s466 + $0x80] sm:$0xff]
        %v1723 = vld [vmem:[%s466 + $0x88] sm:$0xff]
        %v1724 = vld [vmem:[%s466 + $0x90] sm:$0xff]
        %v1725 = vld [vmem:[%s466 + $0x98] sm:$0xff]
        %v1726 = vld [vmem:[%s466 + $0xa0] sm:$0xff]
        %v1727 = vld [vmem:[%s466 + $0xa8] sm:$0xff]
        %v1728 = vld [vmem:[%s466 + $0xb0] sm:$0xff]
        %v1729 = vld [vmem:[%s466 + $0xb8] sm:$0xff]
        %v1730 = vld [vmem:[%s466 + $0xc0] sm:$0xff]
        %v1731 = vld [vmem:[%s466 + $0xc8] sm:$0xff]
        %v1732 = vld [vmem:[%s466 + $0xd0] sm:$0xff]
        %v1733 = vld [vmem:[%s466 + $0xd8] sm:$0xff]
        %v1734 = vld [vmem:[%s466 + $0xe0] sm:$0xff]
        %v1735 = vld [vmem:[%s466 + $0xe8] sm:$0xff]
        %v1736 = vld [vmem:[%s466 + $0xf0] sm:$0xff]
        %v1737 = vld [vmem:[%s466 + $0xf8] sm:$0xff]
        %v1738 = vld [vmem:[%s466 + $0x100] sm:$0xff]
        %v1739 = vld [vmem:[%s466 + $0x108] sm:$0xff]
        %v1740 = vld [vmem:[%s466 + $0x110] sm:$0xff]
        %v1741 = vld [vmem:[%s466 + $0x118] sm:$0xff]
        %v1742 = vld [vmem:[%s466 + $0x120] sm:$0xff]
        %v1743 = vld [vmem:[%s466 + $0x128] sm:$0xff]
        %v1744 = vld [vmem:[%s466 + $0x130] sm:$0xff]
        %v1745 = vld [vmem:[%s466 + $0x138] sm:$0xff]
        %v1746 = vld [vmem:[%s466 + $0x140] sm:$0xff]
        %v1747 = vld [vmem:[%s466 + $0x148] sm:$0xff]
        %v1748 = vld [vmem:[%s466 + $0x150] sm:$0xff]
        %v1749 = vld [vmem:[%s466 + $0x158] sm:$0xff]
        %v1750 = vld [vmem:[%s466 + $0x160] sm:$0xff]
        %v1751 = vld [vmem:[%s466 + $0x168] sm:$0xff]
        %v1752 = vld [vmem:[%s466 + $0x170] sm:$0xff]
        %v1753 = vld [vmem:[%s466 + $0x178] sm:$0xff]
        %1754 = vmatprep.subr.mxu0 0.0
        %1755 = vmatpush1.msra.mxu0 %v1721
        %1756 = vmatprep.subr.mxu0 0.0
        %1757 = vmatpush1.msra.mxu0 %v1720
        %1758 = vmatprep.subr.mxu0 0.0
        %1759 = vmatpush1.msra.mxu0 %v1719
        %1760 = vmatprep.subr.mxu0 0.0
        %1761 = vmatpush1.msra.mxu0 %v1718
        %1762 = vmatprep.subr.mxu0 0.0
        %1763 = vmatpush1.msra.mxu0 %v1717
        %1764 = vmatprep.subr.mxu0 0.0
        %1765 = vmatpush1.msra.mxu0 %v1716
        %1766 = vmatprep.subr.mxu0 0.0
        %1767 = vmatpush1.msra.mxu0 %v1715
        %1768 = vmatprep.subr.mxu0 0.0
        %1769 = vmatpush1.msra.mxu0 %v1714
        %1770 = vmatprep.subr.mxu0 0.0
        %1771 = vmatpush1.msra.mxu0 %v1713
        %1772 = vmatprep.subr.mxu0 0.0
        %1773 = vmatpush1.msra.mxu0 %v1712
        %1774 = vmatprep.subr.mxu0 0.0
        %1775 = vmatpush1.msra.mxu0 %v1711
        %1776 = vmatprep.subr.mxu0 0.0
        %1777 = vmatpush1.msra.mxu0 %v1710
        %1778 = vmatprep.subr.mxu0 0.0
        %1779 = vmatpush1.msra.mxu0 %v1709
        %1780 = vmatprep.subr.mxu0 0.0
        %1781 = vmatpush1.msra.mxu0 %v1708
        %1782 = vmatprep.subr.mxu0 0.0
        %1783 = vmatpush1.msra.mxu0 %v1707
        %1784 = vmatprep.subr.mxu0 0.0
        %1785 = vmatpush1.msra.mxu0 %v1706
        %1786 = vmatprep.subr.mxu0 0.0
        %1787 = vmatpush2.msra.mxu0 %v1737
        %1788 = vmatprep.subr.mxu0 0.0
        %1789 = vmatpush2.msra.mxu0 %v1736
        %1790 = vmatprep.subr.mxu0 0.0
        %1791 = vmatpush2.msra.mxu0 %v1735
        %1792 = vmatprep.subr.mxu0 0.0
        %1793 = vmatpush2.msra.mxu0 %v1734
        %1794 = vmatprep.subr.mxu0 0.0
        %1795 = vmatpush2.msra.mxu0 %v1733
        %1796 = vmatprep.subr.mxu0 0.0
        %1797 = vmatpush2.msra.mxu0 %v1732
        %1798 = vmatprep.subr.mxu0 0.0
        %1799 = vmatpush2.msra.mxu0 %v1731
        %1800 = vmatprep.subr.mxu0 0.0
        %1801 = vmatpush2.msra.mxu0 %v1730
        %1802 = vmatprep.subr.mxu0 0.0
        %1803 = vmatpush2.msra.mxu0 %v1729
        %1804 = vmatprep.subr.mxu0 0.0
        %1805 = vmatpush2.msra.mxu0 %v1728
        %1806 = vmatprep.subr.mxu0 0.0
        %1807 = vmatpush2.msra.mxu0 %v1727
        %1808 = vmatprep.subr.mxu0 0.0
        %1809 = vmatpush2.msra.mxu0 %v1726
        %1810 = vmatprep.subr.mxu0 0.0
        %1811 = vmatpush2.msra.mxu0 %v1725
        %1812 = vmatprep.subr.mxu0 0.0
        %1813 = vmatpush2.msra.mxu0 %v1724
        %1814 = vmatprep.subr.mxu0 0.0
        %1815 = vmatpush2.msra.mxu0 %v1723
        %1816 = vmatprep.subr.mxu0 0.0
        %1817 = vmatpush2.msra.mxu0 %v1722
        %1818 = vmatprep.mubr.f32.mxu0 %v1674
        %1819 = vmatmul.mubr.f32.gmra.mxu0 %v1658
        %v1820 = vpop.f32.mrf.mxu0
        %v1821 = vadd.f32 0.0, %v1820
        %v1822 = vpop.f32.mrf.mxu0
        %1823 = vmatprep.mubr.f32.mxu0 %v1675
        %1824 = vmatmul.mubr.f32.gmra.mxu0 %v1659
        %v1825 = vpop.f32.mrf.mxu0
        %v1826 = vadd.f32 0.0, %v1825
        %v1827 = vpop.f32.mrf.mxu0
        %1828 = vmatprep.mubr.f32.mxu0 %v1676
        %1829 = vmatmul.mubr.f32.gmra.mxu0 %v1660
        %v1830 = vpop.f32.mrf.mxu0
        %v1831 = vadd.f32 0.0, %v1830
        %v1832 = vpop.f32.mrf.mxu0
        %1833 = vmatprep.mubr.f32.mxu0 %v1677
        %1834 = vmatmul.mubr.f32.gmra.mxu0 %v1661
        %v1835 = vpop.f32.mrf.mxu0
        %v1836 = vadd.f32 0.0, %v1835
        %v1837 = vpop.f32.mrf.mxu0
        %1838 = vmatprep.mubr.f32.mxu0 %v1678
        %1839 = vmatmul.mubr.f32.gmra.mxu0 %v1662
        %v1840 = vpop.f32.mrf.mxu0
        %v1841 = vadd.f32 0.0, %v1840
        %v1842 = vpop.f32.mrf.mxu0
        %1843 = vmatprep.mubr.f32.mxu0 %v1679
        %1844 = vmatmul.mubr.f32.gmra.mxu0 %v1663
        %v1845 = vpop.f32.mrf.mxu0
        %v1846 = vadd.f32 0.0, %v1845
        %v1847 = vpop.f32.mrf.mxu0
        %1848 = vmatprep.mubr.f32.mxu0 %v1680
        %1849 = vmatmul.mubr.f32.gmra.mxu0 %v1664
        %v1850 = vpop.f32.mrf.mxu0
        %v1851 = vadd.f32 0.0, %v1850
        %v1852 = vpop.f32.mrf.mxu0
        %1853 = vmatprep.mubr.f32.mxu0 %v1681
        %1854 = vmatmul.mubr.f32.gmra.mxu0 %v1665
        %v1855 = vpop.f32.mrf.mxu0
        %v1856 = vadd.f32 0.0, %v1855
        %v1857 = vpop.f32.mrf.mxu0
        %1858 = vmatprep.mubr.f32.mxu0 %v1682
        %1859 = vmatmul.mubr.f32.gmra.mxu0 %v1666
        %v1860 = vpop.f32.mrf.mxu0
        %v1861 = vadd.f32 0.0, %v1860
        %v1862 = vpop.f32.mrf.mxu0
        %1863 = vmatprep.mubr.f32.mxu0 %v1683
        %1864 = vmatmul.mubr.f32.gmra.mxu0 %v1667
        %v1865 = vpop.f32.mrf.mxu0
        %v1866 = vadd.f32 0.0, %v1865
        %v1867 = vpop.f32.mrf.mxu0
        %1868 = vmatprep.mubr.f32.mxu0 %v1684
        %1869 = vmatmul.mubr.f32.gmra.mxu0 %v1668
        %v1870 = vpop.f32.mrf.mxu0
        %v1871 = vadd.f32 0.0, %v1870
        %v1872 = vpop.f32.mrf.mxu0
        %1873 = vmatprep.mubr.f32.mxu0 %v1685
        %1874 = vmatmul.mubr.f32.gmra.mxu0 %v1669
        %v1875 = vpop.f32.mrf.mxu0
        %v1876 = vadd.f32 0.0, %v1875
        %v1877 = vpop.f32.mrf.mxu0
        %1878 = vmatprep.mubr.f32.mxu0 %v1686
        %1879 = vmatmul.mubr.f32.gmra.mxu0 %v1670
        %v1880 = vpop.f32.mrf.mxu0
        %v1881 = vadd.f32 0.0, %v1880
        %v1882 = vpop.f32.mrf.mxu0
        %1883 = vmatprep.mubr.f32.mxu0 %v1687
        %1884 = vmatmul.mubr.f32.gmra.mxu0 %v1671
        %v1885 = vpop.f32.mrf.mxu0
        %v1886 = vadd.f32 0.0, %v1885
        %v1887 = vpop.f32.mrf.mxu0
        %1888 = vmatprep.mubr.f32.mxu0 %v1688
        %1889 = vmatmul.mubr.f32.gmra.mxu0 %v1672
        %v1890 = vpop.f32.mrf.mxu0
        %v1891 = vadd.f32 0.0, %v1890
        %v1892 = vpop.f32.mrf.mxu0
        %1893 = vmatprep.mubr.f32.mxu0 %v1689
        %1894 = vmatmul.mubr.f32.gmra.mxu0 %v1673
        %v1895 = vpop.f32.mrf.mxu0
        %v1896 = vadd.f32 0.0, %v1895
        %v1897 = vpop.f32.mrf.mxu0
        %1898 = vdwg.mxu0
        %1899 = vmatprep.subr.mxu0 0.0
        %1900 = vmatpush1.msra.mxu0 %v1753
        %1901 = vmatprep.subr.mxu0 0.0
        %1902 = vmatpush1.msra.mxu0 %v1752
        %1903 = vmatprep.subr.mxu0 0.0
        %1904 = vmatpush1.msra.mxu0 %v1751
        %1905 = vmatprep.subr.mxu0 0.0
        %1906 = vmatpush1.msra.mxu0 %v1750
        %1907 = vmatprep.subr.mxu0 0.0
        %1908 = vmatpush1.msra.mxu0 %v1749
        %1909 = vmatprep.subr.mxu0 0.0
        %1910 = vmatpush1.msra.mxu0 %v1748
        %1911 = vmatprep.subr.mxu0 0.0
        %1912 = vmatpush1.msra.mxu0 %v1747
        %1913 = vmatprep.subr.mxu0 0.0
        %1914 = vmatpush1.msra.mxu0 %v1746
        %1915 = vmatprep.subr.mxu0 0.0
        %1916 = vmatpush1.msra.mxu0 %v1745
        %1917 = vmatprep.subr.mxu0 0.0
        %1918 = vmatpush1.msra.mxu0 %v1744
        %1919 = vmatprep.subr.mxu0 0.0
        %1920 = vmatpush1.msra.mxu0 %v1743
        %1921 = vmatprep.subr.mxu0 0.0
        %1922 = vmatpush1.msra.mxu0 %v1742
        %1923 = vmatprep.subr.mxu0 0.0
        %1924 = vmatpush1.msra.mxu0 %v1741
        %1925 = vmatprep.subr.mxu0 0.0
        %1926 = vmatpush1.msra.mxu0 %v1740
        %1927 = vmatprep.subr.mxu0 0.0
        %1928 = vmatpush1.msra.mxu0 %v1739
        %1929 = vmatprep.subr.mxu0 0.0
        %1930 = vmatpush1.msra.mxu0 %v1738
        %1931 = vmatprep.subr.mxu0 0.0
        %1932 = vmatpush2.msra.mxu0 0.0
        %1933 = vmatprep.subr.mxu0 0.0
        %1934 = vmatpush2.msra.mxu0 0.0
        %1935 = vmatprep.subr.mxu0 0.0
        %1936 = vmatpush2.msra.mxu0 0.0
        %1937 = vmatprep.subr.mxu0 0.0
        %1938 = vmatpush2.msra.mxu0 0.0
        %1939 = vmatprep.subr.mxu0 0.0
        %1940 = vmatpush2.msra.mxu0 0.0
        %1941 = vmatprep.subr.mxu0 0.0
        %1942 = vmatpush2.msra.mxu0 0.0
        %1943 = vmatprep.subr.mxu0 0.0
        %1944 = vmatpush2.msra.mxu0 0.0
        %1945 = vmatprep.subr.mxu0 0.0
        %1946 = vmatpush2.msra.mxu0 0.0
        %1947 = vmatprep.subr.mxu0 0.0
        %1948 = vmatpush2.msra.mxu0 0.0
        %1949 = vmatprep.subr.mxu0 0.0
        %1950 = vmatpush2.msra.mxu0 0.0
        %1951 = vmatprep.subr.mxu0 0.0
        %1952 = vmatpush2.msra.mxu0 0.0
        %1953 = vmatprep.subr.mxu0 0.0
        %1954 = vmatpush2.msra.mxu0 0.0
        %1955 = vmatprep.subr.mxu0 0.0
        %1956 = vmatpush2.msra.mxu0 0.0
        %1957 = vmatprep.subr.mxu0 0.0
        %1958 = vmatpush2.msra.mxu0 0.0
        %1959 = vmatprep.subr.mxu0 0.0
        %1960 = vmatpush2.msra.mxu0 0.0
        %1961 = vmatprep.subr.mxu0 0.0
        %1962 = vmatpush2.msra.mxu0 0.0
        %1963 = vmatprep.mubr.f32.mxu0 0.0
        %1964 = vmatmul.mubr.f32.gmra.mxu0 %v1690
        %v1965 = vpop.f32.mrf.mxu0
        %v1966 = vadd.f32 %v1821, %v1965
        %v1967 = vpop.f32.mrf.mxu0
        %1968 = vmatprep.mubr.f32.mxu0 0.0
        %1969 = vmatmul.mubr.f32.gmra.mxu0 %v1691
        %v1970 = vpop.f32.mrf.mxu0
        %v1971 = vadd.f32 %v1826, %v1970
        %v1972 = vpop.f32.mrf.mxu0
        %1973 = vmatprep.mubr.f32.mxu0 0.0
        %1974 = vmatmul.mubr.f32.gmra.mxu0 %v1692
        %v1975 = vpop.f32.mrf.mxu0
        %v1976 = vadd.f32 %v1831, %v1975
        %v1977 = vpop.f32.mrf.mxu0
        %1978 = vmatprep.mubr.f32.mxu0 0.0
        %1979 = vmatmul.mubr.f32.gmra.mxu0 %v1693
        %v1980 = vpop.f32.mrf.mxu0
        %v1981 = vadd.f32 %v1836, %v1980
        %v1982 = vpop.f32.mrf.mxu0
        %1983 = vmatprep.mubr.f32.mxu0 0.0
        %1984 = vmatmul.mubr.f32.gmra.mxu0 %v1694
        %v1985 = vpop.f32.mrf.mxu0
        %v1986 = vadd.f32 %v1841, %v1985
        %v1987 = vpop.f32.mrf.mxu0
        %1988 = vmatprep.mubr.f32.mxu0 0.0
        %1989 = vmatmul.mubr.f32.gmra.mxu0 %v1695
        %v1990 = vpop.f32.mrf.mxu0
        %v1991 = vadd.f32 %v1846, %v1990
        %v1992 = vpop.f32.mrf.mxu0
        %1993 = vmatprep.mubr.f32.mxu0 0.0
        %1994 = vmatmul.mubr.f32.gmra.mxu0 %v1696
        %v1995 = vpop.f32.mrf.mxu0
        %v1996 = vadd.f32 %v1851, %v1995
        %v1997 = vpop.f32.mrf.mxu0
        %1998 = vmatprep.mubr.f32.mxu0 0.0
        %1999 = vmatmul.mubr.f32.gmra.mxu0 %v1697
        %v2000 = vpop.f32.mrf.mxu0
        %v2001 = vadd.f32 %v1856, %v2000
        %v2002 = vpop.f32.mrf.mxu0
        %2003 = vmatprep.mubr.f32.mxu0 0.0
        %2004 = vmatmul.mubr.f32.gmra.mxu0 %v1698
        %v2005 = vpop.f32.mrf.mxu0
        %v2006 = vadd.f32 %v1861, %v2005
        %v2007 = vpop.f32.mrf.mxu0
        %2008 = vmatprep.mubr.f32.mxu0 0.0
        %2009 = vmatmul.mubr.f32.gmra.mxu0 %v1699
        %v2010 = vpop.f32.mrf.mxu0
        %v2011 = vadd.f32 %v1866, %v2010
        %v2012 = vpop.f32.mrf.mxu0
        %2013 = vmatprep.mubr.f32.mxu0 0.0
        %2014 = vmatmul.mubr.f32.gmra.mxu0 %v1700
        %v2015 = vpop.f32.mrf.mxu0
        %v2016 = vadd.f32 %v1871, %v2015
        %v2017 = vpop.f32.mrf.mxu0
        %2018 = vmatprep.mubr.f32.mxu0 0.0
        %2019 = vmatmul.mubr.f32.gmra.mxu0 %v1701
        %v2020 = vpop.f32.mrf.mxu0
        %v2021 = vadd.f32 %v1876, %v2020
        %v2022 = vpop.f32.mrf.mxu0
        %2023 = vmatprep.mubr.f32.mxu0 0.0
        %2024 = vmatmul.mubr.f32.gmra.mxu0 %v1702
        %v2025 = vpop.f32.mrf.mxu0
        %v2026 = vadd.f32 %v1881, %v2025
        %v2027 = vpop.f32.mrf.mxu0
        %2028 = vmatprep.mubr.f32.mxu0 0.0
        %2029 = vmatmul.mubr.f32.gmra.mxu0 %v1703
        %v2030 = vpop.f32.mrf.mxu0
        %v2031 = vadd.f32 %v1886, %v2030
        %v2032 = vpop.f32.mrf.mxu0
        %2033 = vmatprep.mubr.f32.mxu0 0.0
        %2034 = vmatmul.mubr.f32.gmra.mxu0 %v1704
        %v2035 = vpop.f32.mrf.mxu0
        %v2036 = vadd.f32 %v1891, %v2035
        %v2037 = vpop.f32.mrf.mxu0
        %2038 = vmatprep.mubr.f32.mxu0 0.0
        %2039 = vmatmul.mubr.f32.gmra.mxu0 %v1705
        %v2040 = vpop.f32.mrf.mxu0
        %v2041 = vadd.f32 %v1896, %v2040
        %v2042 = vpop.f32.mrf.mxu0
        %2043 = vdwg.mxu0
        %2044 = vmatprep.subr.mxu0 0.0
        %2045 = vmatpush1.msra.mxu0 %v1622
        %2046 = vmatprep.subr.mxu0 0.0
        %2047 = vmatpush1.msra.mxu0 %v1621
        %2048 = vmatprep.subr.mxu0 0.0
        %2049 = vmatpush1.msra.mxu0 %v1620
        %2050 = vmatprep.subr.mxu0 0.0
        %2051 = vmatpush1.msra.mxu0 %v1619
        %2052 = vmatprep.subr.mxu0 0.0
        %2053 = vmatpush1.msra.mxu0 %v1618
        %2054 = vmatprep.subr.mxu0 0.0
        %2055 = vmatpush1.msra.mxu0 %v1617
        %2056 = vmatprep.subr.mxu0 0.0
        %2057 = vmatpush1.msra.mxu0 %v1616
        %2058 = vmatprep.subr.mxu0 0.0
        %2059 = vmatpush1.msra.mxu0 %v1615
        %2060 = vmatprep.subr.mxu0 0.0
        %2061 = vmatpush1.msra.mxu0 %v1614
        %2062 = vmatprep.subr.mxu0 0.0
        %2063 = vmatpush1.msra.mxu0 %v1613
        %2064 = vmatprep.subr.mxu0 0.0
        %2065 = vmatpush1.msra.mxu0 %v1612
        %2066 = vmatprep.subr.mxu0 0.0
        %2067 = vmatpush1.msra.mxu0 %v1611
        %2068 = vmatprep.subr.mxu0 0.0
        %2069 = vmatpush1.msra.mxu0 %v1610
        %2070 = vmatprep.subr.mxu0 0.0
        %2071 = vmatpush1.msra.mxu0 %v1609
        %2072 = vmatprep.subr.mxu0 0.0
        %2073 = vmatpush1.msra.mxu0 %v1608
        %2074 = vmatprep.subr.mxu0 0.0
        %2075 = vmatpush1.msra.mxu0 %v1607
        %2076 = vmatprep.subr.mxu0 0.0
        %2077 = vmatpush2.msra.mxu0 %v1638
        %2078 = vmatprep.subr.mxu0 0.0
        %2079 = vmatpush2.msra.mxu0 %v1637
        %2080 = vmatprep.subr.mxu0 0.0
        %2081 = vmatpush2.msra.mxu0 %v1636
        %2082 = vmatprep.subr.mxu0 0.0
        %2083 = vmatpush2.msra.mxu0 %v1635
        %2084 = vmatprep.subr.mxu0 0.0
        %2085 = vmatpush2.msra.mxu0 %v1634
        %2086 = vmatprep.subr.mxu0 0.0
        %2087 = vmatpush2.msra.mxu0 %v1633
        %2088 = vmatprep.subr.mxu0 0.0
        %2089 = vmatpush2.msra.mxu0 %v1632
        %2090 = vmatprep.subr.mxu0 0.0
        %2091 = vmatpush2.msra.mxu0 %v1631
        %2092 = vmatprep.subr.mxu0 0.0
        %2093 = vmatpush2.msra.mxu0 %v1630
        %2094 = vmatprep.subr.mxu0 0.0
        %2095 = vmatpush2.msra.mxu0 %v1629
        %2096 = vmatprep.subr.mxu0 0.0
        %2097 = vmatpush2.msra.mxu0 %v1628
        %2098 = vmatprep.subr.mxu0 0.0
        %2099 = vmatpush2.msra.mxu0 %v1627
        %2100 = vmatprep.subr.mxu0 0.0
        %2101 = vmatpush2.msra.mxu0 %v1626
        %2102 = vmatprep.subr.mxu0 0.0
        %2103 = vmatpush2.msra.mxu0 %v1625
        %2104 = vmatprep.subr.mxu0 0.0
        %2105 = vmatpush2.msra.mxu0 %v1624
        %2106 = vmatprep.subr.mxu0 0.0
        %2107 = vmatpush2.msra.mxu0 %v1623
        %2108 = vmatprep.mubr.f32.mxu0 %v1575
        %2109 = vmatmul.mubr.f32.gmra.mxu0 %v1559
        %v2110 = vpop.f32.mrf.mxu0
        %v2111 = vadd.f32 %v1966, %v2110
        %v2112 = vpop.f32.mrf.mxu0
        %2113 = vmatprep.mubr.f32.mxu0 %v1576
        %2114 = vmatmul.mubr.f32.gmra.mxu0 %v1560
        %v2115 = vpop.f32.mrf.mxu0
        %v2116 = vadd.f32 %v1971, %v2115
        %v2117 = vpop.f32.mrf.mxu0
        %2118 = vmatprep.mubr.f32.mxu0 %v1577
        %2119 = vmatmul.mubr.f32.gmra.mxu0 %v1561
        %v2120 = vpop.f32.mrf.mxu0
        %v2121 = vadd.f32 %v1976, %v2120
        %v2122 = vpop.f32.mrf.mxu0
        %2123 = vmatprep.mubr.f32.mxu0 %v1578
        %2124 = vmatmul.mubr.f32.gmra.mxu0 %v1562
        %v2125 = vpop.f32.mrf.mxu0
        %v2126 = vadd.f32 %v1981, %v2125
        %v2127 = vpop.f32.mrf.mxu0
        %2128 = vmatprep.mubr.f32.mxu0 %v1579
        %2129 = vmatmul.mubr.f32.gmra.mxu0 %v1563
        %v2130 = vpop.f32.mrf.mxu0
        %v2131 = vadd.f32 %v1986, %v2130
        %v2132 = vpop.f32.mrf.mxu0
        %2133 = vmatprep.mubr.f32.mxu0 %v1580
        %2134 = vmatmul.mubr.f32.gmra.mxu0 %v1564
        %v2135 = vpop.f32.mrf.mxu0
        %v2136 = vadd.f32 %v1991, %v2135
        %v2137 = vpop.f32.mrf.mxu0
        %2138 = vmatprep.mubr.f32.mxu0 %v1581
        %2139 = vmatmul.mubr.f32.gmra.mxu0 %v1565
        %v2140 = vpop.f32.mrf.mxu0
        %v2141 = vadd.f32 %v1996, %v2140
        %v2142 = vpop.f32.mrf.mxu0
        %2143 = vmatprep.mubr.f32.mxu0 %v1582
        %2144 = vmatmul.mubr.f32.gmra.mxu0 %v1566
        %v2145 = vpop.f32.mrf.mxu0
        %v2146 = vadd.f32 %v2001, %v2145
        %v2147 = vpop.f32.mrf.mxu0
        %2148 = vmatprep.mubr.f32.mxu0 %v1583
        %2149 = vmatmul.mubr.f32.gmra.mxu0 %v1567
        %v2150 = vpop.f32.mrf.mxu0
        %v2151 = vadd.f32 %v2006, %v2150
        %v2152 = vpop.f32.mrf.mxu0
        %2153 = vmatprep.mubr.f32.mxu0 %v1584
        %2154 = vmatmul.mubr.f32.gmra.mxu0 %v1568
        %v2155 = vpop.f32.mrf.mxu0
        %v2156 = vadd.f32 %v2011, %v2155
        %v2157 = vpop.f32.mrf.mxu0
        %2158 = vmatprep.mubr.f32.mxu0 %v1585
        %2159 = vmatmul.mubr.f32.gmra.mxu0 %v1569
        %v2160 = vpop.f32.mrf.mxu0
        %v2161 = vadd.f32 %v2016, %v2160
        %v2162 = vpop.f32.mrf.mxu0
        %2163 = vmatprep.mubr.f32.mxu0 %v1586
        %2164 = vmatmul.mubr.f32.gmra.mxu0 %v1570
        %v2165 = vpop.f32.mrf.mxu0
        %v2166 = vadd.f32 %v2021, %v2165
        %v2167 = vpop.f32.mrf.mxu0
        %2168 = vmatprep.mubr.f32.mxu0 %v1587
        %2169 = vmatmul.mubr.f32.gmra.mxu0 %v1571
        %v2170 = vpop.f32.mrf.mxu0
        %v2171 = vadd.f32 %v2026, %v2170
        %v2172 = vpop.f32.mrf.mxu0
        %2173 = vmatprep.mubr.f32.mxu0 %v1588
        %2174 = vmatmul.mubr.f32.gmra.mxu0 %v1572
        %v2175 = vpop.f32.mrf.mxu0
        %v2176 = vadd.f32 %v2031, %v2175
        %v2177 = vpop.f32.mrf.mxu0
        %2178 = vmatprep.mubr.f32.mxu0 %v1589
        %2179 = vmatmul.mubr.f32.gmra.mxu0 %v1573
        %v2180 = vpop.f32.mrf.mxu0
        %v2181 = vadd.f32 %v2036, %v2180
        %v2182 = vpop.f32.mrf.mxu0
        %2183 = vmatprep.mubr.f32.mxu0 %v1590
        %2184 = vmatmul.mubr.f32.gmra.mxu0 %v1574
        %v2185 = vpop.f32.mrf.mxu0
        %v2186 = vadd.f32 %v2041, %v2185
        %v2187 = vpop.f32.mrf.mxu0
        %2188 = vdwg.mxu0
        %2189 = vmatprep.subr.mxu0 0.0
        %2190 = vmatpush1.msra.mxu0 %v1654
        %2191 = vmatprep.subr.mxu0 0.0
        %2192 = vmatpush1.msra.mxu0 %v1653
        %2193 = vmatprep.subr.mxu0 0.0
        %2194 = vmatpush1.msra.mxu0 %v1652
        %2195 = vmatprep.subr.mxu0 0.0
        %2196 = vmatpush1.msra.mxu0 %v1651
        %2197 = vmatprep.subr.mxu0 0.0
        %2198 = vmatpush1.msra.mxu0 %v1650
        %2199 = vmatprep.subr.mxu0 0.0
        %2200 = vmatpush1.msra.mxu0 %v1649
        %2201 = vmatprep.subr.mxu0 0.0
        %2202 = vmatpush1.msra.mxu0 %v1648
        %2203 = vmatprep.subr.mxu0 0.0
        %2204 = vmatpush1.msra.mxu0 %v1647
        %2205 = vmatprep.subr.mxu0 0.0
        %2206 = vmatpush1.msra.mxu0 %v1646
        %2207 = vmatprep.subr.mxu0 0.0
        %2208 = vmatpush1.msra.mxu0 %v1645
        %2209 = vmatprep.subr.mxu0 0.0
        %2210 = vmatpush1.msra.mxu0 %v1644
        %2211 = vmatprep.subr.mxu0 0.0
        %2212 = vmatpush1.msra.mxu0 %v1643
        %2213 = vmatprep.subr.mxu0 0.0
        %2214 = vmatpush1.msra.mxu0 %v1642
        %2215 = vmatprep.subr.mxu0 0.0
        %2216 = vmatpush1.msra.mxu0 %v1641
        %2217 = vmatprep.subr.mxu0 0.0
        %2218 = vmatpush1.msra.mxu0 %v1640
        %2219 = vmatprep.subr.mxu0 0.0
        %2220 = vmatpush1.msra.mxu0 %v1639
        %2221 = vmatprep.subr.mxu0 0.0
        %2222 = vmatpush2.msra.mxu0 0.0
        %2223 = vmatprep.subr.mxu0 0.0
        %2224 = vmatpush2.msra.mxu0 0.0
        %2225 = vmatprep.subr.mxu0 0.0
        %2226 = vmatpush2.msra.mxu0 0.0
        %2227 = vmatprep.subr.mxu0 0.0
        %2228 = vmatpush2.msra.mxu0 0.0
        %2229 = vmatprep.subr.mxu0 0.0
        %2230 = vmatpush2.msra.mxu0 0.0
        %2231 = vmatprep.subr.mxu0 0.0
        %2232 = vmatpush2.msra.mxu0 0.0
        %2233 = vmatprep.subr.mxu0 0.0
        %2234 = vmatpush2.msra.mxu0 0.0
        %2235 = vmatprep.subr.mxu0 0.0
        %2236 = vmatpush2.msra.mxu0 0.0
        %2237 = vmatprep.subr.mxu0 0.0
        %2238 = vmatpush2.msra.mxu0 0.0
        %2239 = vmatprep.subr.mxu0 0.0
        %2240 = vmatpush2.msra.mxu0 0.0
        %2241 = vmatprep.subr.mxu0 0.0
        %2242 = vmatpush2.msra.mxu0 0.0
        %2243 = vmatprep.subr.mxu0 0.0
        %2244 = vmatpush2.msra.mxu0 0.0
        %2245 = vmatprep.subr.mxu0 0.0
        %2246 = vmatpush2.msra.mxu0 0.0
        %2247 = vmatprep.subr.mxu0 0.0
        %2248 = vmatpush2.msra.mxu0 0.0
        %2249 = vmatprep.subr.mxu0 0.0
        %2250 = vmatpush2.msra.mxu0 0.0
        %2251 = vmatprep.subr.mxu0 0.0
        %2252 = vmatpush2.msra.mxu0 0.0
        %2253 = vmatprep.mubr.f32.mxu0 0.0
        %2254 = vmatmul.mubr.f32.gmra.mxu0 %v1591
        %v2255 = vpop.f32.mrf.mxu0
        %v2256 = vadd.f32 %v2111, %v2255
        %v2257 = vpop.f32.mrf.mxu0
        %2258 = vmatprep.mubr.f32.mxu0 0.0
        %2259 = vmatmul.mubr.f32.gmra.mxu0 %v1592
        %v2260 = vpop.f32.mrf.mxu0
        %v2261 = vadd.f32 %v2116, %v2260
        %v2262 = vpop.f32.mrf.mxu0
        %2263 = vmatprep.mubr.f32.mxu0 0.0
        %2264 = vmatmul.mubr.f32.gmra.mxu0 %v1593
        %v2265 = vpop.f32.mrf.mxu0
        %v2266 = vadd.f32 %v2121, %v2265
        %v2267 = vpop.f32.mrf.mxu0
        %2268 = vmatprep.mubr.f32.mxu0 0.0
        %2269 = vmatmul.mubr.f32.gmra.mxu0 %v1594
        %v2270 = vpop.f32.mrf.mxu0
        %v2271 = vadd.f32 %v2126, %v2270
        %v2272 = vpop.f32.mrf.mxu0
        %2273 = vmatprep.mubr.f32.mxu0 0.0
        %2274 = vmatmul.mubr.f32.gmra.mxu0 %v1595
        %v2275 = vpop.f32.mrf.mxu0
        %v2276 = vadd.f32 %v2131, %v2275
        %v2277 = vpop.f32.mrf.mxu0
        %2278 = vmatprep.mubr.f32.mxu0 0.0
        %2279 = vmatmul.mubr.f32.gmra.mxu0 %v1596
        %v2280 = vpop.f32.mrf.mxu0
        %v2281 = vadd.f32 %v2136, %v2280
        %v2282 = vpop.f32.mrf.mxu0
        %2283 = vmatprep.mubr.f32.mxu0 0.0
        %2284 = vmatmul.mubr.f32.gmra.mxu0 %v1597
        %v2285 = vpop.f32.mrf.mxu0
        %v2286 = vadd.f32 %v2141, %v2285
        %v2287 = vpop.f32.mrf.mxu0
        %2288 = vmatprep.mubr.f32.mxu0 0.0
        %2289 = vmatmul.mubr.f32.gmra.mxu0 %v1598
        %v2290 = vpop.f32.mrf.mxu0
        %v2291 = vadd.f32 %v2146, %v2290
        %v2292 = vpop.f32.mrf.mxu0
        %2293 = vmatprep.mubr.f32.mxu0 0.0
        %2294 = vmatmul.mubr.f32.gmra.mxu0 %v1599
        %v2295 = vpop.f32.mrf.mxu0
        %v2296 = vadd.f32 %v2151, %v2295
        %v2297 = vpop.f32.mrf.mxu0
        %2298 = vmatprep.mubr.f32.mxu0 0.0
        %2299 = vmatmul.mubr.f32.gmra.mxu0 %v1600
        %v2300 = vpop.f32.mrf.mxu0
        %v2301 = vadd.f32 %v2156, %v2300
        %v2302 = vpop.f32.mrf.mxu0
        %2303 = vmatprep.mubr.f32.mxu0 0.0
        %2304 = vmatmul.mubr.f32.gmra.mxu0 %v1601
        %v2305 = vpop.f32.mrf.mxu0
        %v2306 = vadd.f32 %v2161, %v2305
        %v2307 = vpop.f32.mrf.mxu0
        %2308 = vmatprep.mubr.f32.mxu0 0.0
        %2309 = vmatmul.mubr.f32.gmra.mxu0 %v1602
        %v2310 = vpop.f32.mrf.mxu0
        %v2311 = vadd.f32 %v2166, %v2310
        %v2312 = vpop.f32.mrf.mxu0
        %2313 = vmatprep.mubr.f32.mxu0 0.0
        %2314 = vmatmul.mubr.f32.gmra.mxu0 %v1603
        %v2315 = vpop.f32.mrf.mxu0
        %v2316 = vadd.f32 %v2171, %v2315
        %v2317 = vpop.f32.mrf.mxu0
        %2318 = vmatprep.mubr.f32.mxu0 0.0
        %2319 = vmatmul.mubr.f32.gmra.mxu0 %v1604
        %v2320 = vpop.f32.mrf.mxu0
        %v2321 = vadd.f32 %v2176, %v2320
        %v2322 = vpop.f32.mrf.mxu0
        %2323 = vmatprep.mubr.f32.mxu0 0.0
        %2324 = vmatmul.mubr.f32.gmra.mxu0 %v1605
        %v2325 = vpop.f32.mrf.mxu0
        %v2326 = vadd.f32 %v2181, %v2325
        %v2327 = vpop.f32.mrf.mxu0
        %2328 = vmatprep.mubr.f32.mxu0 0.0
        %2329 = vmatmul.mubr.f32.gmra.mxu0 %v1606
        %v2330 = vpop.f32.mrf.mxu0
        %v2331 = vadd.f32 %v2186, %v2330
        %v2332 = vpop.f32.mrf.mxu0
        %2333 = vdwg.mxu0
        %s2334 = sadd.s32 %s280, 10
        %s2335 = smul.u32 %s2334, 24
        %s2336 = scalar_lea.vmem %s278, %s2335
        %v2337 = vld [vmem:[%s2336] sm:$0xff]
        %v2338 = vld [vmem:[%s2336 + $0x8] sm:$0xff]
        %v2339 = vld [vmem:[%s2336 + $0x18] sm:$0xff]
        %v2340 = vld [vmem:[%s2336 + $0x20] sm:$0xff]
        %v2341 = vld [vmem:[%s2336 + $0x30] sm:$0xff]
        %v2342 = vld [vmem:[%s2336 + $0x38] sm:$0xff]
        %v2343 = vld [vmem:[%s2336 + $0x48] sm:$0xff]
        %v2344 = vld [vmem:[%s2336 + $0x50] sm:$0xff]
        %v2345 = vld [vmem:[%s2336 + $0x60] sm:$0xff]
        %v2346 = vld [vmem:[%s2336 + $0x68] sm:$0xff]
        %v2347 = vld [vmem:[%s2336 + $0x78] sm:$0xff]
        %v2348 = vld [vmem:[%s2336 + $0x80] sm:$0xff]
        %v2349 = vld [vmem:[%s2336 + $0x90] sm:$0xff]
        %v2350 = vld [vmem:[%s2336 + $0x98] sm:$0xff]
        %v2351 = vld [vmem:[%s2336 + $0xa8] sm:$0xff]
        %v2352 = vld [vmem:[%s2336 + $0xb0] sm:$0xff]
        %v2353 = vld [vmem:[%s2336 + $0x1] sm:$0xff]
        %v2354 = vld [vmem:[%s2336 + $0x9] sm:$0xff]
        %v2355 = vld [vmem:[%s2336 + $0x19] sm:$0xff]
        %v2356 = vld [vmem:[%s2336 + $0x21] sm:$0xff]
        %v2357 = vld [vmem:[%s2336 + $0x31] sm:$0xff]
        %v2358 = vld [vmem:[%s2336 + $0x39] sm:$0xff]
        %v2359 = vld [vmem:[%s2336 + $0x49] sm:$0xff]
        %v2360 = vld [vmem:[%s2336 + $0x51] sm:$0xff]
        %v2361 = vld [vmem:[%s2336 + $0x61] sm:$0xff]
        %v2362 = vld [vmem:[%s2336 + $0x69] sm:$0xff]
        %v2363 = vld [vmem:[%s2336 + $0x79] sm:$0xff]
        %v2364 = vld [vmem:[%s2336 + $0x81] sm:$0xff]
        %v2365 = vld [vmem:[%s2336 + $0x91] sm:$0xff]
        %v2366 = vld [vmem:[%s2336 + $0x99] sm:$0xff]
        %v2367 = vld [vmem:[%s2336 + $0xa9] sm:$0xff]
        %v2368 = vld [vmem:[%s2336 + $0xb1] sm:$0xff]
        %v2369 = vld [vmem:[%s2336 + $0x2] sm:$0xff]
        %v2370 = vld [vmem:[%s2336 + $0xa] sm:$0xff]
        %v2371 = vld [vmem:[%s2336 + $0x1a] sm:$0xff]
        %v2372 = vld [vmem:[%s2336 + $0x22] sm:$0xff]
        %v2373 = vld [vmem:[%s2336 + $0x32] sm:$0xff]
        %v2374 = vld [vmem:[%s2336 + $0x3a] sm:$0xff]
        %v2375 = vld [vmem:[%s2336 + $0x4a] sm:$0xff]
        %v2376 = vld [vmem:[%s2336 + $0x52] sm:$0xff]
        %v2377 = vld [vmem:[%s2336 + $0x62] sm:$0xff]
        %v2378 = vld [vmem:[%s2336 + $0x6a] sm:$0xff]
        %v2379 = vld [vmem:[%s2336 + $0x7a] sm:$0xff]
        %v2380 = vld [vmem:[%s2336 + $0x82] sm:$0xff]
        %v2381 = vld [vmem:[%s2336 + $0x92] sm:$0xff]
        %v2382 = vld [vmem:[%s2336 + $0x9a] sm:$0xff]
        %v2383 = vld [vmem:[%s2336 + $0xaa] sm:$0xff]
        %v2384 = vld [vmem:[%s2336 + $0xb2] sm:$0xff]
        %v2385 = vld [vmem:[%s1146] sm:$0xff]
        %v2386 = vld [vmem:[%s1146 + $0x8] sm:$0xff]
        %v2387 = vld [vmem:[%s1146 + $0x10] sm:$0xff]
        %v2388 = vld [vmem:[%s1146 + $0x18] sm:$0xff]
        %v2389 = vld [vmem:[%s1146 + $0x20] sm:$0xff]
        %v2390 = vld [vmem:[%s1146 + $0x28] sm:$0xff]
        %v2391 = vld [vmem:[%s1146 + $0x30] sm:$0xff]
        %v2392 = vld [vmem:[%s1146 + $0x38] sm:$0xff]
        %v2393 = vld [vmem:[%s1146 + $0x40] sm:$0xff]
        %v2394 = vld [vmem:[%s1146 + $0x48] sm:$0xff]
        %v2395 = vld [vmem:[%s1146 + $0x50] sm:$0xff]
        %v2396 = vld [vmem:[%s1146 + $0x58] sm:$0xff]
        %v2397 = vld [vmem:[%s1146 + $0x60] sm:$0xff]
        %v2398 = vld [vmem:[%s1146 + $0x68] sm:$0xff]
        %v2399 = vld [vmem:[%s1146 + $0x70] sm:$0xff]
        %v2400 = vld [vmem:[%s1146 + $0x78] sm:$0xff]
        %v2401 = vld [vmem:[%s1146 + $0x80] sm:$0xff]
        %v2402 = vld [vmem:[%s1146 + $0x88] sm:$0xff]
        %v2403 = vld [vmem:[%s1146 + $0x90] sm:$0xff]
        %v2404 = vld [vmem:[%s1146 + $0x98] sm:$0xff]
        %v2405 = vld [vmem:[%s1146 + $0xa0] sm:$0xff]
        %v2406 = vld [vmem:[%s1146 + $0xa8] sm:$0xff]
        %v2407 = vld [vmem:[%s1146 + $0xb0] sm:$0xff]
        %v2408 = vld [vmem:[%s1146 + $0xb8] sm:$0xff]
        %v2409 = vld [vmem:[%s1146 + $0xc0] sm:$0xff]
        %v2410 = vld [vmem:[%s1146 + $0xc8] sm:$0xff]
        %v2411 = vld [vmem:[%s1146 + $0xd0] sm:$0xff]
        %v2412 = vld [vmem:[%s1146 + $0xd8] sm:$0xff]
        %v2413 = vld [vmem:[%s1146 + $0xe0] sm:$0xff]
        %v2414 = vld [vmem:[%s1146 + $0xe8] sm:$0xff]
        %v2415 = vld [vmem:[%s1146 + $0xf0] sm:$0xff]
        %v2416 = vld [vmem:[%s1146 + $0xf8] sm:$0xff]
        %v2417 = vld [vmem:[%s1146 + $0x100] sm:$0xff]
        %v2418 = vld [vmem:[%s1146 + $0x108] sm:$0xff]
        %v2419 = vld [vmem:[%s1146 + $0x110] sm:$0xff]
        %v2420 = vld [vmem:[%s1146 + $0x118] sm:$0xff]
        %v2421 = vld [vmem:[%s1146 + $0x120] sm:$0xff]
        %v2422 = vld [vmem:[%s1146 + $0x128] sm:$0xff]
        %v2423 = vld [vmem:[%s1146 + $0x130] sm:$0xff]
        %v2424 = vld [vmem:[%s1146 + $0x138] sm:$0xff]
        %v2425 = vld [vmem:[%s1146 + $0x140] sm:$0xff]
        %v2426 = vld [vmem:[%s1146 + $0x148] sm:$0xff]
        %v2427 = vld [vmem:[%s1146 + $0x150] sm:$0xff]
        %v2428 = vld [vmem:[%s1146 + $0x158] sm:$0xff]
        %v2429 = vld [vmem:[%s1146 + $0x160] sm:$0xff]
        %v2430 = vld [vmem:[%s1146 + $0x168] sm:$0xff]
        %v2431 = vld [vmem:[%s1146 + $0x170] sm:$0xff]
        %v2432 = vld [vmem:[%s1146 + $0x178] sm:$0xff]
        %2433 = vmatprep.subr.mxu0 0.0
        %2434 = vmatpush1.msra.mxu0 %v2400
        %2435 = vmatprep.subr.mxu0 0.0
        %2436 = vmatpush1.msra.mxu0 %v2399
        %2437 = vmatprep.subr.mxu0 0.0
        %2438 = vmatpush1.msra.mxu0 %v2398
        %2439 = vmatprep.subr.mxu0 0.0
        %2440 = vmatpush1.msra.mxu0 %v2397
        %2441 = vmatprep.subr.mxu0 0.0
        %2442 = vmatpush1.msra.mxu0 %v2396
        %2443 = vmatprep.subr.mxu0 0.0
        %2444 = vmatpush1.msra.mxu0 %v2395
        %2445 = vmatprep.subr.mxu0 0.0
        %2446 = vmatpush1.msra.mxu0 %v2394
        %2447 = vmatprep.subr.mxu0 0.0
        %2448 = vmatpush1.msra.mxu0 %v2393
        %2449 = vmatprep.subr.mxu0 0.0
        %2450 = vmatpush1.msra.mxu0 %v2392
        %2451 = vmatprep.subr.mxu0 0.0
        %2452 = vmatpush1.msra.mxu0 %v2391
        %2453 = vmatprep.subr.mxu0 0.0
        %2454 = vmatpush1.msra.mxu0 %v2390
        %2455 = vmatprep.subr.mxu0 0.0
        %2456 = vmatpush1.msra.mxu0 %v2389
        %2457 = vmatprep.subr.mxu0 0.0
        %2458 = vmatpush1.msra.mxu0 %v2388
        %2459 = vmatprep.subr.mxu0 0.0
        %2460 = vmatpush1.msra.mxu0 %v2387
        %2461 = vmatprep.subr.mxu0 0.0
        %2462 = vmatpush1.msra.mxu0 %v2386
        %2463 = vmatprep.subr.mxu0 0.0
        %2464 = vmatpush1.msra.mxu0 %v2385
        %2465 = vmatprep.subr.mxu0 0.0
        %2466 = vmatpush2.msra.mxu0 %v2416
        %2467 = vmatprep.subr.mxu0 0.0
        %2468 = vmatpush2.msra.mxu0 %v2415
        %2469 = vmatprep.subr.mxu0 0.0
        %2470 = vmatpush2.msra.mxu0 %v2414
        %2471 = vmatprep.subr.mxu0 0.0
        %2472 = vmatpush2.msra.mxu0 %v2413
        %2473 = vmatprep.subr.mxu0 0.0
        %2474 = vmatpush2.msra.mxu0 %v2412
        %2475 = vmatprep.subr.mxu0 0.0
        %2476 = vmatpush2.msra.mxu0 %v2411
        %2477 = vmatprep.subr.mxu0 0.0
        %2478 = vmatpush2.msra.mxu0 %v2410
        %2479 = vmatprep.subr.mxu0 0.0
        %2480 = vmatpush2.msra.mxu0 %v2409
        %2481 = vmatprep.subr.mxu0 0.0
        %2482 = vmatpush2.msra.mxu0 %v2408
        %2483 = vmatprep.subr.mxu0 0.0
        %2484 = vmatpush2.msra.mxu0 %v2407
        %2485 = vmatprep.subr.mxu0 0.0
        %2486 = vmatpush2.msra.mxu0 %v2406
        %2487 = vmatprep.subr.mxu0 0.0
        %2488 = vmatpush2.msra.mxu0 %v2405
        %2489 = vmatprep.subr.mxu0 0.0
        %2490 = vmatpush2.msra.mxu0 %v2404
        %2491 = vmatprep.subr.mxu0 0.0
        %2492 = vmatpush2.msra.mxu0 %v2403
        %2493 = vmatprep.subr.mxu0 0.0
        %2494 = vmatpush2.msra.mxu0 %v2402
        %2495 = vmatprep.subr.mxu0 0.0
        %2496 = vmatpush2.msra.mxu0 %v2401
        %2497 = vmatprep.mubr.f32.mxu0 %v2353
        %2498 = vmatmul.mubr.f32.gmra.mxu0 %v2337
        %v2499 = vpop.f32.mrf.mxu0
        %v2500 = vadd.f32 0.0, %v2499
        %v2501 = vpop.f32.mrf.mxu0
        %2502 = vmatprep.mubr.f32.mxu0 %v2354
        %2503 = vmatmul.mubr.f32.gmra.mxu0 %v2338
        %v2504 = vpop.f32.mrf.mxu0
        %v2505 = vadd.f32 0.0, %v2504
        %v2506 = vpop.f32.mrf.mxu0
        %2507 = vmatprep.mubr.f32.mxu0 %v2355
        %2508 = vmatmul.mubr.f32.gmra.mxu0 %v2339
        %v2509 = vpop.f32.mrf.mxu0
        %v2510 = vadd.f32 0.0, %v2509
        %v2511 = vpop.f32.mrf.mxu0
        %2512 = vmatprep.mubr.f32.mxu0 %v2356
        %2513 = vmatmul.mubr.f32.gmra.mxu0 %v2340
        %v2514 = vpop.f32.mrf.mxu0
        %v2515 = vadd.f32 0.0, %v2514
        %v2516 = vpop.f32.mrf.mxu0
        %2517 = vmatprep.mubr.f32.mxu0 %v2357
        %2518 = vmatmul.mubr.f32.gmra.mxu0 %v2341
        %v2519 = vpop.f32.mrf.mxu0
        %v2520 = vadd.f32 0.0, %v2519
        %v2521 = vpop.f32.mrf.mxu0
        %2522 = vmatprep.mubr.f32.mxu0 %v2358
        %2523 = vmatmul.mubr.f32.gmra.mxu0 %v2342
        %v2524 = vpop.f32.mrf.mxu0
        %v2525 = vadd.f32 0.0, %v2524
        %v2526 = vpop.f32.mrf.mxu0
        %2527 = vmatprep.mubr.f32.mxu0 %v2359
        %2528 = vmatmul.mubr.f32.gmra.mxu0 %v2343
        %v2529 = vpop.f32.mrf.mxu0
        %v2530 = vadd.f32 0.0, %v2529
        %v2531 = vpop.f32.mrf.mxu0
        %2532 = vmatprep.mubr.f32.mxu0 %v2360
        %2533 = vmatmul.mubr.f32.gmra.mxu0 %v2344
        %v2534 = vpop.f32.mrf.mxu0
        %v2535 = vadd.f32 0.0, %v2534
        %v2536 = vpop.f32.mrf.mxu0
        %2537 = vmatprep.mubr.f32.mxu0 %v2361
        %2538 = vmatmul.mubr.f32.gmra.mxu0 %v2345
        %v2539 = vpop.f32.mrf.mxu0
        %v2540 = vadd.f32 0.0, %v2539
        %v2541 = vpop.f32.mrf.mxu0
        %2542 = vmatprep.mubr.f32.mxu0 %v2362
        %2543 = vmatmul.mubr.f32.gmra.mxu0 %v2346
        %v2544 = vpop.f32.mrf.mxu0
        %v2545 = vadd.f32 0.0, %v2544
        %v2546 = vpop.f32.mrf.mxu0
        %2547 = vmatprep.mubr.f32.mxu0 %v2363
        %2548 = vmatmul.mubr.f32.gmra.mxu0 %v2347
        %v2549 = vpop.f32.mrf.mxu0
        %v2550 = vadd.f32 0.0, %v2549
        %v2551 = vpop.f32.mrf.mxu0
        %2552 = vmatprep.mubr.f32.mxu0 %v2364
        %2553 = vmatmul.mubr.f32.gmra.mxu0 %v2348
        %v2554 = vpop.f32.mrf.mxu0
        %v2555 = vadd.f32 0.0, %v2554
        %v2556 = vpop.f32.mrf.mxu0
        %2557 = vmatprep.mubr.f32.mxu0 %v2365
        %2558 = vmatmul.mubr.f32.gmra.mxu0 %v2349
        %v2559 = vpop.f32.mrf.mxu0
        %v2560 = vadd.f32 0.0, %v2559
        %v2561 = vpop.f32.mrf.mxu0
        %2562 = vmatprep.mubr.f32.mxu0 %v2366
        %2563 = vmatmul.mubr.f32.gmra.mxu0 %v2350
        %v2564 = vpop.f32.mrf.mxu0
        %v2565 = vadd.f32 0.0, %v2564
        %v2566 = vpop.f32.mrf.mxu0
        %2567 = vmatprep.mubr.f32.mxu0 %v2367
        %2568 = vmatmul.mubr.f32.gmra.mxu0 %v2351
        %v2569 = vpop.f32.mrf.mxu0
        %v2570 = vadd.f32 0.0, %v2569
        %v2571 = vpop.f32.mrf.mxu0
        %2572 = vmatprep.mubr.f32.mxu0 %v2368
        %2573 = vmatmul.mubr.f32.gmra.mxu0 %v2352
        %v2574 = vpop.f32.mrf.mxu0
        %v2575 = vadd.f32 0.0, %v2574
        %v2576 = vpop.f32.mrf.mxu0
        %2577 = vdwg.mxu0
        %2578 = vmatprep.subr.mxu0 0.0
        %2579 = vmatpush1.msra.mxu0 %v2432
        %2580 = vmatprep.subr.mxu0 0.0
        %2581 = vmatpush1.msra.mxu0 %v2431
        %2582 = vmatprep.subr.mxu0 0.0
        %2583 = vmatpush1.msra.mxu0 %v2430
        %2584 = vmatprep.subr.mxu0 0.0
        %2585 = vmatpush1.msra.mxu0 %v2429
        %2586 = vmatprep.subr.mxu0 0.0
        %2587 = vmatpush1.msra.mxu0 %v2428
        %2588 = vmatprep.subr.mxu0 0.0
        %2589 = vmatpush1.msra.mxu0 %v2427
        %2590 = vmatprep.subr.mxu0 0.0
        %2591 = vmatpush1.msra.mxu0 %v2426
        %2592 = vmatprep.subr.mxu0 0.0
        %2593 = vmatpush1.msra.mxu0 %v2425
        %2594 = vmatprep.subr.mxu0 0.0
        %2595 = vmatpush1.msra.mxu0 %v2424
        %2596 = vmatprep.subr.mxu0 0.0
        %2597 = vmatpush1.msra.mxu0 %v2423
        %2598 = vmatprep.subr.mxu0 0.0
        %2599 = vmatpush1.msra.mxu0 %v2422
        %2600 = vmatprep.subr.mxu0 0.0
        %2601 = vmatpush1.msra.mxu0 %v2421
        %2602 = vmatprep.subr.mxu0 0.0
        %2603 = vmatpush1.msra.mxu0 %v2420
        %2604 = vmatprep.subr.mxu0 0.0
        %2605 = vmatpush1.msra.mxu0 %v2419
        %2606 = vmatprep.subr.mxu0 0.0
        %2607 = vmatpush1.msra.mxu0 %v2418
        %2608 = vmatprep.subr.mxu0 0.0
        %2609 = vmatpush1.msra.mxu0 %v2417
        %2610 = vmatprep.subr.mxu0 0.0
        %2611 = vmatpush2.msra.mxu0 0.0
        %2612 = vmatprep.subr.mxu0 0.0
        %2613 = vmatpush2.msra.mxu0 0.0
        %2614 = vmatprep.subr.mxu0 0.0
        %2615 = vmatpush2.msra.mxu0 0.0
        %2616 = vmatprep.subr.mxu0 0.0
        %2617 = vmatpush2.msra.mxu0 0.0
        %2618 = vmatprep.subr.mxu0 0.0
        %2619 = vmatpush2.msra.mxu0 0.0
        %2620 = vmatprep.subr.mxu0 0.0
        %2621 = vmatpush2.msra.mxu0 0.0
        %2622 = vmatprep.subr.mxu0 0.0
        %2623 = vmatpush2.msra.mxu0 0.0
        %2624 = vmatprep.subr.mxu0 0.0
        %2625 = vmatpush2.msra.mxu0 0.0
        %2626 = vmatprep.subr.mxu0 0.0
        %2627 = vmatpush2.msra.mxu0 0.0
        %2628 = vmatprep.subr.mxu0 0.0
        %2629 = vmatpush2.msra.mxu0 0.0
        %2630 = vmatprep.subr.mxu0 0.0
        %2631 = vmatpush2.msra.mxu0 0.0
        %2632 = vmatprep.subr.mxu0 0.0
        %2633 = vmatpush2.msra.mxu0 0.0
        %2634 = vmatprep.subr.mxu0 0.0
        %2635 = vmatpush2.msra.mxu0 0.0
        %2636 = vmatprep.subr.mxu0 0.0
        %2637 = vmatpush2.msra.mxu0 0.0
        %2638 = vmatprep.subr.mxu0 0.0
        %2639 = vmatpush2.msra.mxu0 0.0
        %2640 = vmatprep.subr.mxu0 0.0
        %2641 = vmatpush2.msra.mxu0 0.0
        %2642 = vmatprep.mubr.f32.mxu0 0.0
        %2643 = vmatmul.mubr.f32.gmra.mxu0 %v2369
        %v2644 = vpop.f32.mrf.mxu0
        %v2645 = vadd.f32 %v2500, %v2644
        %v2646 = vpop.f32.mrf.mxu0
        %2647 = vmatprep.mubr.f32.mxu0 0.0
        %2648 = vmatmul.mubr.f32.gmra.mxu0 %v2370
        %v2649 = vpop.f32.mrf.mxu0
        %v2650 = vadd.f32 %v2505, %v2649
        %v2651 = vpop.f32.mrf.mxu0
        %2652 = vmatprep.mubr.f32.mxu0 0.0
        %2653 = vmatmul.mubr.f32.gmra.mxu0 %v2371
        %v2654 = vpop.f32.mrf.mxu0
        %v2655 = vadd.f32 %v2510, %v2654
        %v2656 = vpop.f32.mrf.mxu0
        %2657 = vmatprep.mubr.f32.mxu0 0.0
        %2658 = vmatmul.mubr.f32.gmra.mxu0 %v2372
        %v2659 = vpop.f32.mrf.mxu0
        %v2660 = vadd.f32 %v2515, %v2659
        %v2661 = vpop.f32.mrf.mxu0
        %2662 = vmatprep.mubr.f32.mxu0 0.0
        %2663 = vmatmul.mubr.f32.gmra.mxu0 %v2373
        %v2664 = vpop.f32.mrf.mxu0
        %v2665 = vadd.f32 %v2520, %v2664
        %v2666 = vpop.f32.mrf.mxu0
        %2667 = vmatprep.mubr.f32.mxu0 0.0
        %2668 = vmatmul.mubr.f32.gmra.mxu0 %v2374
        %v2669 = vpop.f32.mrf.mxu0
        %v2670 = vadd.f32 %v2525, %v2669
        %v2671 = vpop.f32.mrf.mxu0
        %2672 = vmatprep.mubr.f32.mxu0 0.0
        %2673 = vmatmul.mubr.f32.gmra.mxu0 %v2375
        %v2674 = vpop.f32.mrf.mxu0
        %v2675 = vadd.f32 %v2530, %v2674
        %v2676 = vpop.f32.mrf.mxu0
        %2677 = vmatprep.mubr.f32.mxu0 0.0
        %2678 = vmatmul.mubr.f32.gmra.mxu0 %v2376
        %v2679 = vpop.f32.mrf.mxu0
        %v2680 = vadd.f32 %v2535, %v2679
        %v2681 = vpop.f32.mrf.mxu0
        %2682 = vmatprep.mubr.f32.mxu0 0.0
        %2683 = vmatmul.mubr.f32.gmra.mxu0 %v2377
        %v2684 = vpop.f32.mrf.mxu0
        %v2685 = vadd.f32 %v2540, %v2684
        %v2686 = vpop.f32.mrf.mxu0
        %2687 = vmatprep.mubr.f32.mxu0 0.0
        %2688 = vmatmul.mubr.f32.gmra.mxu0 %v2378
        %v2689 = vpop.f32.mrf.mxu0
        %v2690 = vadd.f32 %v2545, %v2689
        %v2691 = vpop.f32.mrf.mxu0
        %2692 = vmatprep.mubr.f32.mxu0 0.0
        %2693 = vmatmul.mubr.f32.gmra.mxu0 %v2379
        %v2694 = vpop.f32.mrf.mxu0
        %v2695 = vadd.f32 %v2550, %v2694
        %v2696 = vpop.f32.mrf.mxu0
        %2697 = vmatprep.mubr.f32.mxu0 0.0
        %2698 = vmatmul.mubr.f32.gmra.mxu0 %v2380
        %v2699 = vpop.f32.mrf.mxu0
        %v2700 = vadd.f32 %v2555, %v2699
        %v2701 = vpop.f32.mrf.mxu0
        %2702 = vmatprep.mubr.f32.mxu0 0.0
        %2703 = vmatmul.mubr.f32.gmra.mxu0 %v2381
        %v2704 = vpop.f32.mrf.mxu0
        %v2705 = vadd.f32 %v2560, %v2704
        %v2706 = vpop.f32.mrf.mxu0
        %2707 = vmatprep.mubr.f32.mxu0 0.0
        %2708 = vmatmul.mubr.f32.gmra.mxu0 %v2382
        %v2709 = vpop.f32.mrf.mxu0
        %v2710 = vadd.f32 %v2565, %v2709
        %v2711 = vpop.f32.mrf.mxu0
        %2712 = vmatprep.mubr.f32.mxu0 0.0
        %2713 = vmatmul.mubr.f32.gmra.mxu0 %v2383
        %v2714 = vpop.f32.mrf.mxu0
        %v2715 = vadd.f32 %v2570, %v2714
        %v2716 = vpop.f32.mrf.mxu0
        %2717 = vmatprep.mubr.f32.mxu0 0.0
        %2718 = vmatmul.mubr.f32.gmra.mxu0 %v2384
        %v2719 = vpop.f32.mrf.mxu0
        %v2720 = vadd.f32 %v2575, %v2719
        %v2721 = vpop.f32.mrf.mxu0
        %2722 = vdwg.mxu0
        %v2723 = vadd.f32 %v2256, %v2645
        %v2724 = vadd.f32 %v2261, %v2650
        %v2725 = vadd.f32 %v2266, %v2655
        %v2726 = vadd.f32 %v2271, %v2660
        %v2727 = vadd.f32 %v2276, %v2665
        %v2728 = vadd.f32 %v2281, %v2670
        %v2729 = vadd.f32 %v2286, %v2675
        %v2730 = vadd.f32 %v2291, %v2680
        %v2731 = vadd.f32 %v2296, %v2685
        %v2732 = vadd.f32 %v2301, %v2690
        %v2733 = vadd.f32 %v2306, %v2695
        %v2734 = vadd.f32 %v2311, %v2700
        %v2735 = vadd.f32 %v2316, %v2705
        %v2736 = vadd.f32 %v2321, %v2710
        %v2737 = vadd.f32 %v2326, %v2715
        %v2738 = vadd.f32 %v2331, %v2720
        %v2739 = vld [vmem:[%s4] sm:$0x1]
        %v2741 = vlaneseq
        %v2742 = vshrl.u32 %v2741, 7
        %v2743 = vsub.s32 0, %v2742
        %v2744 = vrot.slane %v2739, %v2743
        %v2746 = vadd.f32 %v2723, %v2744
        %v2747 = vadd.f32 %v2724, %v2744
        %v2748 = vadd.f32 %v2725, %v2744
        %v2749 = vadd.f32 %v2726, %v2744
        %v2750 = vadd.f32 %v2727, %v2744
        %v2751 = vadd.f32 %v2728, %v2744
        %v2752 = vadd.f32 %v2729, %v2744
        %v2753 = vadd.f32 %v2730, %v2744
        %v2754 = vadd.f32 %v2731, %v2744
        %v2755 = vadd.f32 %v2732, %v2744
        %v2756 = vadd.f32 %v2733, %v2744
        %v2757 = vadd.f32 %v2734, %v2744
        %v2758 = vadd.f32 %v2735, %v2744
        %v2759 = vadd.f32 %v2736, %v2744
        %v2760 = vadd.f32 %v2737, %v2744
        %v2761 = vadd.f32 %v2738, %v2744
        %v2762 = vmax.f32 %v2746, 0.0
        %v2763 = vmax.f32 %v2747, 0.0
        %v2764 = vmax.f32 %v2748, 0.0
        %v2765 = vmax.f32 %v2749, 0.0
        %v2766 = vmax.f32 %v2750, 0.0
        %v2767 = vmax.f32 %v2751, 0.0
        %v2768 = vmax.f32 %v2752, 0.0
        %v2769 = vmax.f32 %v2753, 0.0
        %v2770 = vmax.f32 %v2754, 0.0
        %v2771 = vmax.f32 %v2755, 0.0
        %v2772 = vmax.f32 %v2756, 0.0
        %v2773 = vmax.f32 %v2757, 0.0
        %v2774 = vmax.f32 %v2758, 0.0
        %v2775 = vmax.f32 %v2759, 0.0
        %v2776 = vmax.f32 %v2760, 0.0
        %v2777 = vmax.f32 %v2761, 0.0
        %s2778 = scalar_lea.vmem [#allocation2], 192
        %2779 = vst [vmem:[%s2778 + $0x1] sm:$0xff] %v2762
        %2780 = vst [vmem:[%s2778 + $0x9] sm:$0xff] %v2763
        %2781 = vst [vmem:[%s2778 + $0x19] sm:$0xff] %v2764
        %2782 = vst [vmem:[%s2778 + $0x21] sm:$0xff] %v2765
        %2783 = vst [vmem:[%s2778 + $0x31] sm:$0xff] %v2766
        %2784 = vst [vmem:[%s2778 + $0x39] sm:$0xff] %v2767
        %2785 = vst [vmem:[%s2778 + $0x49] sm:$0xff] %v2768
        %2786 = vst [vmem:[%s2778 + $0x51] sm:$0xff] %v2769
        %2787 = vst [vmem:[%s2778 + $0x61] sm:$0xff] %v2770
        %2788 = vst [vmem:[%s2778 + $0x69] sm:$0xff] %v2771
        %2789 = vst [vmem:[%s2778 + $0x79] sm:$0xff] %v2772
        %2790 = vst [vmem:[%s2778 + $0x81] sm:$0xff] %v2773
        %2791 = vst [vmem:[%s2778 + $0x91] sm:$0xff] %v2774
        %2792 = vst [vmem:[%s2778 + $0x99] sm:$0xff] %v2775
        %2793 = vst [vmem:[%s2778 + $0xa9] sm:$0xff] %v2776
        %2794 = vst [vmem:[%s2778 + $0xb1] sm:$0xff] %v2777
        %s2795 = sadd.s32 %s280, 16
        %s2796 = smul.u32 %s2795, 24
        %s2797 = scalar_lea.vmem %s278, %s2796
        %v2798 = vld [vmem:[%s2797] sm:$0xff]
        %v2799 = vld [vmem:[%s2797 + $0x8] sm:$0xff]
        %v2800 = vld [vmem:[%s2797 + $0x18] sm:$0xff]
        %v2801 = vld [vmem:[%s2797 + $0x20] sm:$0xff]
        %v2802 = vld [vmem:[%s2797 + $0x1] sm:$0xff]
        %v2803 = vld [vmem:[%s2797 + $0x9] sm:$0xff]
        %v2804 = vld [vmem:[%s2797 + $0x19] sm:$0xff]
        %v2805 = vld [vmem:[%s2797 + $0x21] sm:$0xff]
        %v2806 = vld [vmem:[%s2797 + $0x2] sm:$0xff]
        %v2807 = vld [vmem:[%s2797 + $0xa] sm:$0xff]
        %v2808 = vld [vmem:[%s2797 + $0x1a] sm:$0xff]
        %v2809 = vld [vmem:[%s2797 + $0x22] sm:$0xff]
        %v2810 = vld [vmem:[%s1] sm:$0xff]
        %v2811 = vld [vmem:[%s1 + $0x8] sm:$0xff]
        %v2812 = vld [vmem:[%s1 + $0x10] sm:$0xff]
        %v2813 = vld [vmem:[%s1 + $0x18] sm:$0xff]
        %v2814 = vld [vmem:[%s1 + $0x20] sm:$0xff]
        %v2815 = vld [vmem:[%s1 + $0x28] sm:$0xff]
        %v2816 = vld [vmem:[%s1 + $0x30] sm:$0xff]
        %v2817 = vld [vmem:[%s1 + $0x38] sm:$0xff]
        %v2818 = vld [vmem:[%s1 + $0x40] sm:$0xff]
        %v2819 = vld [vmem:[%s1 + $0x48] sm:$0xff]
        %v2820 = vld [vmem:[%s1 + $0x50] sm:$0xff]
        %v2821 = vld [vmem:[%s1 + $0x58] sm:$0xff]
        %v2822 = vld [vmem:[%s1 + $0x60] sm:$0xff]
        %v2823 = vld [vmem:[%s1 + $0x68] sm:$0xff]
        %v2824 = vld [vmem:[%s1 + $0x70] sm:$0xff]
        %v2825 = vld [vmem:[%s1 + $0x78] sm:$0xff]
        %v2826 = vld [vmem:[%s1 + $0x80] sm:$0xff]
        %v2827 = vld [vmem:[%s1 + $0x88] sm:$0xff]
        %v2828 = vld [vmem:[%s1 + $0x90] sm:$0xff]
        %v2829 = vld [vmem:[%s1 + $0x98] sm:$0xff]
        %v2830 = vld [vmem:[%s1 + $0xa0] sm:$0xff]
        %v2831 = vld [vmem:[%s1 + $0xa8] sm:$0xff]
        %v2832 = vld [vmem:[%s1 + $0xb0] sm:$0xff]
        %v2833 = vld [vmem:[%s1 + $0xb8] sm:$0xff]
        %v2834 = vld [vmem:[%s1 + $0xc0] sm:$0xff]
        %v2835 = vld [vmem:[%s1 + $0xc8] sm:$0xff]
        %v2836 = vld [vmem:[%s1 + $0xd0] sm:$0xff]
        %v2837 = vld [vmem:[%s1 + $0xd8] sm:$0xff]
        %v2838 = vld [vmem:[%s1 + $0xe0] sm:$0xff]
        %v2839 = vld [vmem:[%s1 + $0xe8] sm:$0xff]
        %v2840 = vld [vmem:[%s1 + $0xf0] sm:$0xff]
        %v2841 = vld [vmem:[%s1 + $0xf8] sm:$0xff]
        %v2842 = vld [vmem:[%s1 + $0x100] sm:$0xff]
        %v2843 = vld [vmem:[%s1 + $0x108] sm:$0xff]
        %v2844 = vld [vmem:[%s1 + $0x110] sm:$0xff]
        %v2845 = vld [vmem:[%s1 + $0x118] sm:$0xff]
        %v2846 = vld [vmem:[%s1 + $0x120] sm:$0xff]
        %v2847 = vld [vmem:[%s1 + $0x128] sm:$0xff]
        %v2848 = vld [vmem:[%s1 + $0x130] sm:$0xff]
        %v2849 = vld [vmem:[%s1 + $0x138] sm:$0xff]
        %v2850 = vld [vmem:[%s1 + $0x140] sm:$0xff]
        %v2851 = vld [vmem:[%s1 + $0x148] sm:$0xff]
        %v2852 = vld [vmem:[%s1 + $0x150] sm:$0xff]
        %v2853 = vld [vmem:[%s1 + $0x158] sm:$0xff]
        %v2854 = vld [vmem:[%s1 + $0x160] sm:$0xff]
        %v2855 = vld [vmem:[%s1 + $0x168] sm:$0xff]
        %v2856 = vld [vmem:[%s1 + $0x170] sm:$0xff]
        %v2857 = vld [vmem:[%s1 + $0x178] sm:$0xff]
        %s2858 = sadd.s32 %s280, 17
        %s2859 = smul.u32 %s2858, 24
        %s2860 = scalar_lea.vmem %s278, %s2859
        %v2861 = vld [vmem:[%s2860] sm:$0xff]
        %v2862 = vld [vmem:[%s2860 + $0x8] sm:$0xff]
        %v2863 = vld [vmem:[%s2860 + $0x18] sm:$0xff]
        %v2864 = vld [vmem:[%s2860 + $0x20] sm:$0xff]
        %v2865 = vld [vmem:[%s2860 + $0x1] sm:$0xff]
        %v2866 = vld [vmem:[%s2860 + $0x9] sm:$0xff]
        %v2867 = vld [vmem:[%s2860 + $0x19] sm:$0xff]
        %v2868 = vld [vmem:[%s2860 + $0x21] sm:$0xff]
        %v2869 = vld [vmem:[%s2860 + $0x2] sm:$0xff]
        %v2870 = vld [vmem:[%s2860 + $0xa] sm:$0xff]
        %v2871 = vld [vmem:[%s2860 + $0x1a] sm:$0xff]
        %v2872 = vld [vmem:[%s2860 + $0x22] sm:$0xff]
        %v2873 = vld [vmem:[%s466] sm:$0xff]
        %v2874 = vld [vmem:[%s466 + $0x8] sm:$0xff]
        %v2875 = vld [vmem:[%s466 + $0x10] sm:$0xff]
        %v2876 = vld [vmem:[%s466 + $0x18] sm:$0xff]
        %v2877 = vld [vmem:[%s466 + $0x20] sm:$0xff]
        %v2878 = vld [vmem:[%s466 + $0x28] sm:$0xff]
        %v2879 = vld [vmem:[%s466 + $0x30] sm:$0xff]
        %v2880 = vld [vmem:[%s466 + $0x38] sm:$0xff]
        %v2881 = vld [vmem:[%s466 + $0x40] sm:$0xff]
        %v2882 = vld [vmem:[%s466 + $0x48] sm:$0xff]
        %v2883 = vld [vmem:[%s466 + $0x50] sm:$0xff]
        %v2884 = vld [vmem:[%s466 + $0x58] sm:$0xff]
        %v2885 = vld [vmem:[%s466 + $0x60] sm:$0xff]
        %v2886 = vld [vmem:[%s466 + $0x68] sm:$0xff]
        %v2887 = vld [vmem:[%s466 + $0x70] sm:$0xff]
        %v2888 = vld [vmem:[%s466 + $0x78] sm:$0xff]
        %v2889 = vld [vmem:[%s466 + $0x80] sm:$0xff]
        %v2890 = vld [vmem:[%s466 + $0x88] sm:$0xff]
        %v2891 = vld [vmem:[%s466 + $0x90] sm:$0xff]
        %v2892 = vld [vmem:[%s466 + $0x98] sm:$0xff]
        %v2893 = vld [vmem:[%s466 + $0xa0] sm:$0xff]
        %v2894 = vld [vmem:[%s466 + $0xa8] sm:$0xff]
        %v2895 = vld [vmem:[%s466 + $0xb0] sm:$0xff]
        %v2896 = vld [vmem:[%s466 + $0xb8] sm:$0xff]
        %v2897 = vld [vmem:[%s466 + $0xc0] sm:$0xff]
        %v2898 = vld [vmem:[%s466 + $0xc8] sm:$0xff]
        %v2899 = vld [vmem:[%s466 + $0xd0] sm:$0xff]
        %v2900 = vld [vmem:[%s466 + $0xd8] sm:$0xff]
        %v2901 = vld [vmem:[%s466 + $0xe0] sm:$0xff]
        %v2902 = vld [vmem:[%s466 + $0xe8] sm:$0xff]
        %v2903 = vld [vmem:[%s466 + $0xf0] sm:$0xff]
        %v2904 = vld [vmem:[%s466 + $0xf8] sm:$0xff]
        %v2905 = vld [vmem:[%s466 + $0x100] sm:$0xff]
        %v2906 = vld [vmem:[%s466 + $0x108] sm:$0xff]
        %v2907 = vld [vmem:[%s466 + $0x110] sm:$0xff]
        %v2908 = vld [vmem:[%s466 + $0x118] sm:$0xff]
        %v2909 = vld [vmem:[%s466 + $0x120] sm:$0xff]
        %v2910 = vld [vmem:[%s466 + $0x128] sm:$0xff]
        %v2911 = vld [vmem:[%s466 + $0x130] sm:$0xff]
        %v2912 = vld [vmem:[%s466 + $0x138] sm:$0xff]
        %v2913 = vld [vmem:[%s466 + $0x140] sm:$0xff]
        %v2914 = vld [vmem:[%s466 + $0x148] sm:$0xff]
        %v2915 = vld [vmem:[%s466 + $0x150] sm:$0xff]
        %v2916 = vld [vmem:[%s466 + $0x158] sm:$0xff]
        %v2917 = vld [vmem:[%s466 + $0x160] sm:$0xff]
        %v2918 = vld [vmem:[%s466 + $0x168] sm:$0xff]
        %v2919 = vld [vmem:[%s466 + $0x170] sm:$0xff]
        %v2920 = vld [vmem:[%s466 + $0x178] sm:$0xff]
        %2921 = vmatprep.subr.mxu0 0.0
        %2922 = vmatpush1.msra.mxu0 %v2888
        %2923 = vmatprep.subr.mxu0 0.0
        %2924 = vmatpush1.msra.mxu0 %v2887
        %2925 = vmatprep.subr.mxu0 0.0
        %2926 = vmatpush1.msra.mxu0 %v2886
        %2927 = vmatprep.subr.mxu0 0.0
        %2928 = vmatpush1.msra.mxu0 %v2885
        %2929 = vmatprep.subr.mxu0 0.0
        %2930 = vmatpush1.msra.mxu0 %v2884
        %2931 = vmatprep.subr.mxu0 0.0
        %2932 = vmatpush1.msra.mxu0 %v2883
        %2933 = vmatprep.subr.mxu0 0.0
        %2934 = vmatpush1.msra.mxu0 %v2882
        %2935 = vmatprep.subr.mxu0 0.0
        %2936 = vmatpush1.msra.mxu0 %v2881
        %2937 = vmatprep.subr.mxu0 0.0
        %2938 = vmatpush1.msra.mxu0 %v2880
        %2939 = vmatprep.subr.mxu0 0.0
        %2940 = vmatpush1.msra.mxu0 %v2879
        %2941 = vmatprep.subr.mxu0 0.0
        %2942 = vmatpush1.msra.mxu0 %v2878
        %2943 = vmatprep.subr.mxu0 0.0
        %2944 = vmatpush1.msra.mxu0 %v2877
        %2945 = vmatprep.subr.mxu0 0.0
        %2946 = vmatpush1.msra.mxu0 %v2876
        %2947 = vmatprep.subr.mxu0 0.0
        %2948 = vmatpush1.msra.mxu0 %v2875
        %2949 = vmatprep.subr.mxu0 0.0
        %2950 = vmatpush1.msra.mxu0 %v2874
        %2951 = vmatprep.subr.mxu0 0.0
        %2952 = vmatpush1.msra.mxu0 %v2873
        %2953 = vmatprep.subr.mxu0 0.0
        %2954 = vmatpush2.msra.mxu0 %v2904
        %2955 = vmatprep.subr.mxu0 0.0
        %2956 = vmatpush2.msra.mxu0 %v2903
        %2957 = vmatprep.subr.mxu0 0.0
        %2958 = vmatpush2.msra.mxu0 %v2902
        %2959 = vmatprep.subr.mxu0 0.0
        %2960 = vmatpush2.msra.mxu0 %v2901
        %2961 = vmatprep.subr.mxu0 0.0
        %2962 = vmatpush2.msra.mxu0 %v2900
        %2963 = vmatprep.subr.mxu0 0.0
        %2964 = vmatpush2.msra.mxu0 %v2899
        %2965 = vmatprep.subr.mxu0 0.0
        %2966 = vmatpush2.msra.mxu0 %v2898
        %2967 = vmatprep.subr.mxu0 0.0
        %2968 = vmatpush2.msra.mxu0 %v2897
        %2969 = vmatprep.subr.mxu0 0.0
        %2970 = vmatpush2.msra.mxu0 %v2896
        %2971 = vmatprep.subr.mxu0 0.0
        %2972 = vmatpush2.msra.mxu0 %v2895
        %2973 = vmatprep.subr.mxu0 0.0
        %2974 = vmatpush2.msra.mxu0 %v2894
        %2975 = vmatprep.subr.mxu0 0.0
        %2976 = vmatpush2.msra.mxu0 %v2893
        %2977 = vmatprep.subr.mxu0 0.0
        %2978 = vmatpush2.msra.mxu0 %v2892
        %2979 = vmatprep.subr.mxu0 0.0
        %2980 = vmatpush2.msra.mxu0 %v2891
        %2981 = vmatprep.subr.mxu0 0.0
        %2982 = vmatpush2.msra.mxu0 %v2890
        %2983 = vmatprep.subr.mxu0 0.0
        %2984 = vmatpush2.msra.mxu0 %v2889
        %2985 = vmatprep.mubr.f32.mxu0 %v2865
        %2986 = vmatmul.mubr.f32.gmra.mxu0 %v2861
        %v2987 = vpop.f32.mrf.mxu0
        %v2988 = vadd.f32 0.0, %v2987
        %v2989 = vpop.f32.mrf.mxu0
        %2990 = vmatprep.mubr.f32.mxu0 %v2866
        %2991 = vmatmul.mubr.f32.gmra.mxu0 %v2862
        %v2992 = vpop.f32.mrf.mxu0
        %v2993 = vadd.f32 0.0, %v2992
        %v2994 = vpop.f32.mrf.mxu0
        %2995 = vmatprep.mubr.f32.mxu0 %v2867
        %2996 = vmatmul.mubr.f32.gmra.mxu0 %v2863
        %v2997 = vpop.f32.mrf.mxu0
        %v2998 = vadd.f32 0.0, %v2997
        %v2999 = vpop.f32.mrf.mxu0
        %3000 = vmatprep.mubr.f32.mxu0 %v2868
        %3001 = vmatmul.mubr.f32.gmra.mxu0 %v2864
        %v3002 = vpop.f32.mrf.mxu0
        %v3003 = vadd.f32 0.0, %v3002
        %v3004 = vpop.f32.mrf.mxu0
        %3005 = vdwg.mxu0
        %3006 = vmatprep.subr.mxu0 0.0
        %3007 = vmatpush1.msra.mxu0 %v2920
        %3008 = vmatprep.subr.mxu0 0.0
        %3009 = vmatpush1.msra.mxu0 %v2919
        %3010 = vmatprep.subr.mxu0 0.0
        %3011 = vmatpush1.msra.mxu0 %v2918
        %3012 = vmatprep.subr.mxu0 0.0
        %3013 = vmatpush1.msra.mxu0 %v2917
        %3014 = vmatprep.subr.mxu0 0.0
        %3015 = vmatpush1.msra.mxu0 %v2916
        %3016 = vmatprep.subr.mxu0 0.0
        %3017 = vmatpush1.msra.mxu0 %v2915
        %3018 = vmatprep.subr.mxu0 0.0
        %3019 = vmatpush1.msra.mxu0 %v2914
        %3020 = vmatprep.subr.mxu0 0.0
        %3021 = vmatpush1.msra.mxu0 %v2913
        %3022 = vmatprep.subr.mxu0 0.0
        %3023 = vmatpush1.msra.mxu0 %v2912
        %3024 = vmatprep.subr.mxu0 0.0
        %3025 = vmatpush1.msra.mxu0 %v2911
        %3026 = vmatprep.subr.mxu0 0.0
        %3027 = vmatpush1.msra.mxu0 %v2910
        %3028 = vmatprep.subr.mxu0 0.0
        %3029 = vmatpush1.msra.mxu0 %v2909
        %3030 = vmatprep.subr.mxu0 0.0
        %3031 = vmatpush1.msra.mxu0 %v2908
        %3032 = vmatprep.subr.mxu0 0.0
        %3033 = vmatpush1.msra.mxu0 %v2907
        %3034 = vmatprep.subr.mxu0 0.0
        %3035 = vmatpush1.msra.mxu0 %v2906
        %3036 = vmatprep.subr.mxu0 0.0
        %3037 = vmatpush1.msra.mxu0 %v2905
        %3038 = vmatprep.subr.mxu0 0.0
        %3039 = vmatpush2.msra.mxu0 0.0
        %3040 = vmatprep.subr.mxu0 0.0
        %3041 = vmatpush2.msra.mxu0 0.0
        %3042 = vmatprep.subr.mxu0 0.0
        %3043 = vmatpush2.msra.mxu0 0.0
        %3044 = vmatprep.subr.mxu0 0.0
        %3045 = vmatpush2.msra.mxu0 0.0
        %3046 = vmatprep.subr.mxu0 0.0
        %3047 = vmatpush2.msra.mxu0 0.0
        %3048 = vmatprep.subr.mxu0 0.0
        %3049 = vmatpush2.msra.mxu0 0.0
        %3050 = vmatprep.subr.mxu0 0.0
        %3051 = vmatpush2.msra.mxu0 0.0
        %3052 = vmatprep.subr.mxu0 0.0
        %3053 = vmatpush2.msra.mxu0 0.0
        %3054 = vmatprep.subr.mxu0 0.0
        %3055 = vmatpush2.msra.mxu0 0.0
        %3056 = vmatprep.subr.mxu0 0.0
        %3057 = vmatpush2.msra.mxu0 0.0
        %3058 = vmatprep.subr.mxu0 0.0
        %3059 = vmatpush2.msra.mxu0 0.0
        %3060 = vmatprep.subr.mxu0 0.0
        %3061 = vmatpush2.msra.mxu0 0.0
        %3062 = vmatprep.subr.mxu0 0.0
        %3063 = vmatpush2.msra.mxu0 0.0
        %3064 = vmatprep.subr.mxu0 0.0
        %3065 = vmatpush2.msra.mxu0 0.0
        %3066 = vmatprep.subr.mxu0 0.0
        %3067 = vmatpush2.msra.mxu0 0.0
        %3068 = vmatprep.subr.mxu0 0.0
        %3069 = vmatpush2.msra.mxu0 0.0
        %3070 = vmatprep.mubr.f32.mxu0 0.0
        %3071 = vmatmul.mubr.f32.gmra.mxu0 %v2869
        %v3072 = vpop.f32.mrf.mxu0
        %v3073 = vadd.f32 %v2988, %v3072
        %v3074 = vpop.f32.mrf.mxu0
        %3075 = vmatprep.mubr.f32.mxu0 0.0
        %3076 = vmatmul.mubr.f32.gmra.mxu0 %v2870
        %v3077 = vpop.f32.mrf.mxu0
        %v3078 = vadd.f32 %v2993, %v3077
        %v3079 = vpop.f32.mrf.mxu0
        %3080 = vmatprep.mubr.f32.mxu0 0.0
        %3081 = vmatmul.mubr.f32.gmra.mxu0 %v2871
        %v3082 = vpop.f32.mrf.mxu0
        %v3083 = vadd.f32 %v2998, %v3082
        %v3084 = vpop.f32.mrf.mxu0
        %3085 = vmatprep.mubr.f32.mxu0 0.0
        %3086 = vmatmul.mubr.f32.gmra.mxu0 %v2872
        %v3087 = vpop.f32.mrf.mxu0
        %v3088 = vadd.f32 %v3003, %v3087
        %v3089 = vpop.f32.mrf.mxu0
        %3090 = vdwg.mxu0
        %3091 = vmatprep.subr.mxu0 0.0
        %3092 = vmatpush1.msra.mxu0 %v2825
        %3093 = vmatprep.subr.mxu0 0.0
        %3094 = vmatpush1.msra.mxu0 %v2824
        %3095 = vmatprep.subr.mxu0 0.0
        %3096 = vmatpush1.msra.mxu0 %v2823
        %3097 = vmatprep.subr.mxu0 0.0
        %3098 = vmatpush1.msra.mxu0 %v2822
        %3099 = vmatprep.subr.mxu0 0.0
        %3100 = vmatpush1.msra.mxu0 %v2821
        %3101 = vmatprep.subr.mxu0 0.0
        %3102 = vmatpush1.msra.mxu0 %v2820
        %3103 = vmatprep.subr.mxu0 0.0
        %3104 = vmatpush1.msra.mxu0 %v2819
        %3105 = vmatprep.subr.mxu0 0.0
        %3106 = vmatpush1.msra.mxu0 %v2818
        %3107 = vmatprep.subr.mxu0 0.0
        %3108 = vmatpush1.msra.mxu0 %v2817
        %3109 = vmatprep.subr.mxu0 0.0
        %3110 = vmatpush1.msra.mxu0 %v2816
        %3111 = vmatprep.subr.mxu0 0.0
        %3112 = vmatpush1.msra.mxu0 %v2815
        %3113 = vmatprep.subr.mxu0 0.0
        %3114 = vmatpush1.msra.mxu0 %v2814
        %3115 = vmatprep.subr.mxu0 0.0
        %3116 = vmatpush1.msra.mxu0 %v2813
        %3117 = vmatprep.subr.mxu0 0.0
        %3118 = vmatpush1.msra.mxu0 %v2812
        %3119 = vmatprep.subr.mxu0 0.0
        %3120 = vmatpush1.msra.mxu0 %v2811
        %3121 = vmatprep.subr.mxu0 0.0
        %3122 = vmatpush1.msra.mxu0 %v2810
        %3123 = vmatprep.subr.mxu0 0.0
        %3124 = vmatpush2.msra.mxu0 %v2841
        %3125 = vmatprep.subr.mxu0 0.0
        %3126 = vmatpush2.msra.mxu0 %v2840
        %3127 = vmatprep.subr.mxu0 0.0
        %3128 = vmatpush2.msra.mxu0 %v2839
        %3129 = vmatprep.subr.mxu0 0.0
        %3130 = vmatpush2.msra.mxu0 %v2838
        %3131 = vmatprep.subr.mxu0 0.0
        %3132 = vmatpush2.msra.mxu0 %v2837
        %3133 = vmatprep.subr.mxu0 0.0
        %3134 = vmatpush2.msra.mxu0 %v2836
        %3135 = vmatprep.subr.mxu0 0.0
        %3136 = vmatpush2.msra.mxu0 %v2835
        %3137 = vmatprep.subr.mxu0 0.0
        %3138 = vmatpush2.msra.mxu0 %v2834
        %3139 = vmatprep.subr.mxu0 0.0
        %3140 = vmatpush2.msra.mxu0 %v2833
        %3141 = vmatprep.subr.mxu0 0.0
        %3142 = vmatpush2.msra.mxu0 %v2832
        %3143 = vmatprep.subr.mxu0 0.0
        %3144 = vmatpush2.msra.mxu0 %v2831
        %3145 = vmatprep.subr.mxu0 0.0
        %3146 = vmatpush2.msra.mxu0 %v2830
        %3147 = vmatprep.subr.mxu0 0.0
        %3148 = vmatpush2.msra.mxu0 %v2829
        %3149 = vmatprep.subr.mxu0 0.0
        %3150 = vmatpush2.msra.mxu0 %v2828
        %3151 = vmatprep.subr.mxu0 0.0
        %3152 = vmatpush2.msra.mxu0 %v2827
        %3153 = vmatprep.subr.mxu0 0.0
        %3154 = vmatpush2.msra.mxu0 %v2826
        %3155 = vmatprep.mubr.f32.mxu0 %v2802
        %3156 = vmatmul.mubr.f32.gmra.mxu0 %v2798
        %v3157 = vpop.f32.mrf.mxu0
        %v3158 = vadd.f32 %v3073, %v3157
        %v3159 = vpop.f32.mrf.mxu0
        %3160 = vmatprep.mubr.f32.mxu0 %v2803
        %3161 = vmatmul.mubr.f32.gmra.mxu0 %v2799
        %v3162 = vpop.f32.mrf.mxu0
        %v3163 = vadd.f32 %v3078, %v3162
        %v3164 = vpop.f32.mrf.mxu0
        %3165 = vmatprep.mubr.f32.mxu0 %v2804
        %3166 = vmatmul.mubr.f32.gmra.mxu0 %v2800
        %v3167 = vpop.f32.mrf.mxu0
        %v3168 = vadd.f32 %v3083, %v3167
        %v3169 = vpop.f32.mrf.mxu0
        %3170 = vmatprep.mubr.f32.mxu0 %v2805
        %3171 = vmatmul.mubr.f32.gmra.mxu0 %v2801
        %v3172 = vpop.f32.mrf.mxu0
        %v3173 = vadd.f32 %v3088, %v3172
        %v3174 = vpop.f32.mrf.mxu0
        %3175 = vdwg.mxu0
        %3176 = vmatprep.subr.mxu0 0.0
        %3177 = vmatpush1.msra.mxu0 %v2857
        %3178 = vmatprep.subr.mxu0 0.0
        %3179 = vmatpush1.msra.mxu0 %v2856
        %3180 = vmatprep.subr.mxu0 0.0
        %3181 = vmatpush1.msra.mxu0 %v2855
        %3182 = vmatprep.subr.mxu0 0.0
        %3183 = vmatpush1.msra.mxu0 %v2854
        %3184 = vmatprep.subr.mxu0 0.0
        %3185 = vmatpush1.msra.mxu0 %v2853
        %3186 = vmatprep.subr.mxu0 0.0
        %3187 = vmatpush1.msra.mxu0 %v2852
        %3188 = vmatprep.subr.mxu0 0.0
        %3189 = vmatpush1.msra.mxu0 %v2851
        %3190 = vmatprep.subr.mxu0 0.0
        %3191 = vmatpush1.msra.mxu0 %v2850
        %3192 = vmatprep.subr.mxu0 0.0
        %3193 = vmatpush1.msra.mxu0 %v2849
        %3194 = vmatprep.subr.mxu0 0.0
        %3195 = vmatpush1.msra.mxu0 %v2848
        %3196 = vmatprep.subr.mxu0 0.0
        %3197 = vmatpush1.msra.mxu0 %v2847
        %3198 = vmatprep.subr.mxu0 0.0
        %3199 = vmatpush1.msra.mxu0 %v2846
        %3200 = vmatprep.subr.mxu0 0.0
        %3201 = vmatpush1.msra.mxu0 %v2845
        %3202 = vmatprep.subr.mxu0 0.0
        %3203 = vmatpush1.msra.mxu0 %v2844
        %3204 = vmatprep.subr.mxu0 0.0
        %3205 = vmatpush1.msra.mxu0 %v2843
        %3206 = vmatprep.subr.mxu0 0.0
        %3207 = vmatpush1.msra.mxu0 %v2842
        %3208 = vmatprep.subr.mxu0 0.0
        %3209 = vmatpush2.msra.mxu0 0.0
        %3210 = vmatprep.subr.mxu0 0.0
        %3211 = vmatpush2.msra.mxu0 0.0
        %3212 = vmatprep.subr.mxu0 0.0
        %3213 = vmatpush2.msra.mxu0 0.0
        %3214 = vmatprep.subr.mxu0 0.0
        %3215 = vmatpush2.msra.mxu0 0.0
        %3216 = vmatprep.subr.mxu0 0.0
        %3217 = vmatpush2.msra.mxu0 0.0
        %3218 = vmatprep.subr.mxu0 0.0
        %3219 = vmatpush2.msra.mxu0 0.0
        %3220 = vmatprep.subr.mxu0 0.0
        %3221 = vmatpush2.msra.mxu0 0.0
        %3222 = vmatprep.subr.mxu0 0.0
        %3223 = vmatpush2.msra.mxu0 0.0
        %3224 = vmatprep.subr.mxu0 0.0
        %3225 = vmatpush2.msra.mxu0 0.0
        %3226 = vmatprep.subr.mxu0 0.0
        %3227 = vmatpush2.msra.mxu0 0.0
        %3228 = vmatprep.subr.mxu0 0.0
        %3229 = vmatpush2.msra.mxu0 0.0
        %3230 = vmatprep.subr.mxu0 0.0
        %3231 = vmatpush2.msra.mxu0 0.0
        %3232 = vmatprep.subr.mxu0 0.0
        %3233 = vmatpush2.msra.mxu0 0.0
        %3234 = vmatprep.subr.mxu0 0.0
        %3235 = vmatpush2.msra.mxu0 0.0
        %3236 = vmatprep.subr.mxu0 0.0
        %3237 = vmatpush2.msra.mxu0 0.0
        %3238 = vmatprep.subr.mxu0 0.0
        %3239 = vmatpush2.msra.mxu0 0.0
        %3240 = vmatprep.mubr.f32.mxu0 0.0
        %3241 = vmatmul.mubr.f32.gmra.mxu0 %v2806
        %v3242 = vpop.f32.mrf.mxu0
        %v3243 = vadd.f32 %v3158, %v3242
        %v3244 = vpop.f32.mrf.mxu0
        %3245 = vmatprep.mubr.f32.mxu0 0.0
        %3246 = vmatmul.mubr.f32.gmra.mxu0 %v2807
        %v3247 = vpop.f32.mrf.mxu0
        %v3248 = vadd.f32 %v3163, %v3247
        %v3249 = vpop.f32.mrf.mxu0
        %3250 = vmatprep.mubr.f32.mxu0 0.0
        %3251 = vmatmul.mubr.f32.gmra.mxu0 %v2808
        %v3252 = vpop.f32.mrf.mxu0
        %v3253 = vadd.f32 %v3168, %v3252
        %v3254 = vpop.f32.mrf.mxu0
        %3255 = vmatprep.mubr.f32.mxu0 0.0
        %3256 = vmatmul.mubr.f32.gmra.mxu0 %v2809
        %v3257 = vpop.f32.mrf.mxu0
        %v3258 = vadd.f32 %v3173, %v3257
        %v3259 = vpop.f32.mrf.mxu0
        %3260 = vdwg.mxu0
        %s3261 = sadd.s32 %s280, 18
        %s3262 = smul.u32 %s3261, 24
        %s3263 = scalar_lea.vmem %s278, %s3262
        %v3264 = vld [vmem:[%s3263] sm:$0xff]
        %v3265 = vld [vmem:[%s3263 + $0x8] sm:$0xff]
        %v3266 = vld [vmem:[%s3263 + $0x18] sm:$0xff]
        %v3267 = vld [vmem:[%s3263 + $0x20] sm:$0xff]
        %v3268 = vld [vmem:[%s3263 + $0x1] sm:$0xff]
        %v3269 = vld [vmem:[%s3263 + $0x9] sm:$0xff]
        %v3270 = vld [vmem:[%s3263 + $0x19] sm:$0xff]
        %v3271 = vld [vmem:[%s3263 + $0x21] sm:$0xff]
        %v3272 = vld [vmem:[%s3263 + $0x2] sm:$0xff]
        %v3273 = vld [vmem:[%s3263 + $0xa] sm:$0xff]
        %v3274 = vld [vmem:[%s3263 + $0x1a] sm:$0xff]
        %v3275 = vld [vmem:[%s3263 + $0x22] sm:$0xff]
        %v3276 = vld [vmem:[%s1146] sm:$0xff]
        %v3277 = vld [vmem:[%s1146 + $0x8] sm:$0xff]
        %v3278 = vld [vmem:[%s1146 + $0x10] sm:$0xff]
        %v3279 = vld [vmem:[%s1146 + $0x18] sm:$0xff]
        %v3280 = vld [vmem:[%s1146 + $0x20] sm:$0xff]
        %v3281 = vld [vmem:[%s1146 + $0x28] sm:$0xff]
        %v3282 = vld [vmem:[%s1146 + $0x30] sm:$0xff]
        %v3283 = vld [vmem:[%s1146 + $0x38] sm:$0xff]
        %v3284 = vld [vmem:[%s1146 + $0x40] sm:$0xff]
        %v3285 = vld [vmem:[%s1146 + $0x48] sm:$0xff]
        %v3286 = vld [vmem:[%s1146 + $0x50] sm:$0xff]
        %v3287 = vld [vmem:[%s1146 + $0x58] sm:$0xff]
        %v3288 = vld [vmem:[%s1146 + $0x60] sm:$0xff]
        %v3289 = vld [vmem:[%s1146 + $0x68] sm:$0xff]
        %v3290 = vld [vmem:[%s1146 + $0x70] sm:$0xff]
        %v3291 = vld [vmem:[%s1146 + $0x78] sm:$0xff]
        %v3292 = vld [vmem:[%s1146 + $0x80] sm:$0xff]
        %v3293 = vld [vmem:[%s1146 + $0x88] sm:$0xff]
        %v3294 = vld [vmem:[%s1146 + $0x90] sm:$0xff]
        %v3295 = vld [vmem:[%s1146 + $0x98] sm:$0xff]
        %v3296 = vld [vmem:[%s1146 + $0xa0] sm:$0xff]
        %v3297 = vld [vmem:[%s1146 + $0xa8] sm:$0xff]
        %v3298 = vld [vmem:[%s1146 + $0xb0] sm:$0xff]
        %v3299 = vld [vmem:[%s1146 + $0xb8] sm:$0xff]
        %v3300 = vld [vmem:[%s1146 + $0xc0] sm:$0xff]
        %v3301 = vld [vmem:[%s1146 + $0xc8] sm:$0xff]
        %v3302 = vld [vmem:[%s1146 + $0xd0] sm:$0xff]
        %v3303 = vld [vmem:[%s1146 + $0xd8] sm:$0xff]
        %v3304 = vld [vmem:[%s1146 + $0xe0] sm:$0xff]
        %v3305 = vld [vmem:[%s1146 + $0xe8] sm:$0xff]
        %v3306 = vld [vmem:[%s1146 + $0xf0] sm:$0xff]
        %v3307 = vld [vmem:[%s1146 + $0xf8] sm:$0xff]
        %v3308 = vld [vmem:[%s1146 + $0x100] sm:$0xff]
        %v3309 = vld [vmem:[%s1146 + $0x108] sm:$0xff]
        %v3310 = vld [vmem:[%s1146 + $0x110] sm:$0xff]
        %v3311 = vld [vmem:[%s1146 + $0x118] sm:$0xff]
        %v3312 = vld [vmem:[%s1146 + $0x120] sm:$0xff]
        %v3313 = vld [vmem:[%s1146 + $0x128] sm:$0xff]
        %v3314 = vld [vmem:[%s1146 + $0x130] sm:$0xff]
        %v3315 = vld [vmem:[%s1146 + $0x138] sm:$0xff]
        %v3316 = vld [vmem:[%s1146 + $0x140] sm:$0xff]
        %v3317 = vld [vmem:[%s1146 + $0x148] sm:$0xff]
        %v3318 = vld [vmem:[%s1146 + $0x150] sm:$0xff]
        %v3319 = vld [vmem:[%s1146 + $0x158] sm:$0xff]
        %v3320 = vld [vmem:[%s1146 + $0x160] sm:$0xff]
        %v3321 = vld [vmem:[%s1146 + $0x168] sm:$0xff]
        %v3322 = vld [vmem:[%s1146 + $0x170] sm:$0xff]
        %v3323 = vld [vmem:[%s1146 + $0x178] sm:$0xff]
        %3324 = vmatprep.subr.mxu0 0.0
        %3325 = vmatpush1.msra.mxu0 %v3291
        %3326 = vmatprep.subr.mxu0 0.0
        %3327 = vmatpush1.msra.mxu0 %v3290
        %3328 = vmatprep.subr.mxu0 0.0
        %3329 = vmatpush1.msra.mxu0 %v3289
        %3330 = vmatprep.subr.mxu0 0.0
        %3331 = vmatpush1.msra.mxu0 %v3288
        %3332 = vmatprep.subr.mxu0 0.0
        %3333 = vmatpush1.msra.mxu0 %v3287
        %3334 = vmatprep.subr.mxu0 0.0
        %3335 = vmatpush1.msra.mxu0 %v3286
        %3336 = vmatprep.subr.mxu0 0.0
        %3337 = vmatpush1.msra.mxu0 %v3285
        %3338 = vmatprep.subr.mxu0 0.0
        %3339 = vmatpush1.msra.mxu0 %v3284
        %3340 = vmatprep.subr.mxu0 0.0
        %3341 = vmatpush1.msra.mxu0 %v3283
        %3342 = vmatprep.subr.mxu0 0.0
        %3343 = vmatpush1.msra.mxu0 %v3282
        %3344 = vmatprep.subr.mxu0 0.0
        %3345 = vmatpush1.msra.mxu0 %v3281
        %3346 = vmatprep.subr.mxu0 0.0
        %3347 = vmatpush1.msra.mxu0 %v3280
        %3348 = vmatprep.subr.mxu0 0.0
        %3349 = vmatpush1.msra.mxu0 %v3279
        %3350 = vmatprep.subr.mxu0 0.0
        %3351 = vmatpush1.msra.mxu0 %v3278
        %3352 = vmatprep.subr.mxu0 0.0
        %3353 = vmatpush1.msra.mxu0 %v3277
        %3354 = vmatprep.subr.mxu0 0.0
        %3355 = vmatpush1.msra.mxu0 %v3276
        %3356 = vmatprep.subr.mxu0 0.0
        %3357 = vmatpush2.msra.mxu0 %v3307
        %3358 = vmatprep.subr.mxu0 0.0
        %3359 = vmatpush2.msra.mxu0 %v3306
        %3360 = vmatprep.subr.mxu0 0.0
        %3361 = vmatpush2.msra.mxu0 %v3305
        %3362 = vmatprep.subr.mxu0 0.0
        %3363 = vmatpush2.msra.mxu0 %v3304
        %3364 = vmatprep.subr.mxu0 0.0
        %3365 = vmatpush2.msra.mxu0 %v3303
        %3366 = vmatprep.subr.mxu0 0.0
        %3367 = vmatpush2.msra.mxu0 %v3302
        %3368 = vmatprep.subr.mxu0 0.0
        %3369 = vmatpush2.msra.mxu0 %v3301
        %3370 = vmatprep.subr.mxu0 0.0
        %3371 = vmatpush2.msra.mxu0 %v3300
        %3372 = vmatprep.subr.mxu0 0.0
        %3373 = vmatpush2.msra.mxu0 %v3299
        %3374 = vmatprep.subr.mxu0 0.0
        %3375 = vmatpush2.msra.mxu0 %v3298
        %3376 = vmatprep.subr.mxu0 0.0
        %3377 = vmatpush2.msra.mxu0 %v3297
        %3378 = vmatprep.subr.mxu0 0.0
        %3379 = vmatpush2.msra.mxu0 %v3296
        %3380 = vmatprep.subr.mxu0 0.0
        %3381 = vmatpush2.msra.mxu0 %v3295
        %3382 = vmatprep.subr.mxu0 0.0
        %3383 = vmatpush2.msra.mxu0 %v3294
        %3384 = vmatprep.subr.mxu0 0.0
        %3385 = vmatpush2.msra.mxu0 %v3293
        %3386 = vmatprep.subr.mxu0 0.0
        %3387 = vmatpush2.msra.mxu0 %v3292
        %3388 = vmatprep.mubr.f32.mxu0 %v3268
        %3389 = vmatmul.mubr.f32.gmra.mxu0 %v3264
        %v3390 = vpop.f32.mrf.mxu0
        %v3391 = vadd.f32 0.0, %v3390
        %v3392 = vpop.f32.mrf.mxu0
        %3393 = vmatprep.mubr.f32.mxu0 %v3269
        %3394 = vmatmul.mubr.f32.gmra.mxu0 %v3265
        %v3395 = vpop.f32.mrf.mxu0
        %v3396 = vadd.f32 0.0, %v3395
        %v3397 = vpop.f32.mrf.mxu0
        %3398 = vmatprep.mubr.f32.mxu0 %v3270
        %3399 = vmatmul.mubr.f32.gmra.mxu0 %v3266
        %v3400 = vpop.f32.mrf.mxu0
        %v3401 = vadd.f32 0.0, %v3400
        %v3402 = vpop.f32.mrf.mxu0
        %3403 = vmatprep.mubr.f32.mxu0 %v3271
        %3404 = vmatmul.mubr.f32.gmra.mxu0 %v3267
        %v3405 = vpop.f32.mrf.mxu0
        %v3406 = vadd.f32 0.0, %v3405
        %v3407 = vpop.f32.mrf.mxu0
        %3408 = vdwg.mxu0
        %3409 = vmatprep.subr.mxu0 0.0
        %3410 = vmatpush1.msra.mxu0 %v3323
        %3411 = vmatprep.subr.mxu0 0.0
        %3412 = vmatpush1.msra.mxu0 %v3322
        %3413 = vmatprep.subr.mxu0 0.0
        %3414 = vmatpush1.msra.mxu0 %v3321
        %3415 = vmatprep.subr.mxu0 0.0
        %3416 = vmatpush1.msra.mxu0 %v3320
        %3417 = vmatprep.subr.mxu0 0.0
        %3418 = vmatpush1.msra.mxu0 %v3319
        %3419 = vmatprep.subr.mxu0 0.0
        %3420 = vmatpush1.msra.mxu0 %v3318
        %3421 = vmatprep.subr.mxu0 0.0
        %3422 = vmatpush1.msra.mxu0 %v3317
        %3423 = vmatprep.subr.mxu0 0.0
        %3424 = vmatpush1.msra.mxu0 %v3316
        %3425 = vmatprep.subr.mxu0 0.0
        %3426 = vmatpush1.msra.mxu0 %v3315
        %3427 = vmatprep.subr.mxu0 0.0
        %3428 = vmatpush1.msra.mxu0 %v3314
        %3429 = vmatprep.subr.mxu0 0.0
        %3430 = vmatpush1.msra.mxu0 %v3313
        %3431 = vmatprep.subr.mxu0 0.0
        %3432 = vmatpush1.msra.mxu0 %v3312
        %3433 = vmatprep.subr.mxu0 0.0
        %3434 = vmatpush1.msra.mxu0 %v3311
        %3435 = vmatprep.subr.mxu0 0.0
        %3436 = vmatpush1.msra.mxu0 %v3310
        %3437 = vmatprep.subr.mxu0 0.0
        %3438 = vmatpush1.msra.mxu0 %v3309
        %3439 = vmatprep.subr.mxu0 0.0
        %3440 = vmatpush1.msra.mxu0 %v3308
        %3441 = vmatprep.subr.mxu0 0.0
        %3442 = vmatpush2.msra.mxu0 0.0
        %3443 = vmatprep.subr.mxu0 0.0
        %3444 = vmatpush2.msra.mxu0 0.0
        %3445 = vmatprep.subr.mxu0 0.0
        %3446 = vmatpush2.msra.mxu0 0.0
        %3447 = vmatprep.subr.mxu0 0.0
        %3448 = vmatpush2.msra.mxu0 0.0
        %3449 = vmatprep.subr.mxu0 0.0
        %3450 = vmatpush2.msra.mxu0 0.0
        %3451 = vmatprep.subr.mxu0 0.0
        %3452 = vmatpush2.msra.mxu0 0.0
        %3453 = vmatprep.subr.mxu0 0.0
        %3454 = vmatpush2.msra.mxu0 0.0
        %3455 = vmatprep.subr.mxu0 0.0
        %3456 = vmatpush2.msra.mxu0 0.0
        %3457 = vmatprep.subr.mxu0 0.0
        %3458 = vmatpush2.msra.mxu0 0.0
        %3459 = vmatprep.subr.mxu0 0.0
        %3460 = vmatpush2.msra.mxu0 0.0
        %3461 = vmatprep.subr.mxu0 0.0
        %3462 = vmatpush2.msra.mxu0 0.0
        %3463 = vmatprep.subr.mxu0 0.0
        %3464 = vmatpush2.msra.mxu0 0.0
        %3465 = vmatprep.subr.mxu0 0.0
        %3466 = vmatpush2.msra.mxu0 0.0
        %3467 = vmatprep.subr.mxu0 0.0
        %3468 = vmatpush2.msra.mxu0 0.0
        %3469 = vmatprep.subr.mxu0 0.0
        %3470 = vmatpush2.msra.mxu0 0.0
        %3471 = vmatprep.subr.mxu0 0.0
        %3472 = vmatpush2.msra.mxu0 0.0
        %3473 = vmatprep.mubr.f32.mxu0 0.0
        %3474 = vmatmul.mubr.f32.gmra.mxu0 %v3272
        %v3475 = vpop.f32.mrf.mxu0
        %v3476 = vadd.f32 %v3391, %v3475
        %v3477 = vpop.f32.mrf.mxu0
        %3478 = vmatprep.mubr.f32.mxu0 0.0
        %3479 = vmatmul.mubr.f32.gmra.mxu0 %v3273
        %v3480 = vpop.f32.mrf.mxu0
        %v3481 = vadd.f32 %v3396, %v3480
        %v3482 = vpop.f32.mrf.mxu0
        %3483 = vmatprep.mubr.f32.mxu0 0.0
        %3484 = vmatmul.mubr.f32.gmra.mxu0 %v3274
        %v3485 = vpop.f32.mrf.mxu0
        %v3486 = vadd.f32 %v3401, %v3485
        %v3487 = vpop.f32.mrf.mxu0
        %3488 = vmatprep.mubr.f32.mxu0 0.0
        %3489 = vmatmul.mubr.f32.gmra.mxu0 %v3275
        %v3490 = vpop.f32.mrf.mxu0
        %v3491 = vadd.f32 %v3406, %v3490
        %v3492 = vpop.f32.mrf.mxu0
        %3493 = vdwg.mxu0
        %v3494 = vadd.f32 %v3243, %v3476
        %v3495 = vadd.f32 %v3248, %v3481
        %v3496 = vadd.f32 %v3253, %v3486
        %v3497 = vadd.f32 %v3258, %v3491
        %v3498 = vld [vmem:[%s4] sm:$0x1]
        %v3500 = vlaneseq
        %v3501 = vshrl.u32 %v3500, 7
        %v3502 = vsub.s32 0, %v3501
        %v3503 = vrot.slane %v3498, %v3502
        %v3505 = vadd.f32 %v3494, %v3503
        %v3506 = vadd.f32 %v3495, %v3503
        %v3507 = vadd.f32 %v3496, %v3503
        %v3508 = vadd.f32 %v3497, %v3503
        %v3509 = vmax.f32 %v3505, 0.0
        %v3510 = vmax.f32 %v3506, 0.0
        %v3511 = vmax.f32 %v3507, 0.0
        %v3512 = vmax.f32 %v3508, 0.0
        %s3513 = scalar_lea.vmem [#allocation2], 384
        %3514 = vst [vmem:[%s3513 + $0x1] sm:$0xff] %v3509
        %3515 = vst [vmem:[%s3513 + $0x9] sm:$0xff] %v3510
        %3516 = vst [vmem:[%s3513 + $0x19] sm:$0xff] %v3511
        %3517 = vst [vmem:[%s3513 + $0x21] sm:$0xff] %v3512
        %p3518 = scmp.eq.s32.totalorder %s26, 0
        // Predicated region
        $region49: #{tpu_custom_call.1} parent=43 // pred_check
          %p3519 = pneg %p3518
        $region50: #{tpu_custom_call.1} parent=43 // pred_check_branch
          %3521 = sbr.rel (%p3519) target = $region52
        $region51: #{tpu_custom_call.1} parent=43 // pred_region
          %3522 = vst [vmem:[#allocation2] sm:$0xff] 0.0
          %3523 = vst [vmem:[#allocation2 + $0x8] sm:$0xff] 0.0
          %3524 = vst [vmem:[#allocation2 + $0x10] sm:$0x3] 0.0
          %s3525 = scalar_lea.vmem [#allocation2], 408
          %3526 = vst [vmem:[%s3525] sm:$0xff] 0.0
          %3527 = vst [vmem:[%s3525 + $0x8] sm:$0xff] 0.0
          %3528 = vst [vmem:[%s3525 + $0x10] sm:$0x3] 0.0
        $region52: #{tpu_custom_call.1} parent=43 // pred_fallthru
          _
        %v3529 = vld [vmem:[%s1097 + $0x1] sm:$0xff]
        %v3530 = vld [vmem:[%s1097 + $0x9] sm:$0xff]
        %v3531 = vld [vmem:[%s1097 + $0x19] sm:$0xff]
        %v3532 = vld [vmem:[%s1097 + $0x21] sm:$0xff]
        %v3533 = vld [vmem:[%s1097 + $0x31] sm:$0xff]
        %v3534 = vld [vmem:[%s1097 + $0x39] sm:$0xff]
        %v3535 = vld [vmem:[%s1097 + $0x49] sm:$0xff]
        %v3536 = vld [vmem:[%s1097 + $0x51] sm:$0xff]
        %v3537 = vld [vmem:[%s1097 + $0x61] sm:$0xff]
        %v3538 = vld [vmem:[%s1097 + $0x69] sm:$0xff]
        %v3539 = vld [vmem:[%s1097 + $0x79] sm:$0xff]
        %v3540 = vld [vmem:[%s1097 + $0x81] sm:$0xff]
        %v3541 = vld [vmem:[%s1097 + $0x91] sm:$0xff]
        %v3542 = vld [vmem:[%s1097 + $0x99] sm:$0xff]
        %v3543 = vld [vmem:[%s1097 + $0xa9] sm:$0xff]
        %v3544 = vld [vmem:[%s1097 + $0xb1] sm:$0xff]
        %v3545 = vld [vmem:[%s3] sm:$0xff]
        %v3546 = vld [vmem:[%s3 + $0x8] sm:$0xff]
        %v3547 = vld [vmem:[%s3 + $0x10] sm:$0xff]
        %v3548 = vld [vmem:[%s3 + $0x18] sm:$0xff]
        %v3549 = vld [vmem:[%s3 + $0x20] sm:$0xff]
        %v3550 = vld [vmem:[%s3 + $0x28] sm:$0xff]
        %v3551 = vld [vmem:[%s3 + $0x30] sm:$0xff]
        %v3552 = vld [vmem:[%s3 + $0x38] sm:$0xff]
        %v3553 = vld [vmem:[%s3 + $0x40] sm:$0xff]
        %v3554 = vld [vmem:[%s3 + $0x48] sm:$0xff]
        %v3555 = vld [vmem:[%s3 + $0x50] sm:$0xff]
        %v3556 = vld [vmem:[%s3 + $0x58] sm:$0xff]
        %v3557 = vld [vmem:[%s3 + $0x60] sm:$0xff]
        %v3558 = vld [vmem:[%s3 + $0x68] sm:$0xff]
        %v3559 = vld [vmem:[%s3 + $0x70] sm:$0xff]
        %v3560 = vld [vmem:[%s3 + $0x78] sm:$0xff]
        %v3561 = vld [vmem:[#allocation2] sm:$0xff]
        %v3562 = vld [vmem:[#allocation2 + $0x8] sm:$0xff]
        %v3563 = vld [vmem:[#allocation2 + $0x18] sm:$0xff]
        %v3564 = vld [vmem:[#allocation2 + $0x20] sm:$0xff]
        %v3565 = vld [vmem:[#allocation2 + $0x30] sm:$0xff]
        %v3566 = vld [vmem:[#allocation2 + $0x38] sm:$0xff]
        %v3567 = vld [vmem:[#allocation2 + $0x48] sm:$0xff]
        %v3568 = vld [vmem:[#allocation2 + $0x50] sm:$0xff]
        %v3569 = vld [vmem:[#allocation2 + $0x60] sm:$0xff]
        %v3570 = vld [vmem:[#allocation2 + $0x68] sm:$0xff]
        %v3571 = vld [vmem:[#allocation2 + $0x78] sm:$0xff]
        %v3572 = vld [vmem:[#allocation2 + $0x80] sm:$0xff]
        %v3573 = vld [vmem:[#allocation2 + $0x90] sm:$0xff]
        %v3574 = vld [vmem:[#allocation2 + $0x98] sm:$0xff]
        %v3575 = vld [vmem:[#allocation2 + $0xa8] sm:$0xff]
        %v3576 = vld [vmem:[#allocation2 + $0xb0] sm:$0xff]
        %v3577 = vld [vmem:[#allocation2 + $0x1] sm:$0xff]
        %v3578 = vld [vmem:[#allocation2 + $0x9] sm:$0xff]
        %v3579 = vld [vmem:[#allocation2 + $0x19] sm:$0xff]
        %v3580 = vld [vmem:[#allocation2 + $0x21] sm:$0xff]
        %v3581 = vld [vmem:[#allocation2 + $0x31] sm:$0xff]
        %v3582 = vld [vmem:[#allocation2 + $0x39] sm:$0xff]
        %v3583 = vld [vmem:[#allocation2 + $0x49] sm:$0xff]
        %v3584 = vld [vmem:[#allocation2 + $0x51] sm:$0xff]
        %v3585 = vld [vmem:[#allocation2 + $0x61] sm:$0xff]
        %v3586 = vld [vmem:[#allocation2 + $0x69] sm:$0xff]
        %v3587 = vld [vmem:[#allocation2 + $0x79] sm:$0xff]
        %v3588 = vld [vmem:[#allocation2 + $0x81] sm:$0xff]
        %v3589 = vld [vmem:[#allocation2 + $0x91] sm:$0xff]
        %v3590 = vld [vmem:[#allocation2 + $0x99] sm:$0xff]
        %v3591 = vld [vmem:[#allocation2 + $0xa9] sm:$0xff]
        %v3592 = vld [vmem:[#allocation2 + $0xb1] sm:$0xff]
        %v3593 = vld [vmem:[#allocation2 + $0x2] sm:$0xff]
        %v3594 = vld [vmem:[#allocation2 + $0xa] sm:$0xff]
        %v3595 = vld [vmem:[#allocation2 + $0x1a] sm:$0xff]
        %v3596 = vld [vmem:[#allocation2 + $0x22] sm:$0xff]
        %v3597 = vld [vmem:[#allocation2 + $0x32] sm:$0xff]
        %v3598 = vld [vmem:[#allocation2 + $0x3a] sm:$0xff]
        %v3599 = vld [vmem:[#allocation2 + $0x4a] sm:$0xff]
        %v3600 = vld [vmem:[#allocation2 + $0x52] sm:$0xff]
        %v3601 = vld [vmem:[#allocation2 + $0x62] sm:$0xff]
        %v3602 = vld [vmem:[#allocation2 + $0x6a] sm:$0xff]
        %v3603 = vld [vmem:[#allocation2 + $0x7a] sm:$0xff]
        %v3604 = vld [vmem:[#allocation2 + $0x82] sm:$0xff]
        %v3605 = vld [vmem:[#allocation2 + $0x92] sm:$0xff]
        %v3606 = vld [vmem:[#allocation2 + $0x9a] sm:$0xff]
        %v3607 = vld [vmem:[#allocation2 + $0xaa] sm:$0xff]
        %v3608 = vld [vmem:[#allocation2 + $0xb2] sm:$0xff]
        %v3609 = vld [vmem:[#allocation3] sm:$0xff]
        %v3610 = vld [vmem:[#allocation3 + $0x8] sm:$0xff]
        %v3611 = vld [vmem:[#allocation3 + $0x10] sm:$0xff]
        %v3612 = vld [vmem:[#allocation3 + $0x18] sm:$0xff]
        %v3613 = vld [vmem:[#allocation3 + $0x20] sm:$0xff]
        %v3614 = vld [vmem:[#allocation3 + $0x28] sm:$0xff]
        %v3615 = vld [vmem:[#allocation3 + $0x30] sm:$0xff]
        %v3616 = vld [vmem:[#allocation3 + $0x38] sm:$0xff]
        %v3617 = vld [vmem:[#allocation3 + $0x40] sm:$0xff]
        %v3618 = vld [vmem:[#allocation3 + $0x48] sm:$0xff]
        %v3619 = vld [vmem:[#allocation3 + $0x50] sm:$0xff]
        %v3620 = vld [vmem:[#allocation3 + $0x58] sm:$0xff]
        %v3621 = vld [vmem:[#allocation3 + $0x60] sm:$0xff]
        %v3622 = vld [vmem:[#allocation3 + $0x68] sm:$0xff]
        %v3623 = vld [vmem:[#allocation3 + $0x70] sm:$0xff]
        %v3624 = vld [vmem:[#allocation3 + $0x78] sm:$0xff]
        %v3625 = vld [vmem:[#allocation3 + $0x80] sm:$0xff]
        %v3626 = vld [vmem:[#allocation3 + $0x88] sm:$0xff]
        %v3627 = vld [vmem:[#allocation3 + $0x90] sm:$0xff]
        %v3628 = vld [vmem:[#allocation3 + $0x98] sm:$0xff]
        %v3629 = vld [vmem:[#allocation3 + $0xa0] sm:$0xff]
        %v3630 = vld [vmem:[#allocation3 + $0xa8] sm:$0xff]
        %v3631 = vld [vmem:[#allocation3 + $0xb0] sm:$0xff]
        %v3632 = vld [vmem:[#allocation3 + $0xb8] sm:$0xff]
        %v3633 = vld [vmem:[#allocation3 + $0xc0] sm:$0xff]
        %v3634 = vld [vmem:[#allocation3 + $0xc8] sm:$0xff]
        %v3635 = vld [vmem:[#allocation3 + $0xd0] sm:$0xff]
        %v3636 = vld [vmem:[#allocation3 + $0xd8] sm:$0xff]
        %v3637 = vld [vmem:[#allocation3 + $0xe0] sm:$0xff]
        %v3638 = vld [vmem:[#allocation3 + $0xe8] sm:$0xff]
        %v3639 = vld [vmem:[#allocation3 + $0xf0] sm:$0xff]
        %v3640 = vld [vmem:[#allocation3 + $0xf8] sm:$0xff]
        %v3641 = vld [vmem:[#allocation3 + $0x100] sm:$0xff]
        %v3642 = vld [vmem:[#allocation3 + $0x108] sm:$0xff]
        %v3643 = vld [vmem:[#allocation3 + $0x110] sm:$0xff]
        %v3644 = vld [vmem:[#allocation3 + $0x118] sm:$0xff]
        %v3645 = vld [vmem:[#allocation3 + $0x120] sm:$0xff]
        %v3646 = vld [vmem:[#allocation3 + $0x128] sm:$0xff]
        %v3647 = vld [vmem:[#allocation3 + $0x130] sm:$0xff]
        %v3648 = vld [vmem:[#allocation3 + $0x138] sm:$0xff]
        %v3649 = vld [vmem:[#allocation3 + $0x140] sm:$0xff]
        %v3650 = vld [vmem:[#allocation3 + $0x148] sm:$0xff]
        %v3651 = vld [vmem:[#allocation3 + $0x150] sm:$0xff]
        %v3652 = vld [vmem:[#allocation3 + $0x158] sm:$0xff]
        %v3653 = vld [vmem:[#allocation3 + $0x160] sm:$0xff]
        %v3654 = vld [vmem:[#allocation3 + $0x168] sm:$0xff]
        %v3655 = vld [vmem:[#allocation3 + $0x170] sm:$0xff]
        %v3656 = vld [vmem:[#allocation3 + $0x178] sm:$0xff]
        %3657 = vmatprep.subr.mxu0 0.0
        %3658 = vmatpush1.msra.mxu0 %v3624
        %3659 = vmatprep.subr.mxu0 0.0
        %3660 = vmatpush1.msra.mxu0 %v3623
        %3661 = vmatprep.subr.mxu0 0.0
        %3662 = vmatpush1.msra.mxu0 %v3622
        %3663 = vmatprep.subr.mxu0 0.0
        %3664 = vmatpush1.msra.mxu0 %v3621
        %3665 = vmatprep.subr.mxu0 0.0
        %3666 = vmatpush1.msra.mxu0 %v3620
        %3667 = vmatprep.subr.mxu0 0.0
        %3668 = vmatpush1.msra.mxu0 %v3619
        %3669 = vmatprep.subr.mxu0 0.0
        %3670 = vmatpush1.msra.mxu0 %v3618
        %3671 = vmatprep.subr.mxu0 0.0
        %3672 = vmatpush1.msra.mxu0 %v3617
        %3673 = vmatprep.subr.mxu0 0.0
        %3674 = vmatpush1.msra.mxu0 %v3616
        %3675 = vmatprep.subr.mxu0 0.0
        %3676 = vmatpush1.msra.mxu0 %v3615
        %3677 = vmatprep.subr.mxu0 0.0
        %3678 = vmatpush1.msra.mxu0 %v3614
        %3679 = vmatprep.subr.mxu0 0.0
        %3680 = vmatpush1.msra.mxu0 %v3613
        %3681 = vmatprep.subr.mxu0 0.0
        %3682 = vmatpush1.msra.mxu0 %v3612
        %3683 = vmatprep.subr.mxu0 0.0
        %3684 = vmatpush1.msra.mxu0 %v3611
        %3685 = vmatprep.subr.mxu0 0.0
        %3686 = vmatpush1.msra.mxu0 %v3610
        %3687 = vmatprep.subr.mxu0 0.0
        %3688 = vmatpush1.msra.mxu0 %v3609
        %3689 = vmatprep.subr.mxu0 0.0
        %3690 = vmatpush2.msra.mxu0 %v3640
        %3691 = vmatprep.subr.mxu0 0.0
        %3692 = vmatpush2.msra.mxu0 %v3639
        %3693 = vmatprep.subr.mxu0 0.0
        %3694 = vmatpush2.msra.mxu0 %v3638
        %3695 = vmatprep.subr.mxu0 0.0
        %3696 = vmatpush2.msra.mxu0 %v3637
        %3697 = vmatprep.subr.mxu0 0.0
        %3698 = vmatpush2.msra.mxu0 %v3636
        %3699 = vmatprep.subr.mxu0 0.0
        %3700 = vmatpush2.msra.mxu0 %v3635
        %3701 = vmatprep.subr.mxu0 0.0
        %3702 = vmatpush2.msra.mxu0 %v3634
        %3703 = vmatprep.subr.mxu0 0.0
        %3704 = vmatpush2.msra.mxu0 %v3633
        %3705 = vmatprep.subr.mxu0 0.0
        %3706 = vmatpush2.msra.mxu0 %v3632
        %3707 = vmatprep.subr.mxu0 0.0
        %3708 = vmatpush2.msra.mxu0 %v3631
        %3709 = vmatprep.subr.mxu0 0.0
        %3710 = vmatpush2.msra.mxu0 %v3630
        %3711 = vmatprep.subr.mxu0 0.0
        %3712 = vmatpush2.msra.mxu0 %v3629
        %3713 = vmatprep.subr.mxu0 0.0
        %3714 = vmatpush2.msra.mxu0 %v3628
        %3715 = vmatprep.subr.mxu0 0.0
        %3716 = vmatpush2.msra.mxu0 %v3627
        %3717 = vmatprep.subr.mxu0 0.0
        %3718 = vmatpush2.msra.mxu0 %v3626
        %3719 = vmatprep.subr.mxu0 0.0
        %3720 = vmatpush2.msra.mxu0 %v3625
        %3721 = vmatprep.mubr.f32.mxu0 %v3577
        %3722 = vmatmul.mubr.f32.gmra.mxu0 %v3561
        %v3723 = vpop.f32.mrf.mxu0
        %v3724 = vadd.f32 0.0, %v3723
        %v3725 = vpop.f32.mrf.mxu0
        %3726 = vmatprep.mubr.f32.mxu0 %v3578
        %3727 = vmatmul.mubr.f32.gmra.mxu0 %v3562
        %v3728 = vpop.f32.mrf.mxu0
        %v3729 = vadd.f32 0.0, %v3728
        %v3730 = vpop.f32.mrf.mxu0
        %3731 = vmatprep.mubr.f32.mxu0 %v3579
        %3732 = vmatmul.mubr.f32.gmra.mxu0 %v3563
        %v3733 = vpop.f32.mrf.mxu0
        %v3734 = vadd.f32 0.0, %v3733
        %v3735 = vpop.f32.mrf.mxu0
        %3736 = vmatprep.mubr.f32.mxu0 %v3580
        %3737 = vmatmul.mubr.f32.gmra.mxu0 %v3564
        %v3738 = vpop.f32.mrf.mxu0
        %v3739 = vadd.f32 0.0, %v3738
        %v3740 = vpop.f32.mrf.mxu0
        %3741 = vmatprep.mubr.f32.mxu0 %v3581
        %3742 = vmatmul.mubr.f32.gmra.mxu0 %v3565
        %v3743 = vpop.f32.mrf.mxu0
        %v3744 = vadd.f32 0.0, %v3743
        %v3745 = vpop.f32.mrf.mxu0
        %3746 = vmatprep.mubr.f32.mxu0 %v3582
        %3747 = vmatmul.mubr.f32.gmra.mxu0 %v3566
        %v3748 = vpop.f32.mrf.mxu0
        %v3749 = vadd.f32 0.0, %v3748
        %v3750 = vpop.f32.mrf.mxu0
        %3751 = vmatprep.mubr.f32.mxu0 %v3583
        %3752 = vmatmul.mubr.f32.gmra.mxu0 %v3567
        %v3753 = vpop.f32.mrf.mxu0
        %v3754 = vadd.f32 0.0, %v3753
        %v3755 = vpop.f32.mrf.mxu0
        %3756 = vmatprep.mubr.f32.mxu0 %v3584
        %3757 = vmatmul.mubr.f32.gmra.mxu0 %v3568
        %v3758 = vpop.f32.mrf.mxu0
        %v3759 = vadd.f32 0.0, %v3758
        %v3760 = vpop.f32.mrf.mxu0
        %3761 = vmatprep.mubr.f32.mxu0 %v3585
        %3762 = vmatmul.mubr.f32.gmra.mxu0 %v3569
        %v3763 = vpop.f32.mrf.mxu0
        %v3764 = vadd.f32 0.0, %v3763
        %v3765 = vpop.f32.mrf.mxu0
        %3766 = vmatprep.mubr.f32.mxu0 %v3586
        %3767 = vmatmul.mubr.f32.gmra.mxu0 %v3570
        %v3768 = vpop.f32.mrf.mxu0
        %v3769 = vadd.f32 0.0, %v3768
        %v3770 = vpop.f32.mrf.mxu0
        %3771 = vmatprep.mubr.f32.mxu0 %v3587
        %3772 = vmatmul.mubr.f32.gmra.mxu0 %v3571
        %v3773 = vpop.f32.mrf.mxu0
        %v3774 = vadd.f32 0.0, %v3773
        %v3775 = vpop.f32.mrf.mxu0
        %3776 = vmatprep.mubr.f32.mxu0 %v3588
        %3777 = vmatmul.mubr.f32.gmra.mxu0 %v3572
        %v3778 = vpop.f32.mrf.mxu0
        %v3779 = vadd.f32 0.0, %v3778
        %v3780 = vpop.f32.mrf.mxu0
        %3781 = vmatprep.mubr.f32.mxu0 %v3589
        %3782 = vmatmul.mubr.f32.gmra.mxu0 %v3573
        %v3783 = vpop.f32.mrf.mxu0
        %v3784 = vadd.f32 0.0, %v3783
        %v3785 = vpop.f32.mrf.mxu0
        %3786 = vmatprep.mubr.f32.mxu0 %v3590
        %3787 = vmatmul.mubr.f32.gmra.mxu0 %v3574
        %v3788 = vpop.f32.mrf.mxu0
        %v3789 = vadd.f32 0.0, %v3788
        %v3790 = vpop.f32.mrf.mxu0
        %3791 = vmatprep.mubr.f32.mxu0 %v3591
        %3792 = vmatmul.mubr.f32.gmra.mxu0 %v3575
        %v3793 = vpop.f32.mrf.mxu0
        %v3794 = vadd.f32 0.0, %v3793
        %v3795 = vpop.f32.mrf.mxu0
        %3796 = vmatprep.mubr.f32.mxu0 %v3592
        %3797 = vmatmul.mubr.f32.gmra.mxu0 %v3576
        %v3798 = vpop.f32.mrf.mxu0
        %v3799 = vadd.f32 0.0, %v3798
        %v3800 = vpop.f32.mrf.mxu0
        %3801 = vdwg.mxu0
        %3802 = vmatprep.subr.mxu0 0.0
        %3803 = vmatpush1.msra.mxu0 %v3656
        %3804 = vmatprep.subr.mxu0 0.0
        %3805 = vmatpush1.msra.mxu0 %v3655
        %3806 = vmatprep.subr.mxu0 0.0
        %3807 = vmatpush1.msra.mxu0 %v3654
        %3808 = vmatprep.subr.mxu0 0.0
        %3809 = vmatpush1.msra.mxu0 %v3653
        %3810 = vmatprep.subr.mxu0 0.0
        %3811 = vmatpush1.msra.mxu0 %v3652
        %3812 = vmatprep.subr.mxu0 0.0
        %3813 = vmatpush1.msra.mxu0 %v3651
        %3814 = vmatprep.subr.mxu0 0.0
        %3815 = vmatpush1.msra.mxu0 %v3650
        %3816 = vmatprep.subr.mxu0 0.0
        %3817 = vmatpush1.msra.mxu0 %v3649
        %3818 = vmatprep.subr.mxu0 0.0
        %3819 = vmatpush1.msra.mxu0 %v3648
        %3820 = vmatprep.subr.mxu0 0.0
        %3821 = vmatpush1.msra.mxu0 %v3647
        %3822 = vmatprep.subr.mxu0 0.0
        %3823 = vmatpush1.msra.mxu0 %v3646
        %3824 = vmatprep.subr.mxu0 0.0
        %3825 = vmatpush1.msra.mxu0 %v3645
        %3826 = vmatprep.subr.mxu0 0.0
        %3827 = vmatpush1.msra.mxu0 %v3644
        %3828 = vmatprep.subr.mxu0 0.0
        %3829 = vmatpush1.msra.mxu0 %v3643
        %3830 = vmatprep.subr.mxu0 0.0
        %3831 = vmatpush1.msra.mxu0 %v3642
        %3832 = vmatprep.subr.mxu0 0.0
        %3833 = vmatpush1.msra.mxu0 %v3641
        %3834 = vmatprep.subr.mxu0 0.0
        %3835 = vmatpush2.msra.mxu0 0.0
        %3836 = vmatprep.subr.mxu0 0.0
        %3837 = vmatpush2.msra.mxu0 0.0
        %3838 = vmatprep.subr.mxu0 0.0
        %3839 = vmatpush2.msra.mxu0 0.0
        %3840 = vmatprep.subr.mxu0 0.0
        %3841 = vmatpush2.msra.mxu0 0.0
        %3842 = vmatprep.subr.mxu0 0.0
        %3843 = vmatpush2.msra.mxu0 0.0
        %3844 = vmatprep.subr.mxu0 0.0
        %3845 = vmatpush2.msra.mxu0 0.0
        %3846 = vmatprep.subr.mxu0 0.0
        %3847 = vmatpush2.msra.mxu0 0.0
        %3848 = vmatprep.subr.mxu0 0.0
        %3849 = vmatpush2.msra.mxu0 0.0
        %3850 = vmatprep.subr.mxu0 0.0
        %3851 = vmatpush2.msra.mxu0 0.0
        %3852 = vmatprep.subr.mxu0 0.0
        %3853 = vmatpush2.msra.mxu0 0.0
        %3854 = vmatprep.subr.mxu0 0.0
        %3855 = vmatpush2.msra.mxu0 0.0
        %3856 = vmatprep.subr.mxu0 0.0
        %3857 = vmatpush2.msra.mxu0 0.0
        %3858 = vmatprep.subr.mxu0 0.0
        %3859 = vmatpush2.msra.mxu0 0.0
        %3860 = vmatprep.subr.mxu0 0.0
        %3861 = vmatpush2.msra.mxu0 0.0
        %3862 = vmatprep.subr.mxu0 0.0
        %3863 = vmatpush2.msra.mxu0 0.0
        %3864 = vmatprep.subr.mxu0 0.0
        %3865 = vmatpush2.msra.mxu0 0.0
        %3866 = vmatprep.mubr.f32.mxu0 0.0
        %3867 = vmatmul.mubr.f32.gmra.mxu0 %v3593
        %v3868 = vpop.f32.mrf.mxu0
        %v3869 = vadd.f32 %v3724, %v3868
        %v3870 = vpop.f32.mrf.mxu0
        %3871 = vmatprep.mubr.f32.mxu0 0.0
        %3872 = vmatmul.mubr.f32.gmra.mxu0 %v3594
        %v3873 = vpop.f32.mrf.mxu0
        %v3874 = vadd.f32 %v3729, %v3873
        %v3875 = vpop.f32.mrf.mxu0
        %3876 = vmatprep.mubr.f32.mxu0 0.0
        %3877 = vmatmul.mubr.f32.gmra.mxu0 %v3595
        %v3878 = vpop.f32.mrf.mxu0
        %v3879 = vadd.f32 %v3734, %v3878
        %v3880 = vpop.f32.mrf.mxu0
        %3881 = vmatprep.mubr.f32.mxu0 0.0
        %3882 = vmatmul.mubr.f32.gmra.mxu0 %v3596
        %v3883 = vpop.f32.mrf.mxu0
        %v3884 = vadd.f32 %v3739, %v3883
        %v3885 = vpop.f32.mrf.mxu0
        %3886 = vmatprep.mubr.f32.mxu0 0.0
        %3887 = vmatmul.mubr.f32.gmra.mxu0 %v3597
        %v3888 = vpop.f32.mrf.mxu0
        %v3889 = vadd.f32 %v3744, %v3888
        %v3890 = vpop.f32.mrf.mxu0
        %3891 = vmatprep.mubr.f32.mxu0 0.0
        %3892 = vmatmul.mubr.f32.gmra.mxu0 %v3598
        %v3893 = vpop.f32.mrf.mxu0
        %v3894 = vadd.f32 %v3749, %v3893
        %v3895 = vpop.f32.mrf.mxu0
        %3896 = vmatprep.mubr.f32.mxu0 0.0
        %3897 = vmatmul.mubr.f32.gmra.mxu0 %v3599
        %v3898 = vpop.f32.mrf.mxu0
        %v3899 = vadd.f32 %v3754, %v3898
        %v3900 = vpop.f32.mrf.mxu0
        %3901 = vmatprep.mubr.f32.mxu0 0.0
        %3902 = vmatmul.mubr.f32.gmra.mxu0 %v3600
        %v3903 = vpop.f32.mrf.mxu0
        %v3904 = vadd.f32 %v3759, %v3903
        %v3905 = vpop.f32.mrf.mxu0
        %3906 = vmatprep.mubr.f32.mxu0 0.0
        %3907 = vmatmul.mubr.f32.gmra.mxu0 %v3601
        %v3908 = vpop.f32.mrf.mxu0
        %v3909 = vadd.f32 %v3764, %v3908
        %v3910 = vpop.f32.mrf.mxu0
        %3911 = vmatprep.mubr.f32.mxu0 0.0
        %3912 = vmatmul.mubr.f32.gmra.mxu0 %v3602
        %v3913 = vpop.f32.mrf.mxu0
        %v3914 = vadd.f32 %v3769, %v3913
        %v3915 = vpop.f32.mrf.mxu0
        %3916 = vmatprep.mubr.f32.mxu0 0.0
        %3917 = vmatmul.mubr.f32.gmra.mxu0 %v3603
        %v3918 = vpop.f32.mrf.mxu0
        %v3919 = vadd.f32 %v3774, %v3918
        %v3920 = vpop.f32.mrf.mxu0
        %3921 = vmatprep.mubr.f32.mxu0 0.0
        %3922 = vmatmul.mubr.f32.gmra.mxu0 %v3604
        %v3923 = vpop.f32.mrf.mxu0
        %v3924 = vadd.f32 %v3779, %v3923
        %v3925 = vpop.f32.mrf.mxu0
        %3926 = vmatprep.mubr.f32.mxu0 0.0
        %3927 = vmatmul.mubr.f32.gmra.mxu0 %v3605
        %v3928 = vpop.f32.mrf.mxu0
        %v3929 = vadd.f32 %v3784, %v3928
        %v3930 = vpop.f32.mrf.mxu0
        %3931 = vmatprep.mubr.f32.mxu0 0.0
        %3932 = vmatmul.mubr.f32.gmra.mxu0 %v3606
        %v3933 = vpop.f32.mrf.mxu0
        %v3934 = vadd.f32 %v3789, %v3933
        %v3935 = vpop.f32.mrf.mxu0
        %3936 = vmatprep.mubr.f32.mxu0 0.0
        %3937 = vmatmul.mubr.f32.gmra.mxu0 %v3607
        %v3938 = vpop.f32.mrf.mxu0
        %v3939 = vadd.f32 %v3794, %v3938
        %v3940 = vpop.f32.mrf.mxu0
        %3941 = vmatprep.mubr.f32.mxu0 0.0
        %3942 = vmatmul.mubr.f32.gmra.mxu0 %v3608
        %v3943 = vpop.f32.mrf.mxu0
        %v3944 = vadd.f32 %v3799, %v3943
        %v3945 = vpop.f32.mrf.mxu0
        %3946 = vdwg.mxu0
        %3947 = vmatprep.subr.mxu0 0.0
        %3948 = vmatpush1.msra.mxu0 %v3560
        %3949 = vmatprep.subr.mxu0 0.0
        %3950 = vmatpush1.msra.mxu0 %v3559
        %3951 = vmatprep.subr.mxu0 0.0
        %3952 = vmatpush1.msra.mxu0 %v3558
        %3953 = vmatprep.subr.mxu0 0.0
        %3954 = vmatpush1.msra.mxu0 %v3557
        %3955 = vmatprep.subr.mxu0 0.0
        %3956 = vmatpush1.msra.mxu0 %v3556
        %3957 = vmatprep.subr.mxu0 0.0
        %3958 = vmatpush1.msra.mxu0 %v3555
        %3959 = vmatprep.subr.mxu0 0.0
        %3960 = vmatpush1.msra.mxu0 %v3554
        %3961 = vmatprep.subr.mxu0 0.0
        %3962 = vmatpush1.msra.mxu0 %v3553
        %3963 = vmatprep.subr.mxu0 0.0
        %3964 = vmatpush1.msra.mxu0 %v3552
        %3965 = vmatprep.subr.mxu0 0.0
        %3966 = vmatpush1.msra.mxu0 %v3551
        %3967 = vmatprep.subr.mxu0 0.0
        %3968 = vmatpush1.msra.mxu0 %v3550
        %3969 = vmatprep.subr.mxu0 0.0
        %3970 = vmatpush1.msra.mxu0 %v3549
        %3971 = vmatprep.subr.mxu0 0.0
        %3972 = vmatpush1.msra.mxu0 %v3548
        %3973 = vmatprep.subr.mxu0 0.0
        %3974 = vmatpush1.msra.mxu0 %v3547
        %3975 = vmatprep.subr.mxu0 0.0
        %3976 = vmatpush1.msra.mxu0 %v3546
        %3977 = vmatprep.subr.mxu0 0.0
        %3978 = vmatpush1.msra.mxu0 %v3545
        %3979 = vmatprep.subr.mxu0 0.0
        %3980 = vmatpush2.msra.mxu0 0.0
        %3981 = vmatprep.subr.mxu0 0.0
        %3982 = vmatpush2.msra.mxu0 0.0
        %3983 = vmatprep.subr.mxu0 0.0
        %3984 = vmatpush2.msra.mxu0 0.0
        %3985 = vmatprep.subr.mxu0 0.0
        %3986 = vmatpush2.msra.mxu0 0.0
        %3987 = vmatprep.subr.mxu0 0.0
        %3988 = vmatpush2.msra.mxu0 0.0
        %3989 = vmatprep.subr.mxu0 0.0
        %3990 = vmatpush2.msra.mxu0 0.0
        %3991 = vmatprep.subr.mxu0 0.0
        %3992 = vmatpush2.msra.mxu0 0.0
        %3993 = vmatprep.subr.mxu0 0.0
        %3994 = vmatpush2.msra.mxu0 0.0
        %3995 = vmatprep.subr.mxu0 0.0
        %3996 = vmatpush2.msra.mxu0 0.0
        %3997 = vmatprep.subr.mxu0 0.0
        %3998 = vmatpush2.msra.mxu0 0.0
        %3999 = vmatprep.subr.mxu0 0.0
        %4000 = vmatpush2.msra.mxu0 0.0
        %4001 = vmatprep.subr.mxu0 0.0
        %4002 = vmatpush2.msra.mxu0 0.0
        %4003 = vmatprep.subr.mxu0 0.0
        %4004 = vmatpush2.msra.mxu0 0.0
        %4005 = vmatprep.subr.mxu0 0.0
        %4006 = vmatpush2.msra.mxu0 0.0
        %4007 = vmatprep.subr.mxu0 0.0
        %4008 = vmatpush2.msra.mxu0 0.0
        %4009 = vmatprep.subr.mxu0 0.0
        %4010 = vmatpush2.msra.mxu0 0.0
        %4011 = vmatprep.mubr.f32.mxu0 0.0
        %4012 = vmatmul.mubr.f32.gmra.mxu0 %v3529
        %v4013 = vpop.f32.mrf.mxu0
        %v4014 = vadd.f32 %v3869, %v4013
        %v4015 = vpop.f32.mrf.mxu0
        %4016 = vmatprep.mubr.f32.mxu0 0.0
        %4017 = vmatmul.mubr.f32.gmra.mxu0 %v3530
        %v4018 = vpop.f32.mrf.mxu0
        %v4019 = vadd.f32 %v3874, %v4018
        %v4020 = vpop.f32.mrf.mxu0
        %4021 = vmatprep.mubr.f32.mxu0 0.0
        %4022 = vmatmul.mubr.f32.gmra.mxu0 %v3531
        %v4023 = vpop.f32.mrf.mxu0
        %v4024 = vadd.f32 %v3879, %v4023
        %v4025 = vpop.f32.mrf.mxu0
        %4026 = vmatprep.mubr.f32.mxu0 0.0
        %4027 = vmatmul.mubr.f32.gmra.mxu0 %v3532
        %v4028 = vpop.f32.mrf.mxu0
        %v4029 = vadd.f32 %v3884, %v4028
        %v4030 = vpop.f32.mrf.mxu0
        %4031 = vmatprep.mubr.f32.mxu0 0.0
        %4032 = vmatmul.mubr.f32.gmra.mxu0 %v3533
        %v4033 = vpop.f32.mrf.mxu0
        %v4034 = vadd.f32 %v3889, %v4033
        %v4035 = vpop.f32.mrf.mxu0
        %4036 = vmatprep.mubr.f32.mxu0 0.0
        %4037 = vmatmul.mubr.f32.gmra.mxu0 %v3534
        %v4038 = vpop.f32.mrf.mxu0
        %v4039 = vadd.f32 %v3894, %v4038
        %v4040 = vpop.f32.mrf.mxu0
        %4041 = vmatprep.mubr.f32.mxu0 0.0
        %4042 = vmatmul.mubr.f32.gmra.mxu0 %v3535
        %v4043 = vpop.f32.mrf.mxu0
        %v4044 = vadd.f32 %v3899, %v4043
        %v4045 = vpop.f32.mrf.mxu0
        %4046 = vmatprep.mubr.f32.mxu0 0.0
        %4047 = vmatmul.mubr.f32.gmra.mxu0 %v3536
        %v4048 = vpop.f32.mrf.mxu0
        %v4049 = vadd.f32 %v3904, %v4048
        %v4050 = vpop.f32.mrf.mxu0
        %4051 = vmatprep.mubr.f32.mxu0 0.0
        %4052 = vmatmul.mubr.f32.gmra.mxu0 %v3537
        %v4053 = vpop.f32.mrf.mxu0
        %v4054 = vadd.f32 %v3909, %v4053
        %v4055 = vpop.f32.mrf.mxu0
        %4056 = vmatprep.mubr.f32.mxu0 0.0
        %4057 = vmatmul.mubr.f32.gmra.mxu0 %v3538
        %v4058 = vpop.f32.mrf.mxu0
        %v4059 = vadd.f32 %v3914, %v4058
        %v4060 = vpop.f32.mrf.mxu0
        %4061 = vmatprep.mubr.f32.mxu0 0.0
        %4062 = vmatmul.mubr.f32.gmra.mxu0 %v3539
        %v4063 = vpop.f32.mrf.mxu0
        %v4064 = vadd.f32 %v3919, %v4063
        %v4065 = vpop.f32.mrf.mxu0
        %4066 = vmatprep.mubr.f32.mxu0 0.0
        %4067 = vmatmul.mubr.f32.gmra.mxu0 %v3540
        %v4068 = vpop.f32.mrf.mxu0
        %v4069 = vadd.f32 %v3924, %v4068
        %v4070 = vpop.f32.mrf.mxu0
        %4071 = vmatprep.mubr.f32.mxu0 0.0
        %4072 = vmatmul.mubr.f32.gmra.mxu0 %v3541
        %v4073 = vpop.f32.mrf.mxu0
        %v4074 = vadd.f32 %v3929, %v4073
        %v4075 = vpop.f32.mrf.mxu0
        %4076 = vmatprep.mubr.f32.mxu0 0.0
        %4077 = vmatmul.mubr.f32.gmra.mxu0 %v3542
        %v4078 = vpop.f32.mrf.mxu0
        %v4079 = vadd.f32 %v3934, %v4078
        %v4080 = vpop.f32.mrf.mxu0
        %4081 = vmatprep.mubr.f32.mxu0 0.0
        %4082 = vmatmul.mubr.f32.gmra.mxu0 %v3543
        %v4083 = vpop.f32.mrf.mxu0
        %v4084 = vadd.f32 %v3939, %v4083
        %v4085 = vpop.f32.mrf.mxu0
        %4086 = vmatprep.mubr.f32.mxu0 0.0
        %4087 = vmatmul.mubr.f32.gmra.mxu0 %v3544
        %v4088 = vpop.f32.mrf.mxu0
        %v4089 = vadd.f32 %v3944, %v4088
        %v4090 = vpop.f32.mrf.mxu0
        %4091 = vdwg.mxu0
        %s4092 = scalar_lea.vmem [#allocation2], 24
        %v4093 = vld [vmem:[%s4092] sm:$0xff]
        %v4094 = vld [vmem:[%s4092 + $0x8] sm:$0xff]
        %v4095 = vld [vmem:[%s4092 + $0x18] sm:$0xff]
        %v4096 = vld [vmem:[%s4092 + $0x20] sm:$0xff]
        %v4097 = vld [vmem:[%s4092 + $0x30] sm:$0xff]
        %v4098 = vld [vmem:[%s4092 + $0x38] sm:$0xff]
        %v4099 = vld [vmem:[%s4092 + $0x48] sm:$0xff]
        %v4100 = vld [vmem:[%s4092 + $0x50] sm:$0xff]
        %v4101 = vld [vmem:[%s4092 + $0x60] sm:$0xff]
        %v4102 = vld [vmem:[%s4092 + $0x68] sm:$0xff]
        %v4103 = vld [vmem:[%s4092 + $0x78] sm:$0xff]
        %v4104 = vld [vmem:[%s4092 + $0x80] sm:$0xff]
        %v4105 = vld [vmem:[%s4092 + $0x90] sm:$0xff]
        %v4106 = vld [vmem:[%s4092 + $0x98] sm:$0xff]
        %v4107 = vld [vmem:[%s4092 + $0xa8] sm:$0xff]
        %v4108 = vld [vmem:[%s4092 + $0xb0] sm:$0xff]
        %v4109 = vld [vmem:[%s4092 + $0x1] sm:$0xff]
        %v4110 = vld [vmem:[%s4092 + $0x9] sm:$0xff]
        %v4111 = vld [vmem:[%s4092 + $0x19] sm:$0xff]
        %v4112 = vld [vmem:[%s4092 + $0x21] sm:$0xff]
        %v4113 = vld [vmem:[%s4092 + $0x31] sm:$0xff]
        %v4114 = vld [vmem:[%s4092 + $0x39] sm:$0xff]
        %v4115 = vld [vmem:[%s4092 + $0x49] sm:$0xff]
        %v4116 = vld [vmem:[%s4092 + $0x51] sm:$0xff]
        %v4117 = vld [vmem:[%s4092 + $0x61] sm:$0xff]
        %v4118 = vld [vmem:[%s4092 + $0x69] sm:$0xff]
        %v4119 = vld [vmem:[%s4092 + $0x79] sm:$0xff]
        %v4120 = vld [vmem:[%s4092 + $0x81] sm:$0xff]
        %v4121 = vld [vmem:[%s4092 + $0x91] sm:$0xff]
        %v4122 = vld [vmem:[%s4092 + $0x99] sm:$0xff]
        %v4123 = vld [vmem:[%s4092 + $0xa9] sm:$0xff]
        %v4124 = vld [vmem:[%s4092 + $0xb1] sm:$0xff]
        %v4125 = vld [vmem:[%s4092 + $0x2] sm:$0xff]
        %v4126 = vld [vmem:[%s4092 + $0xa] sm:$0xff]
        %v4127 = vld [vmem:[%s4092 + $0x1a] sm:$0xff]
        %v4128 = vld [vmem:[%s4092 + $0x22] sm:$0xff]
        %v4129 = vld [vmem:[%s4092 + $0x32] sm:$0xff]
        %v4130 = vld [vmem:[%s4092 + $0x3a] sm:$0xff]
        %v4131 = vld [vmem:[%s4092 + $0x4a] sm:$0xff]
        %v4132 = vld [vmem:[%s4092 + $0x52] sm:$0xff]
        %v4133 = vld [vmem:[%s4092 + $0x62] sm:$0xff]
        %v4134 = vld [vmem:[%s4092 + $0x6a] sm:$0xff]
        %v4135 = vld [vmem:[%s4092 + $0x7a] sm:$0xff]
        %v4136 = vld [vmem:[%s4092 + $0x82] sm:$0xff]
        %v4137 = vld [vmem:[%s4092 + $0x92] sm:$0xff]
        %v4138 = vld [vmem:[%s4092 + $0x9a] sm:$0xff]
        %v4139 = vld [vmem:[%s4092 + $0xaa] sm:$0xff]
        %v4140 = vld [vmem:[%s4092 + $0xb2] sm:$0xff]
        %s4141 = scalar_lea.vmem [#allocation3], 384
        %v4142 = vld [vmem:[%s4141] sm:$0xff]
        %v4143 = vld [vmem:[%s4141 + $0x8] sm:$0xff]
        %v4144 = vld [vmem:[%s4141 + $0x10] sm:$0xff]
        %v4145 = vld [vmem:[%s4141 + $0x18] sm:$0xff]
        %v4146 = vld [vmem:[%s4141 + $0x20] sm:$0xff]
        %v4147 = vld [vmem:[%s4141 + $0x28] sm:$0xff]
        %v4148 = vld [vmem:[%s4141 + $0x30] sm:$0xff]
        %v4149 = vld [vmem:[%s4141 + $0x38] sm:$0xff]
        %v4150 = vld [vmem:[%s4141 + $0x40] sm:$0xff]
        %v4151 = vld [vmem:[%s4141 + $0x48] sm:$0xff]
        %v4152 = vld [vmem:[%s4141 + $0x50] sm:$0xff]
        %v4153 = vld [vmem:[%s4141 + $0x58] sm:$0xff]
        %v4154 = vld [vmem:[%s4141 + $0x60] sm:$0xff]
        %v4155 = vld [vmem:[%s4141 + $0x68] sm:$0xff]
        %v4156 = vld [vmem:[%s4141 + $0x70] sm:$0xff]
        %v4157 = vld [vmem:[%s4141 + $0x78] sm:$0xff]
        %v4158 = vld [vmem:[%s4141 + $0x80] sm:$0xff]
        %v4159 = vld [vmem:[%s4141 + $0x88] sm:$0xff]
        %v4160 = vld [vmem:[%s4141 + $0x90] sm:$0xff]
        %v4161 = vld [vmem:[%s4141 + $0x98] sm:$0xff]
        %v4162 = vld [vmem:[%s4141 + $0xa0] sm:$0xff]
        %v4163 = vld [vmem:[%s4141 + $0xa8] sm:$0xff]
        %v4164 = vld [vmem:[%s4141 + $0xb0] sm:$0xff]
        %v4165 = vld [vmem:[%s4141 + $0xb8] sm:$0xff]
        %v4166 = vld [vmem:[%s4141 + $0xc0] sm:$0xff]
        %v4167 = vld [vmem:[%s4141 + $0xc8] sm:$0xff]
        %v4168 = vld [vmem:[%s4141 + $0xd0] sm:$0xff]
        %v4169 = vld [vmem:[%s4141 + $0xd8] sm:$0xff]
        %v4170 = vld [vmem:[%s4141 + $0xe0] sm:$0xff]
        %v4171 = vld [vmem:[%s4141 + $0xe8] sm:$0xff]
        %v4172 = vld [vmem:[%s4141 + $0xf0] sm:$0xff]
        %v4173 = vld [vmem:[%s4141 + $0xf8] sm:$0xff]
        %v4174 = vld [vmem:[%s4141 + $0x100] sm:$0xff]
        %v4175 = vld [vmem:[%s4141 + $0x108] sm:$0xff]
        %v4176 = vld [vmem:[%s4141 + $0x110] sm:$0xff]
        %v4177 = vld [vmem:[%s4141 + $0x118] sm:$0xff]
        %v4178 = vld [vmem:[%s4141 + $0x120] sm:$0xff]
        %v4179 = vld [vmem:[%s4141 + $0x128] sm:$0xff]
        %v4180 = vld [vmem:[%s4141 + $0x130] sm:$0xff]
        %v4181 = vld [vmem:[%s4141 + $0x138] sm:$0xff]
        %v4182 = vld [vmem:[%s4141 + $0x140] sm:$0xff]
        %v4183 = vld [vmem:[%s4141 + $0x148] sm:$0xff]
        %v4184 = vld [vmem:[%s4141 + $0x150] sm:$0xff]
        %v4185 = vld [vmem:[%s4141 + $0x158] sm:$0xff]
        %v4186 = vld [vmem:[%s4141 + $0x160] sm:$0xff]
        %v4187 = vld [vmem:[%s4141 + $0x168] sm:$0xff]
        %v4188 = vld [vmem:[%s4141 + $0x170] sm:$0xff]
        %v4189 = vld [vmem:[%s4141 + $0x178] sm:$0xff]
        %4190 = vmatprep.subr.mxu0 0.0
        %4191 = vmatpush1.msra.mxu0 %v4157
        %4192 = vmatprep.subr.mxu0 0.0
        %4193 = vmatpush1.msra.mxu0 %v4156
        %4194 = vmatprep.subr.mxu0 0.0
        %4195 = vmatpush1.msra.mxu0 %v4155
        %4196 = vmatprep.subr.mxu0 0.0
        %4197 = vmatpush1.msra.mxu0 %v4154
        %4198 = vmatprep.subr.mxu0 0.0
        %4199 = vmatpush1.msra.mxu0 %v4153
        %4200 = vmatprep.subr.mxu0 0.0
        %4201 = vmatpush1.msra.mxu0 %v4152
        %4202 = vmatprep.subr.mxu0 0.0
        %4203 = vmatpush1.msra.mxu0 %v4151
        %4204 = vmatprep.subr.mxu0 0.0
        %4205 = vmatpush1.msra.mxu0 %v4150
        %4206 = vmatprep.subr.mxu0 0.0
        %4207 = vmatpush1.msra.mxu0 %v4149
        %4208 = vmatprep.subr.mxu0 0.0
        %4209 = vmatpush1.msra.mxu0 %v4148
        %4210 = vmatprep.subr.mxu0 0.0
        %4211 = vmatpush1.msra.mxu0 %v4147
        %4212 = vmatprep.subr.mxu0 0.0
        %4213 = vmatpush1.msra.mxu0 %v4146
        %4214 = vmatprep.subr.mxu0 0.0
        %4215 = vmatpush1.msra.mxu0 %v4145
        %4216 = vmatprep.subr.mxu0 0.0
        %4217 = vmatpush1.msra.mxu0 %v4144
        %4218 = vmatprep.subr.mxu0 0.0
        %4219 = vmatpush1.msra.mxu0 %v4143
        %4220 = vmatprep.subr.mxu0 0.0
        %4221 = vmatpush1.msra.mxu0 %v4142
        %4222 = vmatprep.subr.mxu0 0.0
        %4223 = vmatpush2.msra.mxu0 %v4173
        %4224 = vmatprep.subr.mxu0 0.0
        %4225 = vmatpush2.msra.mxu0 %v4172
        %4226 = vmatprep.subr.mxu0 0.0
        %4227 = vmatpush2.msra.mxu0 %v4171
        %4228 = vmatprep.subr.mxu0 0.0
        %4229 = vmatpush2.msra.mxu0 %v4170
        %4230 = vmatprep.subr.mxu0 0.0
        %4231 = vmatpush2.msra.mxu0 %v4169
        %4232 = vmatprep.subr.mxu0 0.0
        %4233 = vmatpush2.msra.mxu0 %v4168
        %4234 = vmatprep.subr.mxu0 0.0
        %4235 = vmatpush2.msra.mxu0 %v4167
        %4236 = vmatprep.subr.mxu0 0.0
        %4237 = vmatpush2.msra.mxu0 %v4166
        %4238 = vmatprep.subr.mxu0 0.0
        %4239 = vmatpush2.msra.mxu0 %v4165
        %4240 = vmatprep.subr.mxu0 0.0
        %4241 = vmatpush2.msra.mxu0 %v4164
        %4242 = vmatprep.subr.mxu0 0.0
        %4243 = vmatpush2.msra.mxu0 %v4163
        %4244 = vmatprep.subr.mxu0 0.0
        %4245 = vmatpush2.msra.mxu0 %v4162
        %4246 = vmatprep.subr.mxu0 0.0
        %4247 = vmatpush2.msra.mxu0 %v4161
        %4248 = vmatprep.subr.mxu0 0.0
        %4249 = vmatpush2.msra.mxu0 %v4160
        %4250 = vmatprep.subr.mxu0 0.0
        %4251 = vmatpush2.msra.mxu0 %v4159
        %4252 = vmatprep.subr.mxu0 0.0
        %4253 = vmatpush2.msra.mxu0 %v4158
        %4254 = vmatprep.mubr.f32.mxu0 %v4109
        %4255 = vmatmul.mubr.f32.gmra.mxu0 %v4093
        %v4256 = vpop.f32.mrf.mxu0
        %v4257 = vadd.f32 0.0, %v4256
        %v4258 = vpop.f32.mrf.mxu0
        %4259 = vmatprep.mubr.f32.mxu0 %v4110
        %4260 = vmatmul.mubr.f32.gmra.mxu0 %v4094
        %v4261 = vpop.f32.mrf.mxu0
        %v4262 = vadd.f32 0.0, %v4261
        %v4263 = vpop.f32.mrf.mxu0
        %4264 = vmatprep.mubr.f32.mxu0 %v4111
        %4265 = vmatmul.mubr.f32.gmra.mxu0 %v4095
        %v4266 = vpop.f32.mrf.mxu0
        %v4267 = vadd.f32 0.0, %v4266
        %v4268 = vpop.f32.mrf.mxu0
        %4269 = vmatprep.mubr.f32.mxu0 %v4112
        %4270 = vmatmul.mubr.f32.gmra.mxu0 %v4096
        %v4271 = vpop.f32.mrf.mxu0
        %v4272 = vadd.f32 0.0, %v4271
        %v4273 = vpop.f32.mrf.mxu0
        %4274 = vmatprep.mubr.f32.mxu0 %v4113
        %4275 = vmatmul.mubr.f32.gmra.mxu0 %v4097
        %v4276 = vpop.f32.mrf.mxu0
        %v4277 = vadd.f32 0.0, %v4276
        %v4278 = vpop.f32.mrf.mxu0
        %4279 = vmatprep.mubr.f32.mxu0 %v4114
        %4280 = vmatmul.mubr.f32.gmra.mxu0 %v4098
        %v4281 = vpop.f32.mrf.mxu0
        %v4282 = vadd.f32 0.0, %v4281
        %v4283 = vpop.f32.mrf.mxu0
        %4284 = vmatprep.mubr.f32.mxu0 %v4115
        %4285 = vmatmul.mubr.f32.gmra.mxu0 %v4099
        %v4286 = vpop.f32.mrf.mxu0
        %v4287 = vadd.f32 0.0, %v4286
        %v4288 = vpop.f32.mrf.mxu0
        %4289 = vmatprep.mubr.f32.mxu0 %v4116
        %4290 = vmatmul.mubr.f32.gmra.mxu0 %v4100
        %v4291 = vpop.f32.mrf.mxu0
        %v4292 = vadd.f32 0.0, %v4291
        %v4293 = vpop.f32.mrf.mxu0
        %4294 = vmatprep.mubr.f32.mxu0 %v4117
        %4295 = vmatmul.mubr.f32.gmra.mxu0 %v4101
        %v4296 = vpop.f32.mrf.mxu0
        %v4297 = vadd.f32 0.0, %v4296
        %v4298 = vpop.f32.mrf.mxu0
        %4299 = vmatprep.mubr.f32.mxu0 %v4118
        %4300 = vmatmul.mubr.f32.gmra.mxu0 %v4102
        %v4301 = vpop.f32.mrf.mxu0
        %v4302 = vadd.f32 0.0, %v4301
        %v4303 = vpop.f32.mrf.mxu0
        %4304 = vmatprep.mubr.f32.mxu0 %v4119
        %4305 = vmatmul.mubr.f32.gmra.mxu0 %v4103
        %v4306 = vpop.f32.mrf.mxu0
        %v4307 = vadd.f32 0.0, %v4306
        %v4308 = vpop.f32.mrf.mxu0
        %4309 = vmatprep.mubr.f32.mxu0 %v4120
        %4310 = vmatmul.mubr.f32.gmra.mxu0 %v4104
        %v4311 = vpop.f32.mrf.mxu0
        %v4312 = vadd.f32 0.0, %v4311
        %v4313 = vpop.f32.mrf.mxu0
        %4314 = vmatprep.mubr.f32.mxu0 %v4121
        %4315 = vmatmul.mubr.f32.gmra.mxu0 %v4105
        %v4316 = vpop.f32.mrf.mxu0
        %v4317 = vadd.f32 0.0, %v4316
        %v4318 = vpop.f32.mrf.mxu0
        %4319 = vmatprep.mubr.f32.mxu0 %v4122
        %4320 = vmatmul.mubr.f32.gmra.mxu0 %v4106
        %v4321 = vpop.f32.mrf.mxu0
        %v4322 = vadd.f32 0.0, %v4321
        %v4323 = vpop.f32.mrf.mxu0
        %4324 = vmatprep.mubr.f32.mxu0 %v4123
        %4325 = vmatmul.mubr.f32.gmra.mxu0 %v4107
        %v4326 = vpop.f32.mrf.mxu0
        %v4327 = vadd.f32 0.0, %v4326
        %v4328 = vpop.f32.mrf.mxu0
        %4329 = vmatprep.mubr.f32.mxu0 %v4124
        %4330 = vmatmul.mubr.f32.gmra.mxu0 %v4108
        %v4331 = vpop.f32.mrf.mxu0
        %v4332 = vadd.f32 0.0, %v4331
        %v4333 = vpop.f32.mrf.mxu0
        %4334 = vdwg.mxu0
        %4335 = vmatprep.subr.mxu0 0.0
        %4336 = vmatpush1.msra.mxu0 %v4189
        %4337 = vmatprep.subr.mxu0 0.0
        %4338 = vmatpush1.msra.mxu0 %v4188
        %4339 = vmatprep.subr.mxu0 0.0
        %4340 = vmatpush1.msra.mxu0 %v4187
        %4341 = vmatprep.subr.mxu0 0.0
        %4342 = vmatpush1.msra.mxu0 %v4186
        %4343 = vmatprep.subr.mxu0 0.0
        %4344 = vmatpush1.msra.mxu0 %v4185
        %4345 = vmatprep.subr.mxu0 0.0
        %4346 = vmatpush1.msra.mxu0 %v4184
        %4347 = vmatprep.subr.mxu0 0.0
        %4348 = vmatpush1.msra.mxu0 %v4183
        %4349 = vmatprep.subr.mxu0 0.0
        %4350 = vmatpush1.msra.mxu0 %v4182
        %4351 = vmatprep.subr.mxu0 0.0
        %4352 = vmatpush1.msra.mxu0 %v4181
        %4353 = vmatprep.subr.mxu0 0.0
        %4354 = vmatpush1.msra.mxu0 %v4180
        %4355 = vmatprep.subr.mxu0 0.0
        %4356 = vmatpush1.msra.mxu0 %v4179
        %4357 = vmatprep.subr.mxu0 0.0
        %4358 = vmatpush1.msra.mxu0 %v4178
        %4359 = vmatprep.subr.mxu0 0.0
        %4360 = vmatpush1.msra.mxu0 %v4177
        %4361 = vmatprep.subr.mxu0 0.0
        %4362 = vmatpush1.msra.mxu0 %v4176
        %4363 = vmatprep.subr.mxu0 0.0
        %4364 = vmatpush1.msra.mxu0 %v4175
        %4365 = vmatprep.subr.mxu0 0.0
        %4366 = vmatpush1.msra.mxu0 %v4174
        %4367 = vmatprep.subr.mxu0 0.0
        %4368 = vmatpush2.msra.mxu0 0.0
        %4369 = vmatprep.subr.mxu0 0.0
        %4370 = vmatpush2.msra.mxu0 0.0
        %4371 = vmatprep.subr.mxu0 0.0
        %4372 = vmatpush2.msra.mxu0 0.0
        %4373 = vmatprep.subr.mxu0 0.0
        %4374 = vmatpush2.msra.mxu0 0.0
        %4375 = vmatprep.subr.mxu0 0.0
        %4376 = vmatpush2.msra.mxu0 0.0
        %4377 = vmatprep.subr.mxu0 0.0
        %4378 = vmatpush2.msra.mxu0 0.0
        %4379 = vmatprep.subr.mxu0 0.0
        %4380 = vmatpush2.msra.mxu0 0.0
        %4381 = vmatprep.subr.mxu0 0.0
        %4382 = vmatpush2.msra.mxu0 0.0
        %4383 = vmatprep.subr.mxu0 0.0
        %4384 = vmatpush2.msra.mxu0 0.0
        %4385 = vmatprep.subr.mxu0 0.0
        %4386 = vmatpush2.msra.mxu0 0.0
        %4387 = vmatprep.subr.mxu0 0.0
        %4388 = vmatpush2.msra.mxu0 0.0
        %4389 = vmatprep.subr.mxu0 0.0
        %4390 = vmatpush2.msra.mxu0 0.0
        %4391 = vmatprep.subr.mxu0 0.0
        %4392 = vmatpush2.msra.mxu0 0.0
        %4393 = vmatprep.subr.mxu0 0.0
        %4394 = vmatpush2.msra.mxu0 0.0
        %4395 = vmatprep.subr.mxu0 0.0
        %4396 = vmatpush2.msra.mxu0 0.0
        %4397 = vmatprep.subr.mxu0 0.0
        %4398 = vmatpush2.msra.mxu0 0.0
        %4399 = vmatprep.mubr.f32.mxu0 0.0
        %4400 = vmatmul.mubr.f32.gmra.mxu0 %v4125
        %v4401 = vpop.f32.mrf.mxu0
        %v4402 = vadd.f32 %v4257, %v4401
        %v4403 = vpop.f32.mrf.mxu0
        %4404 = vmatprep.mubr.f32.mxu0 0.0
        %4405 = vmatmul.mubr.f32.gmra.mxu0 %v4126
        %v4406 = vpop.f32.mrf.mxu0
        %v4407 = vadd.f32 %v4262, %v4406
        %v4408 = vpop.f32.mrf.mxu0
        %4409 = vmatprep.mubr.f32.mxu0 0.0
        %4410 = vmatmul.mubr.f32.gmra.mxu0 %v4127
        %v4411 = vpop.f32.mrf.mxu0
        %v4412 = vadd.f32 %v4267, %v4411
        %v4413 = vpop.f32.mrf.mxu0
        %4414 = vmatprep.mubr.f32.mxu0 0.0
        %4415 = vmatmul.mubr.f32.gmra.mxu0 %v4128
        %v4416 = vpop.f32.mrf.mxu0
        %v4417 = vadd.f32 %v4272, %v4416
        %v4418 = vpop.f32.mrf.mxu0
        %4419 = vmatprep.mubr.f32.mxu0 0.0
        %4420 = vmatmul.mubr.f32.gmra.mxu0 %v4129
        %v4421 = vpop.f32.mrf.mxu0
        %v4422 = vadd.f32 %v4277, %v4421
        %v4423 = vpop.f32.mrf.mxu0
        %4424 = vmatprep.mubr.f32.mxu0 0.0
        %4425 = vmatmul.mubr.f32.gmra.mxu0 %v4130
        %v4426 = vpop.f32.mrf.mxu0
        %v4427 = vadd.f32 %v4282, %v4426
        %v4428 = vpop.f32.mrf.mxu0
        %4429 = vmatprep.mubr.f32.mxu0 0.0
        %4430 = vmatmul.mubr.f32.gmra.mxu0 %v4131
        %v4431 = vpop.f32.mrf.mxu0
        %v4432 = vadd.f32 %v4287, %v4431
        %v4433 = vpop.f32.mrf.mxu0
        %4434 = vmatprep.mubr.f32.mxu0 0.0
        %4435 = vmatmul.mubr.f32.gmra.mxu0 %v4132
        %v4436 = vpop.f32.mrf.mxu0
        %v4437 = vadd.f32 %v4292, %v4436
        %v4438 = vpop.f32.mrf.mxu0
        %4439 = vmatprep.mubr.f32.mxu0 0.0
        %4440 = vmatmul.mubr.f32.gmra.mxu0 %v4133
        %v4441 = vpop.f32.mrf.mxu0
        %v4442 = vadd.f32 %v4297, %v4441
        %v4443 = vpop.f32.mrf.mxu0
        %4444 = vmatprep.mubr.f32.mxu0 0.0
        %4445 = vmatmul.mubr.f32.gmra.mxu0 %v4134
        %v4446 = vpop.f32.mrf.mxu0
        %v4447 = vadd.f32 %v4302, %v4446
        %v4448 = vpop.f32.mrf.mxu0
        %4449 = vmatprep.mubr.f32.mxu0 0.0
        %4450 = vmatmul.mubr.f32.gmra.mxu0 %v4135
        %v4451 = vpop.f32.mrf.mxu0
        %v4452 = vadd.f32 %v4307, %v4451
        %v4453 = vpop.f32.mrf.mxu0
        %4454 = vmatprep.mubr.f32.mxu0 0.0
        %4455 = vmatmul.mubr.f32.gmra.mxu0 %v4136
        %v4456 = vpop.f32.mrf.mxu0
        %v4457 = vadd.f32 %v4312, %v4456
        %v4458 = vpop.f32.mrf.mxu0
        %4459 = vmatprep.mubr.f32.mxu0 0.0
        %4460 = vmatmul.mubr.f32.gmra.mxu0 %v4137
        %v4461 = vpop.f32.mrf.mxu0
        %v4462 = vadd.f32 %v4317, %v4461
        %v4463 = vpop.f32.mrf.mxu0
        %4464 = vmatprep.mubr.f32.mxu0 0.0
        %4465 = vmatmul.mubr.f32.gmra.mxu0 %v4138
        %v4466 = vpop.f32.mrf.mxu0
        %v4467 = vadd.f32 %v4322, %v4466
        %v4468 = vpop.f32.mrf.mxu0
        %4469 = vmatprep.mubr.f32.mxu0 0.0
        %4470 = vmatmul.mubr.f32.gmra.mxu0 %v4139
        %v4471 = vpop.f32.mrf.mxu0
        %v4472 = vadd.f32 %v4327, %v4471
        %v4473 = vpop.f32.mrf.mxu0
        %4474 = vmatprep.mubr.f32.mxu0 0.0
        %4475 = vmatmul.mubr.f32.gmra.mxu0 %v4140
        %v4476 = vpop.f32.mrf.mxu0
        %v4477 = vadd.f32 %v4332, %v4476
        %v4478 = vpop.f32.mrf.mxu0
        %4479 = vdwg.mxu0
        %v4480 = vadd.f32 %v4014, %v4402
        %v4481 = vadd.f32 %v4019, %v4407
        %v4482 = vadd.f32 %v4024, %v4412
        %v4483 = vadd.f32 %v4029, %v4417
        %v4484 = vadd.f32 %v4034, %v4422
        %v4485 = vadd.f32 %v4039, %v4427
        %v4486 = vadd.f32 %v4044, %v4432
        %v4487 = vadd.f32 %v4049, %v4437
        %v4488 = vadd.f32 %v4054, %v4442
        %v4489 = vadd.f32 %v4059, %v4447
        %v4490 = vadd.f32 %v4064, %v4452
        %v4491 = vadd.f32 %v4069, %v4457
        %v4492 = vadd.f32 %v4074, %v4462
        %v4493 = vadd.f32 %v4079, %v4467
        %v4494 = vadd.f32 %v4084, %v4472
        %v4495 = vadd.f32 %v4089, %v4477
        %s4496 = scalar_lea.vmem [#allocation2], 48
        %v4497 = vld [vmem:[%s4496] sm:$0xff]
        %v4498 = vld [vmem:[%s4496 + $0x8] sm:$0xff]
        %v4499 = vld [vmem:[%s4496 + $0x18] sm:$0xff]
        %v4500 = vld [vmem:[%s4496 + $0x20] sm:$0xff]
        %v4501 = vld [vmem:[%s4496 + $0x30] sm:$0xff]
        %v4502 = vld [vmem:[%s4496 + $0x38] sm:$0xff]
        %v4503 = vld [vmem:[%s4496 + $0x48] sm:$0xff]
        %v4504 = vld [vmem:[%s4496 + $0x50] sm:$0xff]
        %v4505 = vld [vmem:[%s4496 + $0x60] sm:$0xff]
        %v4506 = vld [vmem:[%s4496 + $0x68] sm:$0xff]
        %v4507 = vld [vmem:[%s4496 + $0x78] sm:$0xff]
        %v4508 = vld [vmem:[%s4496 + $0x80] sm:$0xff]
        %v4509 = vld [vmem:[%s4496 + $0x90] sm:$0xff]
        %v4510 = vld [vmem:[%s4496 + $0x98] sm:$0xff]
        %v4511 = vld [vmem:[%s4496 + $0xa8] sm:$0xff]
        %v4512 = vld [vmem:[%s4496 + $0xb0] sm:$0xff]
        %v4513 = vld [vmem:[%s4496 + $0x1] sm:$0xff]
        %v4514 = vld [vmem:[%s4496 + $0x9] sm:$0xff]
        %v4515 = vld [vmem:[%s4496 + $0x19] sm:$0xff]
        %v4516 = vld [vmem:[%s4496 + $0x21] sm:$0xff]
        %v4517 = vld [vmem:[%s4496 + $0x31] sm:$0xff]
        %v4518 = vld [vmem:[%s4496 + $0x39] sm:$0xff]
        %v4519 = vld [vmem:[%s4496 + $0x49] sm:$0xff]
        %v4520 = vld [vmem:[%s4496 + $0x51] sm:$0xff]
        %v4521 = vld [vmem:[%s4496 + $0x61] sm:$0xff]
        %v4522 = vld [vmem:[%s4496 + $0x69] sm:$0xff]
        %v4523 = vld [vmem:[%s4496 + $0x79] sm:$0xff]
        %v4524 = vld [vmem:[%s4496 + $0x81] sm:$0xff]
        %v4525 = vld [vmem:[%s4496 + $0x91] sm:$0xff]
        %v4526 = vld [vmem:[%s4496 + $0x99] sm:$0xff]
        %v4527 = vld [vmem:[%s4496 + $0xa9] sm:$0xff]
        %v4528 = vld [vmem:[%s4496 + $0xb1] sm:$0xff]
        %v4529 = vld [vmem:[%s4496 + $0x2] sm:$0xff]
        %v4530 = vld [vmem:[%s4496 + $0xa] sm:$0xff]
        %v4531 = vld [vmem:[%s4496 + $0x1a] sm:$0xff]
        %v4532 = vld [vmem:[%s4496 + $0x22] sm:$0xff]
        %v4533 = vld [vmem:[%s4496 + $0x32] sm:$0xff]
        %v4534 = vld [vmem:[%s4496 + $0x3a] sm:$0xff]
        %v4535 = vld [vmem:[%s4496 + $0x4a] sm:$0xff]
        %v4536 = vld [vmem:[%s4496 + $0x52] sm:$0xff]
        %v4537 = vld [vmem:[%s4496 + $0x62] sm:$0xff]
        %v4538 = vld [vmem:[%s4496 + $0x6a] sm:$0xff]
        %v4539 = vld [vmem:[%s4496 + $0x7a] sm:$0xff]
        %v4540 = vld [vmem:[%s4496 + $0x82] sm:$0xff]
        %v4541 = vld [vmem:[%s4496 + $0x92] sm:$0xff]
        %v4542 = vld [vmem:[%s4496 + $0x9a] sm:$0xff]
        %v4543 = vld [vmem:[%s4496 + $0xaa] sm:$0xff]
        %v4544 = vld [vmem:[%s4496 + $0xb2] sm:$0xff]
        %s4545 = scalar_lea.vmem [#allocation3], 768
        %v4546 = vld [vmem:[%s4545] sm:$0xff]
        %v4547 = vld [vmem:[%s4545 + $0x8] sm:$0xff]
        %v4548 = vld [vmem:[%s4545 + $0x10] sm:$0xff]
        %v4549 = vld [vmem:[%s4545 + $0x18] sm:$0xff]
        %v4550 = vld [vmem:[%s4545 + $0x20] sm:$0xff]
        %v4551 = vld [vmem:[%s4545 + $0x28] sm:$0xff]
        %v4552 = vld [vmem:[%s4545 + $0x30] sm:$0xff]
        %v4553 = vld [vmem:[%s4545 + $0x38] sm:$0xff]
        %v4554 = vld [vmem:[%s4545 + $0x40] sm:$0xff]
        %v4555 = vld [vmem:[%s4545 + $0x48] sm:$0xff]
        %v4556 = vld [vmem:[%s4545 + $0x50] sm:$0xff]
        %v4557 = vld [vmem:[%s4545 + $0x58] sm:$0xff]
        %v4558 = vld [vmem:[%s4545 + $0x60] sm:$0xff]
        %v4559 = vld [vmem:[%s4545 + $0x68] sm:$0xff]
        %v4560 = vld [vmem:[%s4545 + $0x70] sm:$0xff]
        %v4561 = vld [vmem:[%s4545 + $0x78] sm:$0xff]
        %v4562 = vld [vmem:[%s4545 + $0x80] sm:$0xff]
        %v4563 = vld [vmem:[%s4545 + $0x88] sm:$0xff]
        %v4564 = vld [vmem:[%s4545 + $0x90] sm:$0xff]
        %v4565 = vld [vmem:[%s4545 + $0x98] sm:$0xff]
        %v4566 = vld [vmem:[%s4545 + $0xa0] sm:$0xff]
        %v4567 = vld [vmem:[%s4545 + $0xa8] sm:$0xff]
        %v4568 = vld [vmem:[%s4545 + $0xb0] sm:$0xff]
        %v4569 = vld [vmem:[%s4545 + $0xb8] sm:$0xff]
        %v4570 = vld [vmem:[%s4545 + $0xc0] sm:$0xff]
        %v4571 = vld [vmem:[%s4545 + $0xc8] sm:$0xff]
        %v4572 = vld [vmem:[%s4545 + $0xd0] sm:$0xff]
        %v4573 = vld [vmem:[%s4545 + $0xd8] sm:$0xff]
        %v4574 = vld [vmem:[%s4545 + $0xe0] sm:$0xff]
        %v4575 = vld [vmem:[%s4545 + $0xe8] sm:$0xff]
        %v4576 = vld [vmem:[%s4545 + $0xf0] sm:$0xff]
        %v4577 = vld [vmem:[%s4545 + $0xf8] sm:$0xff]
        %v4578 = vld [vmem:[%s4545 + $0x100] sm:$0xff]
        %v4579 = vld [vmem:[%s4545 + $0x108] sm:$0xff]
        %v4580 = vld [vmem:[%s4545 + $0x110] sm:$0xff]
        %v4581 = vld [vmem:[%s4545 + $0x118] sm:$0xff]
        %v4582 = vld [vmem:[%s4545 + $0x120] sm:$0xff]
        %v4583 = vld [vmem:[%s4545 + $0x128] sm:$0xff]
        %v4584 = vld [vmem:[%s4545 + $0x130] sm:$0xff]
        %v4585 = vld [vmem:[%s4545 + $0x138] sm:$0xff]
        %v4586 = vld [vmem:[%s4545 + $0x140] sm:$0xff]
        %v4587 = vld [vmem:[%s4545 + $0x148] sm:$0xff]
        %v4588 = vld [vmem:[%s4545 + $0x150] sm:$0xff]
        %v4589 = vld [vmem:[%s4545 + $0x158] sm:$0xff]
        %v4590 = vld [vmem:[%s4545 + $0x160] sm:$0xff]
        %v4591 = vld [vmem:[%s4545 + $0x168] sm:$0xff]
        %v4592 = vld [vmem:[%s4545 + $0x170] sm:$0xff]
        %v4593 = vld [vmem:[%s4545 + $0x178] sm:$0xff]
        %4594 = vmatprep.subr.mxu0 0.0
        %4595 = vmatpush1.msra.mxu0 %v4561
        %4596 = vmatprep.subr.mxu0 0.0
        %4597 = vmatpush1.msra.mxu0 %v4560
        %4598 = vmatprep.subr.mxu0 0.0
        %4599 = vmatpush1.msra.mxu0 %v4559
        %4600 = vmatprep.subr.mxu0 0.0
        %4601 = vmatpush1.msra.mxu0 %v4558
        %4602 = vmatprep.subr.mxu0 0.0
        %4603 = vmatpush1.msra.mxu0 %v4557
        %4604 = vmatprep.subr.mxu0 0.0
        %4605 = vmatpush1.msra.mxu0 %v4556
        %4606 = vmatprep.subr.mxu0 0.0
        %4607 = vmatpush1.msra.mxu0 %v4555
        %4608 = vmatprep.subr.mxu0 0.0
        %4609 = vmatpush1.msra.mxu0 %v4554
        %4610 = vmatprep.subr.mxu0 0.0
        %4611 = vmatpush1.msra.mxu0 %v4553
        %4612 = vmatprep.subr.mxu0 0.0
        %4613 = vmatpush1.msra.mxu0 %v4552
        %4614 = vmatprep.subr.mxu0 0.0
        %4615 = vmatpush1.msra.mxu0 %v4551
        %4616 = vmatprep.subr.mxu0 0.0
        %4617 = vmatpush1.msra.mxu0 %v4550
        %4618 = vmatprep.subr.mxu0 0.0
        %4619 = vmatpush1.msra.mxu0 %v4549
        %4620 = vmatprep.subr.mxu0 0.0
        %4621 = vmatpush1.msra.mxu0 %v4548
        %4622 = vmatprep.subr.mxu0 0.0
        %4623 = vmatpush1.msra.mxu0 %v4547
        %4624 = vmatprep.subr.mxu0 0.0
        %4625 = vmatpush1.msra.mxu0 %v4546
        %4626 = vmatprep.subr.mxu0 0.0
        %4627 = vmatpush2.msra.mxu0 %v4577
        %4628 = vmatprep.subr.mxu0 0.0
        %4629 = vmatpush2.msra.mxu0 %v4576
        %4630 = vmatprep.subr.mxu0 0.0
        %4631 = vmatpush2.msra.mxu0 %v4575
        %4632 = vmatprep.subr.mxu0 0.0
        %4633 = vmatpush2.msra.mxu0 %v4574
        %4634 = vmatprep.subr.mxu0 0.0
        %4635 = vmatpush2.msra.mxu0 %v4573
        %4636 = vmatprep.subr.mxu0 0.0
        %4637 = vmatpush2.msra.mxu0 %v4572
        %4638 = vmatprep.subr.mxu0 0.0
        %4639 = vmatpush2.msra.mxu0 %v4571
        %4640 = vmatprep.subr.mxu0 0.0
        %4641 = vmatpush2.msra.mxu0 %v4570
        %4642 = vmatprep.subr.mxu0 0.0
        %4643 = vmatpush2.msra.mxu0 %v4569
        %4644 = vmatprep.subr.mxu0 0.0
        %4645 = vmatpush2.msra.mxu0 %v4568
        %4646 = vmatprep.subr.mxu0 0.0
        %4647 = vmatpush2.msra.mxu0 %v4567
        %4648 = vmatprep.subr.mxu0 0.0
        %4649 = vmatpush2.msra.mxu0 %v4566
        %4650 = vmatprep.subr.mxu0 0.0
        %4651 = vmatpush2.msra.mxu0 %v4565
        %4652 = vmatprep.subr.mxu0 0.0
        %4653 = vmatpush2.msra.mxu0 %v4564
        %4654 = vmatprep.subr.mxu0 0.0
        %4655 = vmatpush2.msra.mxu0 %v4563
        %4656 = vmatprep.subr.mxu0 0.0
        %4657 = vmatpush2.msra.mxu0 %v4562
        %4658 = vmatprep.mubr.f32.mxu0 %v4513
        %4659 = vmatmul.mubr.f32.gmra.mxu0 %v4497
        %v4660 = vpop.f32.mrf.mxu0
        %v4661 = vadd.f32 0.0, %v4660
        %v4662 = vpop.f32.mrf.mxu0
        %4663 = vmatprep.mubr.f32.mxu0 %v4514
        %4664 = vmatmul.mubr.f32.gmra.mxu0 %v4498
        %v4665 = vpop.f32.mrf.mxu0
        %v4666 = vadd.f32 0.0, %v4665
        %v4667 = vpop.f32.mrf.mxu0
        %4668 = vmatprep.mubr.f32.mxu0 %v4515
        %4669 = vmatmul.mubr.f32.gmra.mxu0 %v4499
        %v4670 = vpop.f32.mrf.mxu0
        %v4671 = vadd.f32 0.0, %v4670
        %v4672 = vpop.f32.mrf.mxu0
        %4673 = vmatprep.mubr.f32.mxu0 %v4516
        %4674 = vmatmul.mubr.f32.gmra.mxu0 %v4500
        %v4675 = vpop.f32.mrf.mxu0
        %v4676 = vadd.f32 0.0, %v4675
        %v4677 = vpop.f32.mrf.mxu0
        %4678 = vmatprep.mubr.f32.mxu0 %v4517
        %4679 = vmatmul.mubr.f32.gmra.mxu0 %v4501
        %v4680 = vpop.f32.mrf.mxu0
        %v4681 = vadd.f32 0.0, %v4680
        %v4682 = vpop.f32.mrf.mxu0
        %4683 = vmatprep.mubr.f32.mxu0 %v4518
        %4684 = vmatmul.mubr.f32.gmra.mxu0 %v4502
        %v4685 = vpop.f32.mrf.mxu0
        %v4686 = vadd.f32 0.0, %v4685
        %v4687 = vpop.f32.mrf.mxu0
        %4688 = vmatprep.mubr.f32.mxu0 %v4519
        %4689 = vmatmul.mubr.f32.gmra.mxu0 %v4503
        %v4690 = vpop.f32.mrf.mxu0
        %v4691 = vadd.f32 0.0, %v4690
        %v4692 = vpop.f32.mrf.mxu0
        %4693 = vmatprep.mubr.f32.mxu0 %v4520
        %4694 = vmatmul.mubr.f32.gmra.mxu0 %v4504
        %v4695 = vpop.f32.mrf.mxu0
        %v4696 = vadd.f32 0.0, %v4695
        %v4697 = vpop.f32.mrf.mxu0
        %4698 = vmatprep.mubr.f32.mxu0 %v4521
        %4699 = vmatmul.mubr.f32.gmra.mxu0 %v4505
        %v4700 = vpop.f32.mrf.mxu0
        %v4701 = vadd.f32 0.0, %v4700
        %v4702 = vpop.f32.mrf.mxu0
        %4703 = vmatprep.mubr.f32.mxu0 %v4522
        %4704 = vmatmul.mubr.f32.gmra.mxu0 %v4506
        %v4705 = vpop.f32.mrf.mxu0
        %v4706 = vadd.f32 0.0, %v4705
        %v4707 = vpop.f32.mrf.mxu0
        %4708 = vmatprep.mubr.f32.mxu0 %v4523
        %4709 = vmatmul.mubr.f32.gmra.mxu0 %v4507
        %v4710 = vpop.f32.mrf.mxu0
        %v4711 = vadd.f32 0.0, %v4710
        %v4712 = vpop.f32.mrf.mxu0
        %4713 = vmatprep.mubr.f32.mxu0 %v4524
        %4714 = vmatmul.mubr.f32.gmra.mxu0 %v4508
        %v4715 = vpop.f32.mrf.mxu0
        %v4716 = vadd.f32 0.0, %v4715
        %v4717 = vpop.f32.mrf.mxu0
        %4718 = vmatprep.mubr.f32.mxu0 %v4525
        %4719 = vmatmul.mubr.f32.gmra.mxu0 %v4509
        %v4720 = vpop.f32.mrf.mxu0
        %v4721 = vadd.f32 0.0, %v4720
        %v4722 = vpop.f32.mrf.mxu0
        %4723 = vmatprep.mubr.f32.mxu0 %v4526
        %4724 = vmatmul.mubr.f32.gmra.mxu0 %v4510
        %v4725 = vpop.f32.mrf.mxu0
        %v4726 = vadd.f32 0.0, %v4725
        %v4727 = vpop.f32.mrf.mxu0
        %4728 = vmatprep.mubr.f32.mxu0 %v4527
        %4729 = vmatmul.mubr.f32.gmra.mxu0 %v4511
        %v4730 = vpop.f32.mrf.mxu0
        %v4731 = vadd.f32 0.0, %v4730
        %v4732 = vpop.f32.mrf.mxu0
        %4733 = vmatprep.mubr.f32.mxu0 %v4528
        %4734 = vmatmul.mubr.f32.gmra.mxu0 %v4512
        %v4735 = vpop.f32.mrf.mxu0
        %v4736 = vadd.f32 0.0, %v4735
        %v4737 = vpop.f32.mrf.mxu0
        %4738 = vdwg.mxu0
        %4739 = vmatprep.subr.mxu0 0.0
        %4740 = vmatpush1.msra.mxu0 %v4593
        %4741 = vmatprep.subr.mxu0 0.0
        %4742 = vmatpush1.msra.mxu0 %v4592
        %4743 = vmatprep.subr.mxu0 0.0
        %4744 = vmatpush1.msra.mxu0 %v4591
        %4745 = vmatprep.subr.mxu0 0.0
        %4746 = vmatpush1.msra.mxu0 %v4590
        %4747 = vmatprep.subr.mxu0 0.0
        %4748 = vmatpush1.msra.mxu0 %v4589
        %4749 = vmatprep.subr.mxu0 0.0
        %4750 = vmatpush1.msra.mxu0 %v4588
        %4751 = vmatprep.subr.mxu0 0.0
        %4752 = vmatpush1.msra.mxu0 %v4587
        %4753 = vmatprep.subr.mxu0 0.0
        %4754 = vmatpush1.msra.mxu0 %v4586
        %4755 = vmatprep.subr.mxu0 0.0
        %4756 = vmatpush1.msra.mxu0 %v4585
        %4757 = vmatprep.subr.mxu0 0.0
        %4758 = vmatpush1.msra.mxu0 %v4584
        %4759 = vmatprep.subr.mxu0 0.0
        %4760 = vmatpush1.msra.mxu0 %v4583
        %4761 = vmatprep.subr.mxu0 0.0
        %4762 = vmatpush1.msra.mxu0 %v4582
        %4763 = vmatprep.subr.mxu0 0.0
        %4764 = vmatpush1.msra.mxu0 %v4581
        %4765 = vmatprep.subr.mxu0 0.0
        %4766 = vmatpush1.msra.mxu0 %v4580
        %4767 = vmatprep.subr.mxu0 0.0
        %4768 = vmatpush1.msra.mxu0 %v4579
        %4769 = vmatprep.subr.mxu0 0.0
        %4770 = vmatpush1.msra.mxu0 %v4578
        %4771 = vmatprep.subr.mxu0 0.0
        %4772 = vmatpush2.msra.mxu0 0.0
        %4773 = vmatprep.subr.mxu0 0.0
        %4774 = vmatpush2.msra.mxu0 0.0
        %4775 = vmatprep.subr.mxu0 0.0
        %4776 = vmatpush2.msra.mxu0 0.0
        %4777 = vmatprep.subr.mxu0 0.0
        %4778 = vmatpush2.msra.mxu0 0.0
        %4779 = vmatprep.subr.mxu0 0.0
        %4780 = vmatpush2.msra.mxu0 0.0
        %4781 = vmatprep.subr.mxu0 0.0
        %4782 = vmatpush2.msra.mxu0 0.0
        %4783 = vmatprep.subr.mxu0 0.0
        %4784 = vmatpush2.msra.mxu0 0.0
        %4785 = vmatprep.subr.mxu0 0.0
        %4786 = vmatpush2.msra.mxu0 0.0
        %4787 = vmatprep.subr.mxu0 0.0
        %4788 = vmatpush2.msra.mxu0 0.0
        %4789 = vmatprep.subr.mxu0 0.0
        %4790 = vmatpush2.msra.mxu0 0.0
        %4791 = vmatprep.subr.mxu0 0.0
        %4792 = vmatpush2.msra.mxu0 0.0
        %4793 = vmatprep.subr.mxu0 0.0
        %4794 = vmatpush2.msra.mxu0 0.0
        %4795 = vmatprep.subr.mxu0 0.0
        %4796 = vmatpush2.msra.mxu0 0.0
        %4797 = vmatprep.subr.mxu0 0.0
        %4798 = vmatpush2.msra.mxu0 0.0
        %4799 = vmatprep.subr.mxu0 0.0
        %4800 = vmatpush2.msra.mxu0 0.0
        %4801 = vmatprep.subr.mxu0 0.0
        %4802 = vmatpush2.msra.mxu0 0.0
        %4803 = vmatprep.mubr.f32.mxu0 0.0
        %4804 = vmatmul.mubr.f32.gmra.mxu0 %v4529
        %v4805 = vpop.f32.mrf.mxu0
        %v4806 = vadd.f32 %v4661, %v4805
        %v4807 = vpop.f32.mrf.mxu0
        %4808 = vmatprep.mubr.f32.mxu0 0.0
        %4809 = vmatmul.mubr.f32.gmra.mxu0 %v4530
        %v4810 = vpop.f32.mrf.mxu0
        %v4811 = vadd.f32 %v4666, %v4810
        %v4812 = vpop.f32.mrf.mxu0
        %4813 = vmatprep.mubr.f32.mxu0 0.0
        %4814 = vmatmul.mubr.f32.gmra.mxu0 %v4531
        %v4815 = vpop.f32.mrf.mxu0
        %v4816 = vadd.f32 %v4671, %v4815
        %v4817 = vpop.f32.mrf.mxu0
        %4818 = vmatprep.mubr.f32.mxu0 0.0
        %4819 = vmatmul.mubr.f32.gmra.mxu0 %v4532
        %v4820 = vpop.f32.mrf.mxu0
        %v4821 = vadd.f32 %v4676, %v4820
        %v4822 = vpop.f32.mrf.mxu0
        %4823 = vmatprep.mubr.f32.mxu0 0.0
        %4824 = vmatmul.mubr.f32.gmra.mxu0 %v4533
        %v4825 = vpop.f32.mrf.mxu0
        %v4826 = vadd.f32 %v4681, %v4825
        %v4827 = vpop.f32.mrf.mxu0
        %4828 = vmatprep.mubr.f32.mxu0 0.0
        %4829 = vmatmul.mubr.f32.gmra.mxu0 %v4534
        %v4830 = vpop.f32.mrf.mxu0
        %v4831 = vadd.f32 %v4686, %v4830
        %v4832 = vpop.f32.mrf.mxu0
        %4833 = vmatprep.mubr.f32.mxu0 0.0
        %4834 = vmatmul.mubr.f32.gmra.mxu0 %v4535
        %v4835 = vpop.f32.mrf.mxu0
        %v4836 = vadd.f32 %v4691, %v4835
        %v4837 = vpop.f32.mrf.mxu0
        %4838 = vmatprep.mubr.f32.mxu0 0.0
        %4839 = vmatmul.mubr.f32.gmra.mxu0 %v4536
        %v4840 = vpop.f32.mrf.mxu0
        %v4841 = vadd.f32 %v4696, %v4840
        %v4842 = vpop.f32.mrf.mxu0
        %4843 = vmatprep.mubr.f32.mxu0 0.0
        %4844 = vmatmul.mubr.f32.gmra.mxu0 %v4537
        %v4845 = vpop.f32.mrf.mxu0
        %v4846 = vadd.f32 %v4701, %v4845
        %v4847 = vpop.f32.mrf.mxu0
        %4848 = vmatprep.mubr.f32.mxu0 0.0
        %4849 = vmatmul.mubr.f32.gmra.mxu0 %v4538
        %v4850 = vpop.f32.mrf.mxu0
        %v4851 = vadd.f32 %v4706, %v4850
        %v4852 = vpop.f32.mrf.mxu0
        %4853 = vmatprep.mubr.f32.mxu0 0.0
        %4854 = vmatmul.mubr.f32.gmra.mxu0 %v4539
        %v4855 = vpop.f32.mrf.mxu0
        %v4856 = vadd.f32 %v4711, %v4855
        %v4857 = vpop.f32.mrf.mxu0
        %4858 = vmatprep.mubr.f32.mxu0 0.0
        %4859 = vmatmul.mubr.f32.gmra.mxu0 %v4540
        %v4860 = vpop.f32.mrf.mxu0
        %v4861 = vadd.f32 %v4716, %v4860
        %v4862 = vpop.f32.mrf.mxu0
        %4863 = vmatprep.mubr.f32.mxu0 0.0
        %4864 = vmatmul.mubr.f32.gmra.mxu0 %v4541
        %v4865 = vpop.f32.mrf.mxu0
        %v4866 = vadd.f32 %v4721, %v4865
        %v4867 = vpop.f32.mrf.mxu0
        %4868 = vmatprep.mubr.f32.mxu0 0.0
        %4869 = vmatmul.mubr.f32.gmra.mxu0 %v4542
        %v4870 = vpop.f32.mrf.mxu0
        %v4871 = vadd.f32 %v4726, %v4870
        %v4872 = vpop.f32.mrf.mxu0
        %4873 = vmatprep.mubr.f32.mxu0 0.0
        %4874 = vmatmul.mubr.f32.gmra.mxu0 %v4543
        %v4875 = vpop.f32.mrf.mxu0
        %v4876 = vadd.f32 %v4731, %v4875
        %v4877 = vpop.f32.mrf.mxu0
        %4878 = vmatprep.mubr.f32.mxu0 0.0
        %4879 = vmatmul.mubr.f32.gmra.mxu0 %v4544
        %v4880 = vpop.f32.mrf.mxu0
        %v4881 = vadd.f32 %v4736, %v4880
        %v4882 = vpop.f32.mrf.mxu0
        %4883 = vdwg.mxu0
        %v4884 = vadd.f32 %v4480, %v4806
        %v4885 = vadd.f32 %v4481, %v4811
        %v4886 = vadd.f32 %v4482, %v4816
        %v4887 = vadd.f32 %v4483, %v4821
        %v4888 = vadd.f32 %v4484, %v4826
        %v4889 = vadd.f32 %v4485, %v4831
        %v4890 = vadd.f32 %v4486, %v4836
        %v4891 = vadd.f32 %v4487, %v4841
        %v4892 = vadd.f32 %v4488, %v4846
        %v4893 = vadd.f32 %v4489, %v4851
        %v4894 = vadd.f32 %v4490, %v4856
        %v4895 = vadd.f32 %v4491, %v4861
        %v4896 = vadd.f32 %v4492, %v4866
        %v4897 = vadd.f32 %v4493, %v4871
        %v4898 = vadd.f32 %v4494, %v4876
        %v4899 = vadd.f32 %v4495, %v4881
        %v4900 = vld [vmem:[%s5] sm:$0x1]
        %v4902 = vlaneseq
        %v4903 = vshrl.u32 %v4902, 7
        %v4904 = vsub.s32 0, %v4903
        %v4905 = vrot.slane %v4900, %v4904
        %v4907 = vadd.f32 %v4884, %v4905
        %v4908 = vadd.f32 %v4885, %v4905
        %v4909 = vadd.f32 %v4886, %v4905
        %v4910 = vadd.f32 %v4887, %v4905
        %v4911 = vadd.f32 %v4888, %v4905
        %v4912 = vadd.f32 %v4889, %v4905
        %v4913 = vadd.f32 %v4890, %v4905
        %v4914 = vadd.f32 %v4891, %v4905
        %v4915 = vadd.f32 %v4892, %v4905
        %v4916 = vadd.f32 %v4893, %v4905
        %v4917 = vadd.f32 %v4894, %v4905
        %v4918 = vadd.f32 %v4895, %v4905
        %v4919 = vadd.f32 %v4896, %v4905
        %v4920 = vadd.f32 %v4897, %v4905
        %v4921 = vadd.f32 %v4898, %v4905
        %v4922 = vadd.f32 %v4899, %v4905
        %v4923 = vmax.f32 %v4907, 0.0
        %v4924 = vmax.f32 %v4908, 0.0
        %v4925 = vmax.f32 %v4909, 0.0
        %v4926 = vmax.f32 %v4910, 0.0
        %v4927 = vmax.f32 %v4911, 0.0
        %v4928 = vmax.f32 %v4912, 0.0
        %v4929 = vmax.f32 %v4913, 0.0
        %v4930 = vmax.f32 %v4914, 0.0
        %v4931 = vmax.f32 %v4915, 0.0
        %v4932 = vmax.f32 %v4916, 0.0
        %v4933 = vmax.f32 %v4917, 0.0
        %v4934 = vmax.f32 %v4918, 0.0
        %v4935 = vmax.f32 %v4919, 0.0
        %v4936 = vmax.f32 %v4920, 0.0
        %v4937 = vmax.f32 %v4921, 0.0
        %v4938 = vmax.f32 %v4922, 0.0
        %4939 = vst [vmem:[%s273] sm:$0xff] %v4923
        %4940 = vst [vmem:[%s273 + $0x8] sm:$0xff] %v4924
        %4941 = vst [vmem:[%s273 + $0x10] sm:$0xff] %v4925
        %4942 = vst [vmem:[%s273 + $0x18] sm:$0xff] %v4926
        %4943 = vst [vmem:[%s273 + $0x20] sm:$0xff] %v4927
        %4944 = vst [vmem:[%s273 + $0x28] sm:$0xff] %v4928
        %4945 = vst [vmem:[%s273 + $0x30] sm:$0xff] %v4929
        %4946 = vst [vmem:[%s273 + $0x38] sm:$0xff] %v4930
        %4947 = vst [vmem:[%s273 + $0x40] sm:$0xff] %v4931
        %4948 = vst [vmem:[%s273 + $0x48] sm:$0xff] %v4932
        %4949 = vst [vmem:[%s273 + $0x50] sm:$0xff] %v4933
        %4950 = vst [vmem:[%s273 + $0x58] sm:$0xff] %v4934
        %4951 = vst [vmem:[%s273 + $0x60] sm:$0xff] %v4935
        %4952 = vst [vmem:[%s273 + $0x68] sm:$0xff] %v4936
        %4953 = vst [vmem:[%s273 + $0x70] sm:$0xff] %v4937
        %4954 = vst [vmem:[%s273 + $0x78] sm:$0xff] %v4938
        %v4955 = vld [vmem:[%s2336 + $0x1] sm:$0xff]
        %v4956 = vld [vmem:[%s2336 + $0x9] sm:$0xff]
        %v4957 = vld [vmem:[%s2336 + $0x19] sm:$0xff]
        %v4958 = vld [vmem:[%s2336 + $0x21] sm:$0xff]
        %v4959 = vld [vmem:[%s2336 + $0x31] sm:$0xff]
        %v4960 = vld [vmem:[%s2336 + $0x39] sm:$0xff]
        %v4961 = vld [vmem:[%s2336 + $0x49] sm:$0xff]
        %v4962 = vld [vmem:[%s2336 + $0x51] sm:$0xff]
        %v4963 = vld [vmem:[%s2336 + $0x61] sm:$0xff]
        %v4964 = vld [vmem:[%s2336 + $0x69] sm:$0xff]
        %v4965 = vld [vmem:[%s2336 + $0x79] sm:$0xff]
        %v4966 = vld [vmem:[%s2336 + $0x81] sm:$0xff]
        %v4967 = vld [vmem:[%s2336 + $0x91] sm:$0xff]
        %v4968 = vld [vmem:[%s2336 + $0x99] sm:$0xff]
        %v4969 = vld [vmem:[%s2336 + $0xa9] sm:$0xff]
        %v4970 = vld [vmem:[%s2336 + $0xb1] sm:$0xff]
        %v4971 = vld [vmem:[%s3] sm:$0xff]
        %v4972 = vld [vmem:[%s3 + $0x8] sm:$0xff]
        %v4973 = vld [vmem:[%s3 + $0x10] sm:$0xff]
        %v4974 = vld [vmem:[%s3 + $0x18] sm:$0xff]
        %v4975 = vld [vmem:[%s3 + $0x20] sm:$0xff]
        %v4976 = vld [vmem:[%s3 + $0x28] sm:$0xff]
        %v4977 = vld [vmem:[%s3 + $0x30] sm:$0xff]
        %v4978 = vld [vmem:[%s3 + $0x38] sm:$0xff]
        %v4979 = vld [vmem:[%s3 + $0x40] sm:$0xff]
        %v4980 = vld [vmem:[%s3 + $0x48] sm:$0xff]
        %v4981 = vld [vmem:[%s3 + $0x50] sm:$0xff]
        %v4982 = vld [vmem:[%s3 + $0x58] sm:$0xff]
        %v4983 = vld [vmem:[%s3 + $0x60] sm:$0xff]
        %v4984 = vld [vmem:[%s3 + $0x68] sm:$0xff]
        %v4985 = vld [vmem:[%s3 + $0x70] sm:$0xff]
        %v4986 = vld [vmem:[%s3 + $0x78] sm:$0xff]
        %v4987 = vld [vmem:[%s2778] sm:$0xff]
        %v4988 = vld [vmem:[%s2778 + $0x8] sm:$0xff]
        %v4989 = vld [vmem:[%s2778 + $0x18] sm:$0xff]
        %v4990 = vld [vmem:[%s2778 + $0x20] sm:$0xff]
        %v4991 = vld [vmem:[%s2778 + $0x30] sm:$0xff]
        %v4992 = vld [vmem:[%s2778 + $0x38] sm:$0xff]
        %v4993 = vld [vmem:[%s2778 + $0x48] sm:$0xff]
        %v4994 = vld [vmem:[%s2778 + $0x50] sm:$0xff]
        %v4995 = vld [vmem:[%s2778 + $0x60] sm:$0xff]
        %v4996 = vld [vmem:[%s2778 + $0x68] sm:$0xff]
        %v4997 = vld [vmem:[%s2778 + $0x78] sm:$0xff]
        %v4998 = vld [vmem:[%s2778 + $0x80] sm:$0xff]
        %v4999 = vld [vmem:[%s2778 + $0x90] sm:$0xff]
        %v5000 = vld [vmem:[%s2778 + $0x98] sm:$0xff]
        %v5001 = vld [vmem:[%s2778 + $0xa8] sm:$0xff]
        %v5002 = vld [vmem:[%s2778 + $0xb0] sm:$0xff]
        %v5003 = vld [vmem:[%s2778 + $0x1] sm:$0xff]
        %v5004 = vld [vmem:[%s2778 + $0x9] sm:$0xff]
        %v5005 = vld [vmem:[%s2778 + $0x19] sm:$0xff]
        %v5006 = vld [vmem:[%s2778 + $0x21] sm:$0xff]
        %v5007 = vld [vmem:[%s2778 + $0x31] sm:$0xff]
        %v5008 = vld [vmem:[%s2778 + $0x39] sm:$0xff]
        %v5009 = vld [vmem:[%s2778 + $0x49] sm:$0xff]
        %v5010 = vld [vmem:[%s2778 + $0x51] sm:$0xff]
        %v5011 = vld [vmem:[%s2778 + $0x61] sm:$0xff]
        %v5012 = vld [vmem:[%s2778 + $0x69] sm:$0xff]
        %v5013 = vld [vmem:[%s2778 + $0x79] sm:$0xff]
        %v5014 = vld [vmem:[%s2778 + $0x81] sm:$0xff]
        %v5015 = vld [vmem:[%s2778 + $0x91] sm:$0xff]
        %v5016 = vld [vmem:[%s2778 + $0x99] sm:$0xff]
        %v5017 = vld [vmem:[%s2778 + $0xa9] sm:$0xff]
        %v5018 = vld [vmem:[%s2778 + $0xb1] sm:$0xff]
        %v5019 = vld [vmem:[%s2778 + $0x2] sm:$0xff]
        %v5020 = vld [vmem:[%s2778 + $0xa] sm:$0xff]
        %v5021 = vld [vmem:[%s2778 + $0x1a] sm:$0xff]
        %v5022 = vld [vmem:[%s2778 + $0x22] sm:$0xff]
        %v5023 = vld [vmem:[%s2778 + $0x32] sm:$0xff]
        %v5024 = vld [vmem:[%s2778 + $0x3a] sm:$0xff]
        %v5025 = vld [vmem:[%s2778 + $0x4a] sm:$0xff]
        %v5026 = vld [vmem:[%s2778 + $0x52] sm:$0xff]
        %v5027 = vld [vmem:[%s2778 + $0x62] sm:$0xff]
        %v5028 = vld [vmem:[%s2778 + $0x6a] sm:$0xff]
        %v5029 = vld [vmem:[%s2778 + $0x7a] sm:$0xff]
        %v5030 = vld [vmem:[%s2778 + $0x82] sm:$0xff]
        %v5031 = vld [vmem:[%s2778 + $0x92] sm:$0xff]
        %v5032 = vld [vmem:[%s2778 + $0x9a] sm:$0xff]
        %v5033 = vld [vmem:[%s2778 + $0xaa] sm:$0xff]
        %v5034 = vld [vmem:[%s2778 + $0xb2] sm:$0xff]
        %v5035 = vld [vmem:[#allocation3] sm:$0xff]
        %v5036 = vld [vmem:[#allocation3 + $0x8] sm:$0xff]
        %v5037 = vld [vmem:[#allocation3 + $0x10] sm:$0xff]
        %v5038 = vld [vmem:[#allocation3 + $0x18] sm:$0xff]
        %v5039 = vld [vmem:[#allocation3 + $0x20] sm:$0xff]
        %v5040 = vld [vmem:[#allocation3 + $0x28] sm:$0xff]
        %v5041 = vld [vmem:[#allocation3 + $0x30] sm:$0xff]
        %v5042 = vld [vmem:[#allocation3 + $0x38] sm:$0xff]
        %v5043 = vld [vmem:[#allocation3 + $0x40] sm:$0xff]
        %v5044 = vld [vmem:[#allocation3 + $0x48] sm:$0xff]
        %v5045 = vld [vmem:[#allocation3 + $0x50] sm:$0xff]
        %v5046 = vld [vmem:[#allocation3 + $0x58] sm:$0xff]
        %v5047 = vld [vmem:[#allocation3 + $0x60] sm:$0xff]
        %v5048 = vld [vmem:[#allocation3 + $0x68] sm:$0xff]
        %v5049 = vld [vmem:[#allocation3 + $0x70] sm:$0xff]
        %v5050 = vld [vmem:[#allocation3 + $0x78] sm:$0xff]
        %v5051 = vld [vmem:[#allocation3 + $0x80] sm:$0xff]
        %v5052 = vld [vmem:[#allocation3 + $0x88] sm:$0xff]
        %v5053 = vld [vmem:[#allocation3 + $0x90] sm:$0xff]
        %v5054 = vld [vmem:[#allocation3 + $0x98] sm:$0xff]
        %v5055 = vld [vmem:[#allocation3 + $0xa0] sm:$0xff]
        %v5056 = vld [vmem:[#allocation3 + $0xa8] sm:$0xff]
        %v5057 = vld [vmem:[#allocation3 + $0xb0] sm:$0xff]
        %v5058 = vld [vmem:[#allocation3 + $0xb8] sm:$0xff]
        %v5059 = vld [vmem:[#allocation3 + $0xc0] sm:$0xff]
        %v5060 = vld [vmem:[#allocation3 + $0xc8] sm:$0xff]
        %v5061 = vld [vmem:[#allocation3 + $0xd0] sm:$0xff]
        %v5062 = vld [vmem:[#allocation3 + $0xd8] sm:$0xff]
        %v5063 = vld [vmem:[#allocation3 + $0xe0] sm:$0xff]
        %v5064 = vld [vmem:[#allocation3 + $0xe8] sm:$0xff]
        %v5065 = vld [vmem:[#allocation3 + $0xf0] sm:$0xff]
        %v5066 = vld [vmem:[#allocation3 + $0xf8] sm:$0xff]
        %v5067 = vld [vmem:[#allocation3 + $0x100] sm:$0xff]
        %v5068 = vld [vmem:[#allocation3 + $0x108] sm:$0xff]
        %v5069 = vld [vmem:[#allocation3 + $0x110] sm:$0xff]
        %v5070 = vld [vmem:[#allocation3 + $0x118] sm:$0xff]
        %v5071 = vld [vmem:[#allocation3 + $0x120] sm:$0xff]
        %v5072 = vld [vmem:[#allocation3 + $0x128] sm:$0xff]
        %v5073 = vld [vmem:[#allocation3 + $0x130] sm:$0xff]
        %v5074 = vld [vmem:[#allocation3 + $0x138] sm:$0xff]
        %v5075 = vld [vmem:[#allocation3 + $0x140] sm:$0xff]
        %v5076 = vld [vmem:[#allocation3 + $0x148] sm:$0xff]
        %v5077 = vld [vmem:[#allocation3 + $0x150] sm:$0xff]
        %v5078 = vld [vmem:[#allocation3 + $0x158] sm:$0xff]
        %v5079 = vld [vmem:[#allocation3 + $0x160] sm:$0xff]
        %v5080 = vld [vmem:[#allocation3 + $0x168] sm:$0xff]
        %v5081 = vld [vmem:[#allocation3 + $0x170] sm:$0xff]
        %v5082 = vld [vmem:[#allocation3 + $0x178] sm:$0xff]
        %5083 = vmatprep.subr.mxu0 0.0
        %5084 = vmatpush1.msra.mxu0 %v5050
        %5085 = vmatprep.subr.mxu0 0.0
        %5086 = vmatpush1.msra.mxu0 %v5049
        %5087 = vmatprep.subr.mxu0 0.0
        %5088 = vmatpush1.msra.mxu0 %v5048
        %5089 = vmatprep.subr.mxu0 0.0
        %5090 = vmatpush1.msra.mxu0 %v5047
        %5091 = vmatprep.subr.mxu0 0.0
        %5092 = vmatpush1.msra.mxu0 %v5046
        %5093 = vmatprep.subr.mxu0 0.0
        %5094 = vmatpush1.msra.mxu0 %v5045
        %5095 = vmatprep.subr.mxu0 0.0
        %5096 = vmatpush1.msra.mxu0 %v5044
        %5097 = vmatprep.subr.mxu0 0.0
        %5098 = vmatpush1.msra.mxu0 %v5043
        %5099 = vmatprep.subr.mxu0 0.0
        %5100 = vmatpush1.msra.mxu0 %v5042
        %5101 = vmatprep.subr.mxu0 0.0
        %5102 = vmatpush1.msra.mxu0 %v5041
        %5103 = vmatprep.subr.mxu0 0.0
        %5104 = vmatpush1.msra.mxu0 %v5040
        %5105 = vmatprep.subr.mxu0 0.0
        %5106 = vmatpush1.msra.mxu0 %v5039
        %5107 = vmatprep.subr.mxu0 0.0
        %5108 = vmatpush1.msra.mxu0 %v5038
        %5109 = vmatprep.subr.mxu0 0.0
        %5110 = vmatpush1.msra.mxu0 %v5037
        %5111 = vmatprep.subr.mxu0 0.0
        %5112 = vmatpush1.msra.mxu0 %v5036
        %5113 = vmatprep.subr.mxu0 0.0
        %5114 = vmatpush1.msra.mxu0 %v5035
        %5115 = vmatprep.subr.mxu0 0.0
        %5116 = vmatpush2.msra.mxu0 %v5066
        %5117 = vmatprep.subr.mxu0 0.0
        %5118 = vmatpush2.msra.mxu0 %v5065
        %5119 = vmatprep.subr.mxu0 0.0
        %5120 = vmatpush2.msra.mxu0 %v5064
        %5121 = vmatprep.subr.mxu0 0.0
        %5122 = vmatpush2.msra.mxu0 %v5063
        %5123 = vmatprep.subr.mxu0 0.0
        %5124 = vmatpush2.msra.mxu0 %v5062
        %5125 = vmatprep.subr.mxu0 0.0
        %5126 = vmatpush2.msra.mxu0 %v5061
        %5127 = vmatprep.subr.mxu0 0.0
        %5128 = vmatpush2.msra.mxu0 %v5060
        %5129 = vmatprep.subr.mxu0 0.0
        %5130 = vmatpush2.msra.mxu0 %v5059
        %5131 = vmatprep.subr.mxu0 0.0
        %5132 = vmatpush2.msra.mxu0 %v5058
        %5133 = vmatprep.subr.mxu0 0.0
        %5134 = vmatpush2.msra.mxu0 %v5057
        %5135 = vmatprep.subr.mxu0 0.0
        %5136 = vmatpush2.msra.mxu0 %v5056
        %5137 = vmatprep.subr.mxu0 0.0
        %5138 = vmatpush2.msra.mxu0 %v5055
        %5139 = vmatprep.subr.mxu0 0.0
        %5140 = vmatpush2.msra.mxu0 %v5054
        %5141 = vmatprep.subr.mxu0 0.0
        %5142 = vmatpush2.msra.mxu0 %v5053
        %5143 = vmatprep.subr.mxu0 0.0
        %5144 = vmatpush2.msra.mxu0 %v5052
        %5145 = vmatprep.subr.mxu0 0.0
        %5146 = vmatpush2.msra.mxu0 %v5051
        %5147 = vmatprep.mubr.f32.mxu0 %v5003
        %5148 = vmatmul.mubr.f32.gmra.mxu0 %v4987
        %v5149 = vpop.f32.mrf.mxu0
        %v5150 = vadd.f32 0.0, %v5149
        %v5151 = vpop.f32.mrf.mxu0
        %5152 = vmatprep.mubr.f32.mxu0 %v5004
        %5153 = vmatmul.mubr.f32.gmra.mxu0 %v4988
        %v5154 = vpop.f32.mrf.mxu0
        %v5155 = vadd.f32 0.0, %v5154
        %v5156 = vpop.f32.mrf.mxu0
        %5157 = vmatprep.mubr.f32.mxu0 %v5005
        %5158 = vmatmul.mubr.f32.gmra.mxu0 %v4989
        %v5159 = vpop.f32.mrf.mxu0
        %v5160 = vadd.f32 0.0, %v5159
        %v5161 = vpop.f32.mrf.mxu0
        %5162 = vmatprep.mubr.f32.mxu0 %v5006
        %5163 = vmatmul.mubr.f32.gmra.mxu0 %v4990
        %v5164 = vpop.f32.mrf.mxu0
        %v5165 = vadd.f32 0.0, %v5164
        %v5166 = vpop.f32.mrf.mxu0
        %5167 = vmatprep.mubr.f32.mxu0 %v5007
        %5168 = vmatmul.mubr.f32.gmra.mxu0 %v4991
        %v5169 = vpop.f32.mrf.mxu0
        %v5170 = vadd.f32 0.0, %v5169
        %v5171 = vpop.f32.mrf.mxu0
        %5172 = vmatprep.mubr.f32.mxu0 %v5008
        %5173 = vmatmul.mubr.f32.gmra.mxu0 %v4992
        %v5174 = vpop.f32.mrf.mxu0
        %v5175 = vadd.f32 0.0, %v5174
        %v5176 = vpop.f32.mrf.mxu0
        %5177 = vmatprep.mubr.f32.mxu0 %v5009
        %5178 = vmatmul.mubr.f32.gmra.mxu0 %v4993
        %v5179 = vpop.f32.mrf.mxu0
        %v5180 = vadd.f32 0.0, %v5179
        %v5181 = vpop.f32.mrf.mxu0
        %5182 = vmatprep.mubr.f32.mxu0 %v5010
        %5183 = vmatmul.mubr.f32.gmra.mxu0 %v4994
        %v5184 = vpop.f32.mrf.mxu0
        %v5185 = vadd.f32 0.0, %v5184
        %v5186 = vpop.f32.mrf.mxu0
        %5187 = vmatprep.mubr.f32.mxu0 %v5011
        %5188 = vmatmul.mubr.f32.gmra.mxu0 %v4995
        %v5189 = vpop.f32.mrf.mxu0
        %v5190 = vadd.f32 0.0, %v5189
        %v5191 = vpop.f32.mrf.mxu0
        %5192 = vmatprep.mubr.f32.mxu0 %v5012
        %5193 = vmatmul.mubr.f32.gmra.mxu0 %v4996
        %v5194 = vpop.f32.mrf.mxu0
        %v5195 = vadd.f32 0.0, %v5194
        %v5196 = vpop.f32.mrf.mxu0
        %5197 = vmatprep.mubr.f32.mxu0 %v5013
        %5198 = vmatmul.mubr.f32.gmra.mxu0 %v4997
        %v5199 = vpop.f32.mrf.mxu0
        %v5200 = vadd.f32 0.0, %v5199
        %v5201 = vpop.f32.mrf.mxu0
        %5202 = vmatprep.mubr.f32.mxu0 %v5014
        %5203 = vmatmul.mubr.f32.gmra.mxu0 %v4998
        %v5204 = vpop.f32.mrf.mxu0
        %v5205 = vadd.f32 0.0, %v5204
        %v5206 = vpop.f32.mrf.mxu0
        %5207 = vmatprep.mubr.f32.mxu0 %v5015
        %5208 = vmatmul.mubr.f32.gmra.mxu0 %v4999
        %v5209 = vpop.f32.mrf.mxu0
        %v5210 = vadd.f32 0.0, %v5209
        %v5211 = vpop.f32.mrf.mxu0
        %5212 = vmatprep.mubr.f32.mxu0 %v5016
        %5213 = vmatmul.mubr.f32.gmra.mxu0 %v5000
        %v5214 = vpop.f32.mrf.mxu0
        %v5215 = vadd.f32 0.0, %v5214
        %v5216 = vpop.f32.mrf.mxu0
        %5217 = vmatprep.mubr.f32.mxu0 %v5017
        %5218 = vmatmul.mubr.f32.gmra.mxu0 %v5001
        %v5219 = vpop.f32.mrf.mxu0
        %v5220 = vadd.f32 0.0, %v5219
        %v5221 = vpop.f32.mrf.mxu0
        %5222 = vmatprep.mubr.f32.mxu0 %v5018
        %5223 = vmatmul.mubr.f32.gmra.mxu0 %v5002
        %v5224 = vpop.f32.mrf.mxu0
        %v5225 = vadd.f32 0.0, %v5224
        %v5226 = vpop.f32.mrf.mxu0
        %5227 = vdwg.mxu0
        %5228 = vmatprep.subr.mxu0 0.0
        %5229 = vmatpush1.msra.mxu0 %v5082
        %5230 = vmatprep.subr.mxu0 0.0
        %5231 = vmatpush1.msra.mxu0 %v5081
        %5232 = vmatprep.subr.mxu0 0.0
        %5233 = vmatpush1.msra.mxu0 %v5080
        %5234 = vmatprep.subr.mxu0 0.0
        %5235 = vmatpush1.msra.mxu0 %v5079
        %5236 = vmatprep.subr.mxu0 0.0
        %5237 = vmatpush1.msra.mxu0 %v5078
        %5238 = vmatprep.subr.mxu0 0.0
        %5239 = vmatpush1.msra.mxu0 %v5077
        %5240 = vmatprep.subr.mxu0 0.0
        %5241 = vmatpush1.msra.mxu0 %v5076
        %5242 = vmatprep.subr.mxu0 0.0
        %5243 = vmatpush1.msra.mxu0 %v5075
        %5244 = vmatprep.subr.mxu0 0.0
        %5245 = vmatpush1.msra.mxu0 %v5074
        %5246 = vmatprep.subr.mxu0 0.0
        %5247 = vmatpush1.msra.mxu0 %v5073
        %5248 = vmatprep.subr.mxu0 0.0
        %5249 = vmatpush1.msra.mxu0 %v5072
        %5250 = vmatprep.subr.mxu0 0.0
        %5251 = vmatpush1.msra.mxu0 %v5071
        %5252 = vmatprep.subr.mxu0 0.0
        %5253 = vmatpush1.msra.mxu0 %v5070
        %5254 = vmatprep.subr.mxu0 0.0
        %5255 = vmatpush1.msra.mxu0 %v5069
        %5256 = vmatprep.subr.mxu0 0.0
        %5257 = vmatpush1.msra.mxu0 %v5068
        %5258 = vmatprep.subr.mxu0 0.0
        %5259 = vmatpush1.msra.mxu0 %v5067
        %5260 = vmatprep.subr.mxu0 0.0
        %5261 = vmatpush2.msra.mxu0 0.0
        %5262 = vmatprep.subr.mxu0 0.0
        %5263 = vmatpush2.msra.mxu0 0.0
        %5264 = vmatprep.subr.mxu0 0.0
        %5265 = vmatpush2.msra.mxu0 0.0
        %5266 = vmatprep.subr.mxu0 0.0
        %5267 = vmatpush2.msra.mxu0 0.0
        %5268 = vmatprep.subr.mxu0 0.0
        %5269 = vmatpush2.msra.mxu0 0.0
        %5270 = vmatprep.subr.mxu0 0.0
        %5271 = vmatpush2.msra.mxu0 0.0
        %5272 = vmatprep.subr.mxu0 0.0
        %5273 = vmatpush2.msra.mxu0 0.0
        %5274 = vmatprep.subr.mxu0 0.0
        %5275 = vmatpush2.msra.mxu0 0.0
        %5276 = vmatprep.subr.mxu0 0.0
        %5277 = vmatpush2.msra.mxu0 0.0
        %5278 = vmatprep.subr.mxu0 0.0
        %5279 = vmatpush2.msra.mxu0 0.0
        %5280 = vmatprep.subr.mxu0 0.0
        %5281 = vmatpush2.msra.mxu0 0.0
        %5282 = vmatprep.subr.mxu0 0.0
        %5283 = vmatpush2.msra.mxu0 0.0
        %5284 = vmatprep.subr.mxu0 0.0
        %5285 = vmatpush2.msra.mxu0 0.0
        %5286 = vmatprep.subr.mxu0 0.0
        %5287 = vmatpush2.msra.mxu0 0.0
        %5288 = vmatprep.subr.mxu0 0.0
        %5289 = vmatpush2.msra.mxu0 0.0
        %5290 = vmatprep.subr.mxu0 0.0
        %5291 = vmatpush2.msra.mxu0 0.0
        %5292 = vmatprep.mubr.f32.mxu0 0.0
        %5293 = vmatmul.mubr.f32.gmra.mxu0 %v5019
        %v5294 = vpop.f32.mrf.mxu0
        %v5295 = vadd.f32 %v5150, %v5294
        %v5296 = vpop.f32.mrf.mxu0
        %5297 = vmatprep.mubr.f32.mxu0 0.0
        %5298 = vmatmul.mubr.f32.gmra.mxu0 %v5020
        %v5299 = vpop.f32.mrf.mxu0
        %v5300 = vadd.f32 %v5155, %v5299
        %v5301 = vpop.f32.mrf.mxu0
        %5302 = vmatprep.mubr.f32.mxu0 0.0
        %5303 = vmatmul.mubr.f32.gmra.mxu0 %v5021
        %v5304 = vpop.f32.mrf.mxu0
        %v5305 = vadd.f32 %v5160, %v5304
        %v5306 = vpop.f32.mrf.mxu0
        %5307 = vmatprep.mubr.f32.mxu0 0.0
        %5308 = vmatmul.mubr.f32.gmra.mxu0 %v5022
        %v5309 = vpop.f32.mrf.mxu0
        %v5310 = vadd.f32 %v5165, %v5309
        %v5311 = vpop.f32.mrf.mxu0
        %5312 = vmatprep.mubr.f32.mxu0 0.0
        %5313 = vmatmul.mubr.f32.gmra.mxu0 %v5023
        %v5314 = vpop.f32.mrf.mxu0
        %v5315 = vadd.f32 %v5170, %v5314
        %v5316 = vpop.f32.mrf.mxu0
        %5317 = vmatprep.mubr.f32.mxu0 0.0
        %5318 = vmatmul.mubr.f32.gmra.mxu0 %v5024
        %v5319 = vpop.f32.mrf.mxu0
        %v5320 = vadd.f32 %v5175, %v5319
        %v5321 = vpop.f32.mrf.mxu0
        %5322 = vmatprep.mubr.f32.mxu0 0.0
        %5323 = vmatmul.mubr.f32.gmra.mxu0 %v5025
        %v5324 = vpop.f32.mrf.mxu0
        %v5325 = vadd.f32 %v5180, %v5324
        %v5326 = vpop.f32.mrf.mxu0
        %5327 = vmatprep.mubr.f32.mxu0 0.0
        %5328 = vmatmul.mubr.f32.gmra.mxu0 %v5026
        %v5329 = vpop.f32.mrf.mxu0
        %v5330 = vadd.f32 %v5185, %v5329
        %v5331 = vpop.f32.mrf.mxu0
        %5332 = vmatprep.mubr.f32.mxu0 0.0
        %5333 = vmatmul.mubr.f32.gmra.mxu0 %v5027
        %v5334 = vpop.f32.mrf.mxu0
        %v5335 = vadd.f32 %v5190, %v5334
        %v5336 = vpop.f32.mrf.mxu0
        %5337 = vmatprep.mubr.f32.mxu0 0.0
        %5338 = vmatmul.mubr.f32.gmra.mxu0 %v5028
        %v5339 = vpop.f32.mrf.mxu0
        %v5340 = vadd.f32 %v5195, %v5339
        %v5341 = vpop.f32.mrf.mxu0
        %5342 = vmatprep.mubr.f32.mxu0 0.0
        %5343 = vmatmul.mubr.f32.gmra.mxu0 %v5029
        %v5344 = vpop.f32.mrf.mxu0
        %v5345 = vadd.f32 %v5200, %v5344
        %v5346 = vpop.f32.mrf.mxu0
        %5347 = vmatprep.mubr.f32.mxu0 0.0
        %5348 = vmatmul.mubr.f32.gmra.mxu0 %v5030
        %v5349 = vpop.f32.mrf.mxu0
        %v5350 = vadd.f32 %v5205, %v5349
        %v5351 = vpop.f32.mrf.mxu0
        %5352 = vmatprep.mubr.f32.mxu0 0.0
        %5353 = vmatmul.mubr.f32.gmra.mxu0 %v5031
        %v5354 = vpop.f32.mrf.mxu0
        %v5355 = vadd.f32 %v5210, %v5354
        %v5356 = vpop.f32.mrf.mxu0
        %5357 = vmatprep.mubr.f32.mxu0 0.0
        %5358 = vmatmul.mubr.f32.gmra.mxu0 %v5032
        %v5359 = vpop.f32.mrf.mxu0
        %v5360 = vadd.f32 %v5215, %v5359
        %v5361 = vpop.f32.mrf.mxu0
        %5362 = vmatprep.mubr.f32.mxu0 0.0
        %5363 = vmatmul.mubr.f32.gmra.mxu0 %v5033
        %v5364 = vpop.f32.mrf.mxu0
        %v5365 = vadd.f32 %v5220, %v5364
        %v5366 = vpop.f32.mrf.mxu0
        %5367 = vmatprep.mubr.f32.mxu0 0.0
        %5368 = vmatmul.mubr.f32.gmra.mxu0 %v5034
        %v5369 = vpop.f32.mrf.mxu0
        %v5370 = vadd.f32 %v5225, %v5369
        %v5371 = vpop.f32.mrf.mxu0
        %5372 = vdwg.mxu0
        %5373 = vmatprep.subr.mxu0 0.0
        %5374 = vmatpush1.msra.mxu0 %v4986
        %5375 = vmatprep.subr.mxu0 0.0
        %5376 = vmatpush1.msra.mxu0 %v4985
        %5377 = vmatprep.subr.mxu0 0.0
        %5378 = vmatpush1.msra.mxu0 %v4984
        %5379 = vmatprep.subr.mxu0 0.0
        %5380 = vmatpush1.msra.mxu0 %v4983
        %5381 = vmatprep.subr.mxu0 0.0
        %5382 = vmatpush1.msra.mxu0 %v4982
        %5383 = vmatprep.subr.mxu0 0.0
        %5384 = vmatpush1.msra.mxu0 %v4981
        %5385 = vmatprep.subr.mxu0 0.0
        %5386 = vmatpush1.msra.mxu0 %v4980
        %5387 = vmatprep.subr.mxu0 0.0
        %5388 = vmatpush1.msra.mxu0 %v4979
        %5389 = vmatprep.subr.mxu0 0.0
        %5390 = vmatpush1.msra.mxu0 %v4978
        %5391 = vmatprep.subr.mxu0 0.0
        %5392 = vmatpush1.msra.mxu0 %v4977
        %5393 = vmatprep.subr.mxu0 0.0
        %5394 = vmatpush1.msra.mxu0 %v4976
        %5395 = vmatprep.subr.mxu0 0.0
        %5396 = vmatpush1.msra.mxu0 %v4975
        %5397 = vmatprep.subr.mxu0 0.0
        %5398 = vmatpush1.msra.mxu0 %v4974
        %5399 = vmatprep.subr.mxu0 0.0
        %5400 = vmatpush1.msra.mxu0 %v4973
        %5401 = vmatprep.subr.mxu0 0.0
        %5402 = vmatpush1.msra.mxu0 %v4972
        %5403 = vmatprep.subr.mxu0 0.0
        %5404 = vmatpush1.msra.mxu0 %v4971
        %5405 = vmatprep.subr.mxu0 0.0
        %5406 = vmatpush2.msra.mxu0 0.0
        %5407 = vmatprep.subr.mxu0 0.0
        %5408 = vmatpush2.msra.mxu0 0.0
        %5409 = vmatprep.subr.mxu0 0.0
        %5410 = vmatpush2.msra.mxu0 0.0
        %5411 = vmatprep.subr.mxu0 0.0
        %5412 = vmatpush2.msra.mxu0 0.0
        %5413 = vmatprep.subr.mxu0 0.0
        %5414 = vmatpush2.msra.mxu0 0.0
        %5415 = vmatprep.subr.mxu0 0.0
        %5416 = vmatpush2.msra.mxu0 0.0
        %5417 = vmatprep.subr.mxu0 0.0
        %5418 = vmatpush2.msra.mxu0 0.0
        %5419 = vmatprep.subr.mxu0 0.0
        %5420 = vmatpush2.msra.mxu0 0.0
        %5421 = vmatprep.subr.mxu0 0.0
        %5422 = vmatpush2.msra.mxu0 0.0
        %5423 = vmatprep.subr.mxu0 0.0
        %5424 = vmatpush2.msra.mxu0 0.0
        %5425 = vmatprep.subr.mxu0 0.0
        %5426 = vmatpush2.msra.mxu0 0.0
        %5427 = vmatprep.subr.mxu0 0.0
        %5428 = vmatpush2.msra.mxu0 0.0
        %5429 = vmatprep.subr.mxu0 0.0
        %5430 = vmatpush2.msra.mxu0 0.0
        %5431 = vmatprep.subr.mxu0 0.0
        %5432 = vmatpush2.msra.mxu0 0.0
        %5433 = vmatprep.subr.mxu0 0.0
        %5434 = vmatpush2.msra.mxu0 0.0
        %5435 = vmatprep.subr.mxu0 0.0
        %5436 = vmatpush2.msra.mxu0 0.0
        %5437 = vmatprep.mubr.f32.mxu0 0.0
        %5438 = vmatmul.mubr.f32.gmra.mxu0 %v4955
        %v5439 = vpop.f32.mrf.mxu0
        %v5440 = vadd.f32 %v5295, %v5439
        %v5441 = vpop.f32.mrf.mxu0
        %5442 = vmatprep.mubr.f32.mxu0 0.0
        %5443 = vmatmul.mubr.f32.gmra.mxu0 %v4956
        %v5444 = vpop.f32.mrf.mxu0
        %v5445 = vadd.f32 %v5300, %v5444
        %v5446 = vpop.f32.mrf.mxu0
        %5447 = vmatprep.mubr.f32.mxu0 0.0
        %5448 = vmatmul.mubr.f32.gmra.mxu0 %v4957
        %v5449 = vpop.f32.mrf.mxu0
        %v5450 = vadd.f32 %v5305, %v5449
        %v5451 = vpop.f32.mrf.mxu0
        %5452 = vmatprep.mubr.f32.mxu0 0.0
        %5453 = vmatmul.mubr.f32.gmra.mxu0 %v4958
        %v5454 = vpop.f32.mrf.mxu0
        %v5455 = vadd.f32 %v5310, %v5454
        %v5456 = vpop.f32.mrf.mxu0
        %5457 = vmatprep.mubr.f32.mxu0 0.0
        %5458 = vmatmul.mubr.f32.gmra.mxu0 %v4959
        %v5459 = vpop.f32.mrf.mxu0
        %v5460 = vadd.f32 %v5315, %v5459
        %v5461 = vpop.f32.mrf.mxu0
        %5462 = vmatprep.mubr.f32.mxu0 0.0
        %5463 = vmatmul.mubr.f32.gmra.mxu0 %v4960
        %v5464 = vpop.f32.mrf.mxu0
        %v5465 = vadd.f32 %v5320, %v5464
        %v5466 = vpop.f32.mrf.mxu0
        %5467 = vmatprep.mubr.f32.mxu0 0.0
        %5468 = vmatmul.mubr.f32.gmra.mxu0 %v4961
        %v5469 = vpop.f32.mrf.mxu0
        %v5470 = vadd.f32 %v5325, %v5469
        %v5471 = vpop.f32.mrf.mxu0
        %5472 = vmatprep.mubr.f32.mxu0 0.0
        %5473 = vmatmul.mubr.f32.gmra.mxu0 %v4962
        %v5474 = vpop.f32.mrf.mxu0
        %v5475 = vadd.f32 %v5330, %v5474
        %v5476 = vpop.f32.mrf.mxu0
        %5477 = vmatprep.mubr.f32.mxu0 0.0
        %5478 = vmatmul.mubr.f32.gmra.mxu0 %v4963
        %v5479 = vpop.f32.mrf.mxu0
        %v5480 = vadd.f32 %v5335, %v5479
        %v5481 = vpop.f32.mrf.mxu0
        %5482 = vmatprep.mubr.f32.mxu0 0.0
        %5483 = vmatmul.mubr.f32.gmra.mxu0 %v4964
        %v5484 = vpop.f32.mrf.mxu0
        %v5485 = vadd.f32 %v5340, %v5484
        %v5486 = vpop.f32.mrf.mxu0
        %5487 = vmatprep.mubr.f32.mxu0 0.0
        %5488 = vmatmul.mubr.f32.gmra.mxu0 %v4965
        %v5489 = vpop.f32.mrf.mxu0
        %v5490 = vadd.f32 %v5345, %v5489
        %v5491 = vpop.f32.mrf.mxu0
        %5492 = vmatprep.mubr.f32.mxu0 0.0
        %5493 = vmatmul.mubr.f32.gmra.mxu0 %v4966
        %v5494 = vpop.f32.mrf.mxu0
        %v5495 = vadd.f32 %v5350, %v5494
        %v5496 = vpop.f32.mrf.mxu0
        %5497 = vmatprep.mubr.f32.mxu0 0.0
        %5498 = vmatmul.mubr.f32.gmra.mxu0 %v4967
        %v5499 = vpop.f32.mrf.mxu0
        %v5500 = vadd.f32 %v5355, %v5499
        %v5501 = vpop.f32.mrf.mxu0
        %5502 = vmatprep.mubr.f32.mxu0 0.0
        %5503 = vmatmul.mubr.f32.gmra.mxu0 %v4968
        %v5504 = vpop.f32.mrf.mxu0
        %v5505 = vadd.f32 %v5360, %v5504
        %v5506 = vpop.f32.mrf.mxu0
        %5507 = vmatprep.mubr.f32.mxu0 0.0
        %5508 = vmatmul.mubr.f32.gmra.mxu0 %v4969
        %v5509 = vpop.f32.mrf.mxu0
        %v5510 = vadd.f32 %v5365, %v5509
        %v5511 = vpop.f32.mrf.mxu0
        %5512 = vmatprep.mubr.f32.mxu0 0.0
        %5513 = vmatmul.mubr.f32.gmra.mxu0 %v4970
        %v5514 = vpop.f32.mrf.mxu0
        %v5515 = vadd.f32 %v5370, %v5514
        %v5516 = vpop.f32.mrf.mxu0
        %5517 = vdwg.mxu0
        %s5518 = scalar_lea.vmem [#allocation2], 216
        %v5519 = vld [vmem:[%s5518] sm:$0xff]
        %v5520 = vld [vmem:[%s5518 + $0x8] sm:$0xff]
        %v5521 = vld [vmem:[%s5518 + $0x18] sm:$0xff]
        %v5522 = vld [vmem:[%s5518 + $0x20] sm:$0xff]
        %v5523 = vld [vmem:[%s5518 + $0x30] sm:$0xff]
        %v5524 = vld [vmem:[%s5518 + $0x38] sm:$0xff]
        %v5525 = vld [vmem:[%s5518 + $0x48] sm:$0xff]
        %v5526 = vld [vmem:[%s5518 + $0x50] sm:$0xff]
        %v5527 = vld [vmem:[%s5518 + $0x60] sm:$0xff]
        %v5528 = vld [vmem:[%s5518 + $0x68] sm:$0xff]
        %v5529 = vld [vmem:[%s5518 + $0x78] sm:$0xff]
        %v5530 = vld [vmem:[%s5518 + $0x80] sm:$0xff]
        %v5531 = vld [vmem:[%s5518 + $0x90] sm:$0xff]
        %v5532 = vld [vmem:[%s5518 + $0x98] sm:$0xff]
        %v5533 = vld [vmem:[%s5518 + $0xa8] sm:$0xff]
        %v5534 = vld [vmem:[%s5518 + $0xb0] sm:$0xff]
        %v5535 = vld [vmem:[%s5518 + $0x1] sm:$0xff]
        %v5536 = vld [vmem:[%s5518 + $0x9] sm:$0xff]
        %v5537 = vld [vmem:[%s5518 + $0x19] sm:$0xff]
        %v5538 = vld [vmem:[%s5518 + $0x21] sm:$0xff]
        %v5539 = vld [vmem:[%s5518 + $0x31] sm:$0xff]
        %v5540 = vld [vmem:[%s5518 + $0x39] sm:$0xff]
        %v5541 = vld [vmem:[%s5518 + $0x49] sm:$0xff]
        %v5542 = vld [vmem:[%s5518 + $0x51] sm:$0xff]
        %v5543 = vld [vmem:[%s5518 + $0x61] sm:$0xff]
        %v5544 = vld [vmem:[%s5518 + $0x69] sm:$0xff]
        %v5545 = vld [vmem:[%s5518 + $0x79] sm:$0xff]
        %v5546 = vld [vmem:[%s5518 + $0x81] sm:$0xff]
        %v5547 = vld [vmem:[%s5518 + $0x91] sm:$0xff]
        %v5548 = vld [vmem:[%s5518 + $0x99] sm:$0xff]
        %v5549 = vld [vmem:[%s5518 + $0xa9] sm:$0xff]
        %v5550 = vld [vmem:[%s5518 + $0xb1] sm:$0xff]
        %v5551 = vld [vmem:[%s5518 + $0x2] sm:$0xff]
        %v5552 = vld [vmem:[%s5518 + $0xa] sm:$0xff]
        %v5553 = vld [vmem:[%s5518 + $0x1a] sm:$0xff]
        %v5554 = vld [vmem:[%s5518 + $0x22] sm:$0xff]
        %v5555 = vld [vmem:[%s5518 + $0x32] sm:$0xff]
        %v5556 = vld [vmem:[%s5518 + $0x3a] sm:$0xff]
        %v5557 = vld [vmem:[%s5518 + $0x4a] sm:$0xff]
        %v5558 = vld [vmem:[%s5518 + $0x52] sm:$0xff]
        %v5559 = vld [vmem:[%s5518 + $0x62] sm:$0xff]
        %v5560 = vld [vmem:[%s5518 + $0x6a] sm:$0xff]
        %v5561 = vld [vmem:[%s5518 + $0x7a] sm:$0xff]
        %v5562 = vld [vmem:[%s5518 + $0x82] sm:$0xff]
        %v5563 = vld [vmem:[%s5518 + $0x92] sm:$0xff]
        %v5564 = vld [vmem:[%s5518 + $0x9a] sm:$0xff]
        %v5565 = vld [vmem:[%s5518 + $0xaa] sm:$0xff]
        %v5566 = vld [vmem:[%s5518 + $0xb2] sm:$0xff]
        %v5567 = vld [vmem:[%s4141] sm:$0xff]
        %v5568 = vld [vmem:[%s4141 + $0x8] sm:$0xff]
        %v5569 = vld [vmem:[%s4141 + $0x10] sm:$0xff]
        %v5570 = vld [vmem:[%s4141 + $0x18] sm:$0xff]
        %v5571 = vld [vmem:[%s4141 + $0x20] sm:$0xff]
        %v5572 = vld [vmem:[%s4141 + $0x28] sm:$0xff]
        %v5573 = vld [vmem:[%s4141 + $0x30] sm:$0xff]
        %v5574 = vld [vmem:[%s4141 + $0x38] sm:$0xff]
        %v5575 = vld [vmem:[%s4141 + $0x40] sm:$0xff]
        %v5576 = vld [vmem:[%s4141 + $0x48] sm:$0xff]
        %v5577 = vld [vmem:[%s4141 + $0x50] sm:$0xff]
        %v5578 = vld [vmem:[%s4141 + $0x58] sm:$0xff]
        %v5579 = vld [vmem:[%s4141 + $0x60] sm:$0xff]
        %v5580 = vld [vmem:[%s4141 + $0x68] sm:$0xff]
        %v5581 = vld [vmem:[%s4141 + $0x70] sm:$0xff]
        %v5582 = vld [vmem:[%s4141 + $0x78] sm:$0xff]
        %v5583 = vld [vmem:[%s4141 + $0x80] sm:$0xff]
        %v5584 = vld [vmem:[%s4141 + $0x88] sm:$0xff]
        %v5585 = vld [vmem:[%s4141 + $0x90] sm:$0xff]
        %v5586 = vld [vmem:[%s4141 + $0x98] sm:$0xff]
        %v5587 = vld [vmem:[%s4141 + $0xa0] sm:$0xff]
        %v5588 = vld [vmem:[%s4141 + $0xa8] sm:$0xff]
        %v5589 = vld [vmem:[%s4141 + $0xb0] sm:$0xff]
        %v5590 = vld [vmem:[%s4141 + $0xb8] sm:$0xff]
        %v5591 = vld [vmem:[%s4141 + $0xc0] sm:$0xff]
        %v5592 = vld [vmem:[%s4141 + $0xc8] sm:$0xff]
        %v5593 = vld [vmem:[%s4141 + $0xd0] sm:$0xff]
        %v5594 = vld [vmem:[%s4141 + $0xd8] sm:$0xff]
        %v5595 = vld [vmem:[%s4141 + $0xe0] sm:$0xff]
        %v5596 = vld [vmem:[%s4141 + $0xe8] sm:$0xff]
        %v5597 = vld [vmem:[%s4141 + $0xf0] sm:$0xff]
        %v5598 = vld [vmem:[%s4141 + $0xf8] sm:$0xff]
        %v5599 = vld [vmem:[%s4141 + $0x100] sm:$0xff]
        %v5600 = vld [vmem:[%s4141 + $0x108] sm:$0xff]
        %v5601 = vld [vmem:[%s4141 + $0x110] sm:$0xff]
        %v5602 = vld [vmem:[%s4141 + $0x118] sm:$0xff]
        %v5603 = vld [vmem:[%s4141 + $0x120] sm:$0xff]
        %v5604 = vld [vmem:[%s4141 + $0x128] sm:$0xff]
        %v5605 = vld [vmem:[%s4141 + $0x130] sm:$0xff]
        %v5606 = vld [vmem:[%s4141 + $0x138] sm:$0xff]
        %v5607 = vld [vmem:[%s4141 + $0x140] sm:$0xff]
        %v5608 = vld [vmem:[%s4141 + $0x148] sm:$0xff]
        %v5609 = vld [vmem:[%s4141 + $0x150] sm:$0xff]
        %v5610 = vld [vmem:[%s4141 + $0x158] sm:$0xff]
        %v5611 = vld [vmem:[%s4141 + $0x160] sm:$0xff]
        %v5612 = vld [vmem:[%s4141 + $0x168] sm:$0xff]
        %v5613 = vld [vmem:[%s4141 + $0x170] sm:$0xff]
        %v5614 = vld [vmem:[%s4141 + $0x178] sm:$0xff]
        %5615 = vmatprep.subr.mxu0 0.0
        %5616 = vmatpush1.msra.mxu0 %v5582
        %5617 = vmatprep.subr.mxu0 0.0
        %5618 = vmatpush1.msra.mxu0 %v5581
        %5619 = vmatprep.subr.mxu0 0.0
        %5620 = vmatpush1.msra.mxu0 %v5580
        %5621 = vmatprep.subr.mxu0 0.0
        %5622 = vmatpush1.msra.mxu0 %v5579
        %5623 = vmatprep.subr.mxu0 0.0
        %5624 = vmatpush1.msra.mxu0 %v5578
        %5625 = vmatprep.subr.mxu0 0.0
        %5626 = vmatpush1.msra.mxu0 %v5577
        %5627 = vmatprep.subr.mxu0 0.0
        %5628 = vmatpush1.msra.mxu0 %v5576
        %5629 = vmatprep.subr.mxu0 0.0
        %5630 = vmatpush1.msra.mxu0 %v5575
        %5631 = vmatprep.subr.mxu0 0.0
        %5632 = vmatpush1.msra.mxu0 %v5574
        %5633 = vmatprep.subr.mxu0 0.0
        %5634 = vmatpush1.msra.mxu0 %v5573
        %5635 = vmatprep.subr.mxu0 0.0
        %5636 = vmatpush1.msra.mxu0 %v5572
        %5637 = vmatprep.subr.mxu0 0.0
        %5638 = vmatpush1.msra.mxu0 %v5571
        %5639 = vmatprep.subr.mxu0 0.0
        %5640 = vmatpush1.msra.mxu0 %v5570
        %5641 = vmatprep.subr.mxu0 0.0
        %5642 = vmatpush1.msra.mxu0 %v5569
        %5643 = vmatprep.subr.mxu0 0.0
        %5644 = vmatpush1.msra.mxu0 %v5568
        %5645 = vmatprep.subr.mxu0 0.0
        %5646 = vmatpush1.msra.mxu0 %v5567
        %5647 = vmatprep.subr.mxu0 0.0
        %5648 = vmatpush2.msra.mxu0 %v5598
        %5649 = vmatprep.subr.mxu0 0.0
        %5650 = vmatpush2.msra.mxu0 %v5597
        %5651 = vmatprep.subr.mxu0 0.0
        %5652 = vmatpush2.msra.mxu0 %v5596
        %5653 = vmatprep.subr.mxu0 0.0
        %5654 = vmatpush2.msra.mxu0 %v5595
        %5655 = vmatprep.subr.mxu0 0.0
        %5656 = vmatpush2.msra.mxu0 %v5594
        %5657 = vmatprep.subr.mxu0 0.0
        %5658 = vmatpush2.msra.mxu0 %v5593
        %5659 = vmatprep.subr.mxu0 0.0
        %5660 = vmatpush2.msra.mxu0 %v5592
        %5661 = vmatprep.subr.mxu0 0.0
        %5662 = vmatpush2.msra.mxu0 %v5591
        %5663 = vmatprep.subr.mxu0 0.0
        %5664 = vmatpush2.msra.mxu0 %v5590
        %5665 = vmatprep.subr.mxu0 0.0
        %5666 = vmatpush2.msra.mxu0 %v5589
        %5667 = vmatprep.subr.mxu0 0.0
        %5668 = vmatpush2.msra.mxu0 %v5588
        %5669 = vmatprep.subr.mxu0 0.0
        %5670 = vmatpush2.msra.mxu0 %v5587
        %5671 = vmatprep.subr.mxu0 0.0
        %5672 = vmatpush2.msra.mxu0 %v5586
        %5673 = vmatprep.subr.mxu0 0.0
        %5674 = vmatpush2.msra.mxu0 %v5585
        %5675 = vmatprep.subr.mxu0 0.0
        %5676 = vmatpush2.msra.mxu0 %v5584
        %5677 = vmatprep.subr.mxu0 0.0
        %5678 = vmatpush2.msra.mxu0 %v5583
        %5679 = vmatprep.mubr.f32.mxu0 %v5535
        %5680 = vmatmul.mubr.f32.gmra.mxu0 %v5519
        %v5681 = vpop.f32.mrf.mxu0
        %v5682 = vadd.f32 0.0, %v5681
        %v5683 = vpop.f32.mrf.mxu0
        %5684 = vmatprep.mubr.f32.mxu0 %v5536
        %5685 = vmatmul.mubr.f32.gmra.mxu0 %v5520
        %v5686 = vpop.f32.mrf.mxu0
        %v5687 = vadd.f32 0.0, %v5686
        %v5688 = vpop.f32.mrf.mxu0
        %5689 = vmatprep.mubr.f32.mxu0 %v5537
        %5690 = vmatmul.mubr.f32.gmra.mxu0 %v5521
        %v5691 = vpop.f32.mrf.mxu0
        %v5692 = vadd.f32 0.0, %v5691
        %v5693 = vpop.f32.mrf.mxu0
        %5694 = vmatprep.mubr.f32.mxu0 %v5538
        %5695 = vmatmul.mubr.f32.gmra.mxu0 %v5522
        %v5696 = vpop.f32.mrf.mxu0
        %v5697 = vadd.f32 0.0, %v5696
        %v5698 = vpop.f32.mrf.mxu0
        %5699 = vmatprep.mubr.f32.mxu0 %v5539
        %5700 = vmatmul.mubr.f32.gmra.mxu0 %v5523
        %v5701 = vpop.f32.mrf.mxu0
        %v5702 = vadd.f32 0.0, %v5701
        %v5703 = vpop.f32.mrf.mxu0
        %5704 = vmatprep.mubr.f32.mxu0 %v5540
        %5705 = vmatmul.mubr.f32.gmra.mxu0 %v5524
        %v5706 = vpop.f32.mrf.mxu0
        %v5707 = vadd.f32 0.0, %v5706
        %v5708 = vpop.f32.mrf.mxu0
        %5709 = vmatprep.mubr.f32.mxu0 %v5541
        %5710 = vmatmul.mubr.f32.gmra.mxu0 %v5525
        %v5711 = vpop.f32.mrf.mxu0
        %v5712 = vadd.f32 0.0, %v5711
        %v5713 = vpop.f32.mrf.mxu0
        %5714 = vmatprep.mubr.f32.mxu0 %v5542
        %5715 = vmatmul.mubr.f32.gmra.mxu0 %v5526
        %v5716 = vpop.f32.mrf.mxu0
        %v5717 = vadd.f32 0.0, %v5716
        %v5718 = vpop.f32.mrf.mxu0
        %5719 = vmatprep.mubr.f32.mxu0 %v5543
        %5720 = vmatmul.mubr.f32.gmra.mxu0 %v5527
        %v5721 = vpop.f32.mrf.mxu0
        %v5722 = vadd.f32 0.0, %v5721
        %v5723 = vpop.f32.mrf.mxu0
        %5724 = vmatprep.mubr.f32.mxu0 %v5544
        %5725 = vmatmul.mubr.f32.gmra.mxu0 %v5528
        %v5726 = vpop.f32.mrf.mxu0
        %v5727 = vadd.f32 0.0, %v5726
        %v5728 = vpop.f32.mrf.mxu0
        %5729 = vmatprep.mubr.f32.mxu0 %v5545
        %5730 = vmatmul.mubr.f32.gmra.mxu0 %v5529
        %v5731 = vpop.f32.mrf.mxu0
        %v5732 = vadd.f32 0.0, %v5731
        %v5733 = vpop.f32.mrf.mxu0
        %5734 = vmatprep.mubr.f32.mxu0 %v5546
        %5735 = vmatmul.mubr.f32.gmra.mxu0 %v5530
        %v5736 = vpop.f32.mrf.mxu0
        %v5737 = vadd.f32 0.0, %v5736
        %v5738 = vpop.f32.mrf.mxu0
        %5739 = vmatprep.mubr.f32.mxu0 %v5547
        %5740 = vmatmul.mubr.f32.gmra.mxu0 %v5531
        %v5741 = vpop.f32.mrf.mxu0
        %v5742 = vadd.f32 0.0, %v5741
        %v5743 = vpop.f32.mrf.mxu0
        %5744 = vmatprep.mubr.f32.mxu0 %v5548
        %5745 = vmatmul.mubr.f32.gmra.mxu0 %v5532
        %v5746 = vpop.f32.mrf.mxu0
        %v5747 = vadd.f32 0.0, %v5746
        %v5748 = vpop.f32.mrf.mxu0
        %5749 = vmatprep.mubr.f32.mxu0 %v5549
        %5750 = vmatmul.mubr.f32.gmra.mxu0 %v5533
        %v5751 = vpop.f32.mrf.mxu0
        %v5752 = vadd.f32 0.0, %v5751
        %v5753 = vpop.f32.mrf.mxu0
        %5754 = vmatprep.mubr.f32.mxu0 %v5550
        %5755 = vmatmul.mubr.f32.gmra.mxu0 %v5534
        %v5756 = vpop.f32.mrf.mxu0
        %v5757 = vadd.f32 0.0, %v5756
        %v5758 = vpop.f32.mrf.mxu0
        %5759 = vdwg.mxu0
        %5760 = vmatprep.subr.mxu0 0.0
        %5761 = vmatpush1.msra.mxu0 %v5614
        %5762 = vmatprep.subr.mxu0 0.0
        %5763 = vmatpush1.msra.mxu0 %v5613
        %5764 = vmatprep.subr.mxu0 0.0
        %5765 = vmatpush1.msra.mxu0 %v5612
        %5766 = vmatprep.subr.mxu0 0.0
        %5767 = vmatpush1.msra.mxu0 %v5611
        %5768 = vmatprep.subr.mxu0 0.0
        %5769 = vmatpush1.msra.mxu0 %v5610
        %5770 = vmatprep.subr.mxu0 0.0
        %5771 = vmatpush1.msra.mxu0 %v5609
        %5772 = vmatprep.subr.mxu0 0.0
        %5773 = vmatpush1.msra.mxu0 %v5608
        %5774 = vmatprep.subr.mxu0 0.0
        %5775 = vmatpush1.msra.mxu0 %v5607
        %5776 = vmatprep.subr.mxu0 0.0
        %5777 = vmatpush1.msra.mxu0 %v5606
        %5778 = vmatprep.subr.mxu0 0.0
        %5779 = vmatpush1.msra.mxu0 %v5605
        %5780 = vmatprep.subr.mxu0 0.0
        %5781 = vmatpush1.msra.mxu0 %v5604
        %5782 = vmatprep.subr.mxu0 0.0
        %5783 = vmatpush1.msra.mxu0 %v5603
        %5784 = vmatprep.subr.mxu0 0.0
        %5785 = vmatpush1.msra.mxu0 %v5602
        %5786 = vmatprep.subr.mxu0 0.0
        %5787 = vmatpush1.msra.mxu0 %v5601
        %5788 = vmatprep.subr.mxu0 0.0
        %5789 = vmatpush1.msra.mxu0 %v5600
        %5790 = vmatprep.subr.mxu0 0.0
        %5791 = vmatpush1.msra.mxu0 %v5599
        %5792 = vmatprep.subr.mxu0 0.0
        %5793 = vmatpush2.msra.mxu0 0.0
        %5794 = vmatprep.subr.mxu0 0.0
        %5795 = vmatpush2.msra.mxu0 0.0
        %5796 = vmatprep.subr.mxu0 0.0
        %5797 = vmatpush2.msra.mxu0 0.0
        %5798 = vmatprep.subr.mxu0 0.0
        %5799 = vmatpush2.msra.mxu0 0.0
        %5800 = vmatprep.subr.mxu0 0.0
        %5801 = vmatpush2.msra.mxu0 0.0
        %5802 = vmatprep.subr.mxu0 0.0
        %5803 = vmatpush2.msra.mxu0 0.0
        %5804 = vmatprep.subr.mxu0 0.0
        %5805 = vmatpush2.msra.mxu0 0.0
        %5806 = vmatprep.subr.mxu0 0.0
        %5807 = vmatpush2.msra.mxu0 0.0
        %5808 = vmatprep.subr.mxu0 0.0
        %5809 = vmatpush2.msra.mxu0 0.0
        %5810 = vmatprep.subr.mxu0 0.0
        %5811 = vmatpush2.msra.mxu0 0.0
        %5812 = vmatprep.subr.mxu0 0.0
        %5813 = vmatpush2.msra.mxu0 0.0
        %5814 = vmatprep.subr.mxu0 0.0
        %5815 = vmatpush2.msra.mxu0 0.0
        %5816 = vmatprep.subr.mxu0 0.0
        %5817 = vmatpush2.msra.mxu0 0.0
        %5818 = vmatprep.subr.mxu0 0.0
        %5819 = vmatpush2.msra.mxu0 0.0
        %5820 = vmatprep.subr.mxu0 0.0
        %5821 = vmatpush2.msra.mxu0 0.0
        %5822 = vmatprep.subr.mxu0 0.0
        %5823 = vmatpush2.msra.mxu0 0.0
        %5824 = vmatprep.mubr.f32.mxu0 0.0
        %5825 = vmatmul.mubr.f32.gmra.mxu0 %v5551
        %v5826 = vpop.f32.mrf.mxu0
        %v5827 = vadd.f32 %v5682, %v5826
        %v5828 = vpop.f32.mrf.mxu0
        %5829 = vmatprep.mubr.f32.mxu0 0.0
        %5830 = vmatmul.mubr.f32.gmra.mxu0 %v5552
        %v5831 = vpop.f32.mrf.mxu0
        %v5832 = vadd.f32 %v5687, %v5831
        %v5833 = vpop.f32.mrf.mxu0
        %5834 = vmatprep.mubr.f32.mxu0 0.0
        %5835 = vmatmul.mubr.f32.gmra.mxu0 %v5553
        %v5836 = vpop.f32.mrf.mxu0
        %v5837 = vadd.f32 %v5692, %v5836
        %v5838 = vpop.f32.mrf.mxu0
        %5839 = vmatprep.mubr.f32.mxu0 0.0
        %5840 = vmatmul.mubr.f32.gmra.mxu0 %v5554
        %v5841 = vpop.f32.mrf.mxu0
        %v5842 = vadd.f32 %v5697, %v5841
        %v5843 = vpop.f32.mrf.mxu0
        %5844 = vmatprep.mubr.f32.mxu0 0.0
        %5845 = vmatmul.mubr.f32.gmra.mxu0 %v5555
        %v5846 = vpop.f32.mrf.mxu0
        %v5847 = vadd.f32 %v5702, %v5846
        %v5848 = vpop.f32.mrf.mxu0
        %5849 = vmatprep.mubr.f32.mxu0 0.0
        %5850 = vmatmul.mubr.f32.gmra.mxu0 %v5556
        %v5851 = vpop.f32.mrf.mxu0
        %v5852 = vadd.f32 %v5707, %v5851
        %v5853 = vpop.f32.mrf.mxu0
        %5854 = vmatprep.mubr.f32.mxu0 0.0
        %5855 = vmatmul.mubr.f32.gmra.mxu0 %v5557
        %v5856 = vpop.f32.mrf.mxu0
        %v5857 = vadd.f32 %v5712, %v5856
        %v5858 = vpop.f32.mrf.mxu0
        %5859 = vmatprep.mubr.f32.mxu0 0.0
        %5860 = vmatmul.mubr.f32.gmra.mxu0 %v5558
        %v5861 = vpop.f32.mrf.mxu0
        %v5862 = vadd.f32 %v5717, %v5861
        %v5863 = vpop.f32.mrf.mxu0
        %5864 = vmatprep.mubr.f32.mxu0 0.0
        %5865 = vmatmul.mubr.f32.gmra.mxu0 %v5559
        %v5866 = vpop.f32.mrf.mxu0
        %v5867 = vadd.f32 %v5722, %v5866
        %v5868 = vpop.f32.mrf.mxu0
        %5869 = vmatprep.mubr.f32.mxu0 0.0
        %5870 = vmatmul.mubr.f32.gmra.mxu0 %v5560
        %v5871 = vpop.f32.mrf.mxu0
        %v5872 = vadd.f32 %v5727, %v5871
        %v5873 = vpop.f32.mrf.mxu0
        %5874 = vmatprep.mubr.f32.mxu0 0.0
        %5875 = vmatmul.mubr.f32.gmra.mxu0 %v5561
        %v5876 = vpop.f32.mrf.mxu0
        %v5877 = vadd.f32 %v5732, %v5876
        %v5878 = vpop.f32.mrf.mxu0
        %5879 = vmatprep.mubr.f32.mxu0 0.0
        %5880 = vmatmul.mubr.f32.gmra.mxu0 %v5562
        %v5881 = vpop.f32.mrf.mxu0
        %v5882 = vadd.f32 %v5737, %v5881
        %v5883 = vpop.f32.mrf.mxu0
        %5884 = vmatprep.mubr.f32.mxu0 0.0
        %5885 = vmatmul.mubr.f32.gmra.mxu0 %v5563
        %v5886 = vpop.f32.mrf.mxu0
        %v5887 = vadd.f32 %v5742, %v5886
        %v5888 = vpop.f32.mrf.mxu0
        %5889 = vmatprep.mubr.f32.mxu0 0.0
        %5890 = vmatmul.mubr.f32.gmra.mxu0 %v5564
        %v5891 = vpop.f32.mrf.mxu0
        %v5892 = vadd.f32 %v5747, %v5891
        %v5893 = vpop.f32.mrf.mxu0
        %5894 = vmatprep.mubr.f32.mxu0 0.0
        %5895 = vmatmul.mubr.f32.gmra.mxu0 %v5565
        %v5896 = vpop.f32.mrf.mxu0
        %v5897 = vadd.f32 %v5752, %v5896
        %v5898 = vpop.f32.mrf.mxu0
        %5899 = vmatprep.mubr.f32.mxu0 0.0
        %5900 = vmatmul.mubr.f32.gmra.mxu0 %v5566
        %v5901 = vpop.f32.mrf.mxu0
        %v5902 = vadd.f32 %v5757, %v5901
        %v5903 = vpop.f32.mrf.mxu0
        %5904 = vdwg.mxu0
        %v5905 = vadd.f32 %v5440, %v5827
        %v5906 = vadd.f32 %v5445, %v5832
        %v5907 = vadd.f32 %v5450, %v5837
        %v5908 = vadd.f32 %v5455, %v5842
        %v5909 = vadd.f32 %v5460, %v5847
        %v5910 = vadd.f32 %v5465, %v5852
        %v5911 = vadd.f32 %v5470, %v5857
        %v5912 = vadd.f32 %v5475, %v5862
        %v5913 = vadd.f32 %v5480, %v5867
        %v5914 = vadd.f32 %v5485, %v5872
        %v5915 = vadd.f32 %v5490, %v5877
        %v5916 = vadd.f32 %v5495, %v5882
        %v5917 = vadd.f32 %v5500, %v5887
        %v5918 = vadd.f32 %v5505, %v5892
        %v5919 = vadd.f32 %v5510, %v5897
        %v5920 = vadd.f32 %v5515, %v5902
        %s5921 = scalar_lea.vmem [#allocation2], 240
        %v5922 = vld [vmem:[%s5921] sm:$0xff]
        %v5923 = vld [vmem:[%s5921 + $0x8] sm:$0xff]
        %v5924 = vld [vmem:[%s5921 + $0x18] sm:$0xff]
        %v5925 = vld [vmem:[%s5921 + $0x20] sm:$0xff]
        %v5926 = vld [vmem:[%s5921 + $0x30] sm:$0xff]
        %v5927 = vld [vmem:[%s5921 + $0x38] sm:$0xff]
        %v5928 = vld [vmem:[%s5921 + $0x48] sm:$0xff]
        %v5929 = vld [vmem:[%s5921 + $0x50] sm:$0xff]
        %v5930 = vld [vmem:[%s5921 + $0x60] sm:$0xff]
        %v5931 = vld [vmem:[%s5921 + $0x68] sm:$0xff]
        %v5932 = vld [vmem:[%s5921 + $0x78] sm:$0xff]
        %v5933 = vld [vmem:[%s5921 + $0x80] sm:$0xff]
        %v5934 = vld [vmem:[%s5921 + $0x90] sm:$0xff]
        %v5935 = vld [vmem:[%s5921 + $0x98] sm:$0xff]
        %v5936 = vld [vmem:[%s5921 + $0xa8] sm:$0xff]
        %v5937 = vld [vmem:[%s5921 + $0xb0] sm:$0xff]
        %v5938 = vld [vmem:[%s5921 + $0x1] sm:$0xff]
        %v5939 = vld [vmem:[%s5921 + $0x9] sm:$0xff]
        %v5940 = vld [vmem:[%s5921 + $0x19] sm:$0xff]
        %v5941 = vld [vmem:[%s5921 + $0x21] sm:$0xff]
        %v5942 = vld [vmem:[%s5921 + $0x31] sm:$0xff]
        %v5943 = vld [vmem:[%s5921 + $0x39] sm:$0xff]
        %v5944 = vld [vmem:[%s5921 + $0x49] sm:$0xff]
        %v5945 = vld [vmem:[%s5921 + $0x51] sm:$0xff]
        %v5946 = vld [vmem:[%s5921 + $0x61] sm:$0xff]
        %v5947 = vld [vmem:[%s5921 + $0x69] sm:$0xff]
        %v5948 = vld [vmem:[%s5921 + $0x79] sm:$0xff]
        %v5949 = vld [vmem:[%s5921 + $0x81] sm:$0xff]
        %v5950 = vld [vmem:[%s5921 + $0x91] sm:$0xff]
        %v5951 = vld [vmem:[%s5921 + $0x99] sm:$0xff]
        %v5952 = vld [vmem:[%s5921 + $0xa9] sm:$0xff]
        %v5953 = vld [vmem:[%s5921 + $0xb1] sm:$0xff]
        %v5954 = vld [vmem:[%s5921 + $0x2] sm:$0xff]
        %v5955 = vld [vmem:[%s5921 + $0xa] sm:$0xff]
        %v5956 = vld [vmem:[%s5921 + $0x1a] sm:$0xff]
        %v5957 = vld [vmem:[%s5921 + $0x22] sm:$0xff]
        %v5958 = vld [vmem:[%s5921 + $0x32] sm:$0xff]
        %v5959 = vld [vmem:[%s5921 + $0x3a] sm:$0xff]
        %v5960 = vld [vmem:[%s5921 + $0x4a] sm:$0xff]
        %v5961 = vld [vmem:[%s5921 + $0x52] sm:$0xff]
        %v5962 = vld [vmem:[%s5921 + $0x62] sm:$0xff]
        %v5963 = vld [vmem:[%s5921 + $0x6a] sm:$0xff]
        %v5964 = vld [vmem:[%s5921 + $0x7a] sm:$0xff]
        %v5965 = vld [vmem:[%s5921 + $0x82] sm:$0xff]
        %v5966 = vld [vmem:[%s5921 + $0x92] sm:$0xff]
        %v5967 = vld [vmem:[%s5921 + $0x9a] sm:$0xff]
        %v5968 = vld [vmem:[%s5921 + $0xaa] sm:$0xff]
        %v5969 = vld [vmem:[%s5921 + $0xb2] sm:$0xff]
        %v5970 = vld [vmem:[%s4545] sm:$0xff]
        %v5971 = vld [vmem:[%s4545 + $0x8] sm:$0xff]
        %v5972 = vld [vmem:[%s4545 + $0x10] sm:$0xff]
        %v5973 = vld [vmem:[%s4545 + $0x18] sm:$0xff]
        %v5974 = vld [vmem:[%s4545 + $0x20] sm:$0xff]
        %v5975 = vld [vmem:[%s4545 + $0x28] sm:$0xff]
        %v5976 = vld [vmem:[%s4545 + $0x30] sm:$0xff]
        %v5977 = vld [vmem:[%s4545 + $0x38] sm:$0xff]
        %v5978 = vld [vmem:[%s4545 + $0x40] sm:$0xff]
        %v5979 = vld [vmem:[%s4545 + $0x48] sm:$0xff]
        %v5980 = vld [vmem:[%s4545 + $0x50] sm:$0xff]
        %v5981 = vld [vmem:[%s4545 + $0x58] sm:$0xff]
        %v5982 = vld [vmem:[%s4545 + $0x60] sm:$0xff]
        %v5983 = vld [vmem:[%s4545 + $0x68] sm:$0xff]
        %v5984 = vld [vmem:[%s4545 + $0x70] sm:$0xff]
        %v5985 = vld [vmem:[%s4545 + $0x78] sm:$0xff]
        %v5986 = vld [vmem:[%s4545 + $0x80] sm:$0xff]
        %v5987 = vld [vmem:[%s4545 + $0x88] sm:$0xff]
        %v5988 = vld [vmem:[%s4545 + $0x90] sm:$0xff]
        %v5989 = vld [vmem:[%s4545 + $0x98] sm:$0xff]
        %v5990 = vld [vmem:[%s4545 + $0xa0] sm:$0xff]
        %v5991 = vld [vmem:[%s4545 + $0xa8] sm:$0xff]
        %v5992 = vld [vmem:[%s4545 + $0xb0] sm:$0xff]
        %v5993 = vld [vmem:[%s4545 + $0xb8] sm:$0xff]
        %v5994 = vld [vmem:[%s4545 + $0xc0] sm:$0xff]
        %v5995 = vld [vmem:[%s4545 + $0xc8] sm:$0xff]
        %v5996 = vld [vmem:[%s4545 + $0xd0] sm:$0xff]
        %v5997 = vld [vmem:[%s4545 + $0xd8] sm:$0xff]
        %v5998 = vld [vmem:[%s4545 + $0xe0] sm:$0xff]
        %v5999 = vld [vmem:[%s4545 + $0xe8] sm:$0xff]
        %v6000 = vld [vmem:[%s4545 + $0xf0] sm:$0xff]
        %v6001 = vld [vmem:[%s4545 + $0xf8] sm:$0xff]
        %v6002 = vld [vmem:[%s4545 + $0x100] sm:$0xff]
        %v6003 = vld [vmem:[%s4545 + $0x108] sm:$0xff]
        %v6004 = vld [vmem:[%s4545 + $0x110] sm:$0xff]
        %v6005 = vld [vmem:[%s4545 + $0x118] sm:$0xff]
        %v6006 = vld [vmem:[%s4545 + $0x120] sm:$0xff]
        %v6007 = vld [vmem:[%s4545 + $0x128] sm:$0xff]
        %v6008 = vld [vmem:[%s4545 + $0x130] sm:$0xff]
        %v6009 = vld [vmem:[%s4545 + $0x138] sm:$0xff]
        %v6010 = vld [vmem:[%s4545 + $0x140] sm:$0xff]
        %v6011 = vld [vmem:[%s4545 + $0x148] sm:$0xff]
        %v6012 = vld [vmem:[%s4545 + $0x150] sm:$0xff]
        %v6013 = vld [vmem:[%s4545 + $0x158] sm:$0xff]
        %v6014 = vld [vmem:[%s4545 + $0x160] sm:$0xff]
        %v6015 = vld [vmem:[%s4545 + $0x168] sm:$0xff]
        %v6016 = vld [vmem:[%s4545 + $0x170] sm:$0xff]
        %v6017 = vld [vmem:[%s4545 + $0x178] sm:$0xff]
        %6018 = vmatprep.subr.mxu0 0.0
        %6019 = vmatpush1.msra.mxu0 %v5985
        %6020 = vmatprep.subr.mxu0 0.0
        %6021 = vmatpush1.msra.mxu0 %v5984
        %6022 = vmatprep.subr.mxu0 0.0
        %6023 = vmatpush1.msra.mxu0 %v5983
        %6024 = vmatprep.subr.mxu0 0.0
        %6025 = vmatpush1.msra.mxu0 %v5982
        %6026 = vmatprep.subr.mxu0 0.0
        %6027 = vmatpush1.msra.mxu0 %v5981
        %6028 = vmatprep.subr.mxu0 0.0
        %6029 = vmatpush1.msra.mxu0 %v5980
        %6030 = vmatprep.subr.mxu0 0.0
        %6031 = vmatpush1.msra.mxu0 %v5979
        %6032 = vmatprep.subr.mxu0 0.0
        %6033 = vmatpush1.msra.mxu0 %v5978
        %6034 = vmatprep.subr.mxu0 0.0
        %6035 = vmatpush1.msra.mxu0 %v5977
        %6036 = vmatprep.subr.mxu0 0.0
        %6037 = vmatpush1.msra.mxu0 %v5976
        %6038 = vmatprep.subr.mxu0 0.0
        %6039 = vmatpush1.msra.mxu0 %v5975
        %6040 = vmatprep.subr.mxu0 0.0
        %6041 = vmatpush1.msra.mxu0 %v5974
        %6042 = vmatprep.subr.mxu0 0.0
        %6043 = vmatpush1.msra.mxu0 %v5973
        %6044 = vmatprep.subr.mxu0 0.0
        %6045 = vmatpush1.msra.mxu0 %v5972
        %6046 = vmatprep.subr.mxu0 0.0
        %6047 = vmatpush1.msra.mxu0 %v5971
        %6048 = vmatprep.subr.mxu0 0.0
        %6049 = vmatpush1.msra.mxu0 %v5970
        %6050 = vmatprep.subr.mxu0 0.0
        %6051 = vmatpush2.msra.mxu0 %v6001
        %6052 = vmatprep.subr.mxu0 0.0
        %6053 = vmatpush2.msra.mxu0 %v6000
        %6054 = vmatprep.subr.mxu0 0.0
        %6055 = vmatpush2.msra.mxu0 %v5999
        %6056 = vmatprep.subr.mxu0 0.0
        %6057 = vmatpush2.msra.mxu0 %v5998
        %6058 = vmatprep.subr.mxu0 0.0
        %6059 = vmatpush2.msra.mxu0 %v5997
        %6060 = vmatprep.subr.mxu0 0.0
        %6061 = vmatpush2.msra.mxu0 %v5996
        %6062 = vmatprep.subr.mxu0 0.0
        %6063 = vmatpush2.msra.mxu0 %v5995
        %6064 = vmatprep.subr.mxu0 0.0
        %6065 = vmatpush2.msra.mxu0 %v5994
        %6066 = vmatprep.subr.mxu0 0.0
        %6067 = vmatpush2.msra.mxu0 %v5993
        %6068 = vmatprep.subr.mxu0 0.0
        %6069 = vmatpush2.msra.mxu0 %v5992
        %6070 = vmatprep.subr.mxu0 0.0
        %6071 = vmatpush2.msra.mxu0 %v5991
        %6072 = vmatprep.subr.mxu0 0.0
        %6073 = vmatpush2.msra.mxu0 %v5990
        %6074 = vmatprep.subr.mxu0 0.0
        %6075 = vmatpush2.msra.mxu0 %v5989
        %6076 = vmatprep.subr.mxu0 0.0
        %6077 = vmatpush2.msra.mxu0 %v5988
        %6078 = vmatprep.subr.mxu0 0.0
        %6079 = vmatpush2.msra.mxu0 %v5987
        %6080 = vmatprep.subr.mxu0 0.0
        %6081 = vmatpush2.msra.mxu0 %v5986
        %6082 = vmatprep.mubr.f32.mxu0 %v5938
        %6083 = vmatmul.mubr.f32.gmra.mxu0 %v5922
        %v6084 = vpop.f32.mrf.mxu0
        %v6085 = vadd.f32 0.0, %v6084
        %v6086 = vpop.f32.mrf.mxu0
        %6087 = vmatprep.mubr.f32.mxu0 %v5939
        %6088 = vmatmul.mubr.f32.gmra.mxu0 %v5923
        %v6089 = vpop.f32.mrf.mxu0
        %v6090 = vadd.f32 0.0, %v6089
        %v6091 = vpop.f32.mrf.mxu0
        %6092 = vmatprep.mubr.f32.mxu0 %v5940
        %6093 = vmatmul.mubr.f32.gmra.mxu0 %v5924
        %v6094 = vpop.f32.mrf.mxu0
        %v6095 = vadd.f32 0.0, %v6094
        %v6096 = vpop.f32.mrf.mxu0
        %6097 = vmatprep.mubr.f32.mxu0 %v5941
        %6098 = vmatmul.mubr.f32.gmra.mxu0 %v5925
        %v6099 = vpop.f32.mrf.mxu0
        %v6100 = vadd.f32 0.0, %v6099
        %v6101 = vpop.f32.mrf.mxu0
        %6102 = vmatprep.mubr.f32.mxu0 %v5942
        %6103 = vmatmul.mubr.f32.gmra.mxu0 %v5926
        %v6104 = vpop.f32.mrf.mxu0
        %v6105 = vadd.f32 0.0, %v6104
        %v6106 = vpop.f32.mrf.mxu0
        %6107 = vmatprep.mubr.f32.mxu0 %v5943
        %6108 = vmatmul.mubr.f32.gmra.mxu0 %v5927
        %v6109 = vpop.f32.mrf.mxu0
        %v6110 = vadd.f32 0.0, %v6109
        %v6111 = vpop.f32.mrf.mxu0
        %6112 = vmatprep.mubr.f32.mxu0 %v5944
        %6113 = vmatmul.mubr.f32.gmra.mxu0 %v5928
        %v6114 = vpop.f32.mrf.mxu0
        %v6115 = vadd.f32 0.0, %v6114
        %v6116 = vpop.f32.mrf.mxu0
        %6117 = vmatprep.mubr.f32.mxu0 %v5945
        %6118 = vmatmul.mubr.f32.gmra.mxu0 %v5929
        %v6119 = vpop.f32.mrf.mxu0
        %v6120 = vadd.f32 0.0, %v6119
        %v6121 = vpop.f32.mrf.mxu0
        %6122 = vmatprep.mubr.f32.mxu0 %v5946
        %6123 = vmatmul.mubr.f32.gmra.mxu0 %v5930
        %v6124 = vpop.f32.mrf.mxu0
        %v6125 = vadd.f32 0.0, %v6124
        %v6126 = vpop.f32.mrf.mxu0
        %6127 = vmatprep.mubr.f32.mxu0 %v5947
        %6128 = vmatmul.mubr.f32.gmra.mxu0 %v5931
        %v6129 = vpop.f32.mrf.mxu0
        %v6130 = vadd.f32 0.0, %v6129
        %v6131 = vpop.f32.mrf.mxu0
        %6132 = vmatprep.mubr.f32.mxu0 %v5948
        %6133 = vmatmul.mubr.f32.gmra.mxu0 %v5932
        %v6134 = vpop.f32.mrf.mxu0
        %v6135 = vadd.f32 0.0, %v6134
        %v6136 = vpop.f32.mrf.mxu0
        %6137 = vmatprep.mubr.f32.mxu0 %v5949
        %6138 = vmatmul.mubr.f32.gmra.mxu0 %v5933
        %v6139 = vpop.f32.mrf.mxu0
        %v6140 = vadd.f32 0.0, %v6139
        %v6141 = vpop.f32.mrf.mxu0
        %6142 = vmatprep.mubr.f32.mxu0 %v5950
        %6143 = vmatmul.mubr.f32.gmra.mxu0 %v5934
        %v6144 = vpop.f32.mrf.mxu0
        %v6145 = vadd.f32 0.0, %v6144
        %v6146 = vpop.f32.mrf.mxu0
        %6147 = vmatprep.mubr.f32.mxu0 %v5951
        %6148 = vmatmul.mubr.f32.gmra.mxu0 %v5935
        %v6149 = vpop.f32.mrf.mxu0
        %v6150 = vadd.f32 0.0, %v6149
        %v6151 = vpop.f32.mrf.mxu0
        %6152 = vmatprep.mubr.f32.mxu0 %v5952
        %6153 = vmatmul.mubr.f32.gmra.mxu0 %v5936
        %v6154 = vpop.f32.mrf.mxu0
        %v6155 = vadd.f32 0.0, %v6154
        %v6156 = vpop.f32.mrf.mxu0
        %6157 = vmatprep.mubr.f32.mxu0 %v5953
        %6158 = vmatmul.mubr.f32.gmra.mxu0 %v5937
        %v6159 = vpop.f32.mrf.mxu0
        %v6160 = vadd.f32 0.0, %v6159
        %v6161 = vpop.f32.mrf.mxu0
        %6162 = vdwg.mxu0
        %6163 = vmatprep.subr.mxu0 0.0
        %6164 = vmatpush1.msra.mxu0 %v6017
        %6165 = vmatprep.subr.mxu0 0.0
        %6166 = vmatpush1.msra.mxu0 %v6016
        %6167 = vmatprep.subr.mxu0 0.0
        %6168 = vmatpush1.msra.mxu0 %v6015
        %6169 = vmatprep.subr.mxu0 0.0
        %6170 = vmatpush1.msra.mxu0 %v6014
        %6171 = vmatprep.subr.mxu0 0.0
        %6172 = vmatpush1.msra.mxu0 %v6013
        %6173 = vmatprep.subr.mxu0 0.0
        %6174 = vmatpush1.msra.mxu0 %v6012
        %6175 = vmatprep.subr.mxu0 0.0
        %6176 = vmatpush1.msra.mxu0 %v6011
        %6177 = vmatprep.subr.mxu0 0.0
        %6178 = vmatpush1.msra.mxu0 %v6010
        %6179 = vmatprep.subr.mxu0 0.0
        %6180 = vmatpush1.msra.mxu0 %v6009
        %6181 = vmatprep.subr.mxu0 0.0
        %6182 = vmatpush1.msra.mxu0 %v6008
        %6183 = vmatprep.subr.mxu0 0.0
        %6184 = vmatpush1.msra.mxu0 %v6007
        %6185 = vmatprep.subr.mxu0 0.0
        %6186 = vmatpush1.msra.mxu0 %v6006
        %6187 = vmatprep.subr.mxu0 0.0
        %6188 = vmatpush1.msra.mxu0 %v6005
        %6189 = vmatprep.subr.mxu0 0.0
        %6190 = vmatpush1.msra.mxu0 %v6004
        %6191 = vmatprep.subr.mxu0 0.0
        %6192 = vmatpush1.msra.mxu0 %v6003
        %6193 = vmatprep.subr.mxu0 0.0
        %6194 = vmatpush1.msra.mxu0 %v6002
        %6195 = vmatprep.subr.mxu0 0.0
        %6196 = vmatpush2.msra.mxu0 0.0
        %6197 = vmatprep.subr.mxu0 0.0
        %6198 = vmatpush2.msra.mxu0 0.0
        %6199 = vmatprep.subr.mxu0 0.0
        %6200 = vmatpush2.msra.mxu0 0.0
        %6201 = vmatprep.subr.mxu0 0.0
        %6202 = vmatpush2.msra.mxu0 0.0
        %6203 = vmatprep.subr.mxu0 0.0
        %6204 = vmatpush2.msra.mxu0 0.0
        %6205 = vmatprep.subr.mxu0 0.0
        %6206 = vmatpush2.msra.mxu0 0.0
        %6207 = vmatprep.subr.mxu0 0.0
        %6208 = vmatpush2.msra.mxu0 0.0
        %6209 = vmatprep.subr.mxu0 0.0
        %6210 = vmatpush2.msra.mxu0 0.0
        %6211 = vmatprep.subr.mxu0 0.0
        %6212 = vmatpush2.msra.mxu0 0.0
        %6213 = vmatprep.subr.mxu0 0.0
        %6214 = vmatpush2.msra.mxu0 0.0
        %6215 = vmatprep.subr.mxu0 0.0
        %6216 = vmatpush2.msra.mxu0 0.0
        %6217 = vmatprep.subr.mxu0 0.0
        %6218 = vmatpush2.msra.mxu0 0.0
        %6219 = vmatprep.subr.mxu0 0.0
        %6220 = vmatpush2.msra.mxu0 0.0
        %6221 = vmatprep.subr.mxu0 0.0
        %6222 = vmatpush2.msra.mxu0 0.0
        %6223 = vmatprep.subr.mxu0 0.0
        %6224 = vmatpush2.msra.mxu0 0.0
        %6225 = vmatprep.subr.mxu0 0.0
        %6226 = vmatpush2.msra.mxu0 0.0
        %6227 = vmatprep.mubr.f32.mxu0 0.0
        %6228 = vmatmul.mubr.f32.gmra.mxu0 %v5954
        %v6229 = vpop.f32.mrf.mxu0
        %v6230 = vadd.f32 %v6085, %v6229
        %v6231 = vpop.f32.mrf.mxu0
        %6232 = vmatprep.mubr.f32.mxu0 0.0
        %6233 = vmatmul.mubr.f32.gmra.mxu0 %v5955
        %v6234 = vpop.f32.mrf.mxu0
        %v6235 = vadd.f32 %v6090, %v6234
        %v6236 = vpop.f32.mrf.mxu0
        %6237 = vmatprep.mubr.f32.mxu0 0.0
        %6238 = vmatmul.mubr.f32.gmra.mxu0 %v5956
        %v6239 = vpop.f32.mrf.mxu0
        %v6240 = vadd.f32 %v6095, %v6239
        %v6241 = vpop.f32.mrf.mxu0
        %6242 = vmatprep.mubr.f32.mxu0 0.0
        %6243 = vmatmul.mubr.f32.gmra.mxu0 %v5957
        %v6244 = vpop.f32.mrf.mxu0
        %v6245 = vadd.f32 %v6100, %v6244
        %v6246 = vpop.f32.mrf.mxu0
        %6247 = vmatprep.mubr.f32.mxu0 0.0
        %6248 = vmatmul.mubr.f32.gmra.mxu0 %v5958
        %v6249 = vpop.f32.mrf.mxu0
        %v6250 = vadd.f32 %v6105, %v6249
        %v6251 = vpop.f32.mrf.mxu0
        %6252 = vmatprep.mubr.f32.mxu0 0.0
        %6253 = vmatmul.mubr.f32.gmra.mxu0 %v5959
        %v6254 = vpop.f32.mrf.mxu0
        %v6255 = vadd.f32 %v6110, %v6254
        %v6256 = vpop.f32.mrf.mxu0
        %6257 = vmatprep.mubr.f32.mxu0 0.0
        %6258 = vmatmul.mubr.f32.gmra.mxu0 %v5960
        %v6259 = vpop.f32.mrf.mxu0
        %v6260 = vadd.f32 %v6115, %v6259
        %v6261 = vpop.f32.mrf.mxu0
        %6262 = vmatprep.mubr.f32.mxu0 0.0
        %6263 = vmatmul.mubr.f32.gmra.mxu0 %v5961
        %v6264 = vpop.f32.mrf.mxu0
        %v6265 = vadd.f32 %v6120, %v6264
        %v6266 = vpop.f32.mrf.mxu0
        %6267 = vmatprep.mubr.f32.mxu0 0.0
        %6268 = vmatmul.mubr.f32.gmra.mxu0 %v5962
        %v6269 = vpop.f32.mrf.mxu0
        %v6270 = vadd.f32 %v6125, %v6269
        %v6271 = vpop.f32.mrf.mxu0
        %6272 = vmatprep.mubr.f32.mxu0 0.0
        %6273 = vmatmul.mubr.f32.gmra.mxu0 %v5963
        %v6274 = vpop.f32.mrf.mxu0
        %v6275 = vadd.f32 %v6130, %v6274
        %v6276 = vpop.f32.mrf.mxu0
        %6277 = vmatprep.mubr.f32.mxu0 0.0
        %6278 = vmatmul.mubr.f32.gmra.mxu0 %v5964
        %v6279 = vpop.f32.mrf.mxu0
        %v6280 = vadd.f32 %v6135, %v6279
        %v6281 = vpop.f32.mrf.mxu0
        %6282 = vmatprep.mubr.f32.mxu0 0.0
        %6283 = vmatmul.mubr.f32.gmra.mxu0 %v5965
        %v6284 = vpop.f32.mrf.mxu0
        %v6285 = vadd.f32 %v6140, %v6284
        %v6286 = vpop.f32.mrf.mxu0
        %6287 = vmatprep.mubr.f32.mxu0 0.0
        %6288 = vmatmul.mubr.f32.gmra.mxu0 %v5966
        %v6289 = vpop.f32.mrf.mxu0
        %v6290 = vadd.f32 %v6145, %v6289
        %v6291 = vpop.f32.mrf.mxu0
        %6292 = vmatprep.mubr.f32.mxu0 0.0
        %6293 = vmatmul.mubr.f32.gmra.mxu0 %v5967
        %v6294 = vpop.f32.mrf.mxu0
        %v6295 = vadd.f32 %v6150, %v6294
        %v6296 = vpop.f32.mrf.mxu0
        %6297 = vmatprep.mubr.f32.mxu0 0.0
        %6298 = vmatmul.mubr.f32.gmra.mxu0 %v5968
        %v6299 = vpop.f32.mrf.mxu0
        %v6300 = vadd.f32 %v6155, %v6299
        %v6301 = vpop.f32.mrf.mxu0
        %6302 = vmatprep.mubr.f32.mxu0 0.0
        %6303 = vmatmul.mubr.f32.gmra.mxu0 %v5969
        %v6304 = vpop.f32.mrf.mxu0
        %v6305 = vadd.f32 %v6160, %v6304
        %v6306 = vpop.f32.mrf.mxu0
        %6307 = vdwg.mxu0
        %v6308 = vadd.f32 %v5905, %v6230
        %v6309 = vadd.f32 %v5906, %v6235
        %v6310 = vadd.f32 %v5907, %v6240
        %v6311 = vadd.f32 %v5908, %v6245
        %v6312 = vadd.f32 %v5909, %v6250
        %v6313 = vadd.f32 %v5910, %v6255
        %v6314 = vadd.f32 %v5911, %v6260
        %v6315 = vadd.f32 %v5912, %v6265
        %v6316 = vadd.f32 %v5913, %v6270
        %v6317 = vadd.f32 %v5914, %v6275
        %v6318 = vadd.f32 %v5915, %v6280
        %v6319 = vadd.f32 %v5916, %v6285
        %v6320 = vadd.f32 %v5917, %v6290
        %v6321 = vadd.f32 %v5918, %v6295
        %v6322 = vadd.f32 %v5919, %v6300
        %v6323 = vadd.f32 %v5920, %v6305
        %v6324 = vld [vmem:[%s5] sm:$0x1]
        %v6326 = vlaneseq
        %v6327 = vshrl.u32 %v6326, 7
        %v6328 = vsub.s32 0, %v6327
        %v6329 = vrot.slane %v6324, %v6328
        %v6331 = vadd.f32 %v6308, %v6329
        %v6332 = vadd.f32 %v6309, %v6329
        %v6333 = vadd.f32 %v6310, %v6329
        %v6334 = vadd.f32 %v6311, %v6329
        %v6335 = vadd.f32 %v6312, %v6329
        %v6336 = vadd.f32 %v6313, %v6329
        %v6337 = vadd.f32 %v6314, %v6329
        %v6338 = vadd.f32 %v6315, %v6329
        %v6339 = vadd.f32 %v6316, %v6329
        %v6340 = vadd.f32 %v6317, %v6329
        %v6341 = vadd.f32 %v6318, %v6329
        %v6342 = vadd.f32 %v6319, %v6329
        %v6343 = vadd.f32 %v6320, %v6329
        %v6344 = vadd.f32 %v6321, %v6329
        %v6345 = vadd.f32 %v6322, %v6329
        %v6346 = vadd.f32 %v6323, %v6329
        %v6347 = vmax.f32 %v6331, 0.0
        %v6348 = vmax.f32 %v6332, 0.0
        %v6349 = vmax.f32 %v6333, 0.0
        %v6350 = vmax.f32 %v6334, 0.0
        %v6351 = vmax.f32 %v6335, 0.0
        %v6352 = vmax.f32 %v6336, 0.0
        %v6353 = vmax.f32 %v6337, 0.0
        %v6354 = vmax.f32 %v6338, 0.0
        %v6355 = vmax.f32 %v6339, 0.0
        %v6356 = vmax.f32 %v6340, 0.0
        %v6357 = vmax.f32 %v6341, 0.0
        %v6358 = vmax.f32 %v6342, 0.0
        %v6359 = vmax.f32 %v6343, 0.0
        %v6360 = vmax.f32 %v6344, 0.0
        %v6361 = vmax.f32 %v6345, 0.0
        %v6362 = vmax.f32 %v6346, 0.0
        %s6363 = scalar_lea.vmem %s273, 128 [#allocation6]
        %6364 = vst [vmem:[%s6363] sm:$0xff] %v6347
        %6365 = vst [vmem:[%s6363 + $0x8] sm:$0xff] %v6348
        %6366 = vst [vmem:[%s6363 + $0x10] sm:$0xff] %v6349
        %6367 = vst [vmem:[%s6363 + $0x18] sm:$0xff] %v6350
        %6368 = vst [vmem:[%s6363 + $0x20] sm:$0xff] %v6351
        %6369 = vst [vmem:[%s6363 + $0x28] sm:$0xff] %v6352
        %6370 = vst [vmem:[%s6363 + $0x30] sm:$0xff] %v6353
        %6371 = vst [vmem:[%s6363 + $0x38] sm:$0xff] %v6354
        %6372 = vst [vmem:[%s6363 + $0x40] sm:$0xff] %v6355
        %6373 = vst [vmem:[%s6363 + $0x48] sm:$0xff] %v6356
        %6374 = vst [vmem:[%s6363 + $0x50] sm:$0xff] %v6357
        %6375 = vst [vmem:[%s6363 + $0x58] sm:$0xff] %v6358
        %6376 = vst [vmem:[%s6363 + $0x60] sm:$0xff] %v6359
        %6377 = vst [vmem:[%s6363 + $0x68] sm:$0xff] %v6360
        %6378 = vst [vmem:[%s6363 + $0x70] sm:$0xff] %v6361
        %6379 = vst [vmem:[%s6363 + $0x78] sm:$0xff] %v6362
        %s6380 = sand.u32 %s174, 1
        %s6381 = scalar_lea.sflag [#allocation5], %s6380
        %s6382 = sand.u32 %s174, 1
        %s6383 = smul.addr %s6382, 256
        %s6384 = scalar_lea.vmem [#allocation6], %s6383
        // Predicated region
        $region53: #{tpu_custom_call.1} parent=43 // pred_check
          %p6385 = pneg %p184
        $region54: #{tpu_custom_call.1} parent=43 // pred_check_branch
          %6387 = sbr.rel (%p6385) target = $region56
        $region55: #{tpu_custom_call.1} parent=43 // pred_region
          %s6388 = smul.u32 16, %s26
          %s6390 = ssub.s32 4096, 4096
          %6391 = vsyncadd %s6381, %s6390
          %s6392 = smul.addr %s6388, 2
          %s6393 = smul.addr %s25, 32
          %s6394 = sadd.s32 %s6392, %s6393
          %s6395 = smul.addr %s6394, 128
          %s6396 = scalar_lea.hbm %s6, %s6395
          %s6397 = sshll.u32 %s6384, 4
          %s6398 = int_to_ptr.vmem [resolvable:$true] %s6397
          %6403 = dma.vmem_to_hbm [thread:$0]  %s6398, 4096, %s6396, %s6381, 128, 128, 8
        $region56: #{tpu_custom_call.1} parent=43 // pred_fallthru
          _
      $region44: #{tpu_custom_call.1} parent=5 // pred_fallthru
        _
      %p6404 = scmp.le.s32.totalorder 2, %s16
      // Predicated region
      $region57: #{tpu_custom_call.1} parent=5 // pred_check
        %p6405 = pneg %p6404
      $region58: #{tpu_custom_call.1} parent=5 // pred_check_branch
        %6407 = sbr.rel (%p6405) target = $region60
      $region59: #{tpu_custom_call.1} parent=5 // pred_region
        %s6408 = ssub.s32 %s16, 2
        // Predicated region
        $region61: #{tpu_custom_call.1} parent=59 // pred_check
          %p6409 = pneg %p190
        $region62: #{tpu_custom_call.1} parent=59 // pred_check_branch
          %6411 = sbr.rel (%p6409) target = $region64
        $region63: #{tpu_custom_call.1} parent=59 // pred_region
          %s6412 = sand.u32 %s175, 1
          %s6413 = scalar_lea.sflag [#allocation5], %s6412
          %s6414 = sand.u32 %s175, 1
          %s6415 = smul.addr %s6414, 256
          %s6416 = scalar_lea.vmem [#allocation6], %s6415
          %6417 = dma.done %s6413, 4096
        $region64: #{tpu_custom_call.1} parent=59 // pred_fallthru
          _
      $region60: #{tpu_custom_call.1} parent=5 // pred_fallthru
        _
    $region6: #{tpu_custom_call.1} parent=1 // loop_footer
      %s20 = sadd.s32 1, %s16
    $region7: #{tpu_custom_call.1} parent=1 // loop_footer_branch
      %15 = sbr.rel target = $region3
    $region8: #{tpu_custom_call.1} parent=1 // loop_exit
      _
    %6418 = vsyncpa [#allocation4], 1
    %s6419 = scalar_lea.sflag [#allocation4], 1
    %6420 = vsyncpa %s6419, 1
    %6421 = vsyncpa [#allocation5], 1
    %s6422 = scalar_lea.sflag [#allocation5], 1
    %6423 = vsyncpa %s6422, 1

</llo_original>
